<compile_context>
chip_gen: v6e
topology: v6e:2x2x1
jax: 0.10.0
libtpu: 0.0.40
codegen_flags: <defaults>
</compile_context>

<pallas_src>
import jax
import jax.numpy as jnp
from jax import lax
from jax.experimental import pallas as pl
from jax.experimental.pallas import tpu as pltpu

NUM_CLASSES = 10
BN_EPS = 1e-5
H_IN = 32          # CIFAR spatial size (fc(400) requires 32x32x3 inputs)
C_IN = 3
LANE = 128
B_TILE = 8         # images per grid step (multiple of 8 => unmasked stores)


# ---------------------------------------------------------------------------
# Fused forward-pass kernel: one grid step == B_TILE images.
# Activation layout inside the kernel: 2-D, rows = (image, h), cols = c*W + w
# (zero padded to 128 lanes).
# ---------------------------------------------------------------------------
def _row_pair_max(v, n_out):
    # v: (2*n_out, 128) -> (n_out, 128): max over adjacent row pairs, kept as a
    # value (no scratch stores / strided memory ops).
    return jnp.concatenate(
        [jnp.maximum(v[2 * h:2 * h + 1, :], v[2 * h + 1:2 * h + 2, :])
         for h in range(n_out)], axis=0)


def _lenet5_kernel(x_ref, tb1_ref, sc1_ref, sh1_ref, tb2_ref, sc2_ref, sh2_ref,
                   fcm_ref, fcb_ref, fc1w_ref, fc1b_ref, fc2w_ref, fc2b_ref,
                   o_ref):
    f32 = jnp.float32
    bf16 = jnp.bfloat16

    tb1 = tb1_ref[...]                      # (640, 256) bf16
    tb2 = tb2_ref[...]                      # (640, 256) bf16
    sc1 = sc1_ref[...]                      # (1, 256) f32
    sh1 = sh1_ref[...]
    sc2 = sc2_ref[...]
    sh2 = sh2_ref[...]

    flat_rows = []
    for b in range(B_TILE):
        base = b * H_IN

        # ---- layer 1: conv(3->6, k5) as ONE K=640 MXU matmul + BN + ReLU ----
        # LHS lane-block kh holds input rows shifted by kh; tb1 rows kh*128+...
        # fold the (c, kw) footprint and the even/odd output-column split.
        lhs1 = jnp.concatenate(
            [x_ref[pl.ds(base + kh, 28), :] for kh in range(5)], axis=-1)  # (28, 640) bf16
        acc1 = jnp.dot(lhs1, tb1, preferred_element_type=f32)              # (28, 256)
        y1 = jnp.maximum(acc1 * sc1 + sh1, 0.0)

        # ---- maxpool1 2x2: w dir = max of the two column halves,
        #      h dir = row-pair max (stays in vregs) ----
        w1 = jnp.maximum(y1[:, 0:LANE], y1[:, LANE:2 * LANE])              # (28, 128)
        p1 = _row_pair_max(w1, 14)                                         # (14, 128)

        # ---- layer 2: conv(6->16, k5) as ONE K=640 matmul + BN + ReLU ----
        lhs2 = jnp.concatenate(
            [p1[kh:kh + 10, :] for kh in range(5)], axis=-1)               # (10, 640)
        acc2 = jnp.dot(lhs2.astype(bf16), tb2, preferred_element_type=f32)  # (10, 256)
        y2 = jnp.maximum(acc2 * sc2 + sh2, 0.0)
        w2 = jnp.maximum(y2[:, 0:LANE], y2[:, LANE:2 * LANE])              # (10, 128)
        p2 = _row_pair_max(w2, 5)                                          # (5, 128)

        # ---- flatten: lane-block h3 holds pooled row h3 (cols oc*5 + w3) ----
        flat_rows.append(jnp.concatenate(
            [p2[h:h + 1, :] for h in range(5)], axis=-1))                  # (1, 640)

    flat = jnp.concatenate(flat_rows, axis=0).astype(bf16)                 # (B_TILE, 640)

    # ---- batched FC stage: fc(400->120)+ReLU, fc1(120->84)+ReLU, fc2(84->10) ----
    hid = jnp.maximum(
        jnp.dot(flat, fcm_ref[...], preferred_element_type=f32) + fcb_ref[...], 0.0)
    hid = jnp.maximum(
        jnp.dot(hid.astype(bf16), fc1w_ref[...], preferred_element_type=f32)
        + fc1b_ref[...], 0.0)
    logits = (jnp.dot(hid.astype(bf16), fc2w_ref[...], preferred_element_type=f32)
              + fc2b_ref[...])                                             # (B_TILE, 128)

    o_ref[...] = logits                                                    # unmasked store


# ---------------------------------------------------------------------------
# pallas_call wrapper
# ---------------------------------------------------------------------------
def _const_spec(shape):
    return pl.BlockSpec(shape, lambda i: (0,) * len(shape))


def lenet5_forward(prep, x):
    n = x.shape[0]
    n_pad = ((n + B_TILE - 1) // B_TILE) * B_TILE
    if n_pad != n:
        x = jnp.pad(x, ((0, n_pad - n), (0, 0), (0, 0), (0, 0)))
    # layout plumbing (tiny, one-time XLA ops): NCHW -> rows=(n,h), cols=(c,w),
    # pad to 128 lanes, bf16 for the MXU feed.
    x2 = x.transpose(0, 2, 1, 3).reshape(n_pad * H_IN, C_IN * H_IN)
    x2 = jnp.pad(x2, ((0, 0), (0, LANE - C_IN * H_IN))).astype(jnp.bfloat16)

    out = pl.pallas_call(
        _lenet5_kernel,
        grid=(n_pad // B_TILE,),
        in_specs=[
            pl.BlockSpec((B_TILE * H_IN, LANE), lambda i: (i, 0)),  # per-tile input
            _const_spec((5 * LANE, 256)),                           # tb1 (K-stacked)
            _const_spec((1, 256)),                                  # sc1
            _const_spec((1, 256)),                                  # sh1
            _const_spec((5 * LANE, 256)),                           # tb2 (K-stacked)
            _const_spec((1, 256)),                                  # sc2
            _const_spec((1, 256)),                                  # sh2
            _const_spec((5 * LANE, 128)),                           # fcm (fc 400->120)
            _const_spec((1, 128)),                                  # fcb
            _const_spec((128, 128)),                                # fc1 weights
            _const_spec((1, 128)),                                  # fc1 bias
            _const_spec((128, 128)),                                # fc2 weights
            _const_spec((1, 128)),                                  # fc2 bias
        ],
        out_specs=pl.BlockSpec((B_TILE, LANE), lambda i: (i, 0)),
        out_shape=jax.ShapeDtypeStruct((n_pad, LANE), jnp.float32),
        compiler_params=pltpu.CompilerParams(
            dimension_semantics=("parallel",)),
    )(x2, prep["tb1"], prep["sc1"], prep["sh1"], prep["tb2"], prep["sc2"],
      prep["sh2"], prep["fcm"], prep["fcb"], prep["fc1w"], prep["fc1b"],
      prep["fc2w"], prep["fc2b"])
    return out[:n, :NUM_CLASSES]


# ---------------------------------------------------------------------------
# One-time weight preprocessing (folds im2col, BN, maxpool column split, the
# flatten and the K-merge into zero-padded, 128/640-aligned bf16 matrices).
# ---------------------------------------------------------------------------
def fold_bn(gamma, beta, mean, var, conv_bias):
    scale = gamma / jnp.sqrt(var + BN_EPS)
    shift = beta + scale * (conv_bias - mean)
    return scale, shift


def _conv_toeplitz(w, in_block, out_w):
    # w: (OC, C, KH, KW) PyTorch conv weight.  Returns (KH, 128, 256) so that
    # sum_kh A[h=oh+kh, :] @ B[kh] gives, at column oc*(out_w//2)+u, the conv
    # output at ow=2u (cols 0..127) and at 128+oc*(out_w//2)+u the output at
    # ow=2u+1.  A's columns are c*in_block + w_in (zero padded to 128).
    oc_n, c_n, kh_n, kw_n = w.shape
    half_w = out_w // 2
    oc = jnp.arange(oc_n).reshape(oc_n, 1, 1, 1)
    c = jnp.arange(c_n).reshape(1, c_n, 1, 1)
    kw = jnp.arange(kw_n).reshape(1, 1, kw_n, 1)
    u = jnp.arange(half_w).reshape(1, 1, 1, half_w)
    shape = (oc_n, c_n, kw_n, half_w)
    col_even = jnp.broadcast_to(oc * half_w + u, shape)
    col_odd = jnp.broadcast_to(LANE + oc * half_w + u, shape)
    row_even = jnp.broadcast_to(c * in_block + 2 * u + kw, shape)
    row_odd = jnp.broadcast_to(c * in_block + 2 * u + 1 + kw, shape)
    mats = []
    for kh in range(kh_n):
        vals = jnp.broadcast_to(w[:, :, kh, :][:, :, :, None], shape)
        b = jnp.zeros((128, 256), jnp.float32)
        b = b.at[row_even, col_even].add(vals)
        b = b.at[row_odd, col_odd].add(vals)
        mats.append(b)
    return jnp.stack(mats, axis=0)


def _bn_cols(per_channel, out_w):
    half_w = out_w // 2
    v = jnp.repeat(per_channel, half_w)
    half = jnp.zeros((LANE,), jnp.float32).at[:v.shape[0]].set(v)
    return jnp.concatenate([half, half])[None, :]                    # (1, 256)


def _fc_toeplitz(fc_w, c_n=16, h_n=5, w_n=5):
    # fc_w: (120, 400), PyTorch flatten order (c, h, w).  Input rows are the
    # pooled layer-2 activations with columns oc*5 + w3; lane block h of the
    # flattened (640-wide) LHS holds pooled row h.
    out_n = fc_w.shape[0]
    w4 = fc_w.reshape(out_n, c_n, h_n, w_n)
    o = jnp.arange(out_n).reshape(out_n, 1, 1)
    c = jnp.arange(c_n).reshape(1, c_n, 1)
    wi = jnp.arange(w_n).reshape(1, 1, w_n)
    shape = (out_n, c_n, w_n)
    row = jnp.broadcast_to(c * w_n + wi, shape)
    col = jnp.broadcast_to(o, shape)
    mats = []
    for h in range(h_n):
        m = jnp.zeros((128, 128), jnp.float32)
        m = m.at[row, col].add(w4[:, :, h, :])
        mats.append(m)
    return jnp.stack(mats, axis=0)                                   # (5, 128, 128)


def _pad_mat(m, rows=128, cols=128):
    return jnp.zeros((rows, cols), jnp.float32).at[:m.shape[0], :m.shape[1]].set(m)


def _pad_row(v, cols=128):
    return jnp.zeros((1, cols), jnp.float32).at[0, :v.shape[0]].set(v)


def prepare_params(params):
    bf16 = jnp.bfloat16
    s1, t1 = fold_bn(params["bn1_g"], params["bn1_b"], params["bn1_m"],
                     params["bn1_v"], params["b1"])
    s2, t2 = fold_bn(params["bn2_g"], params["bn2_b"], params["bn2_m"],
                     params["bn2_v"], params["b2"])
    return {
        # K-stacked (kh-major) Toeplitz conv weights, bf16 for the MXU.
        "tb1": _conv_toeplitz(params["w1"], in_block=32, out_w=28)
               .reshape(5 * LANE, 256).astype(bf16),
        "sc1": _bn_cols(s1, out_w=28),
        "sh1": _bn_cols(t1, out_w=28),
        "tb2": _conv_toeplitz(params["w2"], in_block=14, out_w=10)
               .reshape(5 * LANE, 256).astype(bf16),
        "sc2": _bn_cols(s2, out_w=10),
        "sh2": _bn_cols(t2, out_w=10),
        # K-stacked (h-major) fc(400->120) weights for the flattened LHS.
        "fcm": _fc_toeplitz(params["fc_w"]).reshape(5 * LANE, 128).astype(bf16),
        "fcb": _pad_row(params["fc_b"]),
        "fc1w": _pad_mat(params["fc1_w"].T).astype(bf16),
        "fc1b": _pad_row(params["fc1_b"]),
        "fc2w": _pad_mat(params["fc2_w"].T).astype(bf16),
        "fc2b": _pad_row(params["fc2_b"]),
    }


# ---------------------------------------------------------------------------
# Parameter init (deterministic, synthetic) -- mirrors the PyTorch module.
# ---------------------------------------------------------------------------
def init_params(key):
    ks = jax.random.split(key, 16)
    p = {}
    p["w1"] = jax.random.normal(ks[0], (6, 3, 5, 5), jnp.float32) * 0.1
    p["b1"] = jax.random.normal(ks[1], (6,), jnp.float32) * 0.1
    p["bn1_g"] = 1.0 + 0.1 * jax.random.normal(ks[2], (6,), jnp.float32)
    p["bn1_b"] = 0.1 * jax.random.normal(ks[3], (6,), jnp.float32)
    p["bn1_m"] = 0.1 * jax.random.normal(ks[4], (6,), jnp.float32)
    p["bn1_v"] = jnp.abs(1.0 + 0.1 * jax.random.normal(ks[5], (6,), jnp.float32))
    p["w2"] = jax.random.normal(ks[6], (16, 6, 5, 5), jnp.float32) * 0.1
    p["b2"] = jax.random.normal(ks[7], (16,), jnp.float32) * 0.1
    p["bn2_g"] = 1.0 + 0.1 * jax.random.normal(ks[8], (16,), jnp.float32)
    p["bn2_b"] = 0.1 * jax.random.normal(ks[9], (16,), jnp.float32)
    p["bn2_m"] = 0.1 * jax.random.normal(ks[10], (16,), jnp.float32)
    p["bn2_v"] = jnp.abs(1.0 + 0.1 * jax.random.normal(ks[11], (16,), jnp.float32))
    p["fc_w"] = jax.random.normal(ks[12], (120, 400), jnp.float32) * 0.05
    p["fc_b"] = jnp.zeros((120,), jnp.float32)
    p["fc1_w"] = jax.random.normal(ks[13], (84, 120), jnp.float32) * 0.05
    p["fc1_b"] = jnp.zeros((84,), jnp.float32)
    p["fc2_w"] = jax.random.normal(ks[14], (NUM_CLASSES, 84), jnp.float32) * 0.05
    p["fc2_b"] = jnp.zeros((NUM_CLASSES,), jnp.float32)
    return p


# ---------------------------------------------------------------------------
# Pure-JAX reference (inference-mode BatchNorm), for correctness checking.
# ---------------------------------------------------------------------------
def _maxpool2x2_ref(x):
    return jnp.maximum(
        jnp.maximum(x[:, :, 0::2, 0::2], x[:, :, 0::2, 1::2]),
        jnp.maximum(x[:, :, 1::2, 0::2], x[:, :, 1::2, 1::2]))


def lenet5_reference(params, x):
    def block(x, w, b, g, beta, m, v):
        y = lax.conv_general_dilated(x, w, (1, 1), "VALID",
                                     dimension_numbers=("NCHW", "OIHW", "NCHW"))
        y = y + b[None, :, None, None]
        y = ((y - m[None, :, None, None])
             * (g / jnp.sqrt(v + BN_EPS))[None, :, None, None]
             + beta[None, :, None, None])
        return _maxpool2x2_ref(jnp.maximum(y, 0.0))

    y = block(x, params["w1"], params["b1"], params["bn1_g"], params["bn1_b"],
              params["bn1_m"], params["bn1_v"])
    y = block(y, params["w2"], params["b2"], params["bn2_g"], params["bn2_b"],
              params["bn2_m"], params["bn2_v"])
    flat = y.reshape(y.shape[0], -1)
    h = jnp.maximum(flat @ params["fc_w"].T + params["fc_b"], 0.0)
    h = jnp.maximum(h @ params["fc1_w"].T + params["fc1_b"], 0.0)
    return h @ params["fc2_w"].T + params["fc2_b"]


if __name__ == "__main__":
    key = jax.random.PRNGKey(0)
    pkey, xkey = jax.random.split(key)
    params = init_params(pkey)
    # CIFAR-shaped input (the fc(400) layer requires 32x32x3); small batch = 2.
    x = jax.random.normal(xkey, (2, 3, 32, 32), jnp.float32)

    prep = prepare_params(params)          # one-time weight preprocessing
    logits = jax.jit(lenet5_forward)(prep, x)
    logits = jax.block_until_ready(logits)

    ref = jax.block_until_ready(lenet5_reference(params, x))
    assert logits.shape == (2, NUM_CLASSES)
    assert bool(jnp.all(jnp.isfinite(logits)))
    # bf16 weights/MXU inputs with f32 accumulation: expected max |diff| ~1e-2.
    assert float(jnp.max(jnp.abs(logits - ref))) < 5e-2, "mismatch vs reference"
    print("KERNEL_OK")
</pallas_src>

<mosaic_0001>
module attributes {stable_mosaic.version = 11 : i64} {
  func.func @_lenet5_kernel(%arg0: i32, %arg1: memref<256x128xbf16, #tpu.memory_space<vmem>>, %arg2: memref<640x256xbf16, #tpu.memory_space<vmem>>, %arg3: memref<1x256xf32, #tpu.memory_space<vmem>>, %arg4: memref<1x256xf32, #tpu.memory_space<vmem>>, %arg5: memref<640x256xbf16, #tpu.memory_space<vmem>>, %arg6: memref<1x256xf32, #tpu.memory_space<vmem>>, %arg7: memref<1x256xf32, #tpu.memory_space<vmem>>, %arg8: memref<640x128xbf16, #tpu.memory_space<vmem>>, %arg9: memref<1x128xf32, #tpu.memory_space<vmem>>, %arg10: memref<128x128xbf16, #tpu.memory_space<vmem>>, %arg11: memref<1x128xf32, #tpu.memory_space<vmem>>, %arg12: memref<128x128xbf16, #tpu.memory_space<vmem>>, %arg13: memref<1x128xf32, #tpu.memory_space<vmem>>, %arg14: memref<8x128xf32, #tpu.memory_space<vmem>>) attributes {dimension_semantics = [#tpu.dimension_semantics<parallel>], iteration_bounds = array<i64: 1>, scalar_prefetch = 0 : i64, scratch_operands = 0 : i64, tpu.core_type = #tpu.core_type<tc>, window_params = [{transform_indices = @transform_0, window_bounds = array<i64: 256, 128>}, {pipeline_mode = #tpu.pipeline_mode<synchronous>, transform_indices = @transform_1, window_bounds = array<i64: 640, 256>}, {pipeline_mode = #tpu.pipeline_mode<synchronous>, transform_indices = @transform_2, window_bounds = array<i64: 1, 256>}, {pipeline_mode = #tpu.pipeline_mode<synchronous>, transform_indices = @transform_3, window_bounds = array<i64: 1, 256>}, {pipeline_mode = #tpu.pipeline_mode<synchronous>, transform_indices = @transform_4, window_bounds = array<i64: 640, 256>}, {pipeline_mode = #tpu.pipeline_mode<synchronous>, transform_indices = @transform_5, window_bounds = array<i64: 1, 256>}, {pipeline_mode = #tpu.pipeline_mode<synchronous>, transform_indices = @transform_6, window_bounds = array<i64: 1, 256>}, {pipeline_mode = #tpu.pipeline_mode<synchronous>, transform_indices = @transform_7, window_bounds = array<i64: 640, 128>}, {pipeline_mode = #tpu.pipeline_mode<synchronous>, transform_indices = @transform_8, window_bounds = array<i64: 1, 128>}, {pipeline_mode = #tpu.pipeline_mode<synchronous>, transform_indices = @transform_9, window_bounds = array<i64: 128, 128>}, {pipeline_mode = #tpu.pipeline_mode<synchronous>, transform_indices = @transform_10, window_bounds = array<i64: 1, 128>}, {pipeline_mode = #tpu.pipeline_mode<synchronous>, transform_indices = @transform_11, window_bounds = array<i64: 128, 128>}, {pipeline_mode = #tpu.pipeline_mode<synchronous>, transform_indices = @transform_12, window_bounds = array<i64: 1, 128>}, {transform_indices = @transform_13, window_bounds = array<i64: 8, 128>}]} {
    %c0 = arith.constant 0 : index
    %c0_0 = arith.constant 0 : index
    %0 = vector.load %arg2[%c0, %c0_0] : memref<640x256xbf16, #tpu.memory_space<vmem>>, vector<640x256xbf16>
    %c0_1 = arith.constant 0 : index
    %c0_2 = arith.constant 0 : index
    %1 = vector.load %arg5[%c0_1, %c0_2] : memref<640x256xbf16, #tpu.memory_space<vmem>>, vector<640x256xbf16>
    %c0_3 = arith.constant 0 : index
    %c0_4 = arith.constant 0 : index
    %2 = vector.load %arg3[%c0_3, %c0_4] : memref<1x256xf32, #tpu.memory_space<vmem>>, vector<1x256xf32>
    %c0_5 = arith.constant 0 : index
    %c0_6 = arith.constant 0 : index
    %3 = vector.load %arg4[%c0_5, %c0_6] : memref<1x256xf32, #tpu.memory_space<vmem>>, vector<1x256xf32>
    %c0_7 = arith.constant 0 : index
    %c0_8 = arith.constant 0 : index
    %4 = vector.load %arg6[%c0_7, %c0_8] : memref<1x256xf32, #tpu.memory_space<vmem>>, vector<1x256xf32>
    %c0_9 = arith.constant 0 : index
    %c0_10 = arith.constant 0 : index
    %5 = vector.load %arg7[%c0_9, %c0_10] : memref<1x256xf32, #tpu.memory_space<vmem>>, vector<1x256xf32>
    %c0_11 = arith.constant 0 : index
    %c0_12 = arith.constant 0 : index
    %6 = vector.load %arg1[%c0_11, %c0_12] : memref<256x128xbf16, #tpu.memory_space<vmem>>, vector<28x128xbf16>
    %c1 = arith.constant 1 : index
    %c0_13 = arith.constant 0 : index
    %7 = vector.load %arg1[%c1, %c0_13] : memref<256x128xbf16, #tpu.memory_space<vmem>>, vector<28x128xbf16>
    %c2 = arith.constant 2 : index
    %c0_14 = arith.constant 0 : index
    %8 = vector.load %arg1[%c2, %c0_14] : memref<256x128xbf16, #tpu.memory_space<vmem>>, vector<28x128xbf16>
    %c3 = arith.constant 3 : index
    %c0_15 = arith.constant 0 : index
    %9 = vector.load %arg1[%c3, %c0_15] : memref<256x128xbf16, #tpu.memory_space<vmem>>, vector<28x128xbf16>
    %c4 = arith.constant 4 : index
    %c0_16 = arith.constant 0 : index
    %10 = vector.load %arg1[%c4, %c0_16] : memref<256x128xbf16, #tpu.memory_space<vmem>>, vector<28x128xbf16>
    %11 = tpu.concatenate %6, %7, %8, %9, %10 in 1 : vector<28x128xbf16>, vector<28x128xbf16>, vector<28x128xbf16>, vector<28x128xbf16>, vector<28x128xbf16> -> vector<28x640xbf16>
    %cst = arith.constant dense<0.000000e+00> : vector<28x256xf32>
    %12 = tpu.matmul %11, %0, %cst {dimension_numbers = #tpu.dot_dimension_numbers<[1], [0], [0], [1], [0, 0, 1, 1], [], []>} : vector<28x640xbf16>, vector<640x256xbf16>, vector<28x256xf32> -> vector<28x256xf32>
    %13 = vector.broadcast %2 : vector<1x256xf32> to vector<28x256xf32>
    %14 = arith.mulf %12, %13 : vector<28x256xf32>
    %15 = vector.broadcast %3 : vector<1x256xf32> to vector<28x256xf32>
    %16 = arith.addf %14, %15 : vector<28x256xf32>
    %cst_17 = arith.constant 0.000000e+00 : f32
    %17 = vector.broadcast %cst_17 : f32 to vector<28x256xf32>
    %18 = arith.maximumf %16, %17 : vector<28x256xf32>
    %19 = vector.extract_strided_slice %18 {offsets = [0, 0], sizes = [28, 128], strides = [1, 1]} : vector<28x256xf32> to vector<28x128xf32>
    %20 = vector.extract_strided_slice %18 {offsets = [0, 128], sizes = [28, 128], strides = [1, 1]} : vector<28x256xf32> to vector<28x128xf32>
    %21 = arith.maximumf %19, %20 : vector<28x128xf32>
    %22 = vector.extract_strided_slice %21 {offsets = [0, 0], sizes = [1, 128], strides = [1, 1]} : vector<28x128xf32> to vector<1x128xf32>
    %23 = vector.extract_strided_slice %21 {offsets = [1, 0], sizes = [1, 128], strides = [1, 1]} : vector<28x128xf32> to vector<1x128xf32>
    %24 = arith.maximumf %22, %23 : vector<1x128xf32>
    %25 = vector.extract_strided_slice %21 {offsets = [2, 0], sizes = [1, 128], strides = [1, 1]} : vector<28x128xf32> to vector<1x128xf32>
    %26 = vector.extract_strided_slice %21 {offsets = [3, 0], sizes = [1, 128], strides = [1, 1]} : vector<28x128xf32> to vector<1x128xf32>
    %27 = arith.maximumf %25, %26 : vector<1x128xf32>
    %28 = vector.extract_strided_slice %21 {offsets = [4, 0], sizes = [1, 128], strides = [1, 1]} : vector<28x128xf32> to vector<1x128xf32>
    %29 = vector.extract_strided_slice %21 {offsets = [5, 0], sizes = [1, 128], strides = [1, 1]} : vector<28x128xf32> to vector<1x128xf32>
    %30 = arith.maximumf %28, %29 : vector<1x128xf32>
    %31 = vector.extract_strided_slice %21 {offsets = [6, 0], sizes = [1, 128], strides = [1, 1]} : vector<28x128xf32> to vector<1x128xf32>
    %32 = vector.extract_strided_slice %21 {offsets = [7, 0], sizes = [1, 128], strides = [1, 1]} : vector<28x128xf32> to vector<1x128xf32>
    %33 = arith.maximumf %31, %32 : vector<1x128xf32>
    %34 = vector.extract_strided_slice %21 {offsets = [8, 0], sizes = [1, 128], strides = [1, 1]} : vector<28x128xf32> to vector<1x128xf32>
    %35 = vector.extract_strided_slice %21 {offsets = [9, 0], sizes = [1, 128], strides = [1, 1]} : vector<28x128xf32> to vector<1x128xf32>
    %36 = arith.maximumf %34, %35 : vector<1x128xf32>
    %37 = vector.extract_strided_slice %21 {offsets = [10, 0], sizes = [1, 128], strides = [1, 1]} : vector<28x128xf32> to vector<1x128xf32>
    %38 = vector.extract_strided_slice %21 {offsets = [11, 0], sizes = [1, 128], strides = [1, 1]} : vector<28x128xf32> to vector<1x128xf32>
    %39 = arith.maximumf %37, %38 : vector<1x128xf32>
    %40 = vector.extract_strided_slice %21 {offsets = [12, 0], sizes = [1, 128], strides = [1, 1]} : vector<28x128xf32> to vector<1x128xf32>
    %41 = vector.extract_strided_slice %21 {offsets = [13, 0], sizes = [1, 128], strides = [1, 1]} : vector<28x128xf32> to vector<1x128xf32>
    %42 = arith.maximumf %40, %41 : vector<1x128xf32>
    %43 = vector.extract_strided_slice %21 {offsets = [14, 0], sizes = [1, 128], strides = [1, 1]} : vector<28x128xf32> to vector<1x128xf32>
    %44 = vector.extract_strided_slice %21 {offsets = [15, 0], sizes = [1, 128], strides = [1, 1]} : vector<28x128xf32> to vector<1x128xf32>
    %45 = arith.maximumf %43, %44 : vector<1x128xf32>
    %46 = vector.extract_strided_slice %21 {offsets = [16, 0], sizes = [1, 128], strides = [1, 1]} : vector<28x128xf32> to vector<1x128xf32>
    %47 = vector.extract_strided_slice %21 {offsets = [17, 0], sizes = [1, 128], strides = [1, 1]} : vector<28x128xf32> to vector<1x128xf32>
    %48 = arith.maximumf %46, %47 : vector<1x128xf32>
    %49 = vector.extract_strided_slice %21 {offsets = [18, 0], sizes = [1, 128], strides = [1, 1]} : vector<28x128xf32> to vector<1x128xf32>
    %50 = vector.extract_strided_slice %21 {offsets = [19, 0], sizes = [1, 128], strides = [1, 1]} : vector<28x128xf32> to vector<1x128xf32>
    %51 = arith.maximumf %49, %50 : vector<1x128xf32>
    %52 = vector.extract_strided_slice %21 {offsets = [20, 0], sizes = [1, 128], strides = [1, 1]} : vector<28x128xf32> to vector<1x128xf32>
    %53 = vector.extract_strided_slice %21 {offsets = [21, 0], sizes = [1, 128], strides = [1, 1]} : vector<28x128xf32> to vector<1x128xf32>
    %54 = arith.maximumf %52, %53 : vector<1x128xf32>
    %55 = vector.extract_strided_slice %21 {offsets = [22, 0], sizes = [1, 128], strides = [1, 1]} : vector<28x128xf32> to vector<1x128xf32>
    %56 = vector.extract_strided_slice %21 {offsets = [23, 0], sizes = [1, 128], strides = [1, 1]} : vector<28x128xf32> to vector<1x128xf32>
    %57 = arith.maximumf %55, %56 : vector<1x128xf32>
    %58 = vector.extract_strided_slice %21 {offsets = [24, 0], sizes = [1, 128], strides = [1, 1]} : vector<28x128xf32> to vector<1x128xf32>
    %59 = vector.extract_strided_slice %21 {offsets = [25, 0], sizes = [1, 128], strides = [1, 1]} : vector<28x128xf32> to vector<1x128xf32>
    %60 = arith.maximumf %58, %59 : vector<1x128xf32>
    %61 = vector.extract_strided_slice %21 {offsets = [26, 0], sizes = [1, 128], strides = [1, 1]} : vector<28x128xf32> to vector<1x128xf32>
    %62 = vector.extract_strided_slice %21 {offsets = [27, 0], sizes = [1, 128], strides = [1, 1]} : vector<28x128xf32> to vector<1x128xf32>
    %63 = arith.maximumf %61, %62 : vector<1x128xf32>
    %64 = tpu.concatenate %24, %27, %30, %33, %36, %39, %42, %45, %48, %51, %54, %57, %60, %63 in 0 : vector<1x128xf32>, vector<1x128xf32>, vector<1x128xf32>, vector<1x128xf32>, vector<1x128xf32>, vector<1x128xf32>, vector<1x128xf32>, vector<1x128xf32>, vector<1x128xf32>, vector<1x128xf32>, vector<1x128xf32>, vector<1x128xf32>, vector<1x128xf32>, vector<1x128xf32> -> vector<14x128xf32>
    %65 = vector.extract_strided_slice %64 {offsets = [0, 0], sizes = [10, 128], strides = [1, 1]} : vector<14x128xf32> to vector<10x128xf32>
    %66 = vector.extract_strided_slice %64 {offsets = [1, 0], sizes = [10, 128], strides = [1, 1]} : vector<14x128xf32> to vector<10x128xf32>
    %67 = vector.extract_strided_slice %64 {offsets = [2, 0], sizes = [10, 128], strides = [1, 1]} : vector<14x128xf32> to vector<10x128xf32>
    %68 = vector.extract_strided_slice %64 {offsets = [3, 0], sizes = [10, 128], strides = [1, 1]} : vector<14x128xf32> to vector<10x128xf32>
    %69 = vector.extract_strided_slice %64 {offsets = [4, 0], sizes = [10, 128], strides = [1, 1]} : vector<14x128xf32> to vector<10x128xf32>
    %70 = tpu.concatenate %65, %66, %67, %68, %69 in 1 : vector<10x128xf32>, vector<10x128xf32>, vector<10x128xf32>, vector<10x128xf32>, vector<10x128xf32> -> vector<10x640xf32>
    %71 = arith.truncf %70 : vector<10x640xf32> to vector<10x640xbf16>
    %cst_18 = arith.constant dense<0.000000e+00> : vector<10x256xf32>
    %72 = tpu.matmul %71, %1, %cst_18 {dimension_numbers = #tpu.dot_dimension_numbers<[1], [0], [0], [1], [0, 0, 1, 1], [], []>} : vector<10x640xbf16>, vector<640x256xbf16>, vector<10x256xf32> -> vector<10x256xf32>
    %73 = vector.broadcast %4 : vector<1x256xf32> to vector<10x256xf32>
    %74 = arith.mulf %72, %73 : vector<10x256xf32>
    %75 = vector.broadcast %5 : vector<1x256xf32> to vector<10x256xf32>
    %76 = arith.addf %74, %75 : vector<10x256xf32>
    %cst_19 = arith.constant 0.000000e+00 : f32
    %77 = vector.broadcast %cst_19 : f32 to vector<10x256xf32>
    %78 = arith.maximumf %76, %77 : vector<10x256xf32>
    %79 = vector.extract_strided_slice %78 {offsets = [0, 0], sizes = [10, 128], strides = [1, 1]} : vector<10x256xf32> to vector<10x128xf32>
    %80 = vector.extract_strided_slice %78 {offsets = [0, 128], sizes = [10, 128], strides = [1, 1]} : vector<10x256xf32> to vector<10x128xf32>
    %81 = arith.maximumf %79, %80 : vector<10x128xf32>
    %82 = vector.extract_strided_slice %81 {offsets = [0, 0], sizes = [1, 128], strides = [1, 1]} : vector<10x128xf32> to vector<1x128xf32>
    %83 = vector.extract_strided_slice %81 {offsets = [1, 0], sizes = [1, 128], strides = [1, 1]} : vector<10x128xf32> to vector<1x128xf32>
    %84 = arith.maximumf %82, %83 : vector<1x128xf32>
    %85 = vector.extract_strided_slice %81 {offsets = [2, 0], sizes = [1, 128], strides = [1, 1]} : vector<10x128xf32> to vector<1x128xf32>
    %86 = vector.extract_strided_slice %81 {offsets = [3, 0], sizes = [1, 128], strides = [1, 1]} : vector<10x128xf32> to vector<1x128xf32>
    %87 = arith.maximumf %85, %86 : vector<1x128xf32>
    %88 = vector.extract_strided_slice %81 {offsets = [4, 0], sizes = [1, 128], strides = [1, 1]} : vector<10x128xf32> to vector<1x128xf32>
    %89 = vector.extract_strided_slice %81 {offsets = [5, 0], sizes = [1, 128], strides = [1, 1]} : vector<10x128xf32> to vector<1x128xf32>
    %90 = arith.maximumf %88, %89 : vector<1x128xf32>
    %91 = vector.extract_strided_slice %81 {offsets = [6, 0], sizes = [1, 128], strides = [1, 1]} : vector<10x128xf32> to vector<1x128xf32>
    %92 = vector.extract_strided_slice %81 {offsets = [7, 0], sizes = [1, 128], strides = [1, 1]} : vector<10x128xf32> to vector<1x128xf32>
    %93 = arith.maximumf %91, %92 : vector<1x128xf32>
    %94 = vector.extract_strided_slice %81 {offsets = [8, 0], sizes = [1, 128], strides = [1, 1]} : vector<10x128xf32> to vector<1x128xf32>
    %95 = vector.extract_strided_slice %81 {offsets = [9, 0], sizes = [1, 128], strides = [1, 1]} : vector<10x128xf32> to vector<1x128xf32>
    %96 = arith.maximumf %94, %95 : vector<1x128xf32>
    %97 = tpu.concatenate %84, %87, %90, %93, %96 in 0 : vector<1x128xf32>, vector<1x128xf32>, vector<1x128xf32>, vector<1x128xf32>, vector<1x128xf32> -> vector<5x128xf32>
    %98 = vector.extract_strided_slice %97 {offsets = [0, 0], sizes = [1, 128], strides = [1, 1]} : vector<5x128xf32> to vector<1x128xf32>
    %99 = vector.extract_strided_slice %97 {offsets = [1, 0], sizes = [1, 128], strides = [1, 1]} : vector<5x128xf32> to vector<1x128xf32>
    %100 = vector.extract_strided_slice %97 {offsets = [2, 0], sizes = [1, 128], strides = [1, 1]} : vector<5x128xf32> to vector<1x128xf32>
    %101 = vector.extract_strided_slice %97 {offsets = [3, 0], sizes = [1, 128], strides = [1, 1]} : vector<5x128xf32> to vector<1x128xf32>
    %102 = vector.extract_strided_slice %97 {offsets = [4, 0], sizes = [1, 128], strides = [1, 1]} : vector<5x128xf32> to vector<1x128xf32>
    %103 = tpu.concatenate %98, %99, %100, %101, %102 in 1 : vector<1x128xf32>, vector<1x128xf32>, vector<1x128xf32>, vector<1x128xf32>, vector<1x128xf32> -> vector<1x640xf32>
    %c32 = arith.constant 32 : index
    %c0_20 = arith.constant 0 : index
    %104 = vector.load %arg1[%c32, %c0_20] : memref<256x128xbf16, #tpu.memory_space<vmem>>, vector<28x128xbf16>
    %c33 = arith.constant 33 : index
    %c0_21 = arith.constant 0 : index
    %105 = vector.load %arg1[%c33, %c0_21] : memref<256x128xbf16, #tpu.memory_space<vmem>>, vector<28x128xbf16>
    %c34 = arith.constant 34 : index
    %c0_22 = arith.constant 0 : index
    %106 = vector.load %arg1[%c34, %c0_22] : memref<256x128xbf16, #tpu.memory_space<vmem>>, vector<28x128xbf16>
    %c35 = arith.constant 35 : index
    %c0_23 = arith.constant 0 : index
    %107 = vector.load %arg1[%c35, %c0_23] : memref<256x128xbf16, #tpu.memory_space<vmem>>, vector<28x128xbf16>
    %c36 = arith.constant 36 : index
    %c0_24 = arith.constant 0 : index
    %108 = vector.load %arg1[%c36, %c0_24] : memref<256x128xbf16, #tpu.memory_space<vmem>>, vector<28x128xbf16>
    %109 = tpu.concatenate %104, %105, %106, %107, %108 in 1 : vector<28x128xbf16>, vector<28x128xbf16>, vector<28x128xbf16>, vector<28x128xbf16>, vector<28x128xbf16> -> vector<28x640xbf16>
    %cst_25 = arith.constant dense<0.000000e+00> : vector<28x256xf32>
    %110 = tpu.matmul %109, %0, %cst_25 {dimension_numbers = #tpu.dot_dimension_numbers<[1], [0], [0], [1], [0, 0, 1, 1], [], []>} : vector<28x640xbf16>, vector<640x256xbf16>, vector<28x256xf32> -> vector<28x256xf32>
    %111 = vector.broadcast %2 : vector<1x256xf32> to vector<28x256xf32>
    %112 = arith.mulf %110, %111 : vector<28x256xf32>
    %113 = vector.broadcast %3 : vector<1x256xf32> to vector<28x256xf32>
    %114 = arith.addf %112, %113 : vector<28x256xf32>
    %cst_26 = arith.constant 0.000000e+00 : f32
    %115 = vector.broadcast %cst_26 : f32 to vector<28x256xf32>
    %116 = arith.maximumf %114, %115 : vector<28x256xf32>
    %117 = vector.extract_strided_slice %116 {offsets = [0, 0], sizes = [28, 128], strides = [1, 1]} : vector<28x256xf32> to vector<28x128xf32>
    %118 = vector.extract_strided_slice %116 {offsets = [0, 128], sizes = [28, 128], strides = [1, 1]} : vector<28x256xf32> to vector<28x128xf32>
    %119 = arith.maximumf %117, %118 : vector<28x128xf32>
    %120 = vector.extract_strided_slice %119 {offsets = [0, 0], sizes = [1, 128], strides = [1, 1]} : vector<28x128xf32> to vector<1x128xf32>
    %121 = vector.extract_strided_slice %119 {offsets = [1, 0], sizes = [1, 128], strides = [1, 1]} : vector<28x128xf32> to vector<1x128xf32>
    %122 = arith.maximumf %120, %121 : vector<1x128xf32>
    %123 = vector.extract_strided_slice %119 {offsets = [2, 0], sizes = [1, 128], strides = [1, 1]} : vector<28x128xf32> to vector<1x128xf32>
    %124 = vector.extract_strided_slice %119 {offsets = [3, 0], sizes = [1, 128], strides = [1, 1]} : vector<28x128xf32> to vector<1x128xf32>
    %125 = arith.maximumf %123, %124 : vector<1x128xf32>
    %126 = vector.extract_strided_slice %119 {offsets = [4, 0], sizes = [1, 128], strides = [1, 1]} : vector<28x128xf32> to vector<1x128xf32>
    %127 = vector.extract_strided_slice %119 {offsets = [5, 0], sizes = [1, 128], strides = [1, 1]} : vector<28x128xf32> to vector<1x128xf32>
    %128 = arith.maximumf %126, %127 : vector<1x128xf32>
    %129 = vector.extract_strided_slice %119 {offsets = [6, 0], sizes = [1, 128], strides = [1, 1]} : vector<28x128xf32> to vector<1x128xf32>
    %130 = vector.extract_strided_slice %119 {offsets = [7, 0], sizes = [1, 128], strides = [1, 1]} : vector<28x128xf32> to vector<1x128xf32>
    %131 = arith.maximumf %129, %130 : vector<1x128xf32>
    %132 = vector.extract_strided_slice %119 {offsets = [8, 0], sizes = [1, 128], strides = [1, 1]} : vector<28x128xf32> to vector<1x128xf32>
    %133 = vector.extract_strided_slice %119 {offsets = [9, 0], sizes = [1, 128], strides = [1, 1]} : vector<28x128xf32> to vector<1x128xf32>
    %134 = arith.maximumf %132, %133 : vector<1x128xf32>
    %135 = vector.extract_strided_slice %119 {offsets = [10, 0], sizes = [1, 128], strides = [1, 1]} : vector<28x128xf32> to vector<1x128xf32>
    %136 = vector.extract_strided_slice %119 {offsets = [11, 0], sizes = [1, 128], strides = [1, 1]} : vector<28x128xf32> to vector<1x128xf32>
    %137 = arith.maximumf %135, %136 : vector<1x128xf32>
    %138 = vector.extract_strided_slice %119 {offsets = [12, 0], sizes = [1, 128], strides = [1, 1]} : vector<28x128xf32> to vector<1x128xf32>
    %139 = vector.extract_strided_slice %119 {offsets = [13, 0], sizes = [1, 128], strides = [1, 1]} : vector<28x128xf32> to vector<1x128xf32>
    %140 = arith.maximumf %138, %139 : vector<1x128xf32>
    %141 = vector.extract_strided_slice %119 {offsets = [14, 0], sizes = [1, 128], strides = [1, 1]} : vector<28x128xf32> to vector<1x128xf32>
    %142 = vector.extract_strided_slice %119 {offsets = [15, 0], sizes = [1, 128], strides = [1, 1]} : vector<28x128xf32> to vector<1x128xf32>
    %143 = arith.maximumf %141, %142 : vector<1x128xf32>
    %144 = vector.extract_strided_slice %119 {offsets = [16, 0], sizes = [1, 128], strides = [1, 1]} : vector<28x128xf32> to vector<1x128xf32>
    %145 = vector.extract_strided_slice %119 {offsets = [17, 0], sizes = [1, 128], strides = [1, 1]} : vector<28x128xf32> to vector<1x128xf32>
    %146 = arith.maximumf %144, %145 : vector<1x128xf32>
    %147 = vector.extract_strided_slice %119 {offsets = [18, 0], sizes = [1, 128], strides = [1, 1]} : vector<28x128xf32> to vector<1x128xf32>
    %148 = vector.extract_strided_slice %119 {offsets = [19, 0], sizes = [1, 128], strides = [1, 1]} : vector<28x128xf32> to vector<1x128xf32>
    %149 = arith.maximumf %147, %148 : vector<1x128xf32>
    %150 = vector.extract_strided_slice %119 {offsets = [20, 0], sizes = [1, 128], strides = [1, 1]} : vector<28x128xf32> to vector<1x128xf32>
    %151 = vector.extract_strided_slice %119 {offsets = [21, 0], sizes = [1, 128], strides = [1, 1]} : vector<28x128xf32> to vector<1x128xf32>
    %152 = arith.maximumf %150, %151 : vector<1x128xf32>
    %153 = vector.extract_strided_slice %119 {offsets = [22, 0], sizes = [1, 128], strides = [1, 1]} : vector<28x128xf32> to vector<1x128xf32>
    %154 = vector.extract_strided_slice %119 {offsets = [23, 0], sizes = [1, 128], strides = [1, 1]} : vector<28x128xf32> to vector<1x128xf32>
    %155 = arith.maximumf %153, %154 : vector<1x128xf32>
    %156 = vector.extract_strided_slice %119 {offsets = [24, 0], sizes = [1, 128], strides = [1, 1]} : vector<28x128xf32> to vector<1x128xf32>
    %157 = vector.extract_strided_slice %119 {offsets = [25, 0], sizes = [1, 128], strides = [1, 1]} : vector<28x128xf32> to vector<1x128xf32>
    %158 = arith.maximumf %156, %157 : vector<1x128xf32>
    %159 = vector.extract_strided_slice %119 {offsets = [26, 0], sizes = [1, 128], strides = [1, 1]} : vector<28x128xf32> to vector<1x128xf32>
    %160 = vector.extract_strided_slice %119 {offsets = [27, 0], sizes = [1, 128], strides = [1, 1]} : vector<28x128xf32> to vector<1x128xf32>
    %161 = arith.maximumf %159, %160 : vector<1x128xf32>
    %162 = tpu.concatenate %122, %125, %128, %131, %134, %137, %140, %143, %146, %149, %152, %155, %158, %161 in 0 : vector<1x128xf32>, vector<1x128xf32>, vector<1x128xf32>, vector<1x128xf32>, vector<1x128xf32>, vector<1x128xf32>, vector<1x128xf32>, vector<1x128xf32>, vector<1x128xf32>, vector<1x128xf32>, vector<1x128xf32>, vector<1x128xf32>, vector<1x128xf32>, vector<1x128xf32> -> vector<14x128xf32>
    %163 = vector.extract_strided_slice %162 {offsets = [0, 0], sizes = [10, 128], strides = [1, 1]} : vector<14x128xf32> to vector<10x128xf32>
    %164 = vector.extract_strided_slice %162 {offsets = [1, 0], sizes = [10, 128], strides = [1, 1]} : vector<14x128xf32> to vector<10x128xf32>
    %165 = vector.extract_strided_slice %162 {offsets = [2, 0], sizes = [10, 128], strides = [1, 1]} : vector<14x128xf32> to vector<10x128xf32>
    %166 = vector.extract_strided_slice %162 {offsets = [3, 0], sizes = [10, 128], strides = [1, 1]} : vector<14x128xf32> to vector<10x128xf32>
    %167 = vector.extract_strided_slice %162 {offsets = [4, 0], sizes = [10, 128], strides = [1, 1]} : vector<14x128xf32> to vector<10x128xf32>
    %168 = tpu.concatenate %163, %164, %165, %166, %167 in 1 : vector<10x128xf32>, vector<10x128xf32>, vector<10x128xf32>, vector<10x128xf32>, vector<10x128xf32> -> vector<10x640xf32>
    %169 = arith.truncf %168 : vector<10x640xf32> to vector<10x640xbf16>
    %cst_27 = arith.constant dense<0.000000e+00> : vector<10x256xf32>
    %170 = tpu.matmul %169, %1, %cst_27 {dimension_numbers = #tpu.dot_dimension_numbers<[1], [0], [0], [1], [0, 0, 1, 1], [], []>} : vector<10x640xbf16>, vector<640x256xbf16>, vector<10x256xf32> -> vector<10x256xf32>
    %171 = vector.broadcast %4 : vector<1x256xf32> to vector<10x256xf32>
    %172 = arith.mulf %170, %171 : vector<10x256xf32>
    %173 = vector.broadcast %5 : vector<1x256xf32> to vector<10x256xf32>
    %174 = arith.addf %172, %173 : vector<10x256xf32>
    %cst_28 = arith.constant 0.000000e+00 : f32
    %175 = vector.broadcast %cst_28 : f32 to vector<10x256xf32>
    %176 = arith.maximumf %174, %175 : vector<10x256xf32>
    %177 = vector.extract_strided_slice %176 {offsets = [0, 0], sizes = [10, 128], strides = [1, 1]} : vector<10x256xf32> to vector<10x128xf32>
    %178 = vector.extract_strided_slice %176 {offsets = [0, 128], sizes = [10, 128], strides = [1, 1]} : vector<10x256xf32> to vector<10x128xf32>
    %179 = arith.maximumf %177, %178 : vector<10x128xf32>
    %180 = vector.extract_strided_slice %179 {offsets = [0, 0], sizes = [1, 128], strides = [1, 1]} : vector<10x128xf32> to vector<1x128xf32>
    %181 = vector.extract_strided_slice %179 {offsets = [1, 0], sizes = [1, 128], strides = [1, 1]} : vector<10x128xf32> to vector<1x128xf32>
    %182 = arith.maximumf %180, %181 : vector<1x128xf32>
    %183 = vector.extract_strided_slice %179 {offsets = [2, 0], sizes = [1, 128], strides = [1, 1]} : vector<10x128xf32> to vector<1x128xf32>
    %184 = vector.extract_strided_slice %179 {offsets = [3, 0], sizes = [1, 128], strides = [1, 1]} : vector<10x128xf32> to vector<1x128xf32>
    %185 = arith.maximumf %183, %184 : vector<1x128xf32>
    %186 = vector.extract_strided_slice %179 {offsets = [4, 0], sizes = [1, 128], strides = [1, 1]} : vector<10x128xf32> to vector<1x128xf32>
    %187 = vector.extract_strided_slice %179 {offsets = [5, 0], sizes = [1, 128], strides = [1, 1]} : vector<10x128xf32> to vector<1x128xf32>
    %188 = arith.maximumf %186, %187 : vector<1x128xf32>
    %189 = vector.extract_strided_slice %179 {offsets = [6, 0], sizes = [1, 128], strides = [1, 1]} : vector<10x128xf32> to vector<1x128xf32>
    %190 = vector.extract_strided_slice %179 {offsets = [7, 0], sizes = [1, 128], strides = [1, 1]} : vector<10x128xf32> to vector<1x128xf32>
    %191 = arith.maximumf %189, %190 : vector<1x128xf32>
    %192 = vector.extract_strided_slice %179 {offsets = [8, 0], sizes = [1, 128], strides = [1, 1]} : vector<10x128xf32> to vector<1x128xf32>
    %193 = vector.extract_strided_slice %179 {offsets = [9, 0], sizes = [1, 128], strides = [1, 1]} : vector<10x128xf32> to vector<1x128xf32>
    %194 = arith.maximumf %192, %193 : vector<1x128xf32>
    %195 = tpu.concatenate %182, %185, %188, %191, %194 in 0 : vector<1x128xf32>, vector<1x128xf32>, vector<1x128xf32>, vector<1x128xf32>, vector<1x128xf32> -> vector<5x128xf32>
    %196 = vector.extract_strided_slice %195 {offsets = [0, 0], sizes = [1, 128], strides = [1, 1]} : vector<5x128xf32> to vector<1x128xf32>
    %197 = vector.extract_strided_slice %195 {offsets = [1, 0], sizes = [1, 128], strides = [1, 1]} : vector<5x128xf32> to vector<1x128xf32>
    %198 = vector.extract_strided_slice %195 {offsets = [2, 0], sizes = [1, 128], strides = [1, 1]} : vector<5x128xf32> to vector<1x128xf32>
    %199 = vector.extract_strided_slice %195 {offsets = [3, 0], sizes = [1, 128], strides = [1, 1]} : vector<5x128xf32> to vector<1x128xf32>
    %200 = vector.extract_strided_slice %195 {offsets = [4, 0], sizes = [1, 128], strides = [1, 1]} : vector<5x128xf32> to vector<1x128xf32>
    %201 = tpu.concatenate %196, %197, %198, %199, %200 in 1 : vector<1x128xf32>, vector<1x128xf32>, vector<1x128xf32>, vector<1x128xf32>, vector<1x128xf32> -> vector<1x640xf32>
    %c64 = arith.constant 64 : index
    %c0_29 = arith.constant 0 : index
    %202 = vector.load %arg1[%c64, %c0_29] : memref<256x128xbf16, #tpu.memory_space<vmem>>, vector<28x128xbf16>
    %c65 = arith.constant 65 : index
    %c0_30 = arith.constant 0 : index
    %203 = vector.load %arg1[%c65, %c0_30] : memref<256x128xbf16, #tpu.memory_space<vmem>>, vector<28x128xbf16>
    %c66 = arith.constant 66 : index
    %c0_31 = arith.constant 0 : index
    %204 = vector.load %arg1[%c66, %c0_31] : memref<256x128xbf16, #tpu.memory_space<vmem>>, vector<28x128xbf16>
    %c67 = arith.constant 67 : index
    %c0_32 = arith.constant 0 : index
    %205 = vector.load %arg1[%c67, %c0_32] : memref<256x128xbf16, #tpu.memory_space<vmem>>, vector<28x128xbf16>
    %c68 = arith.constant 68 : index
    %c0_33 = arith.constant 0 : index
    %206 = vector.load %arg1[%c68, %c0_33] : memref<256x128xbf16, #tpu.memory_space<vmem>>, vector<28x128xbf16>
    %207 = tpu.concatenate %202, %203, %204, %205, %206 in 1 : vector<28x128xbf16>, vector<28x128xbf16>, vector<28x128xbf16>, vector<28x128xbf16>, vector<28x128xbf16> -> vector<28x640xbf16>
    %cst_34 = arith.constant dense<0.000000e+00> : vector<28x256xf32>
    %208 = tpu.matmul %207, %0, %cst_34 {dimension_numbers = #tpu.dot_dimension_numbers<[1], [0], [0], [1], [0, 0, 1, 1], [], []>} : vector<28x640xbf16>, vector<640x256xbf16>, vector<28x256xf32> -> vector<28x256xf32>
    %209 = vector.broadcast %2 : vector<1x256xf32> to vector<28x256xf32>
    %210 = arith.mulf %208, %209 : vector<28x256xf32>
    %211 = vector.broadcast %3 : vector<1x256xf32> to vector<28x256xf32>
    %212 = arith.addf %210, %211 : vector<28x256xf32>
    %cst_35 = arith.constant 0.000000e+00 : f32
    %213 = vector.broadcast %cst_35 : f32 to vector<28x256xf32>
    %214 = arith.maximumf %212, %213 : vector<28x256xf32>
    %215 = vector.extract_strided_slice %214 {offsets = [0, 0], sizes = [28, 128], strides = [1, 1]} : vector<28x256xf32> to vector<28x128xf32>
    %216 = vector.extract_strided_slice %214 {offsets = [0, 128], sizes = [28, 128], strides = [1, 1]} : vector<28x256xf32> to vector<28x128xf32>
    %217 = arith.maximumf %215, %216 : vector<28x128xf32>
    %218 = vector.extract_strided_slice %217 {offsets = [0, 0], sizes = [1, 128], strides = [1, 1]} : vector<28x128xf32> to vector<1x128xf32>
    %219 = vector.extract_strided_slice %217 {offsets = [1, 0], sizes = [1, 128], strides = [1, 1]} : vector<28x128xf32> to vector<1x128xf32>
    %220 = arith.maximumf %218, %219 : vector<1x128xf32>
    %221 = vector.extract_strided_slice %217 {offsets = [2, 0], sizes = [1, 128], strides = [1, 1]} : vector<28x128xf32> to vector<1x128xf32>
    %222 = vector.extract_strided_slice %217 {offsets = [3, 0], sizes = [1, 128], strides = [1, 1]} : vector<28x128xf32> to vector<1x128xf32>
    %223 = arith.maximumf %221, %222 : vector<1x128xf32>
    %224 = vector.extract_strided_slice %217 {offsets = [4, 0], sizes = [1, 128], strides = [1, 1]} : vector<28x128xf32> to vector<1x128xf32>
    %225 = vector.extract_strided_slice %217 {offsets = [5, 0], sizes = [1, 128], strides = [1, 1]} : vector<28x128xf32> to vector<1x128xf32>
    %226 = arith.maximumf %224, %225 : vector<1x128xf32>
    %227 = vector.extract_strided_slice %217 {offsets = [6, 0], sizes = [1, 128], strides = [1, 1]} : vector<28x128xf32> to vector<1x128xf32>
    %228 = vector.extract_strided_slice %217 {offsets = [7, 0], sizes = [1, 128], strides = [1, 1]} : vector<28x128xf32> to vector<1x128xf32>
    %229 = arith.maximumf %227, %228 : vector<1x128xf32>
    %230 = vector.extract_strided_slice %217 {offsets = [8, 0], sizes = [1, 128], strides = [1, 1]} : vector<28x128xf32> to vector<1x128xf32>
    %231 = vector.extract_strided_slice %217 {offsets = [9, 0], sizes = [1, 128], strides = [1, 1]} : vector<28x128xf32> to vector<1x128xf32>
    %232 = arith.maximumf %230, %231 : vector<1x128xf32>
    %233 = vector.extract_strided_slice %217 {offsets = [10, 0], sizes = [1, 128], strides = [1, 1]} : vector<28x128xf32> to vector<1x128xf32>
    %234 = vector.extract_strided_slice %217 {offsets = [11, 0], sizes = [1, 128], strides = [1, 1]} : vector<28x128xf32> to vector<1x128xf32>
    %235 = arith.maximumf %233, %234 : vector<1x128xf32>
    %236 = vector.extract_strided_slice %217 {offsets = [12, 0], sizes = [1, 128], strides = [1, 1]} : vector<28x128xf32> to vector<1x128xf32>
    %237 = vector.extract_strided_slice %217 {offsets = [13, 0], sizes = [1, 128], strides = [1, 1]} : vector<28x128xf32> to vector<1x128xf32>
    %238 = arith.maximumf %236, %237 : vector<1x128xf32>
    %239 = vector.extract_strided_slice %217 {offsets = [14, 0], sizes = [1, 128], strides = [1, 1]} : vector<28x128xf32> to vector<1x128xf32>
    %240 = vector.extract_strided_slice %217 {offsets = [15, 0], sizes = [1, 128], strides = [1, 1]} : vector<28x128xf32> to vector<1x128xf32>
    %241 = arith.maximumf %239, %240 : vector<1x128xf32>
    %242 = vector.extract_strided_slice %217 {offsets = [16, 0], sizes = [1, 128], strides = [1, 1]} : vector<28x128xf32> to vector<1x128xf32>
    %243 = vector.extract_strided_slice %217 {offsets = [17, 0], sizes = [1, 128], strides = [1, 1]} : vector<28x128xf32> to vector<1x128xf32>
    %244 = arith.maximumf %242, %243 : vector<1x128xf32>
    %245 = vector.extract_strided_slice %217 {offsets = [18, 0], sizes = [1, 128], strides = [1, 1]} : vector<28x128xf32> to vector<1x128xf32>
    %246 = vector.extract_strided_slice %217 {offsets = [19, 0], sizes = [1, 128], strides = [1, 1]} : vector<28x128xf32> to vector<1x128xf32>
    %247 = arith.maximumf %245, %246 : vector<1x128xf32>
    %248 = vector.extract_strided_slice %217 {offsets = [20, 0], sizes = [1, 128], strides = [1, 1]} : vector<28x128xf32> to vector<1x128xf32>
    %249 = vector.extract_strided_slice %217 {offsets = [21, 0], sizes = [1, 128], strides = [1, 1]} : vector<28x128xf32> to vector<1x128xf32>
    %250 = arith.maximumf %248, %249 : vector<1x128xf32>
    %251 = vector.extract_strided_slice %217 {offsets = [22, 0], sizes = [1, 128], strides = [1, 1]} : vector<28x128xf32> to vector<1x128xf32>
    %252 = vector.extract_strided_slice %217 {offsets = [23, 0], sizes = [1, 128], strides = [1, 1]} : vector<28x128xf32> to vector<1x128xf32>
    %253 = arith.maximumf %251, %252 : vector<1x128xf32>
    %254 = vector.extract_strided_slice %217 {offsets = [24, 0], sizes = [1, 128], strides = [1, 1]} : vector<28x128xf32> to vector<1x128xf32>
    %255 = vector.extract_strided_slice %217 {offsets = [25, 0], sizes = [1, 128], strides = [1, 1]} : vector<28x128xf32> to vector<1x128xf32>
    %256 = arith.maximumf %254, %255 : vector<1x128xf32>
    %257 = vector.extract_strided_slice %217 {offsets = [26, 0], sizes = [1, 128], strides = [1, 1]} : vector<28x128xf32> to vector<1x128xf32>
    %258 = vector.extract_strided_slice %217 {offsets = [27, 0], sizes = [1, 128], strides = [1, 1]} : vector<28x128xf32> to vector<1x128xf32>
    %259 = arith.maximumf %257, %258 : vector<1x128xf32>
    %260 = tpu.concatenate %220, %223, %226, %229, %232, %235, %238, %241, %244, %247, %250, %253, %256, %259 in 0 : vector<1x128xf32>, vector<1x128xf32>, vector<1x128xf32>, vector<1x128xf32>, vector<1x128xf32>, vector<1x128xf32>, vector<1x128xf32>, vector<1x128xf32>, vector<1x128xf32>, vector<1x128xf32>, vector<1x128xf32>, vector<1x128xf32>, vector<1x128xf32>, vector<1x128xf32> -> vector<14x128xf32>
    %261 = vector.extract_strided_slice %260 {offsets = [0, 0], sizes = [10, 128], strides = [1, 1]} : vector<14x128xf32> to vector<10x128xf32>
    %262 = vector.extract_strided_slice %260 {offsets = [1, 0], sizes = [10, 128], strides = [1, 1]} : vector<14x128xf32> to vector<10x128xf32>
    %263 = vector.extract_strided_slice %260 {offsets = [2, 0], sizes = [10, 128], strides = [1, 1]} : vector<14x128xf32> to vector<10x128xf32>
    %264 = vector.extract_strided_slice %260 {offsets = [3, 0], sizes = [10, 128], strides = [1, 1]} : vector<14x128xf32> to vector<10x128xf32>
    %265 = vector.extract_strided_slice %260 {offsets = [4, 0], sizes = [10, 128], strides = [1, 1]} : vector<14x128xf32> to vector<10x128xf32>
    %266 = tpu.concatenate %261, %262, %263, %264, %265 in 1 : vector<10x128xf32>, vector<10x128xf32>, vector<10x128xf32>, vector<10x128xf32>, vector<10x128xf32> -> vector<10x640xf32>
    %267 = arith.truncf %266 : vector<10x640xf32> to vector<10x640xbf16>
    %cst_36 = arith.constant dense<0.000000e+00> : vector<10x256xf32>
    %268 = tpu.matmul %267, %1, %cst_36 {dimension_numbers = #tpu.dot_dimension_numbers<[1], [0], [0], [1], [0, 0, 1, 1], [], []>} : vector<10x640xbf16>, vector<640x256xbf16>, vector<10x256xf32> -> vector<10x256xf32>
    %269 = vector.broadcast %4 : vector<1x256xf32> to vector<10x256xf32>
    %270 = arith.mulf %268, %269 : vector<10x256xf32>
    %271 = vector.broadcast %5 : vector<1x256xf32> to vector<10x256xf32>
    %272 = arith.addf %270, %271 : vector<10x256xf32>
    %cst_37 = arith.constant 0.000000e+00 : f32
    %273 = vector.broadcast %cst_37 : f32 to vector<10x256xf32>
    %274 = arith.maximumf %272, %273 : vector<10x256xf32>
    %275 = vector.extract_strided_slice %274 {offsets = [0, 0], sizes = [10, 128], strides = [1, 1]} : vector<10x256xf32> to vector<10x128xf32>
    %276 = vector.extract_strided_slice %274 {offsets = [0, 128], sizes = [10, 128], strides = [1, 1]} : vector<10x256xf32> to vector<10x128xf32>
    %277 = arith.maximumf %275, %276 : vector<10x128xf32>
    %278 = vector.extract_strided_slice %277 {offsets = [0, 0], sizes = [1, 128], strides = [1, 1]} : vector<10x128xf32> to vector<1x128xf32>
    %279 = vector.extract_strided_slice %277 {offsets = [1, 0], sizes = [1, 128], strides = [1, 1]} : vector<10x128xf32> to vector<1x128xf32>
    %280 = arith.maximumf %278, %279 : vector<1x128xf32>
    %281 = vector.extract_strided_slice %277 {offsets = [2, 0], sizes = [1, 128], strides = [1, 1]} : vector<10x128xf32> to vector<1x128xf32>
    %282 = vector.extract_strided_slice %277 {offsets = [3, 0], sizes = [1, 128], strides = [1, 1]} : vector<10x128xf32> to vector<1x128xf32>
    %283 = arith.maximumf %281, %282 : vector<1x128xf32>
    %284 = vector.extract_strided_slice %277 {offsets = [4, 0], sizes = [1, 128], strides = [1, 1]} : vector<10x128xf32> to vector<1x128xf32>
    %285 = vector.extract_strided_slice %277 {offsets = [5, 0], sizes = [1, 128], strides = [1, 1]} : vector<10x128xf32> to vector<1x128xf32>
    %286 = arith.maximumf %284, %285 : vector<1x128xf32>
    %287 = vector.extract_strided_slice %277 {offsets = [6, 0], sizes = [1, 128], strides = [1, 1]} : vector<10x128xf32> to vector<1x128xf32>
    %288 = vector.extract_strided_slice %277 {offsets = [7, 0], sizes = [1, 128], strides = [1, 1]} : vector<10x128xf32> to vector<1x128xf32>
    %289 = arith.maximumf %287, %288 : vector<1x128xf32>
    %290 = vector.extract_strided_slice %277 {offsets = [8, 0], sizes = [1, 128], strides = [1, 1]} : vector<10x128xf32> to vector<1x128xf32>
    %291 = vector.extract_strided_slice %277 {offsets = [9, 0], sizes = [1, 128], strides = [1, 1]} : vector<10x128xf32> to vector<1x128xf32>
    %292 = arith.maximumf %290, %291 : vector<1x128xf32>
    %293 = tpu.concatenate %280, %283, %286, %289, %292 in 0 : vector<1x128xf32>, vector<1x128xf32>, vector<1x128xf32>, vector<1x128xf32>, vector<1x128xf32> -> vector<5x128xf32>
    %294 = vector.extract_strided_slice %293 {offsets = [0, 0], sizes = [1, 128], strides = [1, 1]} : vector<5x128xf32> to vector<1x128xf32>
    %295 = vector.extract_strided_slice %293 {offsets = [1, 0], sizes = [1, 128], strides = [1, 1]} : vector<5x128xf32> to vector<1x128xf32>
    %296 = vector.extract_strided_slice %293 {offsets = [2, 0], sizes = [1, 128], strides = [1, 1]} : vector<5x128xf32> to vector<1x128xf32>
    %297 = vector.extract_strided_slice %293 {offsets = [3, 0], sizes = [1, 128], strides = [1, 1]} : vector<5x128xf32> to vector<1x128xf32>
    %298 = vector.extract_strided_slice %293 {offsets = [4, 0], sizes = [1, 128], strides = [1, 1]} : vector<5x128xf32> to vector<1x128xf32>
    %299 = tpu.concatenate %294, %295, %296, %297, %298 in 1 : vector<1x128xf32>, vector<1x128xf32>, vector<1x128xf32>, vector<1x128xf32>, vector<1x128xf32> -> vector<1x640xf32>
    %c96 = arith.constant 96 : index
    %c0_38 = arith.constant 0 : index
    %300 = vector.load %arg1[%c96, %c0_38] : memref<256x128xbf16, #tpu.memory_space<vmem>>, vector<28x128xbf16>
    %c97 = arith.constant 97 : index
    %c0_39 = arith.constant 0 : index
    %301 = vector.load %arg1[%c97, %c0_39] : memref<256x128xbf16, #tpu.memory_space<vmem>>, vector<28x128xbf16>
    %c98 = arith.constant 98 : index
    %c0_40 = arith.constant 0 : index
    %302 = vector.load %arg1[%c98, %c0_40] : memref<256x128xbf16, #tpu.memory_space<vmem>>, vector<28x128xbf16>
    %c99 = arith.constant 99 : index
    %c0_41 = arith.constant 0 : index
    %303 = vector.load %arg1[%c99, %c0_41] : memref<256x128xbf16, #tpu.memory_space<vmem>>, vector<28x128xbf16>
    %c100 = arith.constant 100 : index
    %c0_42 = arith.constant 0 : index
    %304 = vector.load %arg1[%c100, %c0_42] : memref<256x128xbf16, #tpu.memory_space<vmem>>, vector<28x128xbf16>
    %305 = tpu.concatenate %300, %301, %302, %303, %304 in 1 : vector<28x128xbf16>, vector<28x128xbf16>, vector<28x128xbf16>, vector<28x128xbf16>, vector<28x128xbf16> -> vector<28x640xbf16>
    %cst_43 = arith.constant dense<0.000000e+00> : vector<28x256xf32>
    %306 = tpu.matmul %305, %0, %cst_43 {dimension_numbers = #tpu.dot_dimension_numbers<[1], [0], [0], [1], [0, 0, 1, 1], [], []>} : vector<28x640xbf16>, vector<640x256xbf16>, vector<28x256xf32> -> vector<28x256xf32>
    %307 = vector.broadcast %2 : vector<1x256xf32> to vector<28x256xf32>
    %308 = arith.mulf %306, %307 : vector<28x256xf32>
    %309 = vector.broadcast %3 : vector<1x256xf32> to vector<28x256xf32>
    %310 = arith.addf %308, %309 : vector<28x256xf32>
    %cst_44 = arith.constant 0.000000e+00 : f32
    %311 = vector.broadcast %cst_44 : f32 to vector<28x256xf32>
    %312 = arith.maximumf %310, %311 : vector<28x256xf32>
    %313 = vector.extract_strided_slice %312 {offsets = [0, 0], sizes = [28, 128], strides = [1, 1]} : vector<28x256xf32> to vector<28x128xf32>
    %314 = vector.extract_strided_slice %312 {offsets = [0, 128], sizes = [28, 128], strides = [1, 1]} : vector<28x256xf32> to vector<28x128xf32>
    %315 = arith.maximumf %313, %314 : vector<28x128xf32>
    %316 = vector.extract_strided_slice %315 {offsets = [0, 0], sizes = [1, 128], strides = [1, 1]} : vector<28x128xf32> to vector<1x128xf32>
    %317 = vector.extract_strided_slice %315 {offsets = [1, 0], sizes = [1, 128], strides = [1, 1]} : vector<28x128xf32> to vector<1x128xf32>
    %318 = arith.maximumf %316, %317 : vector<1x128xf32>
    %319 = vector.extract_strided_slice %315 {offsets = [2, 0], sizes = [1, 128], strides = [1, 1]} : vector<28x128xf32> to vector<1x128xf32>
    %320 = vector.extract_strided_slice %315 {offsets = [3, 0], sizes = [1, 128], strides = [1, 1]} : vector<28x128xf32> to vector<1x128xf32>
    %321 = arith.maximumf %319, %320 : vector<1x128xf32>
    %322 = vector.extract_strided_slice %315 {offsets = [4, 0], sizes = [1, 128], strides = [1, 1]} : vector<28x128xf32> to vector<1x128xf32>
    %323 = vector.extract_strided_slice %315 {offsets = [5, 0], sizes = [1, 128], strides = [1, 1]} : vector<28x128xf32> to vector<1x128xf32>
    %324 = arith.maximumf %322, %323 : vector<1x128xf32>
    %325 = vector.extract_strided_slice %315 {offsets = [6, 0], sizes = [1, 128], strides = [1, 1]} : vector<28x128xf32> to vector<1x128xf32>
    %326 = vector.extract_strided_slice %315 {offsets = [7, 0], sizes = [1, 128], strides = [1, 1]} : vector<28x128xf32> to vector<1x128xf32>
    %327 = arith.maximumf %325, %326 : vector<1x128xf32>
    %328 = vector.extract_strided_slice %315 {offsets = [8, 0], sizes = [1, 128], strides = [1, 1]} : vector<28x128xf32> to vector<1x128xf32>
    %329 = vector.extract_strided_slice %315 {offsets = [9, 0], sizes = [1, 128], strides = [1, 1]} : vector<28x128xf32> to vector<1x128xf32>
    %330 = arith.maximumf %328, %329 : vector<1x128xf32>
    %331 = vector.extract_strided_slice %315 {offsets = [10, 0], sizes = [1, 128], strides = [1, 1]} : vector<28x128xf32> to vector<1x128xf32>
    %332 = vector.extract_strided_slice %315 {offsets = [11, 0], sizes = [1, 128], strides = [1, 1]} : vector<28x128xf32> to vector<1x128xf32>
    %333 = arith.maximumf %331, %332 : vector<1x128xf32>
    %334 = vector.extract_strided_slice %315 {offsets = [12, 0], sizes = [1, 128], strides = [1, 1]} : vector<28x128xf32> to vector<1x128xf32>
    %335 = vector.extract_strided_slice %315 {offsets = [13, 0], sizes = [1, 128], strides = [1, 1]} : vector<28x128xf32> to vector<1x128xf32>
    %336 = arith.maximumf %334, %335 : vector<1x128xf32>
    %337 = vector.extract_strided_slice %315 {offsets = [14, 0], sizes = [1, 128], strides = [1, 1]} : vector<28x128xf32> to vector<1x128xf32>
    %338 = vector.extract_strided_slice %315 {offsets = [15, 0], sizes = [1, 128], strides = [1, 1]} : vector<28x128xf32> to vector<1x128xf32>
    %339 = arith.maximumf %337, %338 : vector<1x128xf32>
    %340 = vector.extract_strided_slice %315 {offsets = [16, 0], sizes = [1, 128], strides = [1, 1]} : vector<28x128xf32> to vector<1x128xf32>
    %341 = vector.extract_strided_slice %315 {offsets = [17, 0], sizes = [1, 128], strides = [1, 1]} : vector<28x128xf32> to vector<1x128xf32>
    %342 = arith.maximumf %340, %341 : vector<1x128xf32>
    %343 = vector.extract_strided_slice %315 {offsets = [18, 0], sizes = [1, 128], strides = [1, 1]} : vector<28x128xf32> to vector<1x128xf32>
    %344 = vector.extract_strided_slice %315 {offsets = [19, 0], sizes = [1, 128], strides = [1, 1]} : vector<28x128xf32> to vector<1x128xf32>
    %345 = arith.maximumf %343, %344 : vector<1x128xf32>
    %346 = vector.extract_strided_slice %315 {offsets = [20, 0], sizes = [1, 128], strides = [1, 1]} : vector<28x128xf32> to vector<1x128xf32>
    %347 = vector.extract_strided_slice %315 {offsets = [21, 0], sizes = [1, 128], strides = [1, 1]} : vector<28x128xf32> to vector<1x128xf32>
    %348 = arith.maximumf %346, %347 : vector<1x128xf32>
    %349 = vector.extract_strided_slice %315 {offsets = [22, 0], sizes = [1, 128], strides = [1, 1]} : vector<28x128xf32> to vector<1x128xf32>
    %350 = vector.extract_strided_slice %315 {offsets = [23, 0], sizes = [1, 128], strides = [1, 1]} : vector<28x128xf32> to vector<1x128xf32>
    %351 = arith.maximumf %349, %350 : vector<1x128xf32>
    %352 = vector.extract_strided_slice %315 {offsets = [24, 0], sizes = [1, 128], strides = [1, 1]} : vector<28x128xf32> to vector<1x128xf32>
    %353 = vector.extract_strided_slice %315 {offsets = [25, 0], sizes = [1, 128], strides = [1, 1]} : vector<28x128xf32> to vector<1x128xf32>
    %354 = arith.maximumf %352, %353 : vector<1x128xf32>
    %355 = vector.extract_strided_slice %315 {offsets = [26, 0], sizes = [1, 128], strides = [1, 1]} : vector<28x128xf32> to vector<1x128xf32>
    %356 = vector.extract_strided_slice %315 {offsets = [27, 0], sizes = [1, 128], strides = [1, 1]} : vector<28x128xf32> to vector<1x128xf32>
    %357 = arith.maximumf %355, %356 : vector<1x128xf32>
    %358 = tpu.concatenate %318, %321, %324, %327, %330, %333, %336, %339, %342, %345, %348, %351, %354, %357 in 0 : vector<1x128xf32>, vector<1x128xf32>, vector<1x128xf32>, vector<1x128xf32>, vector<1x128xf32>, vector<1x128xf32>, vector<1x128xf32>, vector<1x128xf32>, vector<1x128xf32>, vector<1x128xf32>, vector<1x128xf32>, vector<1x128xf32>, vector<1x128xf32>, vector<1x128xf32> -> vector<14x128xf32>
    %359 = vector.extract_strided_slice %358 {offsets = [0, 0], sizes = [10, 128], strides = [1, 1]} : vector<14x128xf32> to vector<10x128xf32>
    %360 = vector.extract_strided_slice %358 {offsets = [1, 0], sizes = [10, 128], strides = [1, 1]} : vector<14x128xf32> to vector<10x128xf32>
    %361 = vector.extract_strided_slice %358 {offsets = [2, 0], sizes = [10, 128], strides = [1, 1]} : vector<14x128xf32> to vector<10x128xf32>
    %362 = vector.extract_strided_slice %358 {offsets = [3, 0], sizes = [10, 128], strides = [1, 1]} : vector<14x128xf32> to vector<10x128xf32>
    %363 = vector.extract_strided_slice %358 {offsets = [4, 0], sizes = [10, 128], strides = [1, 1]} : vector<14x128xf32> to vector<10x128xf32>
    %364 = tpu.concatenate %359, %360, %361, %362, %363 in 1 : vector<10x128xf32>, vector<10x128xf32>, vector<10x128xf32>, vector<10x128xf32>, vector<10x128xf32> -> vector<10x640xf32>
    %365 = arith.truncf %364 : vector<10x640xf32> to vector<10x640xbf16>
    %cst_45 = arith.constant dense<0.000000e+00> : vector<10x256xf32>
    %366 = tpu.matmul %365, %1, %cst_45 {dimension_numbers = #tpu.dot_dimension_numbers<[1], [0], [0], [1], [0, 0, 1, 1], [], []>} : vector<10x640xbf16>, vector<640x256xbf16>, vector<10x256xf32> -> vector<10x256xf32>
    %367 = vector.broadcast %4 : vector<1x256xf32> to vector<10x256xf32>
    %368 = arith.mulf %366, %367 : vector<10x256xf32>
    %369 = vector.broadcast %5 : vector<1x256xf32> to vector<10x256xf32>
    %370 = arith.addf %368, %369 : vector<10x256xf32>
    %cst_46 = arith.constant 0.000000e+00 : f32
    %371 = vector.broadcast %cst_46 : f32 to vector<10x256xf32>
    %372 = arith.maximumf %370, %371 : vector<10x256xf32>
    %373 = vector.extract_strided_slice %372 {offsets = [0, 0], sizes = [10, 128], strides = [1, 1]} : vector<10x256xf32> to vector<10x128xf32>
    %374 = vector.extract_strided_slice %372 {offsets = [0, 128], sizes = [10, 128], strides = [1, 1]} : vector<10x256xf32> to vector<10x128xf32>
    %375 = arith.maximumf %373, %374 : vector<10x128xf32>
    %376 = vector.extract_strided_slice %375 {offsets = [0, 0], sizes = [1, 128], strides = [1, 1]} : vector<10x128xf32> to vector<1x128xf32>
    %377 = vector.extract_strided_slice %375 {offsets = [1, 0], sizes = [1, 128], strides = [1, 1]} : vector<10x128xf32> to vector<1x128xf32>
    %378 = arith.maximumf %376, %377 : vector<1x128xf32>
    %379 = vector.extract_strided_slice %375 {offsets = [2, 0], sizes = [1, 128], strides = [1, 1]} : vector<10x128xf32> to vector<1x128xf32>
    %380 = vector.extract_strided_slice %375 {offsets = [3, 0], sizes = [1, 128], strides = [1, 1]} : vector<10x128xf32> to vector<1x128xf32>
    %381 = arith.maximumf %379, %380 : vector<1x128xf32>
    %382 = vector.extract_strided_slice %375 {offsets = [4, 0], sizes = [1, 128], strides = [1, 1]} : vector<10x128xf32> to vector<1x128xf32>
    %383 = vector.extract_strided_slice %375 {offsets = [5, 0], sizes = [1, 128], strides = [1, 1]} : vector<10x128xf32> to vector<1x128xf32>
    %384 = arith.maximumf %382, %383 : vector<1x128xf32>
    %385 = vector.extract_strided_slice %375 {offsets = [6, 0], sizes = [1, 128], strides = [1, 1]} : vector<10x128xf32> to vector<1x128xf32>
    %386 = vector.extract_strided_slice %375 {offsets = [7, 0], sizes = [1, 128], strides = [1, 1]} : vector<10x128xf32> to vector<1x128xf32>
    %387 = arith.maximumf %385, %386 : vector<1x128xf32>
    %388 = vector.extract_strided_slice %375 {offsets = [8, 0], sizes = [1, 128], strides = [1, 1]} : vector<10x128xf32> to vector<1x128xf32>
    %389 = vector.extract_strided_slice %375 {offsets = [9, 0], sizes = [1, 128], strides = [1, 1]} : vector<10x128xf32> to vector<1x128xf32>
    %390 = arith.maximumf %388, %389 : vector<1x128xf32>
    %391 = tpu.concatenate %378, %381, %384, %387, %390 in 0 : vector<1x128xf32>, vector<1x128xf32>, vector<1x128xf32>, vector<1x128xf32>, vector<1x128xf32> -> vector<5x128xf32>
    %392 = vector.extract_strided_slice %391 {offsets = [0, 0], sizes = [1, 128], strides = [1, 1]} : vector<5x128xf32> to vector<1x128xf32>
    %393 = vector.extract_strided_slice %391 {offsets = [1, 0], sizes = [1, 128], strides = [1, 1]} : vector<5x128xf32> to vector<1x128xf32>
    %394 = vector.extract_strided_slice %391 {offsets = [2, 0], sizes = [1, 128], strides = [1, 1]} : vector<5x128xf32> to vector<1x128xf32>
    %395 = vector.extract_strided_slice %391 {offsets = [3, 0], sizes = [1, 128], strides = [1, 1]} : vector<5x128xf32> to vector<1x128xf32>
    %396 = vector.extract_strided_slice %391 {offsets = [4, 0], sizes = [1, 128], strides = [1, 1]} : vector<5x128xf32> to vector<1x128xf32>
    %397 = tpu.concatenate %392, %393, %394, %395, %396 in 1 : vector<1x128xf32>, vector<1x128xf32>, vector<1x128xf32>, vector<1x128xf32>, vector<1x128xf32> -> vector<1x640xf32>
    %c128 = arith.constant 128 : index
    %c0_47 = arith.constant 0 : index
    %398 = vector.load %arg1[%c128, %c0_47] : memref<256x128xbf16, #tpu.memory_space<vmem>>, vector<28x128xbf16>
    %c129 = arith.constant 129 : index
    %c0_48 = arith.constant 0 : index
    %399 = vector.load %arg1[%c129, %c0_48] : memref<256x128xbf16, #tpu.memory_space<vmem>>, vector<28x128xbf16>
    %c130 = arith.constant 130 : index
    %c0_49 = arith.constant 0 : index
    %400 = vector.load %arg1[%c130, %c0_49] : memref<256x128xbf16, #tpu.memory_space<vmem>>, vector<28x128xbf16>
    %c131 = arith.constant 131 : index
    %c0_50 = arith.constant 0 : index
    %401 = vector.load %arg1[%c131, %c0_50] : memref<256x128xbf16, #tpu.memory_space<vmem>>, vector<28x128xbf16>
    %c132 = arith.constant 132 : index
    %c0_51 = arith.constant 0 : index
    %402 = vector.load %arg1[%c132, %c0_51] : memref<256x128xbf16, #tpu.memory_space<vmem>>, vector<28x128xbf16>
    %403 = tpu.concatenate %398, %399, %400, %401, %402 in 1 : vector<28x128xbf16>, vector<28x128xbf16>, vector<28x128xbf16>, vector<28x128xbf16>, vector<28x128xbf16> -> vector<28x640xbf16>
    %cst_52 = arith.constant dense<0.000000e+00> : vector<28x256xf32>
    %404 = tpu.matmul %403, %0, %cst_52 {dimension_numbers = #tpu.dot_dimension_numbers<[1], [0], [0], [1], [0, 0, 1, 1], [], []>} : vector<28x640xbf16>, vector<640x256xbf16>, vector<28x256xf32> -> vector<28x256xf32>
    %405 = vector.broadcast %2 : vector<1x256xf32> to vector<28x256xf32>
    %406 = arith.mulf %404, %405 : vector<28x256xf32>
    %407 = vector.broadcast %3 : vector<1x256xf32> to vector<28x256xf32>
    %408 = arith.addf %406, %407 : vector<28x256xf32>
    %cst_53 = arith.constant 0.000000e+00 : f32
    %409 = vector.broadcast %cst_53 : f32 to vector<28x256xf32>
    %410 = arith.maximumf %408, %409 : vector<28x256xf32>
    %411 = vector.extract_strided_slice %410 {offsets = [0, 0], sizes = [28, 128], strides = [1, 1]} : vector<28x256xf32> to vector<28x128xf32>
    %412 = vector.extract_strided_slice %410 {offsets = [0, 128], sizes = [28, 128], strides = [1, 1]} : vector<28x256xf32> to vector<28x128xf32>
    %413 = arith.maximumf %411, %412 : vector<28x128xf32>
    %414 = vector.extract_strided_slice %413 {offsets = [0, 0], sizes = [1, 128], strides = [1, 1]} : vector<28x128xf32> to vector<1x128xf32>
    %415 = vector.extract_strided_slice %413 {offsets = [1, 0], sizes = [1, 128], strides = [1, 1]} : vector<28x128xf32> to vector<1x128xf32>
    %416 = arith.maximumf %414, %415 : vector<1x128xf32>
    %417 = vector.extract_strided_slice %413 {offsets = [2, 0], sizes = [1, 128], strides = [1, 1]} : vector<28x128xf32> to vector<1x128xf32>
    %418 = vector.extract_strided_slice %413 {offsets = [3, 0], sizes = [1, 128], strides = [1, 1]} : vector<28x128xf32> to vector<1x128xf32>
    %419 = arith.maximumf %417, %418 : vector<1x128xf32>
    %420 = vector.extract_strided_slice %413 {offsets = [4, 0], sizes = [1, 128], strides = [1, 1]} : vector<28x128xf32> to vector<1x128xf32>
    %421 = vector.extract_strided_slice %413 {offsets = [5, 0], sizes = [1, 128], strides = [1, 1]} : vector<28x128xf32> to vector<1x128xf32>
    %422 = arith.maximumf %420, %421 : vector<1x128xf32>
    %423 = vector.extract_strided_slice %413 {offsets = [6, 0], sizes = [1, 128], strides = [1, 1]} : vector<28x128xf32> to vector<1x128xf32>
    %424 = vector.extract_strided_slice %413 {offsets = [7, 0], sizes = [1, 128], strides = [1, 1]} : vector<28x128xf32> to vector<1x128xf32>
    %425 = arith.maximumf %423, %424 : vector<1x128xf32>
    %426 = vector.extract_strided_slice %413 {offsets = [8, 0], sizes = [1, 128], strides = [1, 1]} : vector<28x128xf32> to vector<1x128xf32>
    %427 = vector.extract_strided_slice %413 {offsets = [9, 0], sizes = [1, 128], strides = [1, 1]} : vector<28x128xf32> to vector<1x128xf32>
    %428 = arith.maximumf %426, %427 : vector<1x128xf32>
    %429 = vector.extract_strided_slice %413 {offsets = [10, 0], sizes = [1, 128], strides = [1, 1]} : vector<28x128xf32> to vector<1x128xf32>
    %430 = vector.extract_strided_slice %413 {offsets = [11, 0], sizes = [1, 128], strides = [1, 1]} : vector<28x128xf32> to vector<1x128xf32>
    %431 = arith.maximumf %429, %430 : vector<1x128xf32>
    %432 = vector.extract_strided_slice %413 {offsets = [12, 0], sizes = [1, 128], strides = [1, 1]} : vector<28x128xf32> to vector<1x128xf32>
    %433 = vector.extract_strided_slice %413 {offsets = [13, 0], sizes = [1, 128], strides = [1, 1]} : vector<28x128xf32> to vector<1x128xf32>
    %434 = arith.maximumf %432, %433 : vector<1x128xf32>
    %435 = vector.extract_strided_slice %413 {offsets = [14, 0], sizes = [1, 128], strides = [1, 1]} : vector<28x128xf32> to vector<1x128xf32>
    %436 = vector.extract_strided_slice %413 {offsets = [15, 0], sizes = [1, 128], strides = [1, 1]} : vector<28x128xf32> to vector<1x128xf32>
    %437 = arith.maximumf %435, %436 : vector<1x128xf32>
    %438 = vector.extract_strided_slice %413 {offsets = [16, 0], sizes = [1, 128], strides = [1, 1]} : vector<28x128xf32> to vector<1x128xf32>
    %439 = vector.extract_strided_slice %413 {offsets = [17, 0], sizes = [1, 128], strides = [1, 1]} : vector<28x128xf32> to vector<1x128xf32>
    %440 = arith.maximumf %438, %439 : vector<1x128xf32>
    %441 = vector.extract_strided_slice %413 {offsets = [18, 0], sizes = [1, 128], strides = [1, 1]} : vector<28x128xf32> to vector<1x128xf32>
    %442 = vector.extract_strided_slice %413 {offsets = [19, 0], sizes = [1, 128], strides = [1, 1]} : vector<28x128xf32> to vector<1x128xf32>
    %443 = arith.maximumf %441, %442 : vector<1x128xf32>
    %444 = vector.extract_strided_slice %413 {offsets = [20, 0], sizes = [1, 128], strides = [1, 1]} : vector<28x128xf32> to vector<1x128xf32>
    %445 = vector.extract_strided_slice %413 {offsets = [21, 0], sizes = [1, 128], strides = [1, 1]} : vector<28x128xf32> to vector<1x128xf32>
    %446 = arith.maximumf %444, %445 : vector<1x128xf32>
    %447 = vector.extract_strided_slice %413 {offsets = [22, 0], sizes = [1, 128], strides = [1, 1]} : vector<28x128xf32> to vector<1x128xf32>
    %448 = vector.extract_strided_slice %413 {offsets = [23, 0], sizes = [1, 128], strides = [1, 1]} : vector<28x128xf32> to vector<1x128xf32>
    %449 = arith.maximumf %447, %448 : vector<1x128xf32>
    %450 = vector.extract_strided_slice %413 {offsets = [24, 0], sizes = [1, 128], strides = [1, 1]} : vector<28x128xf32> to vector<1x128xf32>
    %451 = vector.extract_strided_slice %413 {offsets = [25, 0], sizes = [1, 128], strides = [1, 1]} : vector<28x128xf32> to vector<1x128xf32>
    %452 = arith.maximumf %450, %451 : vector<1x128xf32>
    %453 = vector.extract_strided_slice %413 {offsets = [26, 0], sizes = [1, 128], strides = [1, 1]} : vector<28x128xf32> to vector<1x128xf32>
    %454 = vector.extract_strided_slice %413 {offsets = [27, 0], sizes = [1, 128], strides = [1, 1]} : vector<28x128xf32> to vector<1x128xf32>
    %455 = arith.maximumf %453, %454 : vector<1x128xf32>
    %456 = tpu.concatenate %416, %419, %422, %425, %428, %431, %434, %437, %440, %443, %446, %449, %452, %455 in 0 : vector<1x128xf32>, vector<1x128xf32>, vector<1x128xf32>, vector<1x128xf32>, vector<1x128xf32>, vector<1x128xf32>, vector<1x128xf32>, vector<1x128xf32>, vector<1x128xf32>, vector<1x128xf32>, vector<1x128xf32>, vector<1x128xf32>, vector<1x128xf32>, vector<1x128xf32> -> vector<14x128xf32>
    %457 = vector.extract_strided_slice %456 {offsets = [0, 0], sizes = [10, 128], strides = [1, 1]} : vector<14x128xf32> to vector<10x128xf32>
    %458 = vector.extract_strided_slice %456 {offsets = [1, 0], sizes = [10, 128], strides = [1, 1]} : vector<14x128xf32> to vector<10x128xf32>
    %459 = vector.extract_strided_slice %456 {offsets = [2, 0], sizes = [10, 128], strides = [1, 1]} : vector<14x128xf32> to vector<10x128xf32>
    %460 = vector.extract_strided_slice %456 {offsets = [3, 0], sizes = [10, 128], strides = [1, 1]} : vector<14x128xf32> to vector<10x128xf32>
    %461 = vector.extract_strided_slice %456 {offsets = [4, 0], sizes = [10, 128], strides = [1, 1]} : vector<14x128xf32> to vector<10x128xf32>
    %462 = tpu.concatenate %457, %458, %459, %460, %461 in 1 : vector<10x128xf32>, vector<10x128xf32>, vector<10x128xf32>, vector<10x128xf32>, vector<10x128xf32> -> vector<10x640xf32>
    %463 = arith.truncf %462 : vector<10x640xf32> to vector<10x640xbf16>
    %cst_54 = arith.constant dense<0.000000e+00> : vector<10x256xf32>
    %464 = tpu.matmul %463, %1, %cst_54 {dimension_numbers = #tpu.dot_dimension_numbers<[1], [0], [0], [1], [0, 0, 1, 1], [], []>} : vector<10x640xbf16>, vector<640x256xbf16>, vector<10x256xf32> -> vector<10x256xf32>
    %465 = vector.broadcast %4 : vector<1x256xf32> to vector<10x256xf32>
    %466 = arith.mulf %464, %465 : vector<10x256xf32>
    %467 = vector.broadcast %5 : vector<1x256xf32> to vector<10x256xf32>
    %468 = arith.addf %466, %467 : vector<10x256xf32>
    %cst_55 = arith.constant 0.000000e+00 : f32
    %469 = vector.broadcast %cst_55 : f32 to vector<10x256xf32>
    %470 = arith.maximumf %468, %469 : vector<10x256xf32>
    %471 = vector.extract_strided_slice %470 {offsets = [0, 0], sizes = [10, 128], strides = [1, 1]} : vector<10x256xf32> to vector<10x128xf32>
    %472 = vector.extract_strided_slice %470 {offsets = [0, 128], sizes = [10, 128], strides = [1, 1]} : vector<10x256xf32> to vector<10x128xf32>
    %473 = arith.maximumf %471, %472 : vector<10x128xf32>
    %474 = vector.extract_strided_slice %473 {offsets = [0, 0], sizes = [1, 128], strides = [1, 1]} : vector<10x128xf32> to vector<1x128xf32>
    %475 = vector.extract_strided_slice %473 {offsets = [1, 0], sizes = [1, 128], strides = [1, 1]} : vector<10x128xf32> to vector<1x128xf32>
    %476 = arith.maximumf %474, %475 : vector<1x128xf32>
    %477 = vector.extract_strided_slice %473 {offsets = [2, 0], sizes = [1, 128], strides = [1, 1]} : vector<10x128xf32> to vector<1x128xf32>
    %478 = vector.extract_strided_slice %473 {offsets = [3, 0], sizes = [1, 128], strides = [1, 1]} : vector<10x128xf32> to vector<1x128xf32>
    %479 = arith.maximumf %477, %478 : vector<1x128xf32>
    %480 = vector.extract_strided_slice %473 {offsets = [4, 0], sizes = [1, 128], strides = [1, 1]} : vector<10x128xf32> to vector<1x128xf32>
    %481 = vector.extract_strided_slice %473 {offsets = [5, 0], sizes = [1, 128], strides = [1, 1]} : vector<10x128xf32> to vector<1x128xf32>
    %482 = arith.maximumf %480, %481 : vector<1x128xf32>
    %483 = vector.extract_strided_slice %473 {offsets = [6, 0], sizes = [1, 128], strides = [1, 1]} : vector<10x128xf32> to vector<1x128xf32>
    %484 = vector.extract_strided_slice %473 {offsets = [7, 0], sizes = [1, 128], strides = [1, 1]} : vector<10x128xf32> to vector<1x128xf32>
    %485 = arith.maximumf %483, %484 : vector<1x128xf32>
    %486 = vector.extract_strided_slice %473 {offsets = [8, 0], sizes = [1, 128], strides = [1, 1]} : vector<10x128xf32> to vector<1x128xf32>
    %487 = vector.extract_strided_slice %473 {offsets = [9, 0], sizes = [1, 128], strides = [1, 1]} : vector<10x128xf32> to vector<1x128xf32>
    %488 = arith.maximumf %486, %487 : vector<1x128xf32>
    %489 = tpu.concatenate %476, %479, %482, %485, %488 in 0 : vector<1x128xf32>, vector<1x128xf32>, vector<1x128xf32>, vector<1x128xf32>, vector<1x128xf32> -> vector<5x128xf32>
    %490 = vector.extract_strided_slice %489 {offsets = [0, 0], sizes = [1, 128], strides = [1, 1]} : vector<5x128xf32> to vector<1x128xf32>
    %491 = vector.extract_strided_slice %489 {offsets = [1, 0], sizes = [1, 128], strides = [1, 1]} : vector<5x128xf32> to vector<1x128xf32>
    %492 = vector.extract_strided_slice %489 {offsets = [2, 0], sizes = [1, 128], strides = [1, 1]} : vector<5x128xf32> to vector<1x128xf32>
    %493 = vector.extract_strided_slice %489 {offsets = [3, 0], sizes = [1, 128], strides = [1, 1]} : vector<5x128xf32> to vector<1x128xf32>
    %494 = vector.extract_strided_slice %489 {offsets = [4, 0], sizes = [1, 128], strides = [1, 1]} : vector<5x128xf32> to vector<1x128xf32>
    %495 = tpu.concatenate %490, %491, %492, %493, %494 in 1 : vector<1x128xf32>, vector<1x128xf32>, vector<1x128xf32>, vector<1x128xf32>, vector<1x128xf32> -> vector<1x640xf32>
    %c160 = arith.constant 160 : index
    %c0_56 = arith.constant 0 : index
    %496 = vector.load %arg1[%c160, %c0_56] : memref<256x128xbf16, #tpu.memory_space<vmem>>, vector<28x128xbf16>
    %c161 = arith.constant 161 : index
    %c0_57 = arith.constant 0 : index
    %497 = vector.load %arg1[%c161, %c0_57] : memref<256x128xbf16, #tpu.memory_space<vmem>>, vector<28x128xbf16>
    %c162 = arith.constant 162 : index
    %c0_58 = arith.constant 0 : index
    %498 = vector.load %arg1[%c162, %c0_58] : memref<256x128xbf16, #tpu.memory_space<vmem>>, vector<28x128xbf16>
    %c163 = arith.constant 163 : index
    %c0_59 = arith.constant 0 : index
    %499 = vector.load %arg1[%c163, %c0_59] : memref<256x128xbf16, #tpu.memory_space<vmem>>, vector<28x128xbf16>
    %c164 = arith.constant 164 : index
    %c0_60 = arith.constant 0 : index
    %500 = vector.load %arg1[%c164, %c0_60] : memref<256x128xbf16, #tpu.memory_space<vmem>>, vector<28x128xbf16>
    %501 = tpu.concatenate %496, %497, %498, %499, %500 in 1 : vector<28x128xbf16>, vector<28x128xbf16>, vector<28x128xbf16>, vector<28x128xbf16>, vector<28x128xbf16> -> vector<28x640xbf16>
    %cst_61 = arith.constant dense<0.000000e+00> : vector<28x256xf32>
    %502 = tpu.matmul %501, %0, %cst_61 {dimension_numbers = #tpu.dot_dimension_numbers<[1], [0], [0], [1], [0, 0, 1, 1], [], []>} : vector<28x640xbf16>, vector<640x256xbf16>, vector<28x256xf32> -> vector<28x256xf32>
    %503 = vector.broadcast %2 : vector<1x256xf32> to vector<28x256xf32>
    %504 = arith.mulf %502, %503 : vector<28x256xf32>
    %505 = vector.broadcast %3 : vector<1x256xf32> to vector<28x256xf32>
    %506 = arith.addf %504, %505 : vector<28x256xf32>
    %cst_62 = arith.constant 0.000000e+00 : f32
    %507 = vector.broadcast %cst_62 : f32 to vector<28x256xf32>
    %508 = arith.maximumf %506, %507 : vector<28x256xf32>
    %509 = vector.extract_strided_slice %508 {offsets = [0, 0], sizes = [28, 128], strides = [1, 1]} : vector<28x256xf32> to vector<28x128xf32>
    %510 = vector.extract_strided_slice %508 {offsets = [0, 128], sizes = [28, 128], strides = [1, 1]} : vector<28x256xf32> to vector<28x128xf32>
    %511 = arith.maximumf %509, %510 : vector<28x128xf32>
    %512 = vector.extract_strided_slice %511 {offsets = [0, 0], sizes = [1, 128], strides = [1, 1]} : vector<28x128xf32> to vector<1x128xf32>
    %513 = vector.extract_strided_slice %511 {offsets = [1, 0], sizes = [1, 128], strides = [1, 1]} : vector<28x128xf32> to vector<1x128xf32>
    %514 = arith.maximumf %512, %513 : vector<1x128xf32>
    %515 = vector.extract_strided_slice %511 {offsets = [2, 0], sizes = [1, 128], strides = [1, 1]} : vector<28x128xf32> to vector<1x128xf32>
    %516 = vector.extract_strided_slice %511 {offsets = [3, 0], sizes = [1, 128], strides = [1, 1]} : vector<28x128xf32> to vector<1x128xf32>
    %517 = arith.maximumf %515, %516 : vector<1x128xf32>
    %518 = vector.extract_strided_slice %511 {offsets = [4, 0], sizes = [1, 128], strides = [1, 1]} : vector<28x128xf32> to vector<1x128xf32>
    %519 = vector.extract_strided_slice %511 {offsets = [5, 0], sizes = [1, 128], strides = [1, 1]} : vector<28x128xf32> to vector<1x128xf32>
    %520 = arith.maximumf %518, %519 : vector<1x128xf32>
    %521 = vector.extract_strided_slice %511 {offsets = [6, 0], sizes = [1, 128], strides = [1, 1]} : vector<28x128xf32> to vector<1x128xf32>
    %522 = vector.extract_strided_slice %511 {offsets = [7, 0], sizes = [1, 128], strides = [1, 1]} : vector<28x128xf32> to vector<1x128xf32>
    %523 = arith.maximumf %521, %522 : vector<1x128xf32>
    %524 = vector.extract_strided_slice %511 {offsets = [8, 0], sizes = [1, 128], strides = [1, 1]} : vector<28x128xf32> to vector<1x128xf32>
    %525 = vector.extract_strided_slice %511 {offsets = [9, 0], sizes = [1, 128], strides = [1, 1]} : vector<28x128xf32> to vector<1x128xf32>
    %526 = arith.maximumf %524, %525 : vector<1x128xf32>
    %527 = vector.extract_strided_slice %511 {offsets = [10, 0], sizes = [1, 128], strides = [1, 1]} : vector<28x128xf32> to vector<1x128xf32>
    %528 = vector.extract_strided_slice %511 {offsets = [11, 0], sizes = [1, 128], strides = [1, 1]} : vector<28x128xf32> to vector<1x128xf32>
    %529 = arith.maximumf %527, %528 : vector<1x128xf32>
    %530 = vector.extract_strided_slice %511 {offsets = [12, 0], sizes = [1, 128], strides = [1, 1]} : vector<28x128xf32> to vector<1x128xf32>
    %531 = vector.extract_strided_slice %511 {offsets = [13, 0], sizes = [1, 128], strides = [1, 1]} : vector<28x128xf32> to vector<1x128xf32>
    %532 = arith.maximumf %530, %531 : vector<1x128xf32>
    %533 = vector.extract_strided_slice %511 {offsets = [14, 0], sizes = [1, 128], strides = [1, 1]} : vector<28x128xf32> to vector<1x128xf32>
    %534 = vector.extract_strided_slice %511 {offsets = [15, 0], sizes = [1, 128], strides = [1, 1]} : vector<28x128xf32> to vector<1x128xf32>
    %535 = arith.maximumf %533, %534 : vector<1x128xf32>
    %536 = vector.extract_strided_slice %511 {offsets = [16, 0], sizes = [1, 128], strides = [1, 1]} : vector<28x128xf32> to vector<1x128xf32>
    %537 = vector.extract_strided_slice %511 {offsets = [17, 0], sizes = [1, 128], strides = [1, 1]} : vector<28x128xf32> to vector<1x128xf32>
    %538 = arith.maximumf %536, %537 : vector<1x128xf32>
    %539 = vector.extract_strided_slice %511 {offsets = [18, 0], sizes = [1, 128], strides = [1, 1]} : vector<28x128xf32> to vector<1x128xf32>
    %540 = vector.extract_strided_slice %511 {offsets = [19, 0], sizes = [1, 128], strides = [1, 1]} : vector<28x128xf32> to vector<1x128xf32>
    %541 = arith.maximumf %539, %540 : vector<1x128xf32>
    %542 = vector.extract_strided_slice %511 {offsets = [20, 0], sizes = [1, 128], strides = [1, 1]} : vector<28x128xf32> to vector<1x128xf32>
    %543 = vector.extract_strided_slice %511 {offsets = [21, 0], sizes = [1, 128], strides = [1, 1]} : vector<28x128xf32> to vector<1x128xf32>
    %544 = arith.maximumf %542, %543 : vector<1x128xf32>
    %545 = vector.extract_strided_slice %511 {offsets = [22, 0], sizes = [1, 128], strides = [1, 1]} : vector<28x128xf32> to vector<1x128xf32>
    %546 = vector.extract_strided_slice %511 {offsets = [23, 0], sizes = [1, 128], strides = [1, 1]} : vector<28x128xf32> to vector<1x128xf32>
    %547 = arith.maximumf %545, %546 : vector<1x128xf32>
    %548 = vector.extract_strided_slice %511 {offsets = [24, 0], sizes = [1, 128], strides = [1, 1]} : vector<28x128xf32> to vector<1x128xf32>
    %549 = vector.extract_strided_slice %511 {offsets = [25, 0], sizes = [1, 128], strides = [1, 1]} : vector<28x128xf32> to vector<1x128xf32>
    %550 = arith.maximumf %548, %549 : vector<1x128xf32>
    %551 = vector.extract_strided_slice %511 {offsets = [26, 0], sizes = [1, 128], strides = [1, 1]} : vector<28x128xf32> to vector<1x128xf32>
    %552 = vector.extract_strided_slice %511 {offsets = [27, 0], sizes = [1, 128], strides = [1, 1]} : vector<28x128xf32> to vector<1x128xf32>
    %553 = arith.maximumf %551, %552 : vector<1x128xf32>
    %554 = tpu.concatenate %514, %517, %520, %523, %526, %529, %532, %535, %538, %541, %544, %547, %550, %553 in 0 : vector<1x128xf32>, vector<1x128xf32>, vector<1x128xf32>, vector<1x128xf32>, vector<1x128xf32>, vector<1x128xf32>, vector<1x128xf32>, vector<1x128xf32>, vector<1x128xf32>, vector<1x128xf32>, vector<1x128xf32>, vector<1x128xf32>, vector<1x128xf32>, vector<1x128xf32> -> vector<14x128xf32>
    %555 = vector.extract_strided_slice %554 {offsets = [0, 0], sizes = [10, 128], strides = [1, 1]} : vector<14x128xf32> to vector<10x128xf32>
    %556 = vector.extract_strided_slice %554 {offsets = [1, 0], sizes = [10, 128], strides = [1, 1]} : vector<14x128xf32> to vector<10x128xf32>
    %557 = vector.extract_strided_slice %554 {offsets = [2, 0], sizes = [10, 128], strides = [1, 1]} : vector<14x128xf32> to vector<10x128xf32>
    %558 = vector.extract_strided_slice %554 {offsets = [3, 0], sizes = [10, 128], strides = [1, 1]} : vector<14x128xf32> to vector<10x128xf32>
    %559 = vector.extract_strided_slice %554 {offsets = [4, 0], sizes = [10, 128], strides = [1, 1]} : vector<14x128xf32> to vector<10x128xf32>
    %560 = tpu.concatenate %555, %556, %557, %558, %559 in 1 : vector<10x128xf32>, vector<10x128xf32>, vector<10x128xf32>, vector<10x128xf32>, vector<10x128xf32> -> vector<10x640xf32>
    %561 = arith.truncf %560 : vector<10x640xf32> to vector<10x640xbf16>
    %cst_63 = arith.constant dense<0.000000e+00> : vector<10x256xf32>
    %562 = tpu.matmul %561, %1, %cst_63 {dimension_numbers = #tpu.dot_dimension_numbers<[1], [0], [0], [1], [0, 0, 1, 1], [], []>} : vector<10x640xbf16>, vector<640x256xbf16>, vector<10x256xf32> -> vector<10x256xf32>
    %563 = vector.broadcast %4 : vector<1x256xf32> to vector<10x256xf32>
    %564 = arith.mulf %562, %563 : vector<10x256xf32>
    %565 = vector.broadcast %5 : vector<1x256xf32> to vector<10x256xf32>
    %566 = arith.addf %564, %565 : vector<10x256xf32>
    %cst_64 = arith.constant 0.000000e+00 : f32
    %567 = vector.broadcast %cst_64 : f32 to vector<10x256xf32>
    %568 = arith.maximumf %566, %567 : vector<10x256xf32>
    %569 = vector.extract_strided_slice %568 {offsets = [0, 0], sizes = [10, 128], strides = [1, 1]} : vector<10x256xf32> to vector<10x128xf32>
    %570 = vector.extract_strided_slice %568 {offsets = [0, 128], sizes = [10, 128], strides = [1, 1]} : vector<10x256xf32> to vector<10x128xf32>
    %571 = arith.maximumf %569, %570 : vector<10x128xf32>
    %572 = vector.extract_strided_slice %571 {offsets = [0, 0], sizes = [1, 128], strides = [1, 1]} : vector<10x128xf32> to vector<1x128xf32>
    %573 = vector.extract_strided_slice %571 {offsets = [1, 0], sizes = [1, 128], strides = [1, 1]} : vector<10x128xf32> to vector<1x128xf32>
    %574 = arith.maximumf %572, %573 : vector<1x128xf32>
    %575 = vector.extract_strided_slice %571 {offsets = [2, 0], sizes = [1, 128], strides = [1, 1]} : vector<10x128xf32> to vector<1x128xf32>
    %576 = vector.extract_strided_slice %571 {offsets = [3, 0], sizes = [1, 128], strides = [1, 1]} : vector<10x128xf32> to vector<1x128xf32>
    %577 = arith.maximumf %575, %576 : vector<1x128xf32>
    %578 = vector.extract_strided_slice %571 {offsets = [4, 0], sizes = [1, 128], strides = [1, 1]} : vector<10x128xf32> to vector<1x128xf32>
    %579 = vector.extract_strided_slice %571 {offsets = [5, 0], sizes = [1, 128], strides = [1, 1]} : vector<10x128xf32> to vector<1x128xf32>
    %580 = arith.maximumf %578, %579 : vector<1x128xf32>
    %581 = vector.extract_strided_slice %571 {offsets = [6, 0], sizes = [1, 128], strides = [1, 1]} : vector<10x128xf32> to vector<1x128xf32>
    %582 = vector.extract_strided_slice %571 {offsets = [7, 0], sizes = [1, 128], strides = [1, 1]} : vector<10x128xf32> to vector<1x128xf32>
    %583 = arith.maximumf %581, %582 : vector<1x128xf32>
    %584 = vector.extract_strided_slice %571 {offsets = [8, 0], sizes = [1, 128], strides = [1, 1]} : vector<10x128xf32> to vector<1x128xf32>
    %585 = vector.extract_strided_slice %571 {offsets = [9, 0], sizes = [1, 128], strides = [1, 1]} : vector<10x128xf32> to vector<1x128xf32>
    %586 = arith.maximumf %584, %585 : vector<1x128xf32>
    %587 = tpu.concatenate %574, %577, %580, %583, %586 in 0 : vector<1x128xf32>, vector<1x128xf32>, vector<1x128xf32>, vector<1x128xf32>, vector<1x128xf32> -> vector<5x128xf32>
    %588 = vector.extract_strided_slice %587 {offsets = [0, 0], sizes = [1, 128], strides = [1, 1]} : vector<5x128xf32> to vector<1x128xf32>
    %589 = vector.extract_strided_slice %587 {offsets = [1, 0], sizes = [1, 128], strides = [1, 1]} : vector<5x128xf32> to vector<1x128xf32>
    %590 = vector.extract_strided_slice %587 {offsets = [2, 0], sizes = [1, 128], strides = [1, 1]} : vector<5x128xf32> to vector<1x128xf32>
    %591 = vector.extract_strided_slice %587 {offsets = [3, 0], sizes = [1, 128], strides = [1, 1]} : vector<5x128xf32> to vector<1x128xf32>
    %592 = vector.extract_strided_slice %587 {offsets = [4, 0], sizes = [1, 128], strides = [1, 1]} : vector<5x128xf32> to vector<1x128xf32>
    %593 = tpu.concatenate %588, %589, %590, %591, %592 in 1 : vector<1x128xf32>, vector<1x128xf32>, vector<1x128xf32>, vector<1x128xf32>, vector<1x128xf32> -> vector<1x640xf32>
    %c192 = arith.constant 192 : index
    %c0_65 = arith.constant 0 : index
    %594 = vector.load %arg1[%c192, %c0_65] : memref<256x128xbf16, #tpu.memory_space<vmem>>, vector<28x128xbf16>
    %c193 = arith.constant 193 : index
    %c0_66 = arith.constant 0 : index
    %595 = vector.load %arg1[%c193, %c0_66] : memref<256x128xbf16, #tpu.memory_space<vmem>>, vector<28x128xbf16>
    %c194 = arith.constant 194 : index
    %c0_67 = arith.constant 0 : index
    %596 = vector.load %arg1[%c194, %c0_67] : memref<256x128xbf16, #tpu.memory_space<vmem>>, vector<28x128xbf16>
    %c195 = arith.constant 195 : index
    %c0_68 = arith.constant 0 : index
    %597 = vector.load %arg1[%c195, %c0_68] : memref<256x128xbf16, #tpu.memory_space<vmem>>, vector<28x128xbf16>
    %c196 = arith.constant 196 : index
    %c0_69 = arith.constant 0 : index
    %598 = vector.load %arg1[%c196, %c0_69] : memref<256x128xbf16, #tpu.memory_space<vmem>>, vector<28x128xbf16>
    %599 = tpu.concatenate %594, %595, %596, %597, %598 in 1 : vector<28x128xbf16>, vector<28x128xbf16>, vector<28x128xbf16>, vector<28x128xbf16>, vector<28x128xbf16> -> vector<28x640xbf16>
    %cst_70 = arith.constant dense<0.000000e+00> : vector<28x256xf32>
    %600 = tpu.matmul %599, %0, %cst_70 {dimension_numbers = #tpu.dot_dimension_numbers<[1], [0], [0], [1], [0, 0, 1, 1], [], []>} : vector<28x640xbf16>, vector<640x256xbf16>, vector<28x256xf32> -> vector<28x256xf32>
    %601 = vector.broadcast %2 : vector<1x256xf32> to vector<28x256xf32>
    %602 = arith.mulf %600, %601 : vector<28x256xf32>
    %603 = vector.broadcast %3 : vector<1x256xf32> to vector<28x256xf32>
    %604 = arith.addf %602, %603 : vector<28x256xf32>
    %cst_71 = arith.constant 0.000000e+00 : f32
    %605 = vector.broadcast %cst_71 : f32 to vector<28x256xf32>
    %606 = arith.maximumf %604, %605 : vector<28x256xf32>
    %607 = vector.extract_strided_slice %606 {offsets = [0, 0], sizes = [28, 128], strides = [1, 1]} : vector<28x256xf32> to vector<28x128xf32>
    %608 = vector.extract_strided_slice %606 {offsets = [0, 128], sizes = [28, 128], strides = [1, 1]} : vector<28x256xf32> to vector<28x128xf32>
    %609 = arith.maximumf %607, %608 : vector<28x128xf32>
    %610 = vector.extract_strided_slice %609 {offsets = [0, 0], sizes = [1, 128], strides = [1, 1]} : vector<28x128xf32> to vector<1x128xf32>
    %611 = vector.extract_strided_slice %609 {offsets = [1, 0], sizes = [1, 128], strides = [1, 1]} : vector<28x128xf32> to vector<1x128xf32>
    %612 = arith.maximumf %610, %611 : vector<1x128xf32>
    %613 = vector.extract_strided_slice %609 {offsets = [2, 0], sizes = [1, 128], strides = [1, 1]} : vector<28x128xf32> to vector<1x128xf32>
    %614 = vector.extract_strided_slice %609 {offsets = [3, 0], sizes = [1, 128], strides = [1, 1]} : vector<28x128xf32> to vector<1x128xf32>
    %615 = arith.maximumf %613, %614 : vector<1x128xf32>
    %616 = vector.extract_strided_slice %609 {offsets = [4, 0], sizes = [1, 128], strides = [1, 1]} : vector<28x128xf32> to vector<1x128xf32>
    %617 = vector.extract_strided_slice %609 {offsets = [5, 0], sizes = [1, 128], strides = [1, 1]} : vector<28x128xf32> to vector<1x128xf32>
    %618 = arith.maximumf %616, %617 : vector<1x128xf32>
    %619 = vector.extract_strided_slice %609 {offsets = [6, 0], sizes = [1, 128], strides = [1, 1]} : vector<28x128xf32> to vector<1x128xf32>
    %620 = vector.extract_strided_slice %609 {offsets = [7, 0], sizes = [1, 128], strides = [1, 1]} : vector<28x128xf32> to vector<1x128xf32>
    %621 = arith.maximumf %619, %620 : vector<1x128xf32>
    %622 = vector.extract_strided_slice %609 {offsets = [8, 0], sizes = [1, 128], strides = [1, 1]} : vector<28x128xf32> to vector<1x128xf32>
    %623 = vector.extract_strided_slice %609 {offsets = [9, 0], sizes = [1, 128], strides = [1, 1]} : vector<28x128xf32> to vector<1x128xf32>
    %624 = arith.maximumf %622, %623 : vector<1x128xf32>
    %625 = vector.extract_strided_slice %609 {offsets = [10, 0], sizes = [1, 128], strides = [1, 1]} : vector<28x128xf32> to vector<1x128xf32>
    %626 = vector.extract_strided_slice %609 {offsets = [11, 0], sizes = [1, 128], strides = [1, 1]} : vector<28x128xf32> to vector<1x128xf32>
    %627 = arith.maximumf %625, %626 : vector<1x128xf32>
    %628 = vector.extract_strided_slice %609 {offsets = [12, 0], sizes = [1, 128], strides = [1, 1]} : vector<28x128xf32> to vector<1x128xf32>
    %629 = vector.extract_strided_slice %609 {offsets = [13, 0], sizes = [1, 128], strides = [1, 1]} : vector<28x128xf32> to vector<1x128xf32>
    %630 = arith.maximumf %628, %629 : vector<1x128xf32>
    %631 = vector.extract_strided_slice %609 {offsets = [14, 0], sizes = [1, 128], strides = [1, 1]} : vector<28x128xf32> to vector<1x128xf32>
    %632 = vector.extract_strided_slice %609 {offsets = [15, 0], sizes = [1, 128], strides = [1, 1]} : vector<28x128xf32> to vector<1x128xf32>
    %633 = arith.maximumf %631, %632 : vector<1x128xf32>
    %634 = vector.extract_strided_slice %609 {offsets = [16, 0], sizes = [1, 128], strides = [1, 1]} : vector<28x128xf32> to vector<1x128xf32>
    %635 = vector.extract_strided_slice %609 {offsets = [17, 0], sizes = [1, 128], strides = [1, 1]} : vector<28x128xf32> to vector<1x128xf32>
    %636 = arith.maximumf %634, %635 : vector<1x128xf32>
    %637 = vector.extract_strided_slice %609 {offsets = [18, 0], sizes = [1, 128], strides = [1, 1]} : vector<28x128xf32> to vector<1x128xf32>
    %638 = vector.extract_strided_slice %609 {offsets = [19, 0], sizes = [1, 128], strides = [1, 1]} : vector<28x128xf32> to vector<1x128xf32>
    %639 = arith.maximumf %637, %638 : vector<1x128xf32>
    %640 = vector.extract_strided_slice %609 {offsets = [20, 0], sizes = [1, 128], strides = [1, 1]} : vector<28x128xf32> to vector<1x128xf32>
    %641 = vector.extract_strided_slice %609 {offsets = [21, 0], sizes = [1, 128], strides = [1, 1]} : vector<28x128xf32> to vector<1x128xf32>
    %642 = arith.maximumf %640, %641 : vector<1x128xf32>
    %643 = vector.extract_strided_slice %609 {offsets = [22, 0], sizes = [1, 128], strides = [1, 1]} : vector<28x128xf32> to vector<1x128xf32>
    %644 = vector.extract_strided_slice %609 {offsets = [23, 0], sizes = [1, 128], strides = [1, 1]} : vector<28x128xf32> to vector<1x128xf32>
    %645 = arith.maximumf %643, %644 : vector<1x128xf32>
    %646 = vector.extract_strided_slice %609 {offsets = [24, 0], sizes = [1, 128], strides = [1, 1]} : vector<28x128xf32> to vector<1x128xf32>
    %647 = vector.extract_strided_slice %609 {offsets = [25, 0], sizes = [1, 128], strides = [1, 1]} : vector<28x128xf32> to vector<1x128xf32>
    %648 = arith.maximumf %646, %647 : vector<1x128xf32>
    %649 = vector.extract_strided_slice %609 {offsets = [26, 0], sizes = [1, 128], strides = [1, 1]} : vector<28x128xf32> to vector<1x128xf32>
    %650 = vector.extract_strided_slice %609 {offsets = [27, 0], sizes = [1, 128], strides = [1, 1]} : vector<28x128xf32> to vector<1x128xf32>
    %651 = arith.maximumf %649, %650 : vector<1x128xf32>
    %652 = tpu.concatenate %612, %615, %618, %621, %624, %627, %630, %633, %636, %639, %642, %645, %648, %651 in 0 : vector<1x128xf32>, vector<1x128xf32>, vector<1x128xf32>, vector<1x128xf32>, vector<1x128xf32>, vector<1x128xf32>, vector<1x128xf32>, vector<1x128xf32>, vector<1x128xf32>, vector<1x128xf32>, vector<1x128xf32>, vector<1x128xf32>, vector<1x128xf32>, vector<1x128xf32> -> vector<14x128xf32>
    %653 = vector.extract_strided_slice %652 {offsets = [0, 0], sizes = [10, 128], strides = [1, 1]} : vector<14x128xf32> to vector<10x128xf32>
    %654 = vector.extract_strided_slice %652 {offsets = [1, 0], sizes = [10, 128], strides = [1, 1]} : vector<14x128xf32> to vector<10x128xf32>
    %655 = vector.extract_strided_slice %652 {offsets = [2, 0], sizes = [10, 128], strides = [1, 1]} : vector<14x128xf32> to vector<10x128xf32>
    %656 = vector.extract_strided_slice %652 {offsets = [3, 0], sizes = [10, 128], strides = [1, 1]} : vector<14x128xf32> to vector<10x128xf32>
    %657 = vector.extract_strided_slice %652 {offsets = [4, 0], sizes = [10, 128], strides = [1, 1]} : vector<14x128xf32> to vector<10x128xf32>
    %658 = tpu.concatenate %653, %654, %655, %656, %657 in 1 : vector<10x128xf32>, vector<10x128xf32>, vector<10x128xf32>, vector<10x128xf32>, vector<10x128xf32> -> vector<10x640xf32>
    %659 = arith.truncf %658 : vector<10x640xf32> to vector<10x640xbf16>
    %cst_72 = arith.constant dense<0.000000e+00> : vector<10x256xf32>
    %660 = tpu.matmul %659, %1, %cst_72 {dimension_numbers = #tpu.dot_dimension_numbers<[1], [0], [0], [1], [0, 0, 1, 1], [], []>} : vector<10x640xbf16>, vector<640x256xbf16>, vector<10x256xf32> -> vector<10x256xf32>
    %661 = vector.broadcast %4 : vector<1x256xf32> to vector<10x256xf32>
    %662 = arith.mulf %660, %661 : vector<10x256xf32>
    %663 = vector.broadcast %5 : vector<1x256xf32> to vector<10x256xf32>
    %664 = arith.addf %662, %663 : vector<10x256xf32>
    %cst_73 = arith.constant 0.000000e+00 : f32
    %665 = vector.broadcast %cst_73 : f32 to vector<10x256xf32>
    %666 = arith.maximumf %664, %665 : vector<10x256xf32>
    %667 = vector.extract_strided_slice %666 {offsets = [0, 0], sizes = [10, 128], strides = [1, 1]} : vector<10x256xf32> to vector<10x128xf32>
    %668 = vector.extract_strided_slice %666 {offsets = [0, 128], sizes = [10, 128], strides = [1, 1]} : vector<10x256xf32> to vector<10x128xf32>
    %669 = arith.maximumf %667, %668 : vector<10x128xf32>
    %670 = vector.extract_strided_slice %669 {offsets = [0, 0], sizes = [1, 128], strides = [1, 1]} : vector<10x128xf32> to vector<1x128xf32>
    %671 = vector.extract_strided_slice %669 {offsets = [1, 0], sizes = [1, 128], strides = [1, 1]} : vector<10x128xf32> to vector<1x128xf32>
    %672 = arith.maximumf %670, %671 : vector<1x128xf32>
    %673 = vector.extract_strided_slice %669 {offsets = [2, 0], sizes = [1, 128], strides = [1, 1]} : vector<10x128xf32> to vector<1x128xf32>
    %674 = vector.extract_strided_slice %669 {offsets = [3, 0], sizes = [1, 128], strides = [1, 1]} : vector<10x128xf32> to vector<1x128xf32>
    %675 = arith.maximumf %673, %674 : vector<1x128xf32>
    %676 = vector.extract_strided_slice %669 {offsets = [4, 0], sizes = [1, 128], strides = [1, 1]} : vector<10x128xf32> to vector<1x128xf32>
    %677 = vector.extract_strided_slice %669 {offsets = [5, 0], sizes = [1, 128], strides = [1, 1]} : vector<10x128xf32> to vector<1x128xf32>
    %678 = arith.maximumf %676, %677 : vector<1x128xf32>
    %679 = vector.extract_strided_slice %669 {offsets = [6, 0], sizes = [1, 128], strides = [1, 1]} : vector<10x128xf32> to vector<1x128xf32>
    %680 = vector.extract_strided_slice %669 {offsets = [7, 0], sizes = [1, 128], strides = [1, 1]} : vector<10x128xf32> to vector<1x128xf32>
    %681 = arith.maximumf %679, %680 : vector<1x128xf32>
    %682 = vector.extract_strided_slice %669 {offsets = [8, 0], sizes = [1, 128], strides = [1, 1]} : vector<10x128xf32> to vector<1x128xf32>
    %683 = vector.extract_strided_slice %669 {offsets = [9, 0], sizes = [1, 128], strides = [1, 1]} : vector<10x128xf32> to vector<1x128xf32>
    %684 = arith.maximumf %682, %683 : vector<1x128xf32>
    %685 = tpu.concatenate %672, %675, %678, %681, %684 in 0 : vector<1x128xf32>, vector<1x128xf32>, vector<1x128xf32>, vector<1x128xf32>, vector<1x128xf32> -> vector<5x128xf32>
    %686 = vector.extract_strided_slice %685 {offsets = [0, 0], sizes = [1, 128], strides = [1, 1]} : vector<5x128xf32> to vector<1x128xf32>
    %687 = vector.extract_strided_slice %685 {offsets = [1, 0], sizes = [1, 128], strides = [1, 1]} : vector<5x128xf32> to vector<1x128xf32>
    %688 = vector.extract_strided_slice %685 {offsets = [2, 0], sizes = [1, 128], strides = [1, 1]} : vector<5x128xf32> to vector<1x128xf32>
    %689 = vector.extract_strided_slice %685 {offsets = [3, 0], sizes = [1, 128], strides = [1, 1]} : vector<5x128xf32> to vector<1x128xf32>
    %690 = vector.extract_strided_slice %685 {offsets = [4, 0], sizes = [1, 128], strides = [1, 1]} : vector<5x128xf32> to vector<1x128xf32>
    %691 = tpu.concatenate %686, %687, %688, %689, %690 in 1 : vector<1x128xf32>, vector<1x128xf32>, vector<1x128xf32>, vector<1x128xf32>, vector<1x128xf32> -> vector<1x640xf32>
    %c224 = arith.constant 224 : index
    %c0_74 = arith.constant 0 : index
    %692 = vector.load %arg1[%c224, %c0_74] : memref<256x128xbf16, #tpu.memory_space<vmem>>, vector<28x128xbf16>
    %c225 = arith.constant 225 : index
    %c0_75 = arith.constant 0 : index
    %693 = vector.load %arg1[%c225, %c0_75] : memref<256x128xbf16, #tpu.memory_space<vmem>>, vector<28x128xbf16>
    %c226 = arith.constant 226 : index
    %c0_76 = arith.constant 0 : index
    %694 = vector.load %arg1[%c226, %c0_76] : memref<256x128xbf16, #tpu.memory_space<vmem>>, vector<28x128xbf16>
    %c227 = arith.constant 227 : index
    %c0_77 = arith.constant 0 : index
    %695 = vector.load %arg1[%c227, %c0_77] : memref<256x128xbf16, #tpu.memory_space<vmem>>, vector<28x128xbf16>
    %c228 = arith.constant 228 : index
    %c0_78 = arith.constant 0 : index
    %696 = vector.load %arg1[%c228, %c0_78] : memref<256x128xbf16, #tpu.memory_space<vmem>>, vector<28x128xbf16>
    %697 = tpu.concatenate %692, %693, %694, %695, %696 in 1 : vector<28x128xbf16>, vector<28x128xbf16>, vector<28x128xbf16>, vector<28x128xbf16>, vector<28x128xbf16> -> vector<28x640xbf16>
    %cst_79 = arith.constant dense<0.000000e+00> : vector<28x256xf32>
    %698 = tpu.matmul %697, %0, %cst_79 {dimension_numbers = #tpu.dot_dimension_numbers<[1], [0], [0], [1], [0, 0, 1, 1], [], []>} : vector<28x640xbf16>, vector<640x256xbf16>, vector<28x256xf32> -> vector<28x256xf32>
    %699 = vector.broadcast %2 : vector<1x256xf32> to vector<28x256xf32>
    %700 = arith.mulf %698, %699 : vector<28x256xf32>
    %701 = vector.broadcast %3 : vector<1x256xf32> to vector<28x256xf32>
    %702 = arith.addf %700, %701 : vector<28x256xf32>
    %cst_80 = arith.constant 0.000000e+00 : f32
    %703 = vector.broadcast %cst_80 : f32 to vector<28x256xf32>
    %704 = arith.maximumf %702, %703 : vector<28x256xf32>
    %705 = vector.extract_strided_slice %704 {offsets = [0, 0], sizes = [28, 128], strides = [1, 1]} : vector<28x256xf32> to vector<28x128xf32>
    %706 = vector.extract_strided_slice %704 {offsets = [0, 128], sizes = [28, 128], strides = [1, 1]} : vector<28x256xf32> to vector<28x128xf32>
    %707 = arith.maximumf %705, %706 : vector<28x128xf32>
    %708 = vector.extract_strided_slice %707 {offsets = [0, 0], sizes = [1, 128], strides = [1, 1]} : vector<28x128xf32> to vector<1x128xf32>
    %709 = vector.extract_strided_slice %707 {offsets = [1, 0], sizes = [1, 128], strides = [1, 1]} : vector<28x128xf32> to vector<1x128xf32>
    %710 = arith.maximumf %708, %709 : vector<1x128xf32>
    %711 = vector.extract_strided_slice %707 {offsets = [2, 0], sizes = [1, 128], strides = [1, 1]} : vector<28x128xf32> to vector<1x128xf32>
    %712 = vector.extract_strided_slice %707 {offsets = [3, 0], sizes = [1, 128], strides = [1, 1]} : vector<28x128xf32> to vector<1x128xf32>
    %713 = arith.maximumf %711, %712 : vector<1x128xf32>
    %714 = vector.extract_strided_slice %707 {offsets = [4, 0], sizes = [1, 128], strides = [1, 1]} : vector<28x128xf32> to vector<1x128xf32>
    %715 = vector.extract_strided_slice %707 {offsets = [5, 0], sizes = [1, 128], strides = [1, 1]} : vector<28x128xf32> to vector<1x128xf32>
    %716 = arith.maximumf %714, %715 : vector<1x128xf32>
    %717 = vector.extract_strided_slice %707 {offsets = [6, 0], sizes = [1, 128], strides = [1, 1]} : vector<28x128xf32> to vector<1x128xf32>
    %718 = vector.extract_strided_slice %707 {offsets = [7, 0], sizes = [1, 128], strides = [1, 1]} : vector<28x128xf32> to vector<1x128xf32>
    %719 = arith.maximumf %717, %718 : vector<1x128xf32>
    %720 = vector.extract_strided_slice %707 {offsets = [8, 0], sizes = [1, 128], strides = [1, 1]} : vector<28x128xf32> to vector<1x128xf32>
    %721 = vector.extract_strided_slice %707 {offsets = [9, 0], sizes = [1, 128], strides = [1, 1]} : vector<28x128xf32> to vector<1x128xf32>
    %722 = arith.maximumf %720, %721 : vector<1x128xf32>
    %723 = vector.extract_strided_slice %707 {offsets = [10, 0], sizes = [1, 128], strides = [1, 1]} : vector<28x128xf32> to vector<1x128xf32>
    %724 = vector.extract_strided_slice %707 {offsets = [11, 0], sizes = [1, 128], strides = [1, 1]} : vector<28x128xf32> to vector<1x128xf32>
    %725 = arith.maximumf %723, %724 : vector<1x128xf32>
    %726 = vector.extract_strided_slice %707 {offsets = [12, 0], sizes = [1, 128], strides = [1, 1]} : vector<28x128xf32> to vector<1x128xf32>
    %727 = vector.extract_strided_slice %707 {offsets = [13, 0], sizes = [1, 128], strides = [1, 1]} : vector<28x128xf32> to vector<1x128xf32>
    %728 = arith.maximumf %726, %727 : vector<1x128xf32>
    %729 = vector.extract_strided_slice %707 {offsets = [14, 0], sizes = [1, 128], strides = [1, 1]} : vector<28x128xf32> to vector<1x128xf32>
    %730 = vector.extract_strided_slice %707 {offsets = [15, 0], sizes = [1, 128], strides = [1, 1]} : vector<28x128xf32> to vector<1x128xf32>
    %731 = arith.maximumf %729, %730 : vector<1x128xf32>
    %732 = vector.extract_strided_slice %707 {offsets = [16, 0], sizes = [1, 128], strides = [1, 1]} : vector<28x128xf32> to vector<1x128xf32>
    %733 = vector.extract_strided_slice %707 {offsets = [17, 0], sizes = [1, 128], strides = [1, 1]} : vector<28x128xf32> to vector<1x128xf32>
    %734 = arith.maximumf %732, %733 : vector<1x128xf32>
    %735 = vector.extract_strided_slice %707 {offsets = [18, 0], sizes = [1, 128], strides = [1, 1]} : vector<28x128xf32> to vector<1x128xf32>
    %736 = vector.extract_strided_slice %707 {offsets = [19, 0], sizes = [1, 128], strides = [1, 1]} : vector<28x128xf32> to vector<1x128xf32>
    %737 = arith.maximumf %735, %736 : vector<1x128xf32>
    %738 = vector.extract_strided_slice %707 {offsets = [20, 0], sizes = [1, 128], strides = [1, 1]} : vector<28x128xf32> to vector<1x128xf32>
    %739 = vector.extract_strided_slice %707 {offsets = [21, 0], sizes = [1, 128], strides = [1, 1]} : vector<28x128xf32> to vector<1x128xf32>
    %740 = arith.maximumf %738, %739 : vector<1x128xf32>
    %741 = vector.extract_strided_slice %707 {offsets = [22, 0], sizes = [1, 128], strides = [1, 1]} : vector<28x128xf32> to vector<1x128xf32>
    %742 = vector.extract_strided_slice %707 {offsets = [23, 0], sizes = [1, 128], strides = [1, 1]} : vector<28x128xf32> to vector<1x128xf32>
    %743 = arith.maximumf %741, %742 : vector<1x128xf32>
    %744 = vector.extract_strided_slice %707 {offsets = [24, 0], sizes = [1, 128], strides = [1, 1]} : vector<28x128xf32> to vector<1x128xf32>
    %745 = vector.extract_strided_slice %707 {offsets = [25, 0], sizes = [1, 128], strides = [1, 1]} : vector<28x128xf32> to vector<1x128xf32>
    %746 = arith.maximumf %744, %745 : vector<1x128xf32>
    %747 = vector.extract_strided_slice %707 {offsets = [26, 0], sizes = [1, 128], strides = [1, 1]} : vector<28x128xf32> to vector<1x128xf32>
    %748 = vector.extract_strided_slice %707 {offsets = [27, 0], sizes = [1, 128], strides = [1, 1]} : vector<28x128xf32> to vector<1x128xf32>
    %749 = arith.maximumf %747, %748 : vector<1x128xf32>
    %750 = tpu.concatenate %710, %713, %716, %719, %722, %725, %728, %731, %734, %737, %740, %743, %746, %749 in 0 : vector<1x128xf32>, vector<1x128xf32>, vector<1x128xf32>, vector<1x128xf32>, vector<1x128xf32>, vector<1x128xf32>, vector<1x128xf32>, vector<1x128xf32>, vector<1x128xf32>, vector<1x128xf32>, vector<1x128xf32>, vector<1x128xf32>, vector<1x128xf32>, vector<1x128xf32> -> vector<14x128xf32>
    %751 = vector.extract_strided_slice %750 {offsets = [0, 0], sizes = [10, 128], strides = [1, 1]} : vector<14x128xf32> to vector<10x128xf32>
    %752 = vector.extract_strided_slice %750 {offsets = [1, 0], sizes = [10, 128], strides = [1, 1]} : vector<14x128xf32> to vector<10x128xf32>
    %753 = vector.extract_strided_slice %750 {offsets = [2, 0], sizes = [10, 128], strides = [1, 1]} : vector<14x128xf32> to vector<10x128xf32>
    %754 = vector.extract_strided_slice %750 {offsets = [3, 0], sizes = [10, 128], strides = [1, 1]} : vector<14x128xf32> to vector<10x128xf32>
    %755 = vector.extract_strided_slice %750 {offsets = [4, 0], sizes = [10, 128], strides = [1, 1]} : vector<14x128xf32> to vector<10x128xf32>
    %756 = tpu.concatenate %751, %752, %753, %754, %755 in 1 : vector<10x128xf32>, vector<10x128xf32>, vector<10x128xf32>, vector<10x128xf32>, vector<10x128xf32> -> vector<10x640xf32>
    %757 = arith.truncf %756 : vector<10x640xf32> to vector<10x640xbf16>
    %cst_81 = arith.constant dense<0.000000e+00> : vector<10x256xf32>
    %758 = tpu.matmul %757, %1, %cst_81 {dimension_numbers = #tpu.dot_dimension_numbers<[1], [0], [0], [1], [0, 0, 1, 1], [], []>} : vector<10x640xbf16>, vector<640x256xbf16>, vector<10x256xf32> -> vector<10x256xf32>
    %759 = vector.broadcast %4 : vector<1x256xf32> to vector<10x256xf32>
    %760 = arith.mulf %758, %759 : vector<10x256xf32>
    %761 = vector.broadcast %5 : vector<1x256xf32> to vector<10x256xf32>
    %762 = arith.addf %760, %761 : vector<10x256xf32>
    %cst_82 = arith.constant 0.000000e+00 : f32
    %763 = vector.broadcast %cst_82 : f32 to vector<10x256xf32>
    %764 = arith.maximumf %762, %763 : vector<10x256xf32>
    %765 = vector.extract_strided_slice %764 {offsets = [0, 0], sizes = [10, 128], strides = [1, 1]} : vector<10x256xf32> to vector<10x128xf32>
    %766 = vector.extract_strided_slice %764 {offsets = [0, 128], sizes = [10, 128], strides = [1, 1]} : vector<10x256xf32> to vector<10x128xf32>
    %767 = arith.maximumf %765, %766 : vector<10x128xf32>
    %768 = vector.extract_strided_slice %767 {offsets = [0, 0], sizes = [1, 128], strides = [1, 1]} : vector<10x128xf32> to vector<1x128xf32>
    %769 = vector.extract_strided_slice %767 {offsets = [1, 0], sizes = [1, 128], strides = [1, 1]} : vector<10x128xf32> to vector<1x128xf32>
    %770 = arith.maximumf %768, %769 : vector<1x128xf32>
    %771 = vector.extract_strided_slice %767 {offsets = [2, 0], sizes = [1, 128], strides = [1, 1]} : vector<10x128xf32> to vector<1x128xf32>
    %772 = vector.extract_strided_slice %767 {offsets = [3, 0], sizes = [1, 128], strides = [1, 1]} : vector<10x128xf32> to vector<1x128xf32>
    %773 = arith.maximumf %771, %772 : vector<1x128xf32>
    %774 = vector.extract_strided_slice %767 {offsets = [4, 0], sizes = [1, 128], strides = [1, 1]} : vector<10x128xf32> to vector<1x128xf32>
    %775 = vector.extract_strided_slice %767 {offsets = [5, 0], sizes = [1, 128], strides = [1, 1]} : vector<10x128xf32> to vector<1x128xf32>
    %776 = arith.maximumf %774, %775 : vector<1x128xf32>
    %777 = vector.extract_strided_slice %767 {offsets = [6, 0], sizes = [1, 128], strides = [1, 1]} : vector<10x128xf32> to vector<1x128xf32>
    %778 = vector.extract_strided_slice %767 {offsets = [7, 0], sizes = [1, 128], strides = [1, 1]} : vector<10x128xf32> to vector<1x128xf32>
    %779 = arith.maximumf %777, %778 : vector<1x128xf32>
    %780 = vector.extract_strided_slice %767 {offsets = [8, 0], sizes = [1, 128], strides = [1, 1]} : vector<10x128xf32> to vector<1x128xf32>
    %781 = vector.extract_strided_slice %767 {offsets = [9, 0], sizes = [1, 128], strides = [1, 1]} : vector<10x128xf32> to vector<1x128xf32>
    %782 = arith.maximumf %780, %781 : vector<1x128xf32>
    %783 = tpu.concatenate %770, %773, %776, %779, %782 in 0 : vector<1x128xf32>, vector<1x128xf32>, vector<1x128xf32>, vector<1x128xf32>, vector<1x128xf32> -> vector<5x128xf32>
    %784 = vector.extract_strided_slice %783 {offsets = [0, 0], sizes = [1, 128], strides = [1, 1]} : vector<5x128xf32> to vector<1x128xf32>
    %785 = vector.extract_strided_slice %783 {offsets = [1, 0], sizes = [1, 128], strides = [1, 1]} : vector<5x128xf32> to vector<1x128xf32>
    %786 = vector.extract_strided_slice %783 {offsets = [2, 0], sizes = [1, 128], strides = [1, 1]} : vector<5x128xf32> to vector<1x128xf32>
    %787 = vector.extract_strided_slice %783 {offsets = [3, 0], sizes = [1, 128], strides = [1, 1]} : vector<5x128xf32> to vector<1x128xf32>
    %788 = vector.extract_strided_slice %783 {offsets = [4, 0], sizes = [1, 128], strides = [1, 1]} : vector<5x128xf32> to vector<1x128xf32>
    %789 = tpu.concatenate %784, %785, %786, %787, %788 in 1 : vector<1x128xf32>, vector<1x128xf32>, vector<1x128xf32>, vector<1x128xf32>, vector<1x128xf32> -> vector<1x640xf32>
    %790 = tpu.concatenate %103, %201, %299, %397, %495, %593, %691, %789 in 0 : vector<1x640xf32>, vector<1x640xf32>, vector<1x640xf32>, vector<1x640xf32>, vector<1x640xf32>, vector<1x640xf32>, vector<1x640xf32>, vector<1x640xf32> -> vector<8x640xf32>
    %791 = arith.truncf %790 : vector<8x640xf32> to vector<8x640xbf16>
    %c0_83 = arith.constant 0 : index
    %c0_84 = arith.constant 0 : index
    %792 = vector.load %arg8[%c0_83, %c0_84] : memref<640x128xbf16, #tpu.memory_space<vmem>>, vector<640x128xbf16>
    %cst_85 = arith.constant dense<0.000000e+00> : vector<8x128xf32>
    %793 = tpu.matmul %791, %792, %cst_85 {dimension_numbers = #tpu.dot_dimension_numbers<[1], [0], [0], [1], [0, 0, 1, 1], [], []>} : vector<8x640xbf16>, vector<640x128xbf16>, vector<8x128xf32> -> vector<8x128xf32>
    %c0_86 = arith.constant 0 : index
    %c0_87 = arith.constant 0 : index
    %794 = vector.load %arg9[%c0_86, %c0_87] : memref<1x128xf32, #tpu.memory_space<vmem>>, vector<1x128xf32>
    %795 = vector.broadcast %794 : vector<1x128xf32> to vector<8x128xf32>
    %796 = arith.addf %793, %795 : vector<8x128xf32>
    %cst_88 = arith.constant 0.000000e+00 : f32
    %797 = vector.broadcast %cst_88 : f32 to vector<8x128xf32>
    %798 = arith.maximumf %796, %797 : vector<8x128xf32>
    %799 = arith.truncf %798 : vector<8x128xf32> to vector<8x128xbf16>
    %c0_89 = arith.constant 0 : index
    %c0_90 = arith.constant 0 : index
    %800 = vector.load %arg10[%c0_89, %c0_90] : memref<128x128xbf16, #tpu.memory_space<vmem>>, vector<128x128xbf16>
    %cst_91 = arith.constant dense<0.000000e+00> : vector<8x128xf32>
    %801 = tpu.matmul %799, %800, %cst_91 {dimension_numbers = #tpu.dot_dimension_numbers<[1], [0], [0], [1], [0, 0, 1, 1], [], []>} : vector<8x128xbf16>, vector<128x128xbf16>, vector<8x128xf32> -> vector<8x128xf32>
    %c0_92 = arith.constant 0 : index
    %c0_93 = arith.constant 0 : index
    %802 = vector.load %arg11[%c0_92, %c0_93] : memref<1x128xf32, #tpu.memory_space<vmem>>, vector<1x128xf32>
    %803 = vector.broadcast %802 : vector<1x128xf32> to vector<8x128xf32>
    %804 = arith.addf %801, %803 : vector<8x128xf32>
    %cst_94 = arith.constant 0.000000e+00 : f32
    %805 = vector.broadcast %cst_94 : f32 to vector<8x128xf32>
    %806 = arith.maximumf %804, %805 : vector<8x128xf32>
    %807 = arith.truncf %806 : vector<8x128xf32> to vector<8x128xbf16>
    %c0_95 = arith.constant 0 : index
    %c0_96 = arith.constant 0 : index
    %808 = vector.load %arg12[%c0_95, %c0_96] : memref<128x128xbf16, #tpu.memory_space<vmem>>, vector<128x128xbf16>
    %cst_97 = arith.constant dense<0.000000e+00> : vector<8x128xf32>
    %809 = tpu.matmul %807, %808, %cst_97 {dimension_numbers = #tpu.dot_dimension_numbers<[1], [0], [0], [1], [0, 0, 1, 1], [], []>} : vector<8x128xbf16>, vector<128x128xbf16>, vector<8x128xf32> -> vector<8x128xf32>
    %c0_98 = arith.constant 0 : index
    %c0_99 = arith.constant 0 : index
    %810 = vector.load %arg13[%c0_98, %c0_99] : memref<1x128xf32, #tpu.memory_space<vmem>>, vector<1x128xf32>
    %811 = vector.broadcast %810 : vector<1x128xf32> to vector<8x128xf32>
    %812 = arith.addf %809, %811 : vector<8x128xf32>
    %c0_100 = arith.constant 0 : index
    %c0_101 = arith.constant 0 : index
    %813 = vector.load %arg14[%c0_100, %c0_101] : memref<8x128xf32, #tpu.memory_space<vmem>>, vector<8x128xf32>
    tpu.vector_store %arg14[%c0_100, %c0_101], %812 {strides = array<i32>} : memref<8x128xf32, #tpu.memory_space<vmem>>, vector<8x128xf32>,
    return
  }
  func.func @transform_0(%arg0: i32) -> (i32, i32) {
    %c0_i32 = arith.constant 0 : i32
    %c0_i32_0 = arith.constant 0 : i32
    return %arg0, %c0_i32 : i32, i32
  }
  func.func @transform_1(%arg0: i32) -> (i32, i32) {
    %c0_i32 = arith.constant 0 : i32
    %c0_i32_0 = arith.constant 0 : i32
    %c0_i32_1 = arith.constant 0 : i32
    return %c0_i32, %c0_i32_0 : i32, i32
  }
  func.func @transform_2(%arg0: i32) -> (i32, i32) {
    %c0_i32 = arith.constant 0 : i32
    %c0_i32_0 = arith.constant 0 : i32
    %c0_i32_1 = arith.constant 0 : i32
    return %c0_i32, %c0_i32_0 : i32, i32
  }
  func.func @transform_3(%arg0: i32) -> (i32, i32) {
    %c0_i32 = arith.constant 0 : i32
    %c0_i32_0 = arith.constant 0 : i32
    %c0_i32_1 = arith.constant 0 : i32
    return %c0_i32, %c0_i32_0 : i32, i32
  }
  func.func @transform_4(%arg0: i32) -> (i32, i32) {
    %c0_i32 = arith.constant 0 : i32
    %c0_i32_0 = arith.constant 0 : i32
    %c0_i32_1 = arith.constant 0 : i32
    return %c0_i32, %c0_i32_0 : i32, i32
  }
  func.func @transform_5(%arg0: i32) -> (i32, i32) {
    %c0_i32 = arith.constant 0 : i32
    %c0_i32_0 = arith.constant 0 : i32
    %c0_i32_1 = arith.constant 0 : i32
    return %c0_i32, %c0_i32_0 : i32, i32
  }
  func.func @transform_6(%arg0: i32) -> (i32, i32) {
    %c0_i32 = arith.constant 0 : i32
    %c0_i32_0 = arith.constant 0 : i32
    %c0_i32_1 = arith.constant 0 : i32
    return %c0_i32, %c0_i32_0 : i32, i32
  }
  func.func @transform_7(%arg0: i32) -> (i32, i32) {
    %c0_i32 = arith.constant 0 : i32
    %c0_i32_0 = arith.constant 0 : i32
    %c0_i32_1 = arith.constant 0 : i32
    return %c0_i32, %c0_i32_0 : i32, i32
  }
  func.func @transform_8(%arg0: i32) -> (i32, i32) {
    %c0_i32 = arith.constant 0 : i32
    %c0_i32_0 = arith.constant 0 : i32
    %c0_i32_1 = arith.constant 0 : i32
    return %c0_i32, %c0_i32_0 : i32, i32
  }
  func.func @transform_9(%arg0: i32) -> (i32, i32) {
    %c0_i32 = arith.constant 0 : i32
    %c0_i32_0 = arith.constant 0 : i32
    %c0_i32_1 = arith.constant 0 : i32
    return %c0_i32, %c0_i32_0 : i32, i32
  }
  func.func @transform_10(%arg0: i32) -> (i32, i32) {
    %c0_i32 = arith.constant 0 : i32
    %c0_i32_0 = arith.constant 0 : i32
    %c0_i32_1 = arith.constant 0 : i32
    return %c0_i32, %c0_i32_0 : i32, i32
  }
  func.func @transform_11(%arg0: i32) -> (i32, i32) {
    %c0_i32 = arith.constant 0 : i32
    %c0_i32_0 = arith.constant 0 : i32
    %c0_i32_1 = arith.constant 0 : i32
    return %c0_i32, %c0_i32_0 : i32, i32
  }
  func.func @transform_12(%arg0: i32) -> (i32, i32) {
    %c0_i32 = arith.constant 0 : i32
    %c0_i32_0 = arith.constant 0 : i32
    %c0_i32_1 = arith.constant 0 : i32
    return %c0_i32, %c0_i32_0 : i32, i32
  }
  func.func @transform_13(%arg0: i32) -> (i32, i32) {
    %c0_i32 = arith.constant 0 : i32
    %c0_i32_0 = arith.constant 0 : i32
    return %arg0, %c0_i32 : i32, i32
  }
}

</mosaic_0001>

<llo_original>
// kernel: lenet5_forward.1
$region0: #{lenet5_forward.1}
  #allocation0 [shape = 'u32[]', space=smem, size = 0x4, offset = 0x4, fixed_abs, tag = 'smem constant byte address 0x4 - core index']
  #allocation1 [shape = 'u32[144,128]{1,0:T(1,128)}', space=vmem, size = 0x12000, scoped, tag = 'internal scratch']
  %s0 = inlined_call_operand.vmem [shape: bf16[256,128], index: 0, kind: input, shape index: {}]
  %s1 = inlined_call_operand.vmem [shape: bf16[640,256], index: 1, kind: input, shape index: {}]
  %s2 = inlined_call_operand.vmem [shape: f32[1,256], index: 2, kind: input, shape index: {}]
  %s3 = inlined_call_operand.vmem [shape: f32[1,256], index: 3, kind: input, shape index: {}]
  %s4 = inlined_call_operand.vmem [shape: bf16[640,256], index: 4, kind: input, shape index: {}]
  %s5 = inlined_call_operand.vmem [shape: f32[1,256], index: 5, kind: input, shape index: {}]
  %s6 = inlined_call_operand.vmem [shape: f32[1,256], index: 6, kind: input, shape index: {}]
  %s7 = inlined_call_operand.vmem [shape: bf16[640,128], index: 7, kind: input, shape index: {}]
  %s8 = inlined_call_operand.vmem [shape: f32[1,128], index: 8, kind: input, shape index: {}]
  %s9 = inlined_call_operand.vmem [shape: bf16[128,128], index: 9, kind: input, shape index: {}]
  %s10 = inlined_call_operand.vmem [shape: f32[1,128], index: 10, kind: input, shape index: {}]
  %s11 = inlined_call_operand.vmem [shape: bf16[128,128], index: 11, kind: input, shape index: {}]
  %s12 = inlined_call_operand.vmem [shape: f32[1,128], index: 12, kind: input, shape index: {}]
  %s13 = inlined_call_operand.vmem [shape: f32[8,128], index: 13, kind: output, shape index: {}]
  %s14 = sld [smem:[#allocation0]]
  $region62: #{lenet5_forward.1} parent=0
    _
  %s16 = ssub.s32 1, %s14
  %s17 = scalar_select 0, %s16, %s14
  // Predicated region
  $region2: #{lenet5_forward.1} parent=0 // pred_check
    _
  $region3: #{lenet5_forward.1} parent=0 // pred_check_branch
    %19 = sbr.rel (0) target = $region5
  $region4: #{lenet5_forward.1} parent=0 // pred_region
    _
  $region5: #{lenet5_forward.1} parent=0 // pred_fallthru
    _
  // Predicated region
  $region6: #{lenet5_forward.1} parent=0 // pred_check
    _
  $region7: #{lenet5_forward.1} parent=0 // pred_check_branch
    %21 = sbr.rel (0) target = $region9
  $region8: #{lenet5_forward.1} parent=0 // pred_region
    _
  $region9: #{lenet5_forward.1} parent=0 // pred_fallthru
    _
  // Predicated region
  $region10: #{lenet5_forward.1} parent=0 // pred_check
    _
  $region11: #{lenet5_forward.1} parent=0 // pred_check_branch
    %23 = sbr.rel (0) target = $region13
  $region12: #{lenet5_forward.1} parent=0 // pred_region
    _
  $region13: #{lenet5_forward.1} parent=0 // pred_fallthru
    _
  // Predicated region
  $region14: #{lenet5_forward.1} parent=0 // pred_check
    _
  $region15: #{lenet5_forward.1} parent=0 // pred_check_branch
    %25 = sbr.rel (0) target = $region17
  $region16: #{lenet5_forward.1} parent=0 // pred_region
    _
  $region17: #{lenet5_forward.1} parent=0 // pred_fallthru
    _
  // Predicated region
  $region18: #{lenet5_forward.1} parent=0 // pred_check
    _
  $region19: #{lenet5_forward.1} parent=0 // pred_check_branch
    %27 = sbr.rel (0) target = $region21
  $region20: #{lenet5_forward.1} parent=0 // pred_region
    _
  $region21: #{lenet5_forward.1} parent=0 // pred_fallthru
    _
  // Predicated region
  $region22: #{lenet5_forward.1} parent=0 // pred_check
    _
  $region23: #{lenet5_forward.1} parent=0 // pred_check_branch
    %29 = sbr.rel (0) target = $region25
  $region24: #{lenet5_forward.1} parent=0 // pred_region
    _
  $region25: #{lenet5_forward.1} parent=0 // pred_fallthru
    _
  // Predicated region
  $region26: #{lenet5_forward.1} parent=0 // pred_check
    _
  $region27: #{lenet5_forward.1} parent=0 // pred_check_branch
    %31 = sbr.rel (0) target = $region29
  $region28: #{lenet5_forward.1} parent=0 // pred_region
    _
  $region29: #{lenet5_forward.1} parent=0 // pred_fallthru
    _
  // Predicated region
  $region30: #{lenet5_forward.1} parent=0 // pred_check
    _
  $region31: #{lenet5_forward.1} parent=0 // pred_check_branch
    %33 = sbr.rel (0) target = $region33
  $region32: #{lenet5_forward.1} parent=0 // pred_region
    _
  $region33: #{lenet5_forward.1} parent=0 // pred_fallthru
    _
  // Predicated region
  $region34: #{lenet5_forward.1} parent=0 // pred_check
    _
  $region35: #{lenet5_forward.1} parent=0 // pred_check_branch
    %35 = sbr.rel (0) target = $region37
  $region36: #{lenet5_forward.1} parent=0 // pred_region
    _
  $region37: #{lenet5_forward.1} parent=0 // pred_fallthru
    _
  // Predicated region
  $region38: #{lenet5_forward.1} parent=0 // pred_check
    _
  $region39: #{lenet5_forward.1} parent=0 // pred_check_branch
    %37 = sbr.rel (0) target = $region41
  $region40: #{lenet5_forward.1} parent=0 // pred_region
    _
  $region41: #{lenet5_forward.1} parent=0 // pred_fallthru
    _
  // Predicated region
  $region42: #{lenet5_forward.1} parent=0 // pred_check
    _
  $region43: #{lenet5_forward.1} parent=0 // pred_check_branch
    %39 = sbr.rel (0) target = $region45
  $region44: #{lenet5_forward.1} parent=0 // pred_region
    _
  $region45: #{lenet5_forward.1} parent=0 // pred_fallthru
    _
  // Predicated region
  $region46: #{lenet5_forward.1} parent=0 // pred_check
    _
  $region47: #{lenet5_forward.1} parent=0 // pred_check_branch
    %41 = sbr.rel (0) target = $region49
  $region48: #{lenet5_forward.1} parent=0 // pred_region
    _
  $region49: #{lenet5_forward.1} parent=0 // pred_fallthru
    _
  // Predicated region
  $region50: #{lenet5_forward.1} parent=0 // pred_check
    _
  $region51: #{lenet5_forward.1} parent=0 // pred_check_branch
    %43 = sbr.rel (0) target = $region53
  $region52: #{lenet5_forward.1} parent=0 // pred_region
    _
  $region53: #{lenet5_forward.1} parent=0 // pred_fallthru
    _
  %v45 = vld [vmem:[%s1] sm:$0xff]
  %v46 = vld [vmem:[%s1 + $0x8] sm:$0xff]
  %v47 = vld [vmem:[%s1 + $0x10] sm:$0xff]
  %v48 = vld [vmem:[%s1 + $0x18] sm:$0xff]
  %v49 = vld [vmem:[%s1 + $0x20] sm:$0xff]
  %v50 = vld [vmem:[%s1 + $0x28] sm:$0xff]
  %v51 = vld [vmem:[%s1 + $0x30] sm:$0xff]
  %v52 = vld [vmem:[%s1 + $0x38] sm:$0xff]
  %v53 = vld [vmem:[%s1 + $0x40] sm:$0xff]
  %v54 = vld [vmem:[%s1 + $0x48] sm:$0xff]
  %v55 = vld [vmem:[%s1 + $0x50] sm:$0xff]
  %v56 = vld [vmem:[%s1 + $0x58] sm:$0xff]
  %v57 = vld [vmem:[%s1 + $0x60] sm:$0xff]
  %v58 = vld [vmem:[%s1 + $0x68] sm:$0xff]
  %v59 = vld [vmem:[%s1 + $0x70] sm:$0xff]
  %v60 = vld [vmem:[%s1 + $0x78] sm:$0xff]
  %v61 = vld [vmem:[%s1 + $0x80] sm:$0xff]
  %v62 = vld [vmem:[%s1 + $0x88] sm:$0xff]
  %v63 = vld [vmem:[%s1 + $0x90] sm:$0xff]
  %v64 = vld [vmem:[%s1 + $0x98] sm:$0xff]
  %v65 = vld [vmem:[%s1 + $0xa0] sm:$0xff]
  %v66 = vld [vmem:[%s1 + $0xa8] sm:$0xff]
  %v67 = vld [vmem:[%s1 + $0xb0] sm:$0xff]
  %v68 = vld [vmem:[%s1 + $0xb8] sm:$0xff]
  %v69 = vld [vmem:[%s1 + $0xc0] sm:$0xff]
  %v70 = vld [vmem:[%s1 + $0xc8] sm:$0xff]
  %v71 = vld [vmem:[%s1 + $0xd0] sm:$0xff]
  %v72 = vld [vmem:[%s1 + $0xd8] sm:$0xff]
  %v73 = vld [vmem:[%s1 + $0xe0] sm:$0xff]
  %v74 = vld [vmem:[%s1 + $0xe8] sm:$0xff]
  %v75 = vld [vmem:[%s1 + $0xf0] sm:$0xff]
  %v76 = vld [vmem:[%s1 + $0xf8] sm:$0xff]
  %v77 = vld [vmem:[%s1 + $0x100] sm:$0xff]
  %v78 = vld [vmem:[%s1 + $0x108] sm:$0xff]
  %v79 = vld [vmem:[%s1 + $0x110] sm:$0xff]
  %v80 = vld [vmem:[%s1 + $0x118] sm:$0xff]
  %v81 = vld [vmem:[%s1 + $0x120] sm:$0xff]
  %v82 = vld [vmem:[%s1 + $0x128] sm:$0xff]
  %v83 = vld [vmem:[%s1 + $0x130] sm:$0xff]
  %v84 = vld [vmem:[%s1 + $0x138] sm:$0xff]
  %v85 = vld [vmem:[%s1 + $0x140] sm:$0xff]
  %v86 = vld [vmem:[%s1 + $0x148] sm:$0xff]
  %v87 = vld [vmem:[%s1 + $0x150] sm:$0xff]
  %v88 = vld [vmem:[%s1 + $0x158] sm:$0xff]
  %v89 = vld [vmem:[%s1 + $0x160] sm:$0xff]
  %v90 = vld [vmem:[%s1 + $0x168] sm:$0xff]
  %v91 = vld [vmem:[%s1 + $0x170] sm:$0xff]
  %v92 = vld [vmem:[%s1 + $0x178] sm:$0xff]
  %v93 = vld [vmem:[%s1 + $0x180] sm:$0xff]
  %v94 = vld [vmem:[%s1 + $0x188] sm:$0xff]
  %v95 = vld [vmem:[%s1 + $0x190] sm:$0xff]
  %v96 = vld [vmem:[%s1 + $0x198] sm:$0xff]
  %v97 = vld [vmem:[%s1 + $0x1a0] sm:$0xff]
  %v98 = vld [vmem:[%s1 + $0x1a8] sm:$0xff]
  %v99 = vld [vmem:[%s1 + $0x1b0] sm:$0xff]
  %v100 = vld [vmem:[%s1 + $0x1b8] sm:$0xff]
  %v101 = vld [vmem:[%s1 + $0x1c0] sm:$0xff]
  %v102 = vld [vmem:[%s1 + $0x1c8] sm:$0xff]
  %v103 = vld [vmem:[%s1 + $0x1d0] sm:$0xff]
  %v104 = vld [vmem:[%s1 + $0x1d8] sm:$0xff]
  %v105 = vld [vmem:[%s1 + $0x1e0] sm:$0xff]
  %v106 = vld [vmem:[%s1 + $0x1e8] sm:$0xff]
  %v107 = vld [vmem:[%s1 + $0x1f0] sm:$0xff]
  %v108 = vld [vmem:[%s1 + $0x1f8] sm:$0xff]
  %v109 = vld [vmem:[%s1 + $0x200] sm:$0xff]
  %v110 = vld [vmem:[%s1 + $0x208] sm:$0xff]
  %v111 = vld [vmem:[%s1 + $0x210] sm:$0xff]
  %v112 = vld [vmem:[%s1 + $0x218] sm:$0xff]
  %v113 = vld [vmem:[%s1 + $0x220] sm:$0xff]
  %v114 = vld [vmem:[%s1 + $0x228] sm:$0xff]
  %v115 = vld [vmem:[%s1 + $0x230] sm:$0xff]
  %v116 = vld [vmem:[%s1 + $0x238] sm:$0xff]
  %v117 = vld [vmem:[%s1 + $0x240] sm:$0xff]
  %v118 = vld [vmem:[%s1 + $0x248] sm:$0xff]
  %v119 = vld [vmem:[%s1 + $0x250] sm:$0xff]
  %v120 = vld [vmem:[%s1 + $0x258] sm:$0xff]
  %v121 = vld [vmem:[%s1 + $0x260] sm:$0xff]
  %v122 = vld [vmem:[%s1 + $0x268] sm:$0xff]
  %v123 = vld [vmem:[%s1 + $0x270] sm:$0xff]
  %v124 = vld [vmem:[%s1 + $0x278] sm:$0xff]
  %v125 = vld [vmem:[%s4] sm:$0xff]
  %v126 = vld [vmem:[%s4 + $0x8] sm:$0xff]
  %v127 = vld [vmem:[%s4 + $0x10] sm:$0xff]
  %v128 = vld [vmem:[%s4 + $0x18] sm:$0xff]
  %v129 = vld [vmem:[%s4 + $0x20] sm:$0xff]
  %v130 = vld [vmem:[%s4 + $0x28] sm:$0xff]
  %v131 = vld [vmem:[%s4 + $0x30] sm:$0xff]
  %v132 = vld [vmem:[%s4 + $0x38] sm:$0xff]
  %v133 = vld [vmem:[%s4 + $0x40] sm:$0xff]
  %v134 = vld [vmem:[%s4 + $0x48] sm:$0xff]
  %v135 = vld [vmem:[%s4 + $0x50] sm:$0xff]
  %v136 = vld [vmem:[%s4 + $0x58] sm:$0xff]
  %v137 = vld [vmem:[%s4 + $0x60] sm:$0xff]
  %v138 = vld [vmem:[%s4 + $0x68] sm:$0xff]
  %v139 = vld [vmem:[%s4 + $0x70] sm:$0xff]
  %v140 = vld [vmem:[%s4 + $0x78] sm:$0xff]
  %v141 = vld [vmem:[%s4 + $0x80] sm:$0xff]
  %v142 = vld [vmem:[%s4 + $0x88] sm:$0xff]
  %v143 = vld [vmem:[%s4 + $0x90] sm:$0xff]
  %v144 = vld [vmem:[%s4 + $0x98] sm:$0xff]
  %v145 = vld [vmem:[%s4 + $0xa0] sm:$0xff]
  %v146 = vld [vmem:[%s4 + $0xa8] sm:$0xff]
  %v147 = vld [vmem:[%s4 + $0xb0] sm:$0xff]
  %v148 = vld [vmem:[%s4 + $0xb8] sm:$0xff]
  %v149 = vld [vmem:[%s4 + $0xc0] sm:$0xff]
  %v150 = vld [vmem:[%s4 + $0xc8] sm:$0xff]
  %v151 = vld [vmem:[%s4 + $0xd0] sm:$0xff]
  %v152 = vld [vmem:[%s4 + $0xd8] sm:$0xff]
  %v153 = vld [vmem:[%s4 + $0xe0] sm:$0xff]
  %v154 = vld [vmem:[%s4 + $0xe8] sm:$0xff]
  %v155 = vld [vmem:[%s4 + $0xf0] sm:$0xff]
  %v156 = vld [vmem:[%s4 + $0xf8] sm:$0xff]
  %v157 = vld [vmem:[%s4 + $0x100] sm:$0xff]
  %v158 = vld [vmem:[%s4 + $0x108] sm:$0xff]
  %v159 = vld [vmem:[%s4 + $0x110] sm:$0xff]
  %v160 = vld [vmem:[%s4 + $0x118] sm:$0xff]
  %v161 = vld [vmem:[%s4 + $0x120] sm:$0xff]
  %v162 = vld [vmem:[%s4 + $0x128] sm:$0xff]
  %v163 = vld [vmem:[%s4 + $0x130] sm:$0xff]
  %v164 = vld [vmem:[%s4 + $0x138] sm:$0xff]
  %v165 = vld [vmem:[%s4 + $0x140] sm:$0xff]
  %v166 = vld [vmem:[%s4 + $0x148] sm:$0xff]
  %v167 = vld [vmem:[%s4 + $0x150] sm:$0xff]
  %v168 = vld [vmem:[%s4 + $0x158] sm:$0xff]
  %v169 = vld [vmem:[%s4 + $0x160] sm:$0xff]
  %v170 = vld [vmem:[%s4 + $0x168] sm:$0xff]
  %v171 = vld [vmem:[%s4 + $0x170] sm:$0xff]
  %v172 = vld [vmem:[%s4 + $0x178] sm:$0xff]
  %v173 = vld [vmem:[%s4 + $0x180] sm:$0xff]
  %v174 = vld [vmem:[%s4 + $0x188] sm:$0xff]
  %v175 = vld [vmem:[%s4 + $0x190] sm:$0xff]
  %v176 = vld [vmem:[%s4 + $0x198] sm:$0xff]
  %v177 = vld [vmem:[%s4 + $0x1a0] sm:$0xff]
  %v178 = vld [vmem:[%s4 + $0x1a8] sm:$0xff]
  %v179 = vld [vmem:[%s4 + $0x1b0] sm:$0xff]
  %v180 = vld [vmem:[%s4 + $0x1b8] sm:$0xff]
  %v181 = vld [vmem:[%s4 + $0x1c0] sm:$0xff]
  %v182 = vld [vmem:[%s4 + $0x1c8] sm:$0xff]
  %v183 = vld [vmem:[%s4 + $0x1d0] sm:$0xff]
  %v184 = vld [vmem:[%s4 + $0x1d8] sm:$0xff]
  %v185 = vld [vmem:[%s4 + $0x1e0] sm:$0xff]
  %v186 = vld [vmem:[%s4 + $0x1e8] sm:$0xff]
  %v187 = vld [vmem:[%s4 + $0x1f0] sm:$0xff]
  %v188 = vld [vmem:[%s4 + $0x1f8] sm:$0xff]
  %v189 = vld [vmem:[%s4 + $0x200] sm:$0xff]
  %v190 = vld [vmem:[%s4 + $0x208] sm:$0xff]
  %v191 = vld [vmem:[%s4 + $0x210] sm:$0xff]
  %v192 = vld [vmem:[%s4 + $0x218] sm:$0xff]
  %v193 = vld [vmem:[%s4 + $0x220] sm:$0xff]
  %v194 = vld [vmem:[%s4 + $0x228] sm:$0xff]
  %v195 = vld [vmem:[%s4 + $0x230] sm:$0xff]
  %v196 = vld [vmem:[%s4 + $0x238] sm:$0xff]
  %v197 = vld [vmem:[%s4 + $0x240] sm:$0xff]
  %v198 = vld [vmem:[%s4 + $0x248] sm:$0xff]
  %v199 = vld [vmem:[%s4 + $0x250] sm:$0xff]
  %v200 = vld [vmem:[%s4 + $0x258] sm:$0xff]
  %v201 = vld [vmem:[%s4 + $0x260] sm:$0xff]
  %v202 = vld [vmem:[%s4 + $0x268] sm:$0xff]
  %v203 = vld [vmem:[%s4 + $0x270] sm:$0xff]
  %v204 = vld [vmem:[%s4 + $0x278] sm:$0xff]
  %v205 = vld [vmem:[%s2] sm:$0x3]
  %v206 = vld [vmem:[%s3] sm:$0x3]
  %v207 = vld [vmem:[%s5] sm:$0x3]
  %v208 = vld [vmem:[%s6] sm:$0x3]
  %v209 = vld [vmem:[%s0] sm:$0xf]
  %v210 = vld [vmem:[%s0 + $0x4] sm:$0xf]
  %v211 = vld [vmem:[%s0 + $0x8] sm:$0xf]
  %v212 = vld [vmem:[%s0 + $0xc] sm:$0x3]
  %v213 = vld [vmem:[%s0 + $0xc] sm:$0x7]
  %v214 = vld [vmem:[%s0] sm:$0xe]
  %v215 = vld [vmem:[%s0 + $0xc] sm:$0xf]
  %v216 = vld [vmem:[%s0] sm:$0xc]
  %v221 = vunpack.c.l.b16 %v209
  %v222 = vunpack.c.l.b16 %v210
  %v223 = vunpack.c.l.b16 %v211
  %v224 = vunpack.c.l.b16 %v212
  %v225 = vpack.c.b16 %v222, %v221
  %v226 = vpack.c.b16 %v224, %v223
  %v230 = vunpack.c.l.b16 %v213
  %v231 = vpack.c.b16 %v230, %v223
  %vm232 = vsmask.f32 7424
  %v234 = vshrl.u32 %v225, 16
  %v236 = vshll.u32 %v225, 16
  %v238 = vrot.slane %v236, 1
  %v239 = vor.u32 %v234, %v238
  %v241 = vshll.u32 %v231, 16
  %v243 = vrot.slane %v241, 1
  %v244 = vsel %vm232, %v239, %v243
  %v245 = vshrl.u32 %v231, 16
  %v247 = vor.u32 %v245, %v243
  %v251 = vunpack.c.l.b16 %v214
  %v252 = vpack.c.b16 %v222, %v251
  %vm253 = vcmask 1046528
  %v254 = vrot.slane %v252, 1
  %v255 = vrot.slane %v231, 1
  %v256 = vsel %vm253, %v254, %v255
  %v260 = vunpack.c.l.b16 %v215
  %v261 = vpack.c.b16 %v260, %v223
  %vm262 = vsmask.f32 6400
  %v264 = vshrl.u32 %v252, 16
  %v266 = vrot.slane %v264, 1
  %v267 = vshll.u32 %v252, 16
  %v269 = vrot.slane %v267, 2
  %v270 = vor.u32 %v266, %v269
  %v272 = vshrl.u32 %v261, 16
  %v274 = vrot.slane %v272, 1
  %v275 = vshll.u32 %v261, 16
  %v277 = vrot.slane %v275, 2
  %v278 = vor.u32 %v274, %v277
  %v279 = vsel %vm262, %v270, %v278
  %v283 = vunpack.c.l.b16 %v216
  %v284 = vpack.c.b16 %v222, %v283
  %vm285 = vcmask 1045504
  %v286 = vrot.slane %v284, 2
  %v287 = vrot.slane %v261, 2
  %v288 = vsel %vm285, %v286, %v287
  %v371 = vunpack.c.l.b16 %v45
  %v372 = vunpack.c.h.b16 %v45
  %v373 = vunpack.c.l.b16 %v46
  %v374 = vunpack.c.h.b16 %v46
  %v375 = vunpack.c.l.b16 %v47
  %v376 = vunpack.c.h.b16 %v47
  %v377 = vunpack.c.l.b16 %v48
  %v378 = vunpack.c.h.b16 %v48
  %v379 = vunpack.c.l.b16 %v49
  %v380 = vunpack.c.h.b16 %v49
  %v381 = vunpack.c.l.b16 %v50
  %v382 = vunpack.c.h.b16 %v50
  %v383 = vunpack.c.l.b16 %v51
  %v384 = vunpack.c.h.b16 %v51
  %v385 = vunpack.c.l.b16 %v52
  %v386 = vunpack.c.h.b16 %v52
  %v387 = vunpack.c.l.b16 %v53
  %v388 = vunpack.c.h.b16 %v53
  %v389 = vunpack.c.l.b16 %v54
  %v390 = vunpack.c.h.b16 %v54
  %v391 = vunpack.c.l.b16 %v55
  %v392 = vunpack.c.h.b16 %v55
  %v393 = vunpack.c.l.b16 %v56
  %v394 = vunpack.c.h.b16 %v56
  %v395 = vunpack.c.l.b16 %v57
  %v396 = vunpack.c.h.b16 %v57
  %v397 = vunpack.c.l.b16 %v58
  %v398 = vunpack.c.h.b16 %v58
  %v399 = vunpack.c.l.b16 %v59
  %v400 = vunpack.c.h.b16 %v59
  %v401 = vunpack.c.l.b16 %v60
  %v402 = vunpack.c.h.b16 %v60
  %v403 = vunpack.c.l.b16 %v61
  %v404 = vunpack.c.h.b16 %v61
  %v405 = vunpack.c.l.b16 %v62
  %v406 = vunpack.c.h.b16 %v62
  %v407 = vunpack.c.l.b16 %v63
  %v408 = vunpack.c.h.b16 %v63
  %v409 = vunpack.c.l.b16 %v64
  %v410 = vunpack.c.h.b16 %v64
  %v411 = vunpack.c.l.b16 %v65
  %v412 = vunpack.c.h.b16 %v65
  %v413 = vunpack.c.l.b16 %v66
  %v414 = vunpack.c.h.b16 %v66
  %v415 = vunpack.c.l.b16 %v67
  %v416 = vunpack.c.h.b16 %v67
  %v417 = vunpack.c.l.b16 %v68
  %v418 = vunpack.c.h.b16 %v68
  %v419 = vunpack.c.l.b16 %v69
  %v420 = vunpack.c.h.b16 %v69
  %v421 = vunpack.c.l.b16 %v70
  %v422 = vunpack.c.h.b16 %v70
  %v423 = vunpack.c.l.b16 %v71
  %v424 = vunpack.c.h.b16 %v71
  %v425 = vunpack.c.l.b16 %v72
  %v426 = vunpack.c.h.b16 %v72
  %v427 = vunpack.c.l.b16 %v73
  %v428 = vunpack.c.h.b16 %v73
  %v429 = vunpack.c.l.b16 %v74
  %v430 = vunpack.c.h.b16 %v74
  %v431 = vunpack.c.l.b16 %v75
  %v432 = vunpack.c.h.b16 %v75
  %v433 = vunpack.c.l.b16 %v76
  %v434 = vunpack.c.h.b16 %v76
  %v435 = vunpack.c.l.b16 %v77
  %v436 = vunpack.c.h.b16 %v77
  %v437 = vunpack.c.l.b16 %v78
  %v438 = vunpack.c.h.b16 %v78
  %v439 = vunpack.c.l.b16 %v79
  %v440 = vunpack.c.h.b16 %v79
  %v441 = vunpack.c.l.b16 %v80
  %v442 = vunpack.c.h.b16 %v80
  %v443 = vunpack.c.l.b16 %v81
  %v444 = vunpack.c.h.b16 %v81
  %v445 = vunpack.c.l.b16 %v82
  %v446 = vunpack.c.h.b16 %v82
  %v447 = vunpack.c.l.b16 %v83
  %v448 = vunpack.c.h.b16 %v83
  %v449 = vunpack.c.l.b16 %v84
  %v450 = vunpack.c.h.b16 %v84
  %v451 = vunpack.c.l.b16 %v85
  %v452 = vunpack.c.h.b16 %v85
  %v453 = vunpack.c.l.b16 %v86
  %v454 = vunpack.c.h.b16 %v86
  %v455 = vunpack.c.l.b16 %v87
  %v456 = vunpack.c.h.b16 %v87
  %v457 = vunpack.c.l.b16 %v88
  %v458 = vunpack.c.h.b16 %v88
  %v459 = vunpack.c.l.b16 %v89
  %v460 = vunpack.c.h.b16 %v89
  %v461 = vunpack.c.l.b16 %v90
  %v462 = vunpack.c.h.b16 %v90
  %v463 = vunpack.c.l.b16 %v91
  %v464 = vunpack.c.h.b16 %v91
  %v465 = vunpack.c.l.b16 %v92
  %v466 = vunpack.c.h.b16 %v92
  %v467 = vunpack.c.l.b16 %v93
  %v468 = vunpack.c.h.b16 %v93
  %v469 = vunpack.c.l.b16 %v94
  %v470 = vunpack.c.h.b16 %v94
  %v471 = vunpack.c.l.b16 %v95
  %v472 = vunpack.c.h.b16 %v95
  %v473 = vunpack.c.l.b16 %v96
  %v474 = vunpack.c.h.b16 %v96
  %v475 = vunpack.c.l.b16 %v97
  %v476 = vunpack.c.h.b16 %v97
  %v477 = vunpack.c.l.b16 %v98
  %v478 = vunpack.c.h.b16 %v98
  %v479 = vunpack.c.l.b16 %v99
  %v480 = vunpack.c.h.b16 %v99
  %v481 = vunpack.c.l.b16 %v100
  %v482 = vunpack.c.h.b16 %v100
  %v483 = vunpack.c.l.b16 %v101
  %v484 = vunpack.c.h.b16 %v101
  %v485 = vunpack.c.l.b16 %v102
  %v486 = vunpack.c.h.b16 %v102
  %v487 = vunpack.c.l.b16 %v103
  %v488 = vunpack.c.h.b16 %v103
  %v489 = vunpack.c.l.b16 %v104
  %v490 = vunpack.c.h.b16 %v104
  %v491 = vunpack.c.l.b16 %v105
  %v492 = vunpack.c.h.b16 %v105
  %v493 = vunpack.c.l.b16 %v106
  %v494 = vunpack.c.h.b16 %v106
  %v495 = vunpack.c.l.b16 %v107
  %v496 = vunpack.c.h.b16 %v107
  %v497 = vunpack.c.l.b16 %v108
  %v498 = vunpack.c.h.b16 %v108
  %v499 = vunpack.c.l.b16 %v109
  %v500 = vunpack.c.h.b16 %v109
  %v501 = vunpack.c.l.b16 %v110
  %v502 = vunpack.c.h.b16 %v110
  %v503 = vunpack.c.l.b16 %v111
  %v504 = vunpack.c.h.b16 %v111
  %v505 = vunpack.c.l.b16 %v112
  %v506 = vunpack.c.h.b16 %v112
  %v507 = vunpack.c.l.b16 %v113
  %v508 = vunpack.c.h.b16 %v113
  %v509 = vunpack.c.l.b16 %v114
  %v510 = vunpack.c.h.b16 %v114
  %v511 = vunpack.c.l.b16 %v115
  %v512 = vunpack.c.h.b16 %v115
  %v513 = vunpack.c.l.b16 %v116
  %v514 = vunpack.c.h.b16 %v116
  %v515 = vunpack.c.l.b16 %v117
  %v516 = vunpack.c.h.b16 %v117
  %v517 = vunpack.c.l.b16 %v118
  %v518 = vunpack.c.h.b16 %v118
  %v519 = vunpack.c.l.b16 %v119
  %v520 = vunpack.c.h.b16 %v119
  %v521 = vunpack.c.l.b16 %v120
  %v522 = vunpack.c.h.b16 %v120
  %v523 = vunpack.c.l.b16 %v121
  %v524 = vunpack.c.h.b16 %v121
  %v525 = vunpack.c.l.b16 %v122
  %v526 = vunpack.c.h.b16 %v122
  %v527 = vunpack.c.l.b16 %v123
  %v528 = vunpack.c.h.b16 %v123
  %v529 = vunpack.c.l.b16 %v124
  %v530 = vunpack.c.h.b16 %v124
  %v531 = vpack.c.b16 %v373, %v371
  %v532 = vpack.c.b16 %v374, %v372
  %v533 = vpack.c.b16 %v377, %v375
  %v534 = vpack.c.b16 %v378, %v376
  %v535 = vpack.c.b16 %v381, %v379
  %v536 = vpack.c.b16 %v382, %v380
  %v537 = vpack.c.b16 %v385, %v383
  %v538 = vpack.c.b16 %v386, %v384
  %v539 = vpack.c.b16 %v389, %v387
  %v540 = vpack.c.b16 %v390, %v388
  %v541 = vpack.c.b16 %v393, %v391
  %v542 = vpack.c.b16 %v394, %v392
  %v543 = vpack.c.b16 %v397, %v395
  %v544 = vpack.c.b16 %v398, %v396
  %v545 = vpack.c.b16 %v401, %v399
  %v546 = vpack.c.b16 %v402, %v400
  %v547 = vpack.c.b16 %v405, %v403
  %v548 = vpack.c.b16 %v406, %v404
  %v549 = vpack.c.b16 %v409, %v407
  %v550 = vpack.c.b16 %v410, %v408
  %v551 = vpack.c.b16 %v413, %v411
  %v552 = vpack.c.b16 %v414, %v412
  %v553 = vpack.c.b16 %v417, %v415
  %v554 = vpack.c.b16 %v418, %v416
  %v555 = vpack.c.b16 %v421, %v419
  %v556 = vpack.c.b16 %v422, %v420
  %v557 = vpack.c.b16 %v425, %v423
  %v558 = vpack.c.b16 %v426, %v424
  %v559 = vpack.c.b16 %v429, %v427
  %v560 = vpack.c.b16 %v430, %v428
  %v561 = vpack.c.b16 %v433, %v431
  %v562 = vpack.c.b16 %v434, %v432
  %v563 = vpack.c.b16 %v437, %v435
  %v564 = vpack.c.b16 %v438, %v436
  %v565 = vpack.c.b16 %v441, %v439
  %v566 = vpack.c.b16 %v442, %v440
  %v567 = vpack.c.b16 %v445, %v443
  %v568 = vpack.c.b16 %v446, %v444
  %v569 = vpack.c.b16 %v449, %v447
  %v570 = vpack.c.b16 %v450, %v448
  %v571 = vpack.c.b16 %v453, %v451
  %v572 = vpack.c.b16 %v454, %v452
  %v573 = vpack.c.b16 %v457, %v455
  %v574 = vpack.c.b16 %v458, %v456
  %v575 = vpack.c.b16 %v461, %v459
  %v576 = vpack.c.b16 %v462, %v460
  %v577 = vpack.c.b16 %v465, %v463
  %v578 = vpack.c.b16 %v466, %v464
  %v579 = vpack.c.b16 %v469, %v467
  %v580 = vpack.c.b16 %v470, %v468
  %v581 = vpack.c.b16 %v473, %v471
  %v582 = vpack.c.b16 %v474, %v472
  %v583 = vpack.c.b16 %v477, %v475
  %v584 = vpack.c.b16 %v478, %v476
  %v585 = vpack.c.b16 %v481, %v479
  %v586 = vpack.c.b16 %v482, %v480
  %v587 = vpack.c.b16 %v485, %v483
  %v588 = vpack.c.b16 %v486, %v484
  %v589 = vpack.c.b16 %v489, %v487
  %v590 = vpack.c.b16 %v490, %v488
  %v591 = vpack.c.b16 %v493, %v491
  %v592 = vpack.c.b16 %v494, %v492
  %v593 = vpack.c.b16 %v497, %v495
  %v594 = vpack.c.b16 %v498, %v496
  %v595 = vpack.c.b16 %v501, %v499
  %v596 = vpack.c.b16 %v502, %v500
  %v597 = vpack.c.b16 %v505, %v503
  %v598 = vpack.c.b16 %v506, %v504
  %v599 = vpack.c.b16 %v509, %v507
  %v600 = vpack.c.b16 %v510, %v508
  %v601 = vpack.c.b16 %v513, %v511
  %v602 = vpack.c.b16 %v514, %v512
  %v603 = vpack.c.b16 %v517, %v515
  %v604 = vpack.c.b16 %v518, %v516
  %v605 = vpack.c.b16 %v521, %v519
  %v606 = vpack.c.b16 %v522, %v520
  %v607 = vpack.c.b16 %v525, %v523
  %v608 = vpack.c.b16 %v526, %v524
  %v609 = vpack.c.b16 %v529, %v527
  %v610 = vpack.c.b16 %v530, %v528
  %691 = vmatprep.subr.bf16.mxu0 %v546
  %692 = vmatpush1.bf16.msra.mxu0 %v545
  %693 = vmatprep.subr.bf16.mxu0 %v544
  %694 = vmatpush1.bf16.msra.mxu0 %v543
  %695 = vmatprep.subr.bf16.mxu0 %v542
  %696 = vmatpush1.bf16.msra.mxu0 %v541
  %697 = vmatprep.subr.bf16.mxu0 %v540
  %698 = vmatpush1.bf16.msra.mxu0 %v539
  %699 = vmatprep.subr.bf16.mxu0 %v538
  %700 = vmatpush1.bf16.msra.mxu0 %v537
  %701 = vmatprep.subr.bf16.mxu0 %v536
  %702 = vmatpush1.bf16.msra.mxu0 %v535
  %703 = vmatprep.subr.bf16.mxu0 %v534
  %704 = vmatpush1.bf16.msra.mxu0 %v533
  %705 = vmatprep.subr.bf16.mxu0 %v532
  %706 = vmatpush1.bf16.msra.mxu0 %v531
  %707 = vmatprep.subr.bf16.mxu0 %v562
  %708 = vmatpush2.bf16.msra.mxu0 %v561
  %709 = vmatprep.subr.bf16.mxu0 %v560
  %710 = vmatpush2.bf16.msra.mxu0 %v559
  %711 = vmatprep.subr.bf16.mxu0 %v558
  %712 = vmatpush2.bf16.msra.mxu0 %v557
  %713 = vmatprep.subr.bf16.mxu0 %v556
  %714 = vmatpush2.bf16.msra.mxu0 %v555
  %715 = vmatprep.subr.bf16.mxu0 %v554
  %716 = vmatpush2.bf16.msra.mxu0 %v553
  %717 = vmatprep.subr.bf16.mxu0 %v552
  %718 = vmatpush2.bf16.msra.mxu0 %v551
  %719 = vmatprep.subr.bf16.mxu0 %v550
  %720 = vmatpush2.bf16.msra.mxu0 %v549
  %721 = vmatprep.subr.bf16.mxu0 %v548
  %722 = vmatpush2.bf16.msra.mxu0 %v547
  %723 = vmatprep.mubr.bf16.mxu0 %v244
  %724 = vmatmul.mubr.bf16.gmra.mxu0 %v225
  %v725 = vpop.f32.mrf.mxu0
  %v726 = vadd.f32 0.0, %v725
  %v727 = vpop.f32.mrf.mxu0
  %v728 = vadd.f32 0.0, %v727
  %v729 = vpop.f32.mrf.mxu0
  %v730 = vadd.f32 0.0, %v729
  %v731 = vpop.f32.mrf.mxu0
  %v732 = vadd.f32 0.0, %v731
  %733 = vmatprep.mubr.bf16.mxu0 %v247
  %734 = vmatmul.mubr.bf16.gmra.mxu0 %v226
  %v735 = vpop.f32.mrf.mxu0
  %v736 = vadd.f32 0.0, %v735
  %v737 = vpop.f32.mrf.mxu0
  %v738 = vadd.f32 0.0, %v737
  %v739 = vpop.f32.mrf.mxu0
  %v740 = vadd.f32 0.0, %v739
  %v741 = vpop.f32.mrf.mxu0
  %v742 = vadd.f32 0.0, %v741
  %743 = vdwg.mxu0
  %744 = vmatprep.subr.bf16.mxu0 %v578
  %745 = vmatpush1.bf16.msra.mxu0 %v577
  %746 = vmatprep.subr.bf16.mxu0 %v576
  %747 = vmatpush1.bf16.msra.mxu0 %v575
  %748 = vmatprep.subr.bf16.mxu0 %v574
  %749 = vmatpush1.bf16.msra.mxu0 %v573
  %750 = vmatprep.subr.bf16.mxu0 %v572
  %751 = vmatpush1.bf16.msra.mxu0 %v571
  %752 = vmatprep.subr.bf16.mxu0 %v570
  %753 = vmatpush1.bf16.msra.mxu0 %v569
  %754 = vmatprep.subr.bf16.mxu0 %v568
  %755 = vmatpush1.bf16.msra.mxu0 %v567
  %756 = vmatprep.subr.bf16.mxu0 %v566
  %757 = vmatpush1.bf16.msra.mxu0 %v565
  %758 = vmatprep.subr.bf16.mxu0 %v564
  %759 = vmatpush1.bf16.msra.mxu0 %v563
  %760 = vmatprep.subr.bf16.mxu0 %v594
  %761 = vmatpush2.bf16.msra.mxu0 %v593
  %762 = vmatprep.subr.bf16.mxu0 %v592
  %763 = vmatpush2.bf16.msra.mxu0 %v591
  %764 = vmatprep.subr.bf16.mxu0 %v590
  %765 = vmatpush2.bf16.msra.mxu0 %v589
  %766 = vmatprep.subr.bf16.mxu0 %v588
  %767 = vmatpush2.bf16.msra.mxu0 %v587
  %768 = vmatprep.subr.bf16.mxu0 %v586
  %769 = vmatpush2.bf16.msra.mxu0 %v585
  %770 = vmatprep.subr.bf16.mxu0 %v584
  %771 = vmatpush2.bf16.msra.mxu0 %v583
  %772 = vmatprep.subr.bf16.mxu0 %v582
  %773 = vmatpush2.bf16.msra.mxu0 %v581
  %774 = vmatprep.subr.bf16.mxu0 %v580
  %775 = vmatpush2.bf16.msra.mxu0 %v579
  %776 = vmatprep.mubr.bf16.mxu0 %v279
  %777 = vmatmul.mubr.bf16.gmra.mxu0 %v256
  %v778 = vpop.f32.mrf.mxu0
  %v779 = vadd.f32 %v726, %v778
  %v780 = vpop.f32.mrf.mxu0
  %v781 = vadd.f32 %v728, %v780
  %v782 = vpop.f32.mrf.mxu0
  %v783 = vadd.f32 %v730, %v782
  %v784 = vpop.f32.mrf.mxu0
  %v785 = vadd.f32 %v732, %v784
  %786 = vmatprep.mubr.bf16.mxu0 %v278
  %787 = vmatmul.mubr.bf16.gmra.mxu0 %v255
  %v788 = vpop.f32.mrf.mxu0
  %v789 = vadd.f32 %v736, %v788
  %v790 = vpop.f32.mrf.mxu0
  %v791 = vadd.f32 %v738, %v790
  %v792 = vpop.f32.mrf.mxu0
  %v793 = vadd.f32 %v740, %v792
  %v794 = vpop.f32.mrf.mxu0
  %v795 = vadd.f32 %v742, %v794
  %796 = vdwg.mxu0
  %797 = vmatprep.subr.bf16.mxu0 %v610
  %798 = vmatpush1.bf16.msra.mxu0 %v609
  %799 = vmatprep.subr.bf16.mxu0 %v608
  %800 = vmatpush1.bf16.msra.mxu0 %v607
  %801 = vmatprep.subr.bf16.mxu0 %v606
  %802 = vmatpush1.bf16.msra.mxu0 %v605
  %803 = vmatprep.subr.bf16.mxu0 %v604
  %804 = vmatpush1.bf16.msra.mxu0 %v603
  %805 = vmatprep.subr.bf16.mxu0 %v602
  %806 = vmatpush1.bf16.msra.mxu0 %v601
  %807 = vmatprep.subr.bf16.mxu0 %v600
  %808 = vmatpush1.bf16.msra.mxu0 %v599
  %809 = vmatprep.subr.bf16.mxu0 %v598
  %810 = vmatpush1.bf16.msra.mxu0 %v597
  %811 = vmatprep.subr.bf16.mxu0 %v596
  %812 = vmatpush1.bf16.msra.mxu0 %v595
  %813 = vmatprep.subr.bf16.mxu0 0
  %814 = vmatpush2.bf16.msra.mxu0 0
  %815 = vmatprep.subr.bf16.mxu0 0
  %816 = vmatpush2.bf16.msra.mxu0 0
  %817 = vmatprep.subr.bf16.mxu0 0
  %818 = vmatpush2.bf16.msra.mxu0 0
  %819 = vmatprep.subr.bf16.mxu0 0
  %820 = vmatpush2.bf16.msra.mxu0 0
  %821 = vmatprep.subr.bf16.mxu0 0
  %822 = vmatpush2.bf16.msra.mxu0 0
  %823 = vmatprep.subr.bf16.mxu0 0
  %824 = vmatpush2.bf16.msra.mxu0 0
  %825 = vmatprep.subr.bf16.mxu0 0
  %826 = vmatpush2.bf16.msra.mxu0 0
  %827 = vmatprep.subr.bf16.mxu0 0
  %828 = vmatpush2.bf16.msra.mxu0 0
  %829 = vmatprep.mubr.bf16.mxu0 0
  %830 = vmatmul.mubr.bf16.gmra.mxu0 %v288
  %v831 = vpop.f32.mrf.mxu0
  %v832 = vadd.f32 %v779, %v831
  %v833 = vpop.f32.mrf.mxu0
  %v834 = vadd.f32 %v781, %v833
  %v835 = vpop.f32.mrf.mxu0
  %v836 = vadd.f32 %v783, %v835
  %v837 = vpop.f32.mrf.mxu0
  %v838 = vadd.f32 %v785, %v837
  %839 = vmatprep.mubr.bf16.mxu0 0
  %840 = vmatmul.mubr.bf16.gmra.mxu0 %v287
  %v841 = vpop.f32.mrf.mxu0
  %v842 = vadd.f32 %v789, %v841
  %v843 = vpop.f32.mrf.mxu0
  %v844 = vadd.f32 %v791, %v843
  %v845 = vpop.f32.mrf.mxu0
  %v846 = vadd.f32 %v793, %v845
  %v847 = vpop.f32.mrf.mxu0
  %v848 = vadd.f32 %v795, %v847
  %849 = vdwg.mxu0
  %v851 = vlaneseq
  %v852 = vshrl.u32 %v851, 7
  %v853 = vsub.s32 0, %v852
  %v854 = vrot.slane %v205, %v853
  %v855 = vlaneseq
  %v856 = vshrl.u32 %v855, 7
  %v857 = vsub.s32 1, %v856
  %v858 = vrot.slane %v205, %v857
  %v861 = vmul.f32 %v832, %v854
  %v862 = vmul.f32 %v834, %v858
  %v863 = vmul.f32 %v836, %v854
  %v864 = vmul.f32 %v838, %v858
  %v865 = vmul.f32 %v842, %v854
  %v866 = vmul.f32 %v844, %v858
  %v867 = vmul.f32 %v846, %v854
  %v868 = vmul.f32 %v848, %v858
  %v870 = vlaneseq
  %v871 = vshrl.u32 %v870, 7
  %v872 = vsub.s32 0, %v871
  %v873 = vrot.slane %v206, %v872
  %v874 = vlaneseq
  %v875 = vshrl.u32 %v874, 7
  %v876 = vsub.s32 1, %v875
  %v877 = vrot.slane %v206, %v876
  %v880 = vadd.f32 %v861, %v873
  %v881 = vadd.f32 %v862, %v877
  %v882 = vadd.f32 %v863, %v873
  %v883 = vadd.f32 %v864, %v877
  %v884 = vadd.f32 %v865, %v873
  %v885 = vadd.f32 %v866, %v877
  %v886 = vadd.f32 %v867, %v873
  %v887 = vadd.f32 %v868, %v877
  %v888 = vmax.f32 %v880, 0.0
  %v889 = vmax.f32 %v881, 0.0
  %v890 = vmax.f32 %v882, 0.0
  %v891 = vmax.f32 %v883, 0.0
  %v892 = vmax.f32 %v884, 0.0
  %v893 = vmax.f32 %v885, 0.0
  %v894 = vmax.f32 %v886, 0.0
  %v895 = vmax.f32 %v887, 0.0
  %v896 = vmax.f32 %v888, %v889
  %v897 = vmax.f32 %v890, %v891
  %v898 = vmax.f32 %v892, %v893
  %v899 = vmax.f32 %v894, %v895
  %v901 = vrot.slane %v896, 1
  %v903 = vmax.f32 %v896, %v901
  %v905 = vrot.slane %v897, 1
  %v907 = vmax.f32 %v897, %v905
  %v909 = vrot.slane %v898, 1
  %v911 = vmax.f32 %v898, %v909
  %v913 = vrot.slane %v899, 1
  %v915 = vmax.f32 %v899, %v913
  %v917 = vrot.slane %v903, 1
  %v919 = vrot.slane %v903, 2
  %v921 = vrot.slane %v903, 3
  %v924 = vrot.slane %v907, 4
  %v926 = vrot.slane %v907, 5
  %v928 = vrot.slane %v907, 6
  %v930 = vrot.slane %v907, 7
  %v933 = vrot.slane %v911, 1
  %v935 = vrot.slane %v911, 2
  %v937 = vrot.slane %v911, 3
  %v940 = vrot.slane %v915, 4
  %v942 = vrot.slane %v915, 5
  %vm944 = vcmask 1040384
  %v945 = vsel %vm944, %v903, %v917
  %vm946 = vcmask 1041408
  %v947 = vsel %vm946, %v945, %v919
  %vm948 = vcmask 1042432
  %v949 = vsel %vm948, %v947, %v921
  %vm950 = vcmask 1043456
  %v951 = vsel %vm950, %v949, %v924
  %vm952 = vcmask 1044480
  %v953 = vsel %vm952, %v951, %v926
  %vm954 = vcmask 1045504
  %v955 = vsel %vm954, %v953, %v928
  %vm956 = vcmask 1046528
  %v957 = vsel %vm956, %v955, %v930
  %v958 = vsel %vm944, %v911, %v933
  %v959 = vsel %vm946, %v958, %v935
  %v960 = vsel %vm948, %v959, %v937
  %v961 = vsel %vm950, %v960, %v940
  %v962 = vsel %vm952, %v961, %v942
  %v965 = vrot.slane %v957, 1
  %v966 = vrot.slane %v962, 1
  %v967 = vsel %vm956, %v965, %v966
  %v970 = vrot.slane %v957, 2
  %v971 = vrot.slane %v962, 2
  %v972 = vsel %vm954, %v970, %v971
  %v975 = vrot.slane %v957, 3
  %v976 = vrot.slane %v962, 3
  %v977 = vsel %vm952, %v975, %v976
  %v980 = vrot.slane %v957, 4
  %v981 = vrot.slane %v962, 4
  %v982 = vsel %vm950, %v980, %v981
  %v985 = vpack.c.bf16 %v962, %v957
  %v986 = vpack.c.bf16 %v966, %v967
  %v987 = vpack.c.bf16 %v971, %v972
  %v988 = vpack.c.bf16 %v976, %v977
  %v989 = vpack.c.bf16 %v981, %v982
  %v1070 = vunpack.c.l.b16 %v125
  %v1071 = vunpack.c.h.b16 %v125
  %v1072 = vunpack.c.l.b16 %v126
  %v1073 = vunpack.c.h.b16 %v126
  %v1074 = vunpack.c.l.b16 %v127
  %v1075 = vunpack.c.h.b16 %v127
  %v1076 = vunpack.c.l.b16 %v128
  %v1077 = vunpack.c.h.b16 %v128
  %v1078 = vunpack.c.l.b16 %v129
  %v1079 = vunpack.c.h.b16 %v129
  %v1080 = vunpack.c.l.b16 %v130
  %v1081 = vunpack.c.h.b16 %v130
  %v1082 = vunpack.c.l.b16 %v131
  %v1083 = vunpack.c.h.b16 %v131
  %v1084 = vunpack.c.l.b16 %v132
  %v1085 = vunpack.c.h.b16 %v132
  %v1086 = vunpack.c.l.b16 %v133
  %v1087 = vunpack.c.h.b16 %v133
  %v1088 = vunpack.c.l.b16 %v134
  %v1089 = vunpack.c.h.b16 %v134
  %v1090 = vunpack.c.l.b16 %v135
  %v1091 = vunpack.c.h.b16 %v135
  %v1092 = vunpack.c.l.b16 %v136
  %v1093 = vunpack.c.h.b16 %v136
  %v1094 = vunpack.c.l.b16 %v137
  %v1095 = vunpack.c.h.b16 %v137
  %v1096 = vunpack.c.l.b16 %v138
  %v1097 = vunpack.c.h.b16 %v138
  %v1098 = vunpack.c.l.b16 %v139
  %v1099 = vunpack.c.h.b16 %v139
  %v1100 = vunpack.c.l.b16 %v140
  %v1101 = vunpack.c.h.b16 %v140
  %v1102 = vunpack.c.l.b16 %v141
  %v1103 = vunpack.c.h.b16 %v141
  %v1104 = vunpack.c.l.b16 %v142
  %v1105 = vunpack.c.h.b16 %v142
  %v1106 = vunpack.c.l.b16 %v143
  %v1107 = vunpack.c.h.b16 %v143
  %v1108 = vunpack.c.l.b16 %v144
  %v1109 = vunpack.c.h.b16 %v144
  %v1110 = vunpack.c.l.b16 %v145
  %v1111 = vunpack.c.h.b16 %v145
  %v1112 = vunpack.c.l.b16 %v146
  %v1113 = vunpack.c.h.b16 %v146
  %v1114 = vunpack.c.l.b16 %v147
  %v1115 = vunpack.c.h.b16 %v147
  %v1116 = vunpack.c.l.b16 %v148
  %v1117 = vunpack.c.h.b16 %v148
  %v1118 = vunpack.c.l.b16 %v149
  %v1119 = vunpack.c.h.b16 %v149
  %v1120 = vunpack.c.l.b16 %v150
  %v1121 = vunpack.c.h.b16 %v150
  %v1122 = vunpack.c.l.b16 %v151
  %v1123 = vunpack.c.h.b16 %v151
  %v1124 = vunpack.c.l.b16 %v152
  %v1125 = vunpack.c.h.b16 %v152
  %v1126 = vunpack.c.l.b16 %v153
  %v1127 = vunpack.c.h.b16 %v153
  %v1128 = vunpack.c.l.b16 %v154
  %v1129 = vunpack.c.h.b16 %v154
  %v1130 = vunpack.c.l.b16 %v155
  %v1131 = vunpack.c.h.b16 %v155
  %v1132 = vunpack.c.l.b16 %v156
  %v1133 = vunpack.c.h.b16 %v156
  %v1134 = vunpack.c.l.b16 %v157
  %v1135 = vunpack.c.h.b16 %v157
  %v1136 = vunpack.c.l.b16 %v158
  %v1137 = vunpack.c.h.b16 %v158
  %v1138 = vunpack.c.l.b16 %v159
  %v1139 = vunpack.c.h.b16 %v159
  %v1140 = vunpack.c.l.b16 %v160
  %v1141 = vunpack.c.h.b16 %v160
  %v1142 = vunpack.c.l.b16 %v161
  %v1143 = vunpack.c.h.b16 %v161
  %v1144 = vunpack.c.l.b16 %v162
  %v1145 = vunpack.c.h.b16 %v162
  %v1146 = vunpack.c.l.b16 %v163
  %v1147 = vunpack.c.h.b16 %v163
  %v1148 = vunpack.c.l.b16 %v164
  %v1149 = vunpack.c.h.b16 %v164
  %v1150 = vunpack.c.l.b16 %v165
  %v1151 = vunpack.c.h.b16 %v165
  %v1152 = vunpack.c.l.b16 %v166
  %v1153 = vunpack.c.h.b16 %v166
  %v1154 = vunpack.c.l.b16 %v167
  %v1155 = vunpack.c.h.b16 %v167
  %v1156 = vunpack.c.l.b16 %v168
  %v1157 = vunpack.c.h.b16 %v168
  %v1158 = vunpack.c.l.b16 %v169
  %v1159 = vunpack.c.h.b16 %v169
  %v1160 = vunpack.c.l.b16 %v170
  %v1161 = vunpack.c.h.b16 %v170
  %v1162 = vunpack.c.l.b16 %v171
  %v1163 = vunpack.c.h.b16 %v171
  %v1164 = vunpack.c.l.b16 %v172
  %v1165 = vunpack.c.h.b16 %v172
  %v1166 = vunpack.c.l.b16 %v173
  %v1167 = vunpack.c.h.b16 %v173
  %v1168 = vunpack.c.l.b16 %v174
  %v1169 = vunpack.c.h.b16 %v174
  %v1170 = vunpack.c.l.b16 %v175
  %v1171 = vunpack.c.h.b16 %v175
  %v1172 = vunpack.c.l.b16 %v176
  %v1173 = vunpack.c.h.b16 %v176
  %v1174 = vunpack.c.l.b16 %v177
  %v1175 = vunpack.c.h.b16 %v177
  %v1176 = vunpack.c.l.b16 %v178
  %v1177 = vunpack.c.h.b16 %v178
  %v1178 = vunpack.c.l.b16 %v179
  %v1179 = vunpack.c.h.b16 %v179
  %v1180 = vunpack.c.l.b16 %v180
  %v1181 = vunpack.c.h.b16 %v180
  %v1182 = vunpack.c.l.b16 %v181
  %v1183 = vunpack.c.h.b16 %v181
  %v1184 = vunpack.c.l.b16 %v182
  %v1185 = vunpack.c.h.b16 %v182
  %v1186 = vunpack.c.l.b16 %v183
  %v1187 = vunpack.c.h.b16 %v183
  %v1188 = vunpack.c.l.b16 %v184
  %v1189 = vunpack.c.h.b16 %v184
  %v1190 = vunpack.c.l.b16 %v185
  %v1191 = vunpack.c.h.b16 %v185
  %v1192 = vunpack.c.l.b16 %v186
  %v1193 = vunpack.c.h.b16 %v186
  %v1194 = vunpack.c.l.b16 %v187
  %v1195 = vunpack.c.h.b16 %v187
  %v1196 = vunpack.c.l.b16 %v188
  %v1197 = vunpack.c.h.b16 %v188
  %v1198 = vunpack.c.l.b16 %v189
  %v1199 = vunpack.c.h.b16 %v189
  %v1200 = vunpack.c.l.b16 %v190
  %v1201 = vunpack.c.h.b16 %v190
  %v1202 = vunpack.c.l.b16 %v191
  %v1203 = vunpack.c.h.b16 %v191
  %v1204 = vunpack.c.l.b16 %v192
  %v1205 = vunpack.c.h.b16 %v192
  %v1206 = vunpack.c.l.b16 %v193
  %v1207 = vunpack.c.h.b16 %v193
  %v1208 = vunpack.c.l.b16 %v194
  %v1209 = vunpack.c.h.b16 %v194
  %v1210 = vunpack.c.l.b16 %v195
  %v1211 = vunpack.c.h.b16 %v195
  %v1212 = vunpack.c.l.b16 %v196
  %v1213 = vunpack.c.h.b16 %v196
  %v1214 = vunpack.c.l.b16 %v197
  %v1215 = vunpack.c.h.b16 %v197
  %v1216 = vunpack.c.l.b16 %v198
  %v1217 = vunpack.c.h.b16 %v198
  %v1218 = vunpack.c.l.b16 %v199
  %v1219 = vunpack.c.h.b16 %v199
  %v1220 = vunpack.c.l.b16 %v200
  %v1221 = vunpack.c.h.b16 %v200
  %v1222 = vunpack.c.l.b16 %v201
  %v1223 = vunpack.c.h.b16 %v201
  %v1224 = vunpack.c.l.b16 %v202
  %v1225 = vunpack.c.h.b16 %v202
  %v1226 = vunpack.c.l.b16 %v203
  %v1227 = vunpack.c.h.b16 %v203
  %v1228 = vunpack.c.l.b16 %v204
  %v1229 = vunpack.c.h.b16 %v204
  %v1230 = vpack.c.b16 %v1072, %v1070
  %v1231 = vpack.c.b16 %v1073, %v1071
  %v1232 = vpack.c.b16 %v1076, %v1074
  %v1233 = vpack.c.b16 %v1077, %v1075
  %v1234 = vpack.c.b16 %v1080, %v1078
  %v1235 = vpack.c.b16 %v1081, %v1079
  %v1236 = vpack.c.b16 %v1084, %v1082
  %v1237 = vpack.c.b16 %v1085, %v1083
  %v1238 = vpack.c.b16 %v1088, %v1086
  %v1239 = vpack.c.b16 %v1089, %v1087
  %v1240 = vpack.c.b16 %v1092, %v1090
  %v1241 = vpack.c.b16 %v1093, %v1091
  %v1242 = vpack.c.b16 %v1096, %v1094
  %v1243 = vpack.c.b16 %v1097, %v1095
  %v1244 = vpack.c.b16 %v1100, %v1098
  %v1245 = vpack.c.b16 %v1101, %v1099
  %v1246 = vpack.c.b16 %v1104, %v1102
  %v1247 = vpack.c.b16 %v1105, %v1103
  %v1248 = vpack.c.b16 %v1108, %v1106
  %v1249 = vpack.c.b16 %v1109, %v1107
  %v1250 = vpack.c.b16 %v1112, %v1110
  %v1251 = vpack.c.b16 %v1113, %v1111
  %v1252 = vpack.c.b16 %v1116, %v1114
  %v1253 = vpack.c.b16 %v1117, %v1115
  %v1254 = vpack.c.b16 %v1120, %v1118
  %v1255 = vpack.c.b16 %v1121, %v1119
  %v1256 = vpack.c.b16 %v1124, %v1122
  %v1257 = vpack.c.b16 %v1125, %v1123
  %v1258 = vpack.c.b16 %v1128, %v1126
  %v1259 = vpack.c.b16 %v1129, %v1127
  %v1260 = vpack.c.b16 %v1132, %v1130
  %v1261 = vpack.c.b16 %v1133, %v1131
  %v1262 = vpack.c.b16 %v1136, %v1134
  %v1263 = vpack.c.b16 %v1137, %v1135
  %v1264 = vpack.c.b16 %v1140, %v1138
  %v1265 = vpack.c.b16 %v1141, %v1139
  %v1266 = vpack.c.b16 %v1144, %v1142
  %v1267 = vpack.c.b16 %v1145, %v1143
  %v1268 = vpack.c.b16 %v1148, %v1146
  %v1269 = vpack.c.b16 %v1149, %v1147
  %v1270 = vpack.c.b16 %v1152, %v1150
  %v1271 = vpack.c.b16 %v1153, %v1151
  %v1272 = vpack.c.b16 %v1156, %v1154
  %v1273 = vpack.c.b16 %v1157, %v1155
  %v1274 = vpack.c.b16 %v1160, %v1158
  %v1275 = vpack.c.b16 %v1161, %v1159
  %v1276 = vpack.c.b16 %v1164, %v1162
  %v1277 = vpack.c.b16 %v1165, %v1163
  %v1278 = vpack.c.b16 %v1168, %v1166
  %v1279 = vpack.c.b16 %v1169, %v1167
  %v1280 = vpack.c.b16 %v1172, %v1170
  %v1281 = vpack.c.b16 %v1173, %v1171
  %v1282 = vpack.c.b16 %v1176, %v1174
  %v1283 = vpack.c.b16 %v1177, %v1175
  %v1284 = vpack.c.b16 %v1180, %v1178
  %v1285 = vpack.c.b16 %v1181, %v1179
  %v1286 = vpack.c.b16 %v1184, %v1182
  %v1287 = vpack.c.b16 %v1185, %v1183
  %v1288 = vpack.c.b16 %v1188, %v1186
  %v1289 = vpack.c.b16 %v1189, %v1187
  %v1290 = vpack.c.b16 %v1192, %v1190
  %v1291 = vpack.c.b16 %v1193, %v1191
  %v1292 = vpack.c.b16 %v1196, %v1194
  %v1293 = vpack.c.b16 %v1197, %v1195
  %v1294 = vpack.c.b16 %v1200, %v1198
  %v1295 = vpack.c.b16 %v1201, %v1199
  %v1296 = vpack.c.b16 %v1204, %v1202
  %v1297 = vpack.c.b16 %v1205, %v1203
  %v1298 = vpack.c.b16 %v1208, %v1206
  %v1299 = vpack.c.b16 %v1209, %v1207
  %v1300 = vpack.c.b16 %v1212, %v1210
  %v1301 = vpack.c.b16 %v1213, %v1211
  %v1302 = vpack.c.b16 %v1216, %v1214
  %v1303 = vpack.c.b16 %v1217, %v1215
  %v1304 = vpack.c.b16 %v1220, %v1218
  %v1305 = vpack.c.b16 %v1221, %v1219
  %v1306 = vpack.c.b16 %v1224, %v1222
  %v1307 = vpack.c.b16 %v1225, %v1223
  %v1308 = vpack.c.b16 %v1228, %v1226
  %v1309 = vpack.c.b16 %v1229, %v1227
  %1390 = vmatprep.subr.bf16.mxu0 %v1245
  %1391 = vmatpush1.bf16.msra.mxu0 %v1244
  %1392 = vmatprep.subr.bf16.mxu0 %v1243
  %1393 = vmatpush1.bf16.msra.mxu0 %v1242
  %1394 = vmatprep.subr.bf16.mxu0 %v1241
  %1395 = vmatpush1.bf16.msra.mxu0 %v1240
  %1396 = vmatprep.subr.bf16.mxu0 %v1239
  %1397 = vmatpush1.bf16.msra.mxu0 %v1238
  %1398 = vmatprep.subr.bf16.mxu0 %v1237
  %1399 = vmatpush1.bf16.msra.mxu0 %v1236
  %1400 = vmatprep.subr.bf16.mxu0 %v1235
  %1401 = vmatpush1.bf16.msra.mxu0 %v1234
  %1402 = vmatprep.subr.bf16.mxu0 %v1233
  %1403 = vmatpush1.bf16.msra.mxu0 %v1232
  %1404 = vmatprep.subr.bf16.mxu0 %v1231
  %1405 = vmatpush1.bf16.msra.mxu0 %v1230
  %1406 = vmatprep.subr.bf16.mxu0 %v1261
  %1407 = vmatpush2.bf16.msra.mxu0 %v1260
  %1408 = vmatprep.subr.bf16.mxu0 %v1259
  %1409 = vmatpush2.bf16.msra.mxu0 %v1258
  %1410 = vmatprep.subr.bf16.mxu0 %v1257
  %1411 = vmatpush2.bf16.msra.mxu0 %v1256
  %1412 = vmatprep.subr.bf16.mxu0 %v1255
  %1413 = vmatpush2.bf16.msra.mxu0 %v1254
  %1414 = vmatprep.subr.bf16.mxu0 %v1253
  %1415 = vmatpush2.bf16.msra.mxu0 %v1252
  %1416 = vmatprep.subr.bf16.mxu0 %v1251
  %1417 = vmatpush2.bf16.msra.mxu0 %v1250
  %1418 = vmatprep.subr.bf16.mxu0 %v1249
  %1419 = vmatpush2.bf16.msra.mxu0 %v1248
  %1420 = vmatprep.subr.bf16.mxu0 %v1247
  %1421 = vmatpush2.bf16.msra.mxu0 %v1246
  %1422 = vmatprep.mubr.bf16.mxu0 %v986
  %1423 = vmatmul.mubr.bf16.gmra.mxu0 %v985
  %v1424 = vpop.f32.mrf.mxu0
  %v1425 = vadd.f32 0.0, %v1424
  %v1426 = vpop.f32.mrf.mxu0
  %v1427 = vadd.f32 0.0, %v1426
  %v1428 = vpop.f32.mrf.mxu0
  %v1429 = vadd.f32 0.0, %v1428
  %v1430 = vpop.f32.mrf.mxu0
  %v1431 = vadd.f32 0.0, %v1430
  %1432 = vdwg.mxu0
  %1433 = vmatprep.subr.bf16.mxu0 %v1277
  %1434 = vmatpush1.bf16.msra.mxu0 %v1276
  %1435 = vmatprep.subr.bf16.mxu0 %v1275
  %1436 = vmatpush1.bf16.msra.mxu0 %v1274
  %1437 = vmatprep.subr.bf16.mxu0 %v1273
  %1438 = vmatpush1.bf16.msra.mxu0 %v1272
  %1439 = vmatprep.subr.bf16.mxu0 %v1271
  %1440 = vmatpush1.bf16.msra.mxu0 %v1270
  %1441 = vmatprep.subr.bf16.mxu0 %v1269
  %1442 = vmatpush1.bf16.msra.mxu0 %v1268
  %1443 = vmatprep.subr.bf16.mxu0 %v1267
  %1444 = vmatpush1.bf16.msra.mxu0 %v1266
  %1445 = vmatprep.subr.bf16.mxu0 %v1265
  %1446 = vmatpush1.bf16.msra.mxu0 %v1264
  %1447 = vmatprep.subr.bf16.mxu0 %v1263
  %1448 = vmatpush1.bf16.msra.mxu0 %v1262
  %1449 = vmatprep.subr.bf16.mxu0 %v1293
  %1450 = vmatpush2.bf16.msra.mxu0 %v1292
  %1451 = vmatprep.subr.bf16.mxu0 %v1291
  %1452 = vmatpush2.bf16.msra.mxu0 %v1290
  %1453 = vmatprep.subr.bf16.mxu0 %v1289
  %1454 = vmatpush2.bf16.msra.mxu0 %v1288
  %1455 = vmatprep.subr.bf16.mxu0 %v1287
  %1456 = vmatpush2.bf16.msra.mxu0 %v1286
  %1457 = vmatprep.subr.bf16.mxu0 %v1285
  %1458 = vmatpush2.bf16.msra.mxu0 %v1284
  %1459 = vmatprep.subr.bf16.mxu0 %v1283
  %1460 = vmatpush2.bf16.msra.mxu0 %v1282
  %1461 = vmatprep.subr.bf16.mxu0 %v1281
  %1462 = vmatpush2.bf16.msra.mxu0 %v1280
  %1463 = vmatprep.subr.bf16.mxu0 %v1279
  %1464 = vmatpush2.bf16.msra.mxu0 %v1278
  %1465 = vmatprep.mubr.bf16.mxu0 %v988
  %1466 = vmatmul.mubr.bf16.gmra.mxu0 %v987
  %v1467 = vpop.f32.mrf.mxu0
  %v1468 = vadd.f32 %v1425, %v1467
  %v1469 = vpop.f32.mrf.mxu0
  %v1470 = vadd.f32 %v1427, %v1469
  %v1471 = vpop.f32.mrf.mxu0
  %v1472 = vadd.f32 %v1429, %v1471
  %v1473 = vpop.f32.mrf.mxu0
  %v1474 = vadd.f32 %v1431, %v1473
  %1475 = vdwg.mxu0
  %1476 = vmatprep.subr.bf16.mxu0 %v1309
  %1477 = vmatpush1.bf16.msra.mxu0 %v1308
  %1478 = vmatprep.subr.bf16.mxu0 %v1307
  %1479 = vmatpush1.bf16.msra.mxu0 %v1306
  %1480 = vmatprep.subr.bf16.mxu0 %v1305
  %1481 = vmatpush1.bf16.msra.mxu0 %v1304
  %1482 = vmatprep.subr.bf16.mxu0 %v1303
  %1483 = vmatpush1.bf16.msra.mxu0 %v1302
  %1484 = vmatprep.subr.bf16.mxu0 %v1301
  %1485 = vmatpush1.bf16.msra.mxu0 %v1300
  %1486 = vmatprep.subr.bf16.mxu0 %v1299
  %1487 = vmatpush1.bf16.msra.mxu0 %v1298
  %1488 = vmatprep.subr.bf16.mxu0 %v1297
  %1489 = vmatpush1.bf16.msra.mxu0 %v1296
  %1490 = vmatprep.subr.bf16.mxu0 %v1295
  %1491 = vmatpush1.bf16.msra.mxu0 %v1294
  %1492 = vmatprep.subr.bf16.mxu0 0
  %1493 = vmatpush2.bf16.msra.mxu0 0
  %1494 = vmatprep.subr.bf16.mxu0 0
  %1495 = vmatpush2.bf16.msra.mxu0 0
  %1496 = vmatprep.subr.bf16.mxu0 0
  %1497 = vmatpush2.bf16.msra.mxu0 0
  %1498 = vmatprep.subr.bf16.mxu0 0
  %1499 = vmatpush2.bf16.msra.mxu0 0
  %1500 = vmatprep.subr.bf16.mxu0 0
  %1501 = vmatpush2.bf16.msra.mxu0 0
  %1502 = vmatprep.subr.bf16.mxu0 0
  %1503 = vmatpush2.bf16.msra.mxu0 0
  %1504 = vmatprep.subr.bf16.mxu0 0
  %1505 = vmatpush2.bf16.msra.mxu0 0
  %1506 = vmatprep.subr.bf16.mxu0 0
  %1507 = vmatpush2.bf16.msra.mxu0 0
  %1508 = vmatprep.mubr.bf16.mxu0 0
  %1509 = vmatmul.mubr.bf16.gmra.mxu0 %v989
  %v1510 = vpop.f32.mrf.mxu0
  %v1511 = vadd.f32 %v1468, %v1510
  %v1512 = vpop.f32.mrf.mxu0
  %v1513 = vadd.f32 %v1470, %v1512
  %v1514 = vpop.f32.mrf.mxu0
  %v1515 = vadd.f32 %v1472, %v1514
  %v1516 = vpop.f32.mrf.mxu0
  %v1517 = vadd.f32 %v1474, %v1516
  %1518 = vdwg.mxu0
  %v1520 = vlaneseq
  %v1521 = vshrl.u32 %v1520, 7
  %v1522 = vsub.s32 0, %v1521
  %v1523 = vrot.slane %v207, %v1522
  %v1524 = vlaneseq
  %v1525 = vshrl.u32 %v1524, 7
  %v1526 = vsub.s32 1, %v1525
  %v1527 = vrot.slane %v207, %v1526
  %v1530 = vmul.f32 %v1511, %v1523
  %v1531 = vmul.f32 %v1513, %v1527
  %v1532 = vmul.f32 %v1515, %v1523
  %v1533 = vmul.f32 %v1517, %v1527
  %v1535 = vlaneseq
  %v1536 = vshrl.u32 %v1535, 7
  %v1537 = vsub.s32 0, %v1536
  %v1538 = vrot.slane %v208, %v1537
  %v1539 = vlaneseq
  %v1540 = vshrl.u32 %v1539, 7
  %v1541 = vsub.s32 1, %v1540
  %v1542 = vrot.slane %v208, %v1541
  %v1545 = vadd.f32 %v1530, %v1538
  %v1546 = vadd.f32 %v1531, %v1542
  %v1547 = vadd.f32 %v1532, %v1538
  %v1548 = vadd.f32 %v1533, %v1542
  %v1549 = vmax.f32 %v1545, 0.0
  %v1550 = vmax.f32 %v1546, 0.0
  %v1551 = vmax.f32 %v1547, 0.0
  %v1552 = vmax.f32 %v1548, 0.0
  %v1553 = vmax.f32 %v1549, %v1550
  %v1554 = vmax.f32 %v1551, %v1552
  %v1556 = vrot.slane %v1553, 1
  %v1558 = vmax.f32 %v1553, %v1556
  %v1560 = vrot.slane %v1554, 1
  %v1562 = vmax.f32 %v1554, %v1560
  %v1564 = vrot.slane %v1558, 1
  %v1566 = vrot.slane %v1558, 2
  %v1568 = vrot.slane %v1558, 3
  %v1571 = vrot.slane %v1562, 4
  %v1573 = vsel %vm944, %v1558, %v1564
  %v1574 = vsel %vm946, %v1573, %v1566
  %v1575 = vsel %vm948, %v1574, %v1568
  %v1576 = vsel %vm950, %v1575, %v1571
  %v1578 = vrot.slane %v1576, 1
  %v1580 = vrot.slane %v1576, 2
  %v1582 = vrot.slane %v1576, 3
  %v1584 = vrot.slane %v1576, 4
  %v1586 = vld [vmem:[%s0 + $0x10] sm:$0xf]
  %v1587 = vld [vmem:[%s0 + $0x14] sm:$0xf]
  %v1588 = vld [vmem:[%s0 + $0x18] sm:$0xf]
  %v1589 = vld [vmem:[%s0 + $0x1c] sm:$0x3]
  %v1590 = vld [vmem:[%s0 + $0x1c] sm:$0x7]
  %v1591 = vld [vmem:[%s0 + $0x10] sm:$0xe]
  %v1592 = vld [vmem:[%s0 + $0x1c] sm:$0xf]
  %v1593 = vld [vmem:[%s0 + $0x10] sm:$0xc]
  %v1598 = vunpack.c.l.b16 %v1586
  %v1599 = vunpack.c.l.b16 %v1587
  %v1600 = vunpack.c.l.b16 %v1588
  %v1601 = vunpack.c.l.b16 %v1589
  %v1602 = vpack.c.b16 %v1599, %v1598
  %v1603 = vpack.c.b16 %v1601, %v1600
  %v1607 = vunpack.c.l.b16 %v1590
  %v1608 = vpack.c.b16 %v1607, %v1600
  %v1610 = vshrl.u32 %v1602, 16
  %v1612 = vshll.u32 %v1602, 16
  %v1614 = vrot.slane %v1612, 1
  %v1615 = vor.u32 %v1610, %v1614
  %v1617 = vshll.u32 %v1608, 16
  %v1619 = vrot.slane %v1617, 1
  %v1620 = vsel %vm232, %v1615, %v1619
  %v1621 = vshrl.u32 %v1608, 16
  %v1623 = vor.u32 %v1621, %v1619
  %v1627 = vunpack.c.l.b16 %v1591
  %v1628 = vpack.c.b16 %v1599, %v1627
  %v1629 = vrot.slane %v1628, 1
  %v1630 = vrot.slane %v1608, 1
  %v1631 = vsel %vm253, %v1629, %v1630
  %v1635 = vunpack.c.l.b16 %v1592
  %v1636 = vpack.c.b16 %v1635, %v1600
  %v1638 = vshrl.u32 %v1628, 16
  %v1640 = vrot.slane %v1638, 1
  %v1641 = vshll.u32 %v1628, 16
  %v1643 = vrot.slane %v1641, 2
  %v1644 = vor.u32 %v1640, %v1643
  %v1646 = vshrl.u32 %v1636, 16
  %v1648 = vrot.slane %v1646, 1
  %v1649 = vshll.u32 %v1636, 16
  %v1651 = vrot.slane %v1649, 2
  %v1652 = vor.u32 %v1648, %v1651
  %v1653 = vsel %vm262, %v1644, %v1652
  %v1657 = vunpack.c.l.b16 %v1593
  %v1658 = vpack.c.b16 %v1599, %v1657
  %v1659 = vrot.slane %v1658, 2
  %v1660 = vrot.slane %v1636, 2
  %v1661 = vsel %vm285, %v1659, %v1660
  %1664 = vmatprep.subr.bf16.mxu0 %v546
  %1665 = vmatpush1.bf16.msra.mxu0 %v545
  %1666 = vmatprep.subr.bf16.mxu0 %v544
  %1667 = vmatpush1.bf16.msra.mxu0 %v543
  %1668 = vmatprep.subr.bf16.mxu0 %v542
  %1669 = vmatpush1.bf16.msra.mxu0 %v541
  %1670 = vmatprep.subr.bf16.mxu0 %v540
  %1671 = vmatpush1.bf16.msra.mxu0 %v539
  %1672 = vmatprep.subr.bf16.mxu0 %v538
  %1673 = vmatpush1.bf16.msra.mxu0 %v537
  %1674 = vmatprep.subr.bf16.mxu0 %v536
  %1675 = vmatpush1.bf16.msra.mxu0 %v535
  %1676 = vmatprep.subr.bf16.mxu0 %v534
  %1677 = vmatpush1.bf16.msra.mxu0 %v533
  %1678 = vmatprep.subr.bf16.mxu0 %v532
  %1679 = vmatpush1.bf16.msra.mxu0 %v531
  %1680 = vmatprep.subr.bf16.mxu0 %v562
  %1681 = vmatpush2.bf16.msra.mxu0 %v561
  %1682 = vmatprep.subr.bf16.mxu0 %v560
  %1683 = vmatpush2.bf16.msra.mxu0 %v559
  %1684 = vmatprep.subr.bf16.mxu0 %v558
  %1685 = vmatpush2.bf16.msra.mxu0 %v557
  %1686 = vmatprep.subr.bf16.mxu0 %v556
  %1687 = vmatpush2.bf16.msra.mxu0 %v555
  %1688 = vmatprep.subr.bf16.mxu0 %v554
  %1689 = vmatpush2.bf16.msra.mxu0 %v553
  %1690 = vmatprep.subr.bf16.mxu0 %v552
  %1691 = vmatpush2.bf16.msra.mxu0 %v551
  %1692 = vmatprep.subr.bf16.mxu0 %v550
  %1693 = vmatpush2.bf16.msra.mxu0 %v549
  %1694 = vmatprep.subr.bf16.mxu0 %v548
  %1695 = vmatpush2.bf16.msra.mxu0 %v547
  %1696 = vmatprep.mubr.bf16.mxu0 %v1620
  %1697 = vmatmul.mubr.bf16.gmra.mxu0 %v1602
  %v1698 = vpop.f32.mrf.mxu0
  %v1699 = vadd.f32 0.0, %v1698
  %v1700 = vpop.f32.mrf.mxu0
  %v1701 = vadd.f32 0.0, %v1700
  %v1702 = vpop.f32.mrf.mxu0
  %v1703 = vadd.f32 0.0, %v1702
  %v1704 = vpop.f32.mrf.mxu0
  %v1705 = vadd.f32 0.0, %v1704
  %1706 = vmatprep.mubr.bf16.mxu0 %v1623
  %1707 = vmatmul.mubr.bf16.gmra.mxu0 %v1603
  %v1708 = vpop.f32.mrf.mxu0
  %v1709 = vadd.f32 0.0, %v1708
  %v1710 = vpop.f32.mrf.mxu0
  %v1711 = vadd.f32 0.0, %v1710
  %v1712 = vpop.f32.mrf.mxu0
  %v1713 = vadd.f32 0.0, %v1712
  %v1714 = vpop.f32.mrf.mxu0
  %v1715 = vadd.f32 0.0, %v1714
  %1716 = vdwg.mxu0
  %1717 = vmatprep.subr.bf16.mxu0 %v578
  %1718 = vmatpush1.bf16.msra.mxu0 %v577
  %1719 = vmatprep.subr.bf16.mxu0 %v576
  %1720 = vmatpush1.bf16.msra.mxu0 %v575
  %1721 = vmatprep.subr.bf16.mxu0 %v574
  %1722 = vmatpush1.bf16.msra.mxu0 %v573
  %1723 = vmatprep.subr.bf16.mxu0 %v572
  %1724 = vmatpush1.bf16.msra.mxu0 %v571
  %1725 = vmatprep.subr.bf16.mxu0 %v570
  %1726 = vmatpush1.bf16.msra.mxu0 %v569
  %1727 = vmatprep.subr.bf16.mxu0 %v568
  %1728 = vmatpush1.bf16.msra.mxu0 %v567
  %1729 = vmatprep.subr.bf16.mxu0 %v566
  %1730 = vmatpush1.bf16.msra.mxu0 %v565
  %1731 = vmatprep.subr.bf16.mxu0 %v564
  %1732 = vmatpush1.bf16.msra.mxu0 %v563
  %1733 = vmatprep.subr.bf16.mxu0 %v594
  %1734 = vmatpush2.bf16.msra.mxu0 %v593
  %1735 = vmatprep.subr.bf16.mxu0 %v592
  %1736 = vmatpush2.bf16.msra.mxu0 %v591
  %1737 = vmatprep.subr.bf16.mxu0 %v590
  %1738 = vmatpush2.bf16.msra.mxu0 %v589
  %1739 = vmatprep.subr.bf16.mxu0 %v588
  %1740 = vmatpush2.bf16.msra.mxu0 %v587
  %1741 = vmatprep.subr.bf16.mxu0 %v586
  %1742 = vmatpush2.bf16.msra.mxu0 %v585
  %1743 = vmatprep.subr.bf16.mxu0 %v584
  %1744 = vmatpush2.bf16.msra.mxu0 %v583
  %1745 = vmatprep.subr.bf16.mxu0 %v582
  %1746 = vmatpush2.bf16.msra.mxu0 %v581
  %1747 = vmatprep.subr.bf16.mxu0 %v580
  %1748 = vmatpush2.bf16.msra.mxu0 %v579
  %1749 = vmatprep.mubr.bf16.mxu0 %v1653
  %1750 = vmatmul.mubr.bf16.gmra.mxu0 %v1631
  %v1751 = vpop.f32.mrf.mxu0
  %v1752 = vadd.f32 %v1699, %v1751
  %v1753 = vpop.f32.mrf.mxu0
  %v1754 = vadd.f32 %v1701, %v1753
  %v1755 = vpop.f32.mrf.mxu0
  %v1756 = vadd.f32 %v1703, %v1755
  %v1757 = vpop.f32.mrf.mxu0
  %v1758 = vadd.f32 %v1705, %v1757
  %1759 = vmatprep.mubr.bf16.mxu0 %v1652
  %1760 = vmatmul.mubr.bf16.gmra.mxu0 %v1630
  %v1761 = vpop.f32.mrf.mxu0
  %v1762 = vadd.f32 %v1709, %v1761
  %v1763 = vpop.f32.mrf.mxu0
  %v1764 = vadd.f32 %v1711, %v1763
  %v1765 = vpop.f32.mrf.mxu0
  %v1766 = vadd.f32 %v1713, %v1765
  %v1767 = vpop.f32.mrf.mxu0
  %v1768 = vadd.f32 %v1715, %v1767
  %1769 = vdwg.mxu0
  %1770 = vmatprep.subr.bf16.mxu0 %v610
  %1771 = vmatpush1.bf16.msra.mxu0 %v609
  %1772 = vmatprep.subr.bf16.mxu0 %v608
  %1773 = vmatpush1.bf16.msra.mxu0 %v607
  %1774 = vmatprep.subr.bf16.mxu0 %v606
  %1775 = vmatpush1.bf16.msra.mxu0 %v605
  %1776 = vmatprep.subr.bf16.mxu0 %v604
  %1777 = vmatpush1.bf16.msra.mxu0 %v603
  %1778 = vmatprep.subr.bf16.mxu0 %v602
  %1779 = vmatpush1.bf16.msra.mxu0 %v601
  %1780 = vmatprep.subr.bf16.mxu0 %v600
  %1781 = vmatpush1.bf16.msra.mxu0 %v599
  %1782 = vmatprep.subr.bf16.mxu0 %v598
  %1783 = vmatpush1.bf16.msra.mxu0 %v597
  %1784 = vmatprep.subr.bf16.mxu0 %v596
  %1785 = vmatpush1.bf16.msra.mxu0 %v595
  %1786 = vmatprep.subr.bf16.mxu0 0
  %1787 = vmatpush2.bf16.msra.mxu0 0
  %1788 = vmatprep.subr.bf16.mxu0 0
  %1789 = vmatpush2.bf16.msra.mxu0 0
  %1790 = vmatprep.subr.bf16.mxu0 0
  %1791 = vmatpush2.bf16.msra.mxu0 0
  %1792 = vmatprep.subr.bf16.mxu0 0
  %1793 = vmatpush2.bf16.msra.mxu0 0
  %1794 = vmatprep.subr.bf16.mxu0 0
  %1795 = vmatpush2.bf16.msra.mxu0 0
  %1796 = vmatprep.subr.bf16.mxu0 0
  %1797 = vmatpush2.bf16.msra.mxu0 0
  %1798 = vmatprep.subr.bf16.mxu0 0
  %1799 = vmatpush2.bf16.msra.mxu0 0
  %1800 = vmatprep.subr.bf16.mxu0 0
  %1801 = vmatpush2.bf16.msra.mxu0 0
  %1802 = vmatprep.mubr.bf16.mxu0 0
  %1803 = vmatmul.mubr.bf16.gmra.mxu0 %v1661
  %v1804 = vpop.f32.mrf.mxu0
  %v1805 = vadd.f32 %v1752, %v1804
  %v1806 = vpop.f32.mrf.mxu0
  %v1807 = vadd.f32 %v1754, %v1806
  %v1808 = vpop.f32.mrf.mxu0
  %v1809 = vadd.f32 %v1756, %v1808
  %v1810 = vpop.f32.mrf.mxu0
  %v1811 = vadd.f32 %v1758, %v1810
  %1812 = vmatprep.mubr.bf16.mxu0 0
  %1813 = vmatmul.mubr.bf16.gmra.mxu0 %v1660
  %v1814 = vpop.f32.mrf.mxu0
  %v1815 = vadd.f32 %v1762, %v1814
  %v1816 = vpop.f32.mrf.mxu0
  %v1817 = vadd.f32 %v1764, %v1816
  %v1818 = vpop.f32.mrf.mxu0
  %v1819 = vadd.f32 %v1766, %v1818
  %v1820 = vpop.f32.mrf.mxu0
  %v1821 = vadd.f32 %v1768, %v1820
  %1822 = vdwg.mxu0
  %v1823 = vmul.f32 %v1805, %v854
  %v1824 = vmul.f32 %v1807, %v858
  %v1825 = vmul.f32 %v1809, %v854
  %v1826 = vmul.f32 %v1811, %v858
  %v1827 = vmul.f32 %v1815, %v854
  %v1828 = vmul.f32 %v1817, %v858
  %v1829 = vmul.f32 %v1819, %v854
  %v1830 = vmul.f32 %v1821, %v858
  %v1831 = vadd.f32 %v1823, %v873
  %v1832 = vadd.f32 %v1824, %v877
  %v1833 = vadd.f32 %v1825, %v873
  %v1834 = vadd.f32 %v1826, %v877
  %v1835 = vadd.f32 %v1827, %v873
  %v1836 = vadd.f32 %v1828, %v877
  %v1837 = vadd.f32 %v1829, %v873
  %v1838 = vadd.f32 %v1830, %v877
  %v1839 = vmax.f32 %v1831, 0.0
  %v1840 = vmax.f32 %v1832, 0.0
  %v1841 = vmax.f32 %v1833, 0.0
  %v1842 = vmax.f32 %v1834, 0.0
  %v1843 = vmax.f32 %v1835, 0.0
  %v1844 = vmax.f32 %v1836, 0.0
  %v1845 = vmax.f32 %v1837, 0.0
  %v1846 = vmax.f32 %v1838, 0.0
  %v1847 = vmax.f32 %v1839, %v1840
  %v1848 = vmax.f32 %v1841, %v1842
  %v1849 = vmax.f32 %v1843, %v1844
  %v1850 = vmax.f32 %v1845, %v1846
  %v1852 = vrot.slane %v1847, 1
  %v1854 = vmax.f32 %v1847, %v1852
  %v1856 = vrot.slane %v1848, 1
  %v1858 = vmax.f32 %v1848, %v1856
  %v1860 = vrot.slane %v1849, 1
  %v1862 = vmax.f32 %v1849, %v1860
  %v1864 = vrot.slane %v1850, 1
  %v1866 = vmax.f32 %v1850, %v1864
  %v1868 = vrot.slane %v1854, 1
  %v1870 = vrot.slane %v1854, 2
  %v1872 = vrot.slane %v1854, 3
  %v1875 = vrot.slane %v1858, 4
  %v1877 = vrot.slane %v1858, 5
  %v1879 = vrot.slane %v1858, 6
  %v1881 = vrot.slane %v1858, 7
  %v1884 = vrot.slane %v1862, 1
  %v1886 = vrot.slane %v1862, 2
  %v1888 = vrot.slane %v1862, 3
  %v1891 = vrot.slane %v1866, 4
  %v1893 = vrot.slane %v1866, 5
  %v1895 = vsel %vm944, %v1854, %v1868
  %v1896 = vsel %vm946, %v1895, %v1870
  %v1897 = vsel %vm948, %v1896, %v1872
  %v1898 = vsel %vm950, %v1897, %v1875
  %v1899 = vsel %vm952, %v1898, %v1877
  %v1900 = vsel %vm954, %v1899, %v1879
  %v1901 = vsel %vm956, %v1900, %v1881
  %v1902 = vsel %vm944, %v1862, %v1884
  %v1903 = vsel %vm946, %v1902, %v1886
  %v1904 = vsel %vm948, %v1903, %v1888
  %v1905 = vsel %vm950, %v1904, %v1891
  %v1906 = vsel %vm952, %v1905, %v1893
  %v1909 = vrot.slane %v1901, 1
  %v1910 = vrot.slane %v1906, 1
  %v1911 = vsel %vm956, %v1909, %v1910
  %v1914 = vrot.slane %v1901, 2
  %v1915 = vrot.slane %v1906, 2
  %v1916 = vsel %vm954, %v1914, %v1915
  %v1919 = vrot.slane %v1901, 3
  %v1920 = vrot.slane %v1906, 3
  %v1921 = vsel %vm952, %v1919, %v1920
  %v1924 = vrot.slane %v1901, 4
  %v1925 = vrot.slane %v1906, 4
  %v1926 = vsel %vm950, %v1924, %v1925
  %v1929 = vpack.c.bf16 %v1906, %v1901
  %v1930 = vpack.c.bf16 %v1910, %v1911
  %v1931 = vpack.c.bf16 %v1915, %v1916
  %v1932 = vpack.c.bf16 %v1920, %v1921
  %v1933 = vpack.c.bf16 %v1925, %v1926
  %1934 = vmatprep.subr.bf16.mxu0 %v1245
  %1935 = vmatpush1.bf16.msra.mxu0 %v1244
  %1936 = vmatprep.subr.bf16.mxu0 %v1243
  %1937 = vmatpush1.bf16.msra.mxu0 %v1242
  %1938 = vmatprep.subr.bf16.mxu0 %v1241
  %1939 = vmatpush1.bf16.msra.mxu0 %v1240
  %1940 = vmatprep.subr.bf16.mxu0 %v1239
  %1941 = vmatpush1.bf16.msra.mxu0 %v1238
  %1942 = vmatprep.subr.bf16.mxu0 %v1237
  %1943 = vmatpush1.bf16.msra.mxu0 %v1236
  %1944 = vmatprep.subr.bf16.mxu0 %v1235
  %1945 = vmatpush1.bf16.msra.mxu0 %v1234
  %1946 = vmatprep.subr.bf16.mxu0 %v1233
  %1947 = vmatpush1.bf16.msra.mxu0 %v1232
  %1948 = vmatprep.subr.bf16.mxu0 %v1231
  %1949 = vmatpush1.bf16.msra.mxu0 %v1230
  %1950 = vmatprep.subr.bf16.mxu0 %v1261
  %1951 = vmatpush2.bf16.msra.mxu0 %v1260
  %1952 = vmatprep.subr.bf16.mxu0 %v1259
  %1953 = vmatpush2.bf16.msra.mxu0 %v1258
  %1954 = vmatprep.subr.bf16.mxu0 %v1257
  %1955 = vmatpush2.bf16.msra.mxu0 %v1256
  %1956 = vmatprep.subr.bf16.mxu0 %v1255
  %1957 = vmatpush2.bf16.msra.mxu0 %v1254
  %1958 = vmatprep.subr.bf16.mxu0 %v1253
  %1959 = vmatpush2.bf16.msra.mxu0 %v1252
  %1960 = vmatprep.subr.bf16.mxu0 %v1251
  %1961 = vmatpush2.bf16.msra.mxu0 %v1250
  %1962 = vmatprep.subr.bf16.mxu0 %v1249
  %1963 = vmatpush2.bf16.msra.mxu0 %v1248
  %1964 = vmatprep.subr.bf16.mxu0 %v1247
  %1965 = vmatpush2.bf16.msra.mxu0 %v1246
  %1966 = vmatprep.mubr.bf16.mxu0 %v1930
  %1967 = vmatmul.mubr.bf16.gmra.mxu0 %v1929
  %v1968 = vpop.f32.mrf.mxu0
  %v1969 = vadd.f32 0.0, %v1968
  %v1970 = vpop.f32.mrf.mxu0
  %v1971 = vadd.f32 0.0, %v1970
  %v1972 = vpop.f32.mrf.mxu0
  %v1973 = vadd.f32 0.0, %v1972
  %v1974 = vpop.f32.mrf.mxu0
  %v1975 = vadd.f32 0.0, %v1974
  %1976 = vdwg.mxu0
  %1977 = vmatprep.subr.bf16.mxu0 %v1277
  %1978 = vmatpush1.bf16.msra.mxu0 %v1276
  %1979 = vmatprep.subr.bf16.mxu0 %v1275
  %1980 = vmatpush1.bf16.msra.mxu0 %v1274
  %1981 = vmatprep.subr.bf16.mxu0 %v1273
  %1982 = vmatpush1.bf16.msra.mxu0 %v1272
  %1983 = vmatprep.subr.bf16.mxu0 %v1271
  %1984 = vmatpush1.bf16.msra.mxu0 %v1270
  %1985 = vmatprep.subr.bf16.mxu0 %v1269
  %1986 = vmatpush1.bf16.msra.mxu0 %v1268
  %1987 = vmatprep.subr.bf16.mxu0 %v1267
  %1988 = vmatpush1.bf16.msra.mxu0 %v1266
  %1989 = vmatprep.subr.bf16.mxu0 %v1265
  %1990 = vmatpush1.bf16.msra.mxu0 %v1264
  %1991 = vmatprep.subr.bf16.mxu0 %v1263
  %1992 = vmatpush1.bf16.msra.mxu0 %v1262
  %1993 = vmatprep.subr.bf16.mxu0 %v1293
  %1994 = vmatpush2.bf16.msra.mxu0 %v1292
  %1995 = vmatprep.subr.bf16.mxu0 %v1291
  %1996 = vmatpush2.bf16.msra.mxu0 %v1290
  %1997 = vmatprep.subr.bf16.mxu0 %v1289
  %1998 = vmatpush2.bf16.msra.mxu0 %v1288
  %1999 = vmatprep.subr.bf16.mxu0 %v1287
  %2000 = vmatpush2.bf16.msra.mxu0 %v1286
  %2001 = vmatprep.subr.bf16.mxu0 %v1285
  %2002 = vmatpush2.bf16.msra.mxu0 %v1284
  %2003 = vmatprep.subr.bf16.mxu0 %v1283
  %2004 = vmatpush2.bf16.msra.mxu0 %v1282
  %2005 = vmatprep.subr.bf16.mxu0 %v1281
  %2006 = vmatpush2.bf16.msra.mxu0 %v1280
  %2007 = vmatprep.subr.bf16.mxu0 %v1279
  %2008 = vmatpush2.bf16.msra.mxu0 %v1278
  %2009 = vmatprep.mubr.bf16.mxu0 %v1932
  %2010 = vmatmul.mubr.bf16.gmra.mxu0 %v1931
  %v2011 = vpop.f32.mrf.mxu0
  %v2012 = vadd.f32 %v1969, %v2011
  %v2013 = vpop.f32.mrf.mxu0
  %v2014 = vadd.f32 %v1971, %v2013
  %v2015 = vpop.f32.mrf.mxu0
  %v2016 = vadd.f32 %v1973, %v2015
  %v2017 = vpop.f32.mrf.mxu0
  %v2018 = vadd.f32 %v1975, %v2017
  %2019 = vdwg.mxu0
  %2020 = vmatprep.subr.bf16.mxu0 %v1309
  %2021 = vmatpush1.bf16.msra.mxu0 %v1308
  %2022 = vmatprep.subr.bf16.mxu0 %v1307
  %2023 = vmatpush1.bf16.msra.mxu0 %v1306
  %2024 = vmatprep.subr.bf16.mxu0 %v1305
  %2025 = vmatpush1.bf16.msra.mxu0 %v1304
  %2026 = vmatprep.subr.bf16.mxu0 %v1303
  %2027 = vmatpush1.bf16.msra.mxu0 %v1302
  %2028 = vmatprep.subr.bf16.mxu0 %v1301
  %2029 = vmatpush1.bf16.msra.mxu0 %v1300
  %2030 = vmatprep.subr.bf16.mxu0 %v1299
  %2031 = vmatpush1.bf16.msra.mxu0 %v1298
  %2032 = vmatprep.subr.bf16.mxu0 %v1297
  %2033 = vmatpush1.bf16.msra.mxu0 %v1296
  %2034 = vmatprep.subr.bf16.mxu0 %v1295
  %2035 = vmatpush1.bf16.msra.mxu0 %v1294
  %2036 = vmatprep.subr.bf16.mxu0 0
  %2037 = vmatpush2.bf16.msra.mxu0 0
  %2038 = vmatprep.subr.bf16.mxu0 0
  %2039 = vmatpush2.bf16.msra.mxu0 0
  %2040 = vmatprep.subr.bf16.mxu0 0
  %2041 = vmatpush2.bf16.msra.mxu0 0
  %2042 = vmatprep.subr.bf16.mxu0 0
  %2043 = vmatpush2.bf16.msra.mxu0 0
  %2044 = vmatprep.subr.bf16.mxu0 0
  %2045 = vmatpush2.bf16.msra.mxu0 0
  %2046 = vmatprep.subr.bf16.mxu0 0
  %2047 = vmatpush2.bf16.msra.mxu0 0
  %2048 = vmatprep.subr.bf16.mxu0 0
  %2049 = vmatpush2.bf16.msra.mxu0 0
  %2050 = vmatprep.subr.bf16.mxu0 0
  %2051 = vmatpush2.bf16.msra.mxu0 0
  %2052 = vmatprep.mubr.bf16.mxu0 0
  %2053 = vmatmul.mubr.bf16.gmra.mxu0 %v1933
  %v2054 = vpop.f32.mrf.mxu0
  %v2055 = vadd.f32 %v2012, %v2054
  %v2056 = vpop.f32.mrf.mxu0
  %v2057 = vadd.f32 %v2014, %v2056
  %v2058 = vpop.f32.mrf.mxu0
  %v2059 = vadd.f32 %v2016, %v2058
  %v2060 = vpop.f32.mrf.mxu0
  %v2061 = vadd.f32 %v2018, %v2060
  %2062 = vdwg.mxu0
  %v2063 = vmul.f32 %v2055, %v1523
  %v2064 = vmul.f32 %v2057, %v1527
  %v2065 = vmul.f32 %v2059, %v1523
  %v2066 = vmul.f32 %v2061, %v1527
  %v2067 = vadd.f32 %v2063, %v1538
  %v2068 = vadd.f32 %v2064, %v1542
  %v2069 = vadd.f32 %v2065, %v1538
  %v2070 = vadd.f32 %v2066, %v1542
  %v2071 = vmax.f32 %v2067, 0.0
  %v2072 = vmax.f32 %v2068, 0.0
  %v2073 = vmax.f32 %v2069, 0.0
  %v2074 = vmax.f32 %v2070, 0.0
  %v2075 = vmax.f32 %v2071, %v2072
  %v2076 = vmax.f32 %v2073, %v2074
  %v2078 = vrot.slane %v2075, 1
  %v2080 = vmax.f32 %v2075, %v2078
  %v2082 = vrot.slane %v2076, 1
  %v2084 = vmax.f32 %v2076, %v2082
  %v2086 = vrot.slane %v2080, 1
  %v2088 = vrot.slane %v2080, 2
  %v2090 = vrot.slane %v2080, 3
  %v2093 = vrot.slane %v2084, 4
  %v2095 = vsel %vm944, %v2080, %v2086
  %v2096 = vsel %vm946, %v2095, %v2088
  %v2097 = vsel %vm948, %v2096, %v2090
  %v2098 = vsel %vm950, %v2097, %v2093
  %v2100 = vrot.slane %v2098, 1
  %v2101 = vrot.slane %v2098, 2
  %v2102 = vrot.slane %v2098, 3
  %v2103 = vrot.slane %v2098, 4
  %v2104 = vld [vmem:[%s0 + $0x20] sm:$0xf]
  %v2105 = vld [vmem:[%s0 + $0x24] sm:$0xf]
  %v2106 = vld [vmem:[%s0 + $0x28] sm:$0xf]
  %v2107 = vld [vmem:[%s0 + $0x2c] sm:$0x3]
  %v2108 = vld [vmem:[%s0 + $0x2c] sm:$0x7]
  %v2109 = vld [vmem:[%s0 + $0x20] sm:$0xe]
  %v2110 = vld [vmem:[%s0 + $0x2c] sm:$0xf]
  %v2111 = vld [vmem:[%s0 + $0x20] sm:$0xc]
  %v2116 = vunpack.c.l.b16 %v2104
  %v2117 = vunpack.c.l.b16 %v2105
  %v2118 = vunpack.c.l.b16 %v2106
  %v2119 = vunpack.c.l.b16 %v2107
  %v2120 = vpack.c.b16 %v2117, %v2116
  %v2121 = vpack.c.b16 %v2119, %v2118
  %v2125 = vunpack.c.l.b16 %v2108
  %v2126 = vpack.c.b16 %v2125, %v2118
  %v2128 = vshrl.u32 %v2120, 16
  %v2130 = vshll.u32 %v2120, 16
  %v2132 = vrot.slane %v2130, 1
  %v2133 = vor.u32 %v2128, %v2132
  %v2135 = vshll.u32 %v2126, 16
  %v2137 = vrot.slane %v2135, 1
  %v2138 = vsel %vm232, %v2133, %v2137
  %v2139 = vshrl.u32 %v2126, 16
  %v2141 = vor.u32 %v2139, %v2137
  %v2145 = vunpack.c.l.b16 %v2109
  %v2146 = vpack.c.b16 %v2117, %v2145
  %v2147 = vrot.slane %v2146, 1
  %v2148 = vrot.slane %v2126, 1
  %v2149 = vsel %vm253, %v2147, %v2148
  %v2153 = vunpack.c.l.b16 %v2110
  %v2154 = vpack.c.b16 %v2153, %v2118
  %v2156 = vshrl.u32 %v2146, 16
  %v2158 = vrot.slane %v2156, 1
  %v2159 = vshll.u32 %v2146, 16
  %v2161 = vrot.slane %v2159, 2
  %v2162 = vor.u32 %v2158, %v2161
  %v2164 = vshrl.u32 %v2154, 16
  %v2166 = vrot.slane %v2164, 1
  %v2167 = vshll.u32 %v2154, 16
  %v2169 = vrot.slane %v2167, 2
  %v2170 = vor.u32 %v2166, %v2169
  %v2171 = vsel %vm262, %v2162, %v2170
  %v2175 = vunpack.c.l.b16 %v2111
  %v2176 = vpack.c.b16 %v2117, %v2175
  %v2177 = vrot.slane %v2176, 2
  %v2178 = vrot.slane %v2154, 2
  %v2179 = vsel %vm285, %v2177, %v2178
  %2182 = vmatprep.subr.bf16.mxu0 %v546
  %2183 = vmatpush1.bf16.msra.mxu0 %v545
  %2184 = vmatprep.subr.bf16.mxu0 %v544
  %2185 = vmatpush1.bf16.msra.mxu0 %v543
  %2186 = vmatprep.subr.bf16.mxu0 %v542
  %2187 = vmatpush1.bf16.msra.mxu0 %v541
  %2188 = vmatprep.subr.bf16.mxu0 %v540
  %2189 = vmatpush1.bf16.msra.mxu0 %v539
  %2190 = vmatprep.subr.bf16.mxu0 %v538
  %2191 = vmatpush1.bf16.msra.mxu0 %v537
  %2192 = vmatprep.subr.bf16.mxu0 %v536
  %2193 = vmatpush1.bf16.msra.mxu0 %v535
  %2194 = vmatprep.subr.bf16.mxu0 %v534
  %2195 = vmatpush1.bf16.msra.mxu0 %v533
  %2196 = vmatprep.subr.bf16.mxu0 %v532
  %2197 = vmatpush1.bf16.msra.mxu0 %v531
  %2198 = vmatprep.subr.bf16.mxu0 %v562
  %2199 = vmatpush2.bf16.msra.mxu0 %v561
  %2200 = vmatprep.subr.bf16.mxu0 %v560
  %2201 = vmatpush2.bf16.msra.mxu0 %v559
  %2202 = vmatprep.subr.bf16.mxu0 %v558
  %2203 = vmatpush2.bf16.msra.mxu0 %v557
  %2204 = vmatprep.subr.bf16.mxu0 %v556
  %2205 = vmatpush2.bf16.msra.mxu0 %v555
  %2206 = vmatprep.subr.bf16.mxu0 %v554
  %2207 = vmatpush2.bf16.msra.mxu0 %v553
  %2208 = vmatprep.subr.bf16.mxu0 %v552
  %2209 = vmatpush2.bf16.msra.mxu0 %v551
  %2210 = vmatprep.subr.bf16.mxu0 %v550
  %2211 = vmatpush2.bf16.msra.mxu0 %v549
  %2212 = vmatprep.subr.bf16.mxu0 %v548
  %2213 = vmatpush2.bf16.msra.mxu0 %v547
  %2214 = vmatprep.mubr.bf16.mxu0 %v2138
  %2215 = vmatmul.mubr.bf16.gmra.mxu0 %v2120
  %v2216 = vpop.f32.mrf.mxu0
  %v2217 = vadd.f32 0.0, %v2216
  %v2218 = vpop.f32.mrf.mxu0
  %v2219 = vadd.f32 0.0, %v2218
  %v2220 = vpop.f32.mrf.mxu0
  %v2221 = vadd.f32 0.0, %v2220
  %v2222 = vpop.f32.mrf.mxu0
  %v2223 = vadd.f32 0.0, %v2222
  %2224 = vmatprep.mubr.bf16.mxu0 %v2141
  %2225 = vmatmul.mubr.bf16.gmra.mxu0 %v2121
  %v2226 = vpop.f32.mrf.mxu0
  %v2227 = vadd.f32 0.0, %v2226
  %v2228 = vpop.f32.mrf.mxu0
  %v2229 = vadd.f32 0.0, %v2228
  %v2230 = vpop.f32.mrf.mxu0
  %v2231 = vadd.f32 0.0, %v2230
  %v2232 = vpop.f32.mrf.mxu0
  %v2233 = vadd.f32 0.0, %v2232
  %2234 = vdwg.mxu0
  %2235 = vmatprep.subr.bf16.mxu0 %v578
  %2236 = vmatpush1.bf16.msra.mxu0 %v577
  %2237 = vmatprep.subr.bf16.mxu0 %v576
  %2238 = vmatpush1.bf16.msra.mxu0 %v575
  %2239 = vmatprep.subr.bf16.mxu0 %v574
  %2240 = vmatpush1.bf16.msra.mxu0 %v573
  %2241 = vmatprep.subr.bf16.mxu0 %v572
  %2242 = vmatpush1.bf16.msra.mxu0 %v571
  %2243 = vmatprep.subr.bf16.mxu0 %v570
  %2244 = vmatpush1.bf16.msra.mxu0 %v569
  %2245 = vmatprep.subr.bf16.mxu0 %v568
  %2246 = vmatpush1.bf16.msra.mxu0 %v567
  %2247 = vmatprep.subr.bf16.mxu0 %v566
  %2248 = vmatpush1.bf16.msra.mxu0 %v565
  %2249 = vmatprep.subr.bf16.mxu0 %v564
  %2250 = vmatpush1.bf16.msra.mxu0 %v563
  %2251 = vmatprep.subr.bf16.mxu0 %v594
  %2252 = vmatpush2.bf16.msra.mxu0 %v593
  %2253 = vmatprep.subr.bf16.mxu0 %v592
  %2254 = vmatpush2.bf16.msra.mxu0 %v591
  %2255 = vmatprep.subr.bf16.mxu0 %v590
  %2256 = vmatpush2.bf16.msra.mxu0 %v589
  %2257 = vmatprep.subr.bf16.mxu0 %v588
  %2258 = vmatpush2.bf16.msra.mxu0 %v587
  %2259 = vmatprep.subr.bf16.mxu0 %v586
  %2260 = vmatpush2.bf16.msra.mxu0 %v585
  %2261 = vmatprep.subr.bf16.mxu0 %v584
  %2262 = vmatpush2.bf16.msra.mxu0 %v583
  %2263 = vmatprep.subr.bf16.mxu0 %v582
  %2264 = vmatpush2.bf16.msra.mxu0 %v581
  %2265 = vmatprep.subr.bf16.mxu0 %v580
  %2266 = vmatpush2.bf16.msra.mxu0 %v579
  %2267 = vmatprep.mubr.bf16.mxu0 %v2171
  %2268 = vmatmul.mubr.bf16.gmra.mxu0 %v2149
  %v2269 = vpop.f32.mrf.mxu0
  %v2270 = vadd.f32 %v2217, %v2269
  %v2271 = vpop.f32.mrf.mxu0
  %v2272 = vadd.f32 %v2219, %v2271
  %v2273 = vpop.f32.mrf.mxu0
  %v2274 = vadd.f32 %v2221, %v2273
  %v2275 = vpop.f32.mrf.mxu0
  %v2276 = vadd.f32 %v2223, %v2275
  %2277 = vmatprep.mubr.bf16.mxu0 %v2170
  %2278 = vmatmul.mubr.bf16.gmra.mxu0 %v2148
  %v2279 = vpop.f32.mrf.mxu0
  %v2280 = vadd.f32 %v2227, %v2279
  %v2281 = vpop.f32.mrf.mxu0
  %v2282 = vadd.f32 %v2229, %v2281
  %v2283 = vpop.f32.mrf.mxu0
  %v2284 = vadd.f32 %v2231, %v2283
  %v2285 = vpop.f32.mrf.mxu0
  %v2286 = vadd.f32 %v2233, %v2285
  %2287 = vdwg.mxu0
  %2288 = vmatprep.subr.bf16.mxu0 %v610
  %2289 = vmatpush1.bf16.msra.mxu0 %v609
  %2290 = vmatprep.subr.bf16.mxu0 %v608
  %2291 = vmatpush1.bf16.msra.mxu0 %v607
  %2292 = vmatprep.subr.bf16.mxu0 %v606
  %2293 = vmatpush1.bf16.msra.mxu0 %v605
  %2294 = vmatprep.subr.bf16.mxu0 %v604
  %2295 = vmatpush1.bf16.msra.mxu0 %v603
  %2296 = vmatprep.subr.bf16.mxu0 %v602
  %2297 = vmatpush1.bf16.msra.mxu0 %v601
  %2298 = vmatprep.subr.bf16.mxu0 %v600
  %2299 = vmatpush1.bf16.msra.mxu0 %v599
  %2300 = vmatprep.subr.bf16.mxu0 %v598
  %2301 = vmatpush1.bf16.msra.mxu0 %v597
  %2302 = vmatprep.subr.bf16.mxu0 %v596
  %2303 = vmatpush1.bf16.msra.mxu0 %v595
  %2304 = vmatprep.subr.bf16.mxu0 0
  %2305 = vmatpush2.bf16.msra.mxu0 0
  %2306 = vmatprep.subr.bf16.mxu0 0
  %2307 = vmatpush2.bf16.msra.mxu0 0
  %2308 = vmatprep.subr.bf16.mxu0 0
  %2309 = vmatpush2.bf16.msra.mxu0 0
  %2310 = vmatprep.subr.bf16.mxu0 0
  %2311 = vmatpush2.bf16.msra.mxu0 0
  %2312 = vmatprep.subr.bf16.mxu0 0
  %2313 = vmatpush2.bf16.msra.mxu0 0
  %2314 = vmatprep.subr.bf16.mxu0 0
  %2315 = vmatpush2.bf16.msra.mxu0 0
  %2316 = vmatprep.subr.bf16.mxu0 0
  %2317 = vmatpush2.bf16.msra.mxu0 0
  %2318 = vmatprep.subr.bf16.mxu0 0
  %2319 = vmatpush2.bf16.msra.mxu0 0
  %2320 = vmatprep.mubr.bf16.mxu0 0
  %2321 = vmatmul.mubr.bf16.gmra.mxu0 %v2179
  %v2322 = vpop.f32.mrf.mxu0
  %v2323 = vadd.f32 %v2270, %v2322
  %v2324 = vpop.f32.mrf.mxu0
  %v2325 = vadd.f32 %v2272, %v2324
  %v2326 = vpop.f32.mrf.mxu0
  %v2327 = vadd.f32 %v2274, %v2326
  %v2328 = vpop.f32.mrf.mxu0
  %v2329 = vadd.f32 %v2276, %v2328
  %2330 = vmatprep.mubr.bf16.mxu0 0
  %2331 = vmatmul.mubr.bf16.gmra.mxu0 %v2178
  %v2332 = vpop.f32.mrf.mxu0
  %v2333 = vadd.f32 %v2280, %v2332
  %v2334 = vpop.f32.mrf.mxu0
  %v2335 = vadd.f32 %v2282, %v2334
  %v2336 = vpop.f32.mrf.mxu0
  %v2337 = vadd.f32 %v2284, %v2336
  %v2338 = vpop.f32.mrf.mxu0
  %v2339 = vadd.f32 %v2286, %v2338
  %2340 = vdwg.mxu0
  %v2341 = vmul.f32 %v2323, %v854
  %v2342 = vmul.f32 %v2325, %v858
  %v2343 = vmul.f32 %v2327, %v854
  %v2344 = vmul.f32 %v2329, %v858
  %v2345 = vmul.f32 %v2333, %v854
  %v2346 = vmul.f32 %v2335, %v858
  %v2347 = vmul.f32 %v2337, %v854
  %v2348 = vmul.f32 %v2339, %v858
  %v2349 = vadd.f32 %v2341, %v873
  %v2350 = vadd.f32 %v2342, %v877
  %v2351 = vadd.f32 %v2343, %v873
  %v2352 = vadd.f32 %v2344, %v877
  %v2353 = vadd.f32 %v2345, %v873
  %v2354 = vadd.f32 %v2346, %v877
  %v2355 = vadd.f32 %v2347, %v873
  %v2356 = vadd.f32 %v2348, %v877
  %v2357 = vmax.f32 %v2349, 0.0
  %v2358 = vmax.f32 %v2350, 0.0
  %v2359 = vmax.f32 %v2351, 0.0
  %v2360 = vmax.f32 %v2352, 0.0
  %v2361 = vmax.f32 %v2353, 0.0
  %v2362 = vmax.f32 %v2354, 0.0
  %v2363 = vmax.f32 %v2355, 0.0
  %v2364 = vmax.f32 %v2356, 0.0
  %v2365 = vmax.f32 %v2357, %v2358
  %v2366 = vmax.f32 %v2359, %v2360
  %v2367 = vmax.f32 %v2361, %v2362
  %v2368 = vmax.f32 %v2363, %v2364
  %v2370 = vrot.slane %v2365, 1
  %v2372 = vmax.f32 %v2365, %v2370
  %v2374 = vrot.slane %v2366, 1
  %v2376 = vmax.f32 %v2366, %v2374
  %v2378 = vrot.slane %v2367, 1
  %v2380 = vmax.f32 %v2367, %v2378
  %v2382 = vrot.slane %v2368, 1
  %v2384 = vmax.f32 %v2368, %v2382
  %v2386 = vrot.slane %v2372, 1
  %v2388 = vrot.slane %v2372, 2
  %v2390 = vrot.slane %v2372, 3
  %v2393 = vrot.slane %v2376, 4
  %v2395 = vrot.slane %v2376, 5
  %v2397 = vrot.slane %v2376, 6
  %v2399 = vrot.slane %v2376, 7
  %v2402 = vrot.slane %v2380, 1
  %v2404 = vrot.slane %v2380, 2
  %v2406 = vrot.slane %v2380, 3
  %v2409 = vrot.slane %v2384, 4
  %v2411 = vrot.slane %v2384, 5
  %v2413 = vsel %vm944, %v2372, %v2386
  %v2414 = vsel %vm946, %v2413, %v2388
  %v2415 = vsel %vm948, %v2414, %v2390
  %v2416 = vsel %vm950, %v2415, %v2393
  %v2417 = vsel %vm952, %v2416, %v2395
  %v2418 = vsel %vm954, %v2417, %v2397
  %v2419 = vsel %vm956, %v2418, %v2399
  %v2420 = vsel %vm944, %v2380, %v2402
  %v2421 = vsel %vm946, %v2420, %v2404
  %v2422 = vsel %vm948, %v2421, %v2406
  %v2423 = vsel %vm950, %v2422, %v2409
  %v2424 = vsel %vm952, %v2423, %v2411
  %v2427 = vrot.slane %v2419, 1
  %v2428 = vrot.slane %v2424, 1
  %v2429 = vsel %vm956, %v2427, %v2428
  %v2432 = vrot.slane %v2419, 2
  %v2433 = vrot.slane %v2424, 2
  %v2434 = vsel %vm954, %v2432, %v2433
  %v2437 = vrot.slane %v2419, 3
  %v2438 = vrot.slane %v2424, 3
  %v2439 = vsel %vm952, %v2437, %v2438
  %v2442 = vrot.slane %v2419, 4
  %v2443 = vrot.slane %v2424, 4
  %v2444 = vsel %vm950, %v2442, %v2443
  %v2447 = vpack.c.bf16 %v2424, %v2419
  %v2448 = vpack.c.bf16 %v2428, %v2429
  %v2449 = vpack.c.bf16 %v2433, %v2434
  %v2450 = vpack.c.bf16 %v2438, %v2439
  %v2451 = vpack.c.bf16 %v2443, %v2444
  %2452 = vmatprep.subr.bf16.mxu0 %v1245
  %2453 = vmatpush1.bf16.msra.mxu0 %v1244
  %2454 = vmatprep.subr.bf16.mxu0 %v1243
  %2455 = vmatpush1.bf16.msra.mxu0 %v1242
  %2456 = vmatprep.subr.bf16.mxu0 %v1241
  %2457 = vmatpush1.bf16.msra.mxu0 %v1240
  %2458 = vmatprep.subr.bf16.mxu0 %v1239
  %2459 = vmatpush1.bf16.msra.mxu0 %v1238
  %2460 = vmatprep.subr.bf16.mxu0 %v1237
  %2461 = vmatpush1.bf16.msra.mxu0 %v1236
  %2462 = vmatprep.subr.bf16.mxu0 %v1235
  %2463 = vmatpush1.bf16.msra.mxu0 %v1234
  %2464 = vmatprep.subr.bf16.mxu0 %v1233
  %2465 = vmatpush1.bf16.msra.mxu0 %v1232
  %2466 = vmatprep.subr.bf16.mxu0 %v1231
  %2467 = vmatpush1.bf16.msra.mxu0 %v1230
  %2468 = vmatprep.subr.bf16.mxu0 %v1261
  %2469 = vmatpush2.bf16.msra.mxu0 %v1260
  %2470 = vmatprep.subr.bf16.mxu0 %v1259
  %2471 = vmatpush2.bf16.msra.mxu0 %v1258
  %2472 = vmatprep.subr.bf16.mxu0 %v1257
  %2473 = vmatpush2.bf16.msra.mxu0 %v1256
  %2474 = vmatprep.subr.bf16.mxu0 %v1255
  %2475 = vmatpush2.bf16.msra.mxu0 %v1254
  %2476 = vmatprep.subr.bf16.mxu0 %v1253
  %2477 = vmatpush2.bf16.msra.mxu0 %v1252
  %2478 = vmatprep.subr.bf16.mxu0 %v1251
  %2479 = vmatpush2.bf16.msra.mxu0 %v1250
  %2480 = vmatprep.subr.bf16.mxu0 %v1249
  %2481 = vmatpush2.bf16.msra.mxu0 %v1248
  %2482 = vmatprep.subr.bf16.mxu0 %v1247
  %2483 = vmatpush2.bf16.msra.mxu0 %v1246
  %2484 = vmatprep.mubr.bf16.mxu0 %v2448
  %2485 = vmatmul.mubr.bf16.gmra.mxu0 %v2447
  %v2486 = vpop.f32.mrf.mxu0
  %v2487 = vadd.f32 0.0, %v2486
  %v2488 = vpop.f32.mrf.mxu0
  %v2489 = vadd.f32 0.0, %v2488
  %v2490 = vpop.f32.mrf.mxu0
  %v2491 = vadd.f32 0.0, %v2490
  %v2492 = vpop.f32.mrf.mxu0
  %v2493 = vadd.f32 0.0, %v2492
  %2494 = vdwg.mxu0
  %2495 = vmatprep.subr.bf16.mxu0 %v1277
  %2496 = vmatpush1.bf16.msra.mxu0 %v1276
  %2497 = vmatprep.subr.bf16.mxu0 %v1275
  %2498 = vmatpush1.bf16.msra.mxu0 %v1274
  %2499 = vmatprep.subr.bf16.mxu0 %v1273
  %2500 = vmatpush1.bf16.msra.mxu0 %v1272
  %2501 = vmatprep.subr.bf16.mxu0 %v1271
  %2502 = vmatpush1.bf16.msra.mxu0 %v1270
  %2503 = vmatprep.subr.bf16.mxu0 %v1269
  %2504 = vmatpush1.bf16.msra.mxu0 %v1268
  %2505 = vmatprep.subr.bf16.mxu0 %v1267
  %2506 = vmatpush1.bf16.msra.mxu0 %v1266
  %2507 = vmatprep.subr.bf16.mxu0 %v1265
  %2508 = vmatpush1.bf16.msra.mxu0 %v1264
  %2509 = vmatprep.subr.bf16.mxu0 %v1263
  %2510 = vmatpush1.bf16.msra.mxu0 %v1262
  %2511 = vmatprep.subr.bf16.mxu0 %v1293
  %2512 = vmatpush2.bf16.msra.mxu0 %v1292
  %2513 = vmatprep.subr.bf16.mxu0 %v1291
  %2514 = vmatpush2.bf16.msra.mxu0 %v1290
  %2515 = vmatprep.subr.bf16.mxu0 %v1289
  %2516 = vmatpush2.bf16.msra.mxu0 %v1288
  %2517 = vmatprep.subr.bf16.mxu0 %v1287
  %2518 = vmatpush2.bf16.msra.mxu0 %v1286
  %2519 = vmatprep.subr.bf16.mxu0 %v1285
  %2520 = vmatpush2.bf16.msra.mxu0 %v1284
  %2521 = vmatprep.subr.bf16.mxu0 %v1283
  %2522 = vmatpush2.bf16.msra.mxu0 %v1282
  %2523 = vmatprep.subr.bf16.mxu0 %v1281
  %2524 = vmatpush2.bf16.msra.mxu0 %v1280
  %2525 = vmatprep.subr.bf16.mxu0 %v1279
  %2526 = vmatpush2.bf16.msra.mxu0 %v1278
  %2527 = vmatprep.mubr.bf16.mxu0 %v2450
  %2528 = vmatmul.mubr.bf16.gmra.mxu0 %v2449
  %v2529 = vpop.f32.mrf.mxu0
  %v2530 = vadd.f32 %v2487, %v2529
  %v2531 = vpop.f32.mrf.mxu0
  %v2532 = vadd.f32 %v2489, %v2531
  %v2533 = vpop.f32.mrf.mxu0
  %v2534 = vadd.f32 %v2491, %v2533
  %v2535 = vpop.f32.mrf.mxu0
  %v2536 = vadd.f32 %v2493, %v2535
  %2537 = vdwg.mxu0
  %2538 = vmatprep.subr.bf16.mxu0 %v1309
  %2539 = vmatpush1.bf16.msra.mxu0 %v1308
  %2540 = vmatprep.subr.bf16.mxu0 %v1307
  %2541 = vmatpush1.bf16.msra.mxu0 %v1306
  %2542 = vmatprep.subr.bf16.mxu0 %v1305
  %2543 = vmatpush1.bf16.msra.mxu0 %v1304
  %2544 = vmatprep.subr.bf16.mxu0 %v1303
  %2545 = vmatpush1.bf16.msra.mxu0 %v1302
  %2546 = vmatprep.subr.bf16.mxu0 %v1301
  %2547 = vmatpush1.bf16.msra.mxu0 %v1300
  %2548 = vmatprep.subr.bf16.mxu0 %v1299
  %2549 = vmatpush1.bf16.msra.mxu0 %v1298
  %2550 = vmatprep.subr.bf16.mxu0 %v1297
  %2551 = vmatpush1.bf16.msra.mxu0 %v1296
  %2552 = vmatprep.subr.bf16.mxu0 %v1295
  %2553 = vmatpush1.bf16.msra.mxu0 %v1294
  %2554 = vmatprep.subr.bf16.mxu0 0
  %2555 = vmatpush2.bf16.msra.mxu0 0
  %2556 = vmatprep.subr.bf16.mxu0 0
  %2557 = vmatpush2.bf16.msra.mxu0 0
  %2558 = vmatprep.subr.bf16.mxu0 0
  %2559 = vmatpush2.bf16.msra.mxu0 0
  %2560 = vmatprep.subr.bf16.mxu0 0
  %2561 = vmatpush2.bf16.msra.mxu0 0
  %2562 = vmatprep.subr.bf16.mxu0 0
  %2563 = vmatpush2.bf16.msra.mxu0 0
  %2564 = vmatprep.subr.bf16.mxu0 0
  %2565 = vmatpush2.bf16.msra.mxu0 0
  %2566 = vmatprep.subr.bf16.mxu0 0
  %2567 = vmatpush2.bf16.msra.mxu0 0
  %2568 = vmatprep.subr.bf16.mxu0 0
  %2569 = vmatpush2.bf16.msra.mxu0 0
  %2570 = vmatprep.mubr.bf16.mxu0 0
  %2571 = vmatmul.mubr.bf16.gmra.mxu0 %v2451
  %v2572 = vpop.f32.mrf.mxu0
  %v2573 = vadd.f32 %v2530, %v2572
  %v2574 = vpop.f32.mrf.mxu0
  %v2575 = vadd.f32 %v2532, %v2574
  %v2576 = vpop.f32.mrf.mxu0
  %v2577 = vadd.f32 %v2534, %v2576
  %v2578 = vpop.f32.mrf.mxu0
  %v2579 = vadd.f32 %v2536, %v2578
  %2580 = vdwg.mxu0
  %v2581 = vmul.f32 %v2573, %v1523
  %v2582 = vmul.f32 %v2575, %v1527
  %v2583 = vmul.f32 %v2577, %v1523
  %v2584 = vmul.f32 %v2579, %v1527
  %v2585 = vadd.f32 %v2581, %v1538
  %v2586 = vadd.f32 %v2582, %v1542
  %v2587 = vadd.f32 %v2583, %v1538
  %v2588 = vadd.f32 %v2584, %v1542
  %v2589 = vmax.f32 %v2585, 0.0
  %v2590 = vmax.f32 %v2586, 0.0
  %v2591 = vmax.f32 %v2587, 0.0
  %v2592 = vmax.f32 %v2588, 0.0
  %v2593 = vmax.f32 %v2589, %v2590
  %v2594 = vmax.f32 %v2591, %v2592
  %v2596 = vrot.slane %v2593, 1
  %v2598 = vmax.f32 %v2593, %v2596
  %v2600 = vrot.slane %v2594, 1
  %v2602 = vmax.f32 %v2594, %v2600
  %v2604 = vrot.slane %v2598, 1
  %v2606 = vrot.slane %v2598, 2
  %v2608 = vrot.slane %v2598, 3
  %v2611 = vrot.slane %v2602, 4
  %v2613 = vsel %vm944, %v2598, %v2604
  %v2614 = vsel %vm946, %v2613, %v2606
  %v2615 = vsel %vm948, %v2614, %v2608
  %v2616 = vsel %vm950, %v2615, %v2611
  %v2618 = vrot.slane %v2616, 1
  %v2619 = vrot.slane %v2616, 2
  %v2620 = vrot.slane %v2616, 3
  %v2621 = vrot.slane %v2616, 4
  %v2622 = vld [vmem:[%s0 + $0x30] sm:$0xf]
  %v2623 = vld [vmem:[%s0 + $0x34] sm:$0xf]
  %v2624 = vld [vmem:[%s0 + $0x38] sm:$0xf]
  %v2625 = vld [vmem:[%s0 + $0x3c] sm:$0x3]
  %v2626 = vld [vmem:[%s0 + $0x3c] sm:$0x7]
  %v2627 = vld [vmem:[%s0 + $0x30] sm:$0xe]
  %v2628 = vld [vmem:[%s0 + $0x3c] sm:$0xf]
  %v2629 = vld [vmem:[%s0 + $0x30] sm:$0xc]
  %v2634 = vunpack.c.l.b16 %v2622
  %v2635 = vunpack.c.l.b16 %v2623
  %v2636 = vunpack.c.l.b16 %v2624
  %v2637 = vunpack.c.l.b16 %v2625
  %v2638 = vpack.c.b16 %v2635, %v2634
  %v2639 = vpack.c.b16 %v2637, %v2636
  %v2643 = vunpack.c.l.b16 %v2626
  %v2644 = vpack.c.b16 %v2643, %v2636
  %v2646 = vshrl.u32 %v2638, 16
  %v2648 = vshll.u32 %v2638, 16
  %v2650 = vrot.slane %v2648, 1
  %v2651 = vor.u32 %v2646, %v2650
  %v2653 = vshll.u32 %v2644, 16
  %v2655 = vrot.slane %v2653, 1
  %v2656 = vsel %vm232, %v2651, %v2655
  %v2657 = vshrl.u32 %v2644, 16
  %v2659 = vor.u32 %v2657, %v2655
  %v2663 = vunpack.c.l.b16 %v2627
  %v2664 = vpack.c.b16 %v2635, %v2663
  %v2665 = vrot.slane %v2664, 1
  %v2666 = vrot.slane %v2644, 1
  %v2667 = vsel %vm253, %v2665, %v2666
  %v2671 = vunpack.c.l.b16 %v2628
  %v2672 = vpack.c.b16 %v2671, %v2636
  %v2674 = vshrl.u32 %v2664, 16
  %v2676 = vrot.slane %v2674, 1
  %v2677 = vshll.u32 %v2664, 16
  %v2679 = vrot.slane %v2677, 2
  %v2680 = vor.u32 %v2676, %v2679
  %v2682 = vshrl.u32 %v2672, 16
  %v2684 = vrot.slane %v2682, 1
  %v2685 = vshll.u32 %v2672, 16
  %v2687 = vrot.slane %v2685, 2
  %v2688 = vor.u32 %v2684, %v2687
  %v2689 = vsel %vm262, %v2680, %v2688
  %v2693 = vunpack.c.l.b16 %v2629
  %v2694 = vpack.c.b16 %v2635, %v2693
  %v2695 = vrot.slane %v2694, 2
  %v2696 = vrot.slane %v2672, 2
  %v2697 = vsel %vm285, %v2695, %v2696
  %2700 = vmatprep.subr.bf16.mxu0 %v546
  %2701 = vmatpush1.bf16.msra.mxu0 %v545
  %2702 = vmatprep.subr.bf16.mxu0 %v544
  %2703 = vmatpush1.bf16.msra.mxu0 %v543
  %2704 = vmatprep.subr.bf16.mxu0 %v542
  %2705 = vmatpush1.bf16.msra.mxu0 %v541
  %2706 = vmatprep.subr.bf16.mxu0 %v540
  %2707 = vmatpush1.bf16.msra.mxu0 %v539
  %2708 = vmatprep.subr.bf16.mxu0 %v538
  %2709 = vmatpush1.bf16.msra.mxu0 %v537
  %2710 = vmatprep.subr.bf16.mxu0 %v536
  %2711 = vmatpush1.bf16.msra.mxu0 %v535
  %2712 = vmatprep.subr.bf16.mxu0 %v534
  %2713 = vmatpush1.bf16.msra.mxu0 %v533
  %2714 = vmatprep.subr.bf16.mxu0 %v532
  %2715 = vmatpush1.bf16.msra.mxu0 %v531
  %2716 = vmatprep.subr.bf16.mxu0 %v562
  %2717 = vmatpush2.bf16.msra.mxu0 %v561
  %2718 = vmatprep.subr.bf16.mxu0 %v560
  %2719 = vmatpush2.bf16.msra.mxu0 %v559
  %2720 = vmatprep.subr.bf16.mxu0 %v558
  %2721 = vmatpush2.bf16.msra.mxu0 %v557
  %2722 = vmatprep.subr.bf16.mxu0 %v556
  %2723 = vmatpush2.bf16.msra.mxu0 %v555
  %2724 = vmatprep.subr.bf16.mxu0 %v554
  %2725 = vmatpush2.bf16.msra.mxu0 %v553
  %2726 = vmatprep.subr.bf16.mxu0 %v552
  %2727 = vmatpush2.bf16.msra.mxu0 %v551
  %2728 = vmatprep.subr.bf16.mxu0 %v550
  %2729 = vmatpush2.bf16.msra.mxu0 %v549
  %2730 = vmatprep.subr.bf16.mxu0 %v548
  %2731 = vmatpush2.bf16.msra.mxu0 %v547
  %2732 = vmatprep.mubr.bf16.mxu0 %v2656
  %2733 = vmatmul.mubr.bf16.gmra.mxu0 %v2638
  %v2734 = vpop.f32.mrf.mxu0
  %v2735 = vadd.f32 0.0, %v2734
  %v2736 = vpop.f32.mrf.mxu0
  %v2737 = vadd.f32 0.0, %v2736
  %v2738 = vpop.f32.mrf.mxu0
  %v2739 = vadd.f32 0.0, %v2738
  %v2740 = vpop.f32.mrf.mxu0
  %v2741 = vadd.f32 0.0, %v2740
  %2742 = vmatprep.mubr.bf16.mxu0 %v2659
  %2743 = vmatmul.mubr.bf16.gmra.mxu0 %v2639
  %v2744 = vpop.f32.mrf.mxu0
  %v2745 = vadd.f32 0.0, %v2744
  %v2746 = vpop.f32.mrf.mxu0
  %v2747 = vadd.f32 0.0, %v2746
  %v2748 = vpop.f32.mrf.mxu0
  %v2749 = vadd.f32 0.0, %v2748
  %v2750 = vpop.f32.mrf.mxu0
  %v2751 = vadd.f32 0.0, %v2750
  %2752 = vdwg.mxu0
  %2753 = vmatprep.subr.bf16.mxu0 %v578
  %2754 = vmatpush1.bf16.msra.mxu0 %v577
  %2755 = vmatprep.subr.bf16.mxu0 %v576
  %2756 = vmatpush1.bf16.msra.mxu0 %v575
  %2757 = vmatprep.subr.bf16.mxu0 %v574
  %2758 = vmatpush1.bf16.msra.mxu0 %v573
  %2759 = vmatprep.subr.bf16.mxu0 %v572
  %2760 = vmatpush1.bf16.msra.mxu0 %v571
  %2761 = vmatprep.subr.bf16.mxu0 %v570
  %2762 = vmatpush1.bf16.msra.mxu0 %v569
  %2763 = vmatprep.subr.bf16.mxu0 %v568
  %2764 = vmatpush1.bf16.msra.mxu0 %v567
  %2765 = vmatprep.subr.bf16.mxu0 %v566
  %2766 = vmatpush1.bf16.msra.mxu0 %v565
  %2767 = vmatprep.subr.bf16.mxu0 %v564
  %2768 = vmatpush1.bf16.msra.mxu0 %v563
  %2769 = vmatprep.subr.bf16.mxu0 %v594
  %2770 = vmatpush2.bf16.msra.mxu0 %v593
  %2771 = vmatprep.subr.bf16.mxu0 %v592
  %2772 = vmatpush2.bf16.msra.mxu0 %v591
  %2773 = vmatprep.subr.bf16.mxu0 %v590
  %2774 = vmatpush2.bf16.msra.mxu0 %v589
  %2775 = vmatprep.subr.bf16.mxu0 %v588
  %2776 = vmatpush2.bf16.msra.mxu0 %v587
  %2777 = vmatprep.subr.bf16.mxu0 %v586
  %2778 = vmatpush2.bf16.msra.mxu0 %v585
  %2779 = vmatprep.subr.bf16.mxu0 %v584
  %2780 = vmatpush2.bf16.msra.mxu0 %v583
  %2781 = vmatprep.subr.bf16.mxu0 %v582
  %2782 = vmatpush2.bf16.msra.mxu0 %v581
  %2783 = vmatprep.subr.bf16.mxu0 %v580
  %2784 = vmatpush2.bf16.msra.mxu0 %v579
  %2785 = vmatprep.mubr.bf16.mxu0 %v2689
  %2786 = vmatmul.mubr.bf16.gmra.mxu0 %v2667
  %v2787 = vpop.f32.mrf.mxu0
  %v2788 = vadd.f32 %v2735, %v2787
  %v2789 = vpop.f32.mrf.mxu0
  %v2790 = vadd.f32 %v2737, %v2789
  %v2791 = vpop.f32.mrf.mxu0
  %v2792 = vadd.f32 %v2739, %v2791
  %v2793 = vpop.f32.mrf.mxu0
  %v2794 = vadd.f32 %v2741, %v2793
  %2795 = vmatprep.mubr.bf16.mxu0 %v2688
  %2796 = vmatmul.mubr.bf16.gmra.mxu0 %v2666
  %v2797 = vpop.f32.mrf.mxu0
  %v2798 = vadd.f32 %v2745, %v2797
  %v2799 = vpop.f32.mrf.mxu0
  %v2800 = vadd.f32 %v2747, %v2799
  %v2801 = vpop.f32.mrf.mxu0
  %v2802 = vadd.f32 %v2749, %v2801
  %v2803 = vpop.f32.mrf.mxu0
  %v2804 = vadd.f32 %v2751, %v2803
  %2805 = vdwg.mxu0
  %2806 = vmatprep.subr.bf16.mxu0 %v610
  %2807 = vmatpush1.bf16.msra.mxu0 %v609
  %2808 = vmatprep.subr.bf16.mxu0 %v608
  %2809 = vmatpush1.bf16.msra.mxu0 %v607
  %2810 = vmatprep.subr.bf16.mxu0 %v606
  %2811 = vmatpush1.bf16.msra.mxu0 %v605
  %2812 = vmatprep.subr.bf16.mxu0 %v604
  %2813 = vmatpush1.bf16.msra.mxu0 %v603
  %2814 = vmatprep.subr.bf16.mxu0 %v602
  %2815 = vmatpush1.bf16.msra.mxu0 %v601
  %2816 = vmatprep.subr.bf16.mxu0 %v600
  %2817 = vmatpush1.bf16.msra.mxu0 %v599
  %2818 = vmatprep.subr.bf16.mxu0 %v598
  %2819 = vmatpush1.bf16.msra.mxu0 %v597
  %2820 = vmatprep.subr.bf16.mxu0 %v596
  %2821 = vmatpush1.bf16.msra.mxu0 %v595
  %2822 = vmatprep.subr.bf16.mxu0 0
  %2823 = vmatpush2.bf16.msra.mxu0 0
  %2824 = vmatprep.subr.bf16.mxu0 0
  %2825 = vmatpush2.bf16.msra.mxu0 0
  %2826 = vmatprep.subr.bf16.mxu0 0
  %2827 = vmatpush2.bf16.msra.mxu0 0
  %2828 = vmatprep.subr.bf16.mxu0 0
  %2829 = vmatpush2.bf16.msra.mxu0 0
  %2830 = vmatprep.subr.bf16.mxu0 0
  %2831 = vmatpush2.bf16.msra.mxu0 0
  %2832 = vmatprep.subr.bf16.mxu0 0
  %2833 = vmatpush2.bf16.msra.mxu0 0
  %2834 = vmatprep.subr.bf16.mxu0 0
  %2835 = vmatpush2.bf16.msra.mxu0 0
  %2836 = vmatprep.subr.bf16.mxu0 0
  %2837 = vmatpush2.bf16.msra.mxu0 0
  %2838 = vmatprep.mubr.bf16.mxu0 0
  %2839 = vmatmul.mubr.bf16.gmra.mxu0 %v2697
  %v2840 = vpop.f32.mrf.mxu0
  %v2841 = vadd.f32 %v2788, %v2840
  %v2842 = vpop.f32.mrf.mxu0
  %v2843 = vadd.f32 %v2790, %v2842
  %v2844 = vpop.f32.mrf.mxu0
  %v2845 = vadd.f32 %v2792, %v2844
  %v2846 = vpop.f32.mrf.mxu0
  %v2847 = vadd.f32 %v2794, %v2846
  %2848 = vmatprep.mubr.bf16.mxu0 0
  %2849 = vmatmul.mubr.bf16.gmra.mxu0 %v2696
  %v2850 = vpop.f32.mrf.mxu0
  %v2851 = vadd.f32 %v2798, %v2850
  %v2852 = vpop.f32.mrf.mxu0
  %v2853 = vadd.f32 %v2800, %v2852
  %v2854 = vpop.f32.mrf.mxu0
  %v2855 = vadd.f32 %v2802, %v2854
  %v2856 = vpop.f32.mrf.mxu0
  %v2857 = vadd.f32 %v2804, %v2856
  %2858 = vdwg.mxu0
  %v2859 = vmul.f32 %v2841, %v854
  %v2860 = vmul.f32 %v2843, %v858
  %v2861 = vmul.f32 %v2845, %v854
  %v2862 = vmul.f32 %v2847, %v858
  %v2863 = vmul.f32 %v2851, %v854
  %v2864 = vmul.f32 %v2853, %v858
  %v2865 = vmul.f32 %v2855, %v854
  %v2866 = vmul.f32 %v2857, %v858
  %v2867 = vadd.f32 %v2859, %v873
  %v2868 = vadd.f32 %v2860, %v877
  %v2869 = vadd.f32 %v2861, %v873
  %v2870 = vadd.f32 %v2862, %v877
  %v2871 = vadd.f32 %v2863, %v873
  %v2872 = vadd.f32 %v2864, %v877
  %v2873 = vadd.f32 %v2865, %v873
  %v2874 = vadd.f32 %v2866, %v877
  %v2875 = vmax.f32 %v2867, 0.0
  %v2876 = vmax.f32 %v2868, 0.0
  %v2877 = vmax.f32 %v2869, 0.0
  %v2878 = vmax.f32 %v2870, 0.0
  %v2879 = vmax.f32 %v2871, 0.0
  %v2880 = vmax.f32 %v2872, 0.0
  %v2881 = vmax.f32 %v2873, 0.0
  %v2882 = vmax.f32 %v2874, 0.0
  %v2883 = vmax.f32 %v2875, %v2876
  %v2884 = vmax.f32 %v2877, %v2878
  %v2885 = vmax.f32 %v2879, %v2880
  %v2886 = vmax.f32 %v2881, %v2882
  %v2888 = vrot.slane %v2883, 1
  %v2890 = vmax.f32 %v2883, %v2888
  %v2892 = vrot.slane %v2884, 1
  %v2894 = vmax.f32 %v2884, %v2892
  %v2896 = vrot.slane %v2885, 1
  %v2898 = vmax.f32 %v2885, %v2896
  %v2900 = vrot.slane %v2886, 1
  %v2902 = vmax.f32 %v2886, %v2900
  %v2904 = vrot.slane %v2890, 1
  %v2906 = vrot.slane %v2890, 2
  %v2908 = vrot.slane %v2890, 3
  %v2911 = vrot.slane %v2894, 4
  %v2913 = vrot.slane %v2894, 5
  %v2915 = vrot.slane %v2894, 6
  %v2917 = vrot.slane %v2894, 7
  %v2920 = vrot.slane %v2898, 1
  %v2922 = vrot.slane %v2898, 2
  %v2924 = vrot.slane %v2898, 3
  %v2927 = vrot.slane %v2902, 4
  %v2929 = vrot.slane %v2902, 5
  %v2931 = vsel %vm944, %v2890, %v2904
  %v2932 = vsel %vm946, %v2931, %v2906
  %v2933 = vsel %vm948, %v2932, %v2908
  %v2934 = vsel %vm950, %v2933, %v2911
  %v2935 = vsel %vm952, %v2934, %v2913
  %v2936 = vsel %vm954, %v2935, %v2915
  %v2937 = vsel %vm956, %v2936, %v2917
  %v2938 = vsel %vm944, %v2898, %v2920
  %v2939 = vsel %vm946, %v2938, %v2922
  %v2940 = vsel %vm948, %v2939, %v2924
  %v2941 = vsel %vm950, %v2940, %v2927
  %v2942 = vsel %vm952, %v2941, %v2929
  %v2945 = vrot.slane %v2937, 1
  %v2946 = vrot.slane %v2942, 1
  %v2947 = vsel %vm956, %v2945, %v2946
  %v2950 = vrot.slane %v2937, 2
  %v2951 = vrot.slane %v2942, 2
  %v2952 = vsel %vm954, %v2950, %v2951
  %v2955 = vrot.slane %v2937, 3
  %v2956 = vrot.slane %v2942, 3
  %v2957 = vsel %vm952, %v2955, %v2956
  %v2960 = vrot.slane %v2937, 4
  %v2961 = vrot.slane %v2942, 4
  %v2962 = vsel %vm950, %v2960, %v2961
  %v2965 = vpack.c.bf16 %v2942, %v2937
  %v2966 = vpack.c.bf16 %v2946, %v2947
  %v2967 = vpack.c.bf16 %v2951, %v2952
  %v2968 = vpack.c.bf16 %v2956, %v2957
  %v2969 = vpack.c.bf16 %v2961, %v2962
  %2970 = vmatprep.subr.bf16.mxu0 %v1245
  %2971 = vmatpush1.bf16.msra.mxu0 %v1244
  %2972 = vmatprep.subr.bf16.mxu0 %v1243
  %2973 = vmatpush1.bf16.msra.mxu0 %v1242
  %2974 = vmatprep.subr.bf16.mxu0 %v1241
  %2975 = vmatpush1.bf16.msra.mxu0 %v1240
  %2976 = vmatprep.subr.bf16.mxu0 %v1239
  %2977 = vmatpush1.bf16.msra.mxu0 %v1238
  %2978 = vmatprep.subr.bf16.mxu0 %v1237
  %2979 = vmatpush1.bf16.msra.mxu0 %v1236
  %2980 = vmatprep.subr.bf16.mxu0 %v1235
  %2981 = vmatpush1.bf16.msra.mxu0 %v1234
  %2982 = vmatprep.subr.bf16.mxu0 %v1233
  %2983 = vmatpush1.bf16.msra.mxu0 %v1232
  %2984 = vmatprep.subr.bf16.mxu0 %v1231
  %2985 = vmatpush1.bf16.msra.mxu0 %v1230
  %2986 = vmatprep.subr.bf16.mxu0 %v1261
  %2987 = vmatpush2.bf16.msra.mxu0 %v1260
  %2988 = vmatprep.subr.bf16.mxu0 %v1259
  %2989 = vmatpush2.bf16.msra.mxu0 %v1258
  %2990 = vmatprep.subr.bf16.mxu0 %v1257
  %2991 = vmatpush2.bf16.msra.mxu0 %v1256
  %2992 = vmatprep.subr.bf16.mxu0 %v1255
  %2993 = vmatpush2.bf16.msra.mxu0 %v1254
  %2994 = vmatprep.subr.bf16.mxu0 %v1253
  %2995 = vmatpush2.bf16.msra.mxu0 %v1252
  %2996 = vmatprep.subr.bf16.mxu0 %v1251
  %2997 = vmatpush2.bf16.msra.mxu0 %v1250
  %2998 = vmatprep.subr.bf16.mxu0 %v1249
  %2999 = vmatpush2.bf16.msra.mxu0 %v1248
  %3000 = vmatprep.subr.bf16.mxu0 %v1247
  %3001 = vmatpush2.bf16.msra.mxu0 %v1246
  %3002 = vmatprep.mubr.bf16.mxu0 %v2966
  %3003 = vmatmul.mubr.bf16.gmra.mxu0 %v2965
  %v3004 = vpop.f32.mrf.mxu0
  %v3005 = vadd.f32 0.0, %v3004
  %v3006 = vpop.f32.mrf.mxu0
  %v3007 = vadd.f32 0.0, %v3006
  %v3008 = vpop.f32.mrf.mxu0
  %v3009 = vadd.f32 0.0, %v3008
  %v3010 = vpop.f32.mrf.mxu0
  %v3011 = vadd.f32 0.0, %v3010
  %3012 = vdwg.mxu0
  %3013 = vmatprep.subr.bf16.mxu0 %v1277
  %3014 = vmatpush1.bf16.msra.mxu0 %v1276
  %3015 = vmatprep.subr.bf16.mxu0 %v1275
  %3016 = vmatpush1.bf16.msra.mxu0 %v1274
  %3017 = vmatprep.subr.bf16.mxu0 %v1273
  %3018 = vmatpush1.bf16.msra.mxu0 %v1272
  %3019 = vmatprep.subr.bf16.mxu0 %v1271
  %3020 = vmatpush1.bf16.msra.mxu0 %v1270
  %3021 = vmatprep.subr.bf16.mxu0 %v1269
  %3022 = vmatpush1.bf16.msra.mxu0 %v1268
  %3023 = vmatprep.subr.bf16.mxu0 %v1267
  %3024 = vmatpush1.bf16.msra.mxu0 %v1266
  %3025 = vmatprep.subr.bf16.mxu0 %v1265
  %3026 = vmatpush1.bf16.msra.mxu0 %v1264
  %3027 = vmatprep.subr.bf16.mxu0 %v1263
  %3028 = vmatpush1.bf16.msra.mxu0 %v1262
  %3029 = vmatprep.subr.bf16.mxu0 %v1293
  %3030 = vmatpush2.bf16.msra.mxu0 %v1292
  %3031 = vmatprep.subr.bf16.mxu0 %v1291
  %3032 = vmatpush2.bf16.msra.mxu0 %v1290
  %3033 = vmatprep.subr.bf16.mxu0 %v1289
  %3034 = vmatpush2.bf16.msra.mxu0 %v1288
  %3035 = vmatprep.subr.bf16.mxu0 %v1287
  %3036 = vmatpush2.bf16.msra.mxu0 %v1286
  %3037 = vmatprep.subr.bf16.mxu0 %v1285
  %3038 = vmatpush2.bf16.msra.mxu0 %v1284
  %3039 = vmatprep.subr.bf16.mxu0 %v1283
  %3040 = vmatpush2.bf16.msra.mxu0 %v1282
  %3041 = vmatprep.subr.bf16.mxu0 %v1281
  %3042 = vmatpush2.bf16.msra.mxu0 %v1280
  %3043 = vmatprep.subr.bf16.mxu0 %v1279
  %3044 = vmatpush2.bf16.msra.mxu0 %v1278
  %3045 = vmatprep.mubr.bf16.mxu0 %v2968
  %3046 = vmatmul.mubr.bf16.gmra.mxu0 %v2967
  %v3047 = vpop.f32.mrf.mxu0
  %v3048 = vadd.f32 %v3005, %v3047
  %v3049 = vpop.f32.mrf.mxu0
  %v3050 = vadd.f32 %v3007, %v3049
  %v3051 = vpop.f32.mrf.mxu0
  %v3052 = vadd.f32 %v3009, %v3051
  %v3053 = vpop.f32.mrf.mxu0
  %v3054 = vadd.f32 %v3011, %v3053
  %3055 = vdwg.mxu0
  %3056 = vmatprep.subr.bf16.mxu0 %v1309
  %3057 = vmatpush1.bf16.msra.mxu0 %v1308
  %3058 = vmatprep.subr.bf16.mxu0 %v1307
  %3059 = vmatpush1.bf16.msra.mxu0 %v1306
  %3060 = vmatprep.subr.bf16.mxu0 %v1305
  %3061 = vmatpush1.bf16.msra.mxu0 %v1304
  %3062 = vmatprep.subr.bf16.mxu0 %v1303
  %3063 = vmatpush1.bf16.msra.mxu0 %v1302
  %3064 = vmatprep.subr.bf16.mxu0 %v1301
  %3065 = vmatpush1.bf16.msra.mxu0 %v1300
  %3066 = vmatprep.subr.bf16.mxu0 %v1299
  %3067 = vmatpush1.bf16.msra.mxu0 %v1298
  %3068 = vmatprep.subr.bf16.mxu0 %v1297
  %3069 = vmatpush1.bf16.msra.mxu0 %v1296
  %3070 = vmatprep.subr.bf16.mxu0 %v1295
  %3071 = vmatpush1.bf16.msra.mxu0 %v1294
  %3072 = vmatprep.subr.bf16.mxu0 0
  %3073 = vmatpush2.bf16.msra.mxu0 0
  %3074 = vmatprep.subr.bf16.mxu0 0
  %3075 = vmatpush2.bf16.msra.mxu0 0
  %3076 = vmatprep.subr.bf16.mxu0 0
  %3077 = vmatpush2.bf16.msra.mxu0 0
  %3078 = vmatprep.subr.bf16.mxu0 0
  %3079 = vmatpush2.bf16.msra.mxu0 0
  %3080 = vmatprep.subr.bf16.mxu0 0
  %3081 = vmatpush2.bf16.msra.mxu0 0
  %3082 = vmatprep.subr.bf16.mxu0 0
  %3083 = vmatpush2.bf16.msra.mxu0 0
  %3084 = vmatprep.subr.bf16.mxu0 0
  %3085 = vmatpush2.bf16.msra.mxu0 0
  %3086 = vmatprep.subr.bf16.mxu0 0
  %3087 = vmatpush2.bf16.msra.mxu0 0
  %3088 = vmatprep.mubr.bf16.mxu0 0
  %3089 = vmatmul.mubr.bf16.gmra.mxu0 %v2969
  %v3090 = vpop.f32.mrf.mxu0
  %v3091 = vadd.f32 %v3048, %v3090
  %v3092 = vpop.f32.mrf.mxu0
  %v3093 = vadd.f32 %v3050, %v3092
  %v3094 = vpop.f32.mrf.mxu0
  %v3095 = vadd.f32 %v3052, %v3094
  %v3096 = vpop.f32.mrf.mxu0
  %v3097 = vadd.f32 %v3054, %v3096
  %3098 = vdwg.mxu0
  %v3099 = vmul.f32 %v3091, %v1523
  %v3100 = vmul.f32 %v3093, %v1527
  %v3101 = vmul.f32 %v3095, %v1523
  %v3102 = vmul.f32 %v3097, %v1527
  %v3103 = vadd.f32 %v3099, %v1538
  %v3104 = vadd.f32 %v3100, %v1542
  %v3105 = vadd.f32 %v3101, %v1538
  %v3106 = vadd.f32 %v3102, %v1542
  %v3107 = vmax.f32 %v3103, 0.0
  %v3108 = vmax.f32 %v3104, 0.0
  %v3109 = vmax.f32 %v3105, 0.0
  %v3110 = vmax.f32 %v3106, 0.0
  %v3111 = vmax.f32 %v3107, %v3108
  %v3112 = vmax.f32 %v3109, %v3110
  %v3114 = vrot.slane %v3111, 1
  %v3116 = vmax.f32 %v3111, %v3114
  %v3118 = vrot.slane %v3112, 1
  %v3120 = vmax.f32 %v3112, %v3118
  %v3122 = vrot.slane %v3116, 1
  %v3124 = vrot.slane %v3116, 2
  %v3126 = vrot.slane %v3116, 3
  %v3129 = vrot.slane %v3120, 4
  %v3131 = vsel %vm944, %v3116, %v3122
  %v3132 = vsel %vm946, %v3131, %v3124
  %v3133 = vsel %vm948, %v3132, %v3126
  %v3134 = vsel %vm950, %v3133, %v3129
  %v3136 = vrot.slane %v3134, 1
  %v3137 = vrot.slane %v3134, 2
  %v3138 = vrot.slane %v3134, 3
  %v3139 = vrot.slane %v3134, 4
  %v3140 = vld [vmem:[%s0 + $0x40] sm:$0xf]
  %v3141 = vld [vmem:[%s0 + $0x44] sm:$0xf]
  %v3142 = vld [vmem:[%s0 + $0x48] sm:$0xf]
  %v3143 = vld [vmem:[%s0 + $0x4c] sm:$0x3]
  %v3144 = vld [vmem:[%s0 + $0x4c] sm:$0x7]
  %v3145 = vld [vmem:[%s0 + $0x40] sm:$0xe]
  %v3146 = vld [vmem:[%s0 + $0x4c] sm:$0xf]
  %v3147 = vld [vmem:[%s0 + $0x40] sm:$0xc]
  %v3152 = vunpack.c.l.b16 %v3140
  %v3153 = vunpack.c.l.b16 %v3141
  %v3154 = vunpack.c.l.b16 %v3142
  %v3155 = vunpack.c.l.b16 %v3143
  %v3156 = vpack.c.b16 %v3153, %v3152
  %v3157 = vpack.c.b16 %v3155, %v3154
  %v3161 = vunpack.c.l.b16 %v3144
  %v3162 = vpack.c.b16 %v3161, %v3154
  %v3164 = vshrl.u32 %v3156, 16
  %v3166 = vshll.u32 %v3156, 16
  %v3168 = vrot.slane %v3166, 1
  %v3169 = vor.u32 %v3164, %v3168
  %v3171 = vshll.u32 %v3162, 16
  %v3173 = vrot.slane %v3171, 1
  %v3174 = vsel %vm232, %v3169, %v3173
  %v3175 = vshrl.u32 %v3162, 16
  %v3177 = vor.u32 %v3175, %v3173
  %v3181 = vunpack.c.l.b16 %v3145
  %v3182 = vpack.c.b16 %v3153, %v3181
  %v3183 = vrot.slane %v3182, 1
  %v3184 = vrot.slane %v3162, 1
  %v3185 = vsel %vm253, %v3183, %v3184
  %v3189 = vunpack.c.l.b16 %v3146
  %v3190 = vpack.c.b16 %v3189, %v3154
  %v3192 = vshrl.u32 %v3182, 16
  %v3194 = vrot.slane %v3192, 1
  %v3195 = vshll.u32 %v3182, 16
  %v3197 = vrot.slane %v3195, 2
  %v3198 = vor.u32 %v3194, %v3197
  %v3200 = vshrl.u32 %v3190, 16
  %v3202 = vrot.slane %v3200, 1
  %v3203 = vshll.u32 %v3190, 16
  %v3205 = vrot.slane %v3203, 2
  %v3206 = vor.u32 %v3202, %v3205
  %v3207 = vsel %vm262, %v3198, %v3206
  %v3211 = vunpack.c.l.b16 %v3147
  %v3212 = vpack.c.b16 %v3153, %v3211
  %v3213 = vrot.slane %v3212, 2
  %v3214 = vrot.slane %v3190, 2
  %v3215 = vsel %vm285, %v3213, %v3214
  %3218 = vmatprep.subr.bf16.mxu0 %v546
  %3219 = vmatpush1.bf16.msra.mxu0 %v545
  %3220 = vmatprep.subr.bf16.mxu0 %v544
  %3221 = vmatpush1.bf16.msra.mxu0 %v543
  %3222 = vmatprep.subr.bf16.mxu0 %v542
  %3223 = vmatpush1.bf16.msra.mxu0 %v541
  %3224 = vmatprep.subr.bf16.mxu0 %v540
  %3225 = vmatpush1.bf16.msra.mxu0 %v539
  %3226 = vmatprep.subr.bf16.mxu0 %v538
  %3227 = vmatpush1.bf16.msra.mxu0 %v537
  %3228 = vmatprep.subr.bf16.mxu0 %v536
  %3229 = vmatpush1.bf16.msra.mxu0 %v535
  %3230 = vmatprep.subr.bf16.mxu0 %v534
  %3231 = vmatpush1.bf16.msra.mxu0 %v533
  %3232 = vmatprep.subr.bf16.mxu0 %v532
  %3233 = vmatpush1.bf16.msra.mxu0 %v531
  %3234 = vmatprep.subr.bf16.mxu0 %v562
  %3235 = vmatpush2.bf16.msra.mxu0 %v561
  %3236 = vmatprep.subr.bf16.mxu0 %v560
  %3237 = vmatpush2.bf16.msra.mxu0 %v559
  %3238 = vmatprep.subr.bf16.mxu0 %v558
  %3239 = vmatpush2.bf16.msra.mxu0 %v557
  %3240 = vmatprep.subr.bf16.mxu0 %v556
  %3241 = vmatpush2.bf16.msra.mxu0 %v555
  %3242 = vmatprep.subr.bf16.mxu0 %v554
  %3243 = vmatpush2.bf16.msra.mxu0 %v553
  %3244 = vmatprep.subr.bf16.mxu0 %v552
  %3245 = vmatpush2.bf16.msra.mxu0 %v551
  %3246 = vmatprep.subr.bf16.mxu0 %v550
  %3247 = vmatpush2.bf16.msra.mxu0 %v549
  %3248 = vmatprep.subr.bf16.mxu0 %v548
  %3249 = vmatpush2.bf16.msra.mxu0 %v547
  %3250 = vmatprep.mubr.bf16.mxu0 %v3174
  %3251 = vmatmul.mubr.bf16.gmra.mxu0 %v3156
  %v3252 = vpop.f32.mrf.mxu0
  %v3253 = vadd.f32 0.0, %v3252
  %v3254 = vpop.f32.mrf.mxu0
  %v3255 = vadd.f32 0.0, %v3254
  %v3256 = vpop.f32.mrf.mxu0
  %v3257 = vadd.f32 0.0, %v3256
  %v3258 = vpop.f32.mrf.mxu0
  %v3259 = vadd.f32 0.0, %v3258
  %3260 = vmatprep.mubr.bf16.mxu0 %v3177
  %3261 = vmatmul.mubr.bf16.gmra.mxu0 %v3157
  %v3262 = vpop.f32.mrf.mxu0
  %v3263 = vadd.f32 0.0, %v3262
  %v3264 = vpop.f32.mrf.mxu0
  %v3265 = vadd.f32 0.0, %v3264
  %v3266 = vpop.f32.mrf.mxu0
  %v3267 = vadd.f32 0.0, %v3266
  %v3268 = vpop.f32.mrf.mxu0
  %v3269 = vadd.f32 0.0, %v3268
  %3270 = vdwg.mxu0
  %3271 = vmatprep.subr.bf16.mxu0 %v578
  %3272 = vmatpush1.bf16.msra.mxu0 %v577
  %3273 = vmatprep.subr.bf16.mxu0 %v576
  %3274 = vmatpush1.bf16.msra.mxu0 %v575
  %3275 = vmatprep.subr.bf16.mxu0 %v574
  %3276 = vmatpush1.bf16.msra.mxu0 %v573
  %3277 = vmatprep.subr.bf16.mxu0 %v572
  %3278 = vmatpush1.bf16.msra.mxu0 %v571
  %3279 = vmatprep.subr.bf16.mxu0 %v570
  %3280 = vmatpush1.bf16.msra.mxu0 %v569
  %3281 = vmatprep.subr.bf16.mxu0 %v568
  %3282 = vmatpush1.bf16.msra.mxu0 %v567
  %3283 = vmatprep.subr.bf16.mxu0 %v566
  %3284 = vmatpush1.bf16.msra.mxu0 %v565
  %3285 = vmatprep.subr.bf16.mxu0 %v564
  %3286 = vmatpush1.bf16.msra.mxu0 %v563
  %3287 = vmatprep.subr.bf16.mxu0 %v594
  %3288 = vmatpush2.bf16.msra.mxu0 %v593
  %3289 = vmatprep.subr.bf16.mxu0 %v592
  %3290 = vmatpush2.bf16.msra.mxu0 %v591
  %3291 = vmatprep.subr.bf16.mxu0 %v590
  %3292 = vmatpush2.bf16.msra.mxu0 %v589
  %3293 = vmatprep.subr.bf16.mxu0 %v588
  %3294 = vmatpush2.bf16.msra.mxu0 %v587
  %3295 = vmatprep.subr.bf16.mxu0 %v586
  %3296 = vmatpush2.bf16.msra.mxu0 %v585
  %3297 = vmatprep.subr.bf16.mxu0 %v584
  %3298 = vmatpush2.bf16.msra.mxu0 %v583
  %3299 = vmatprep.subr.bf16.mxu0 %v582
  %3300 = vmatpush2.bf16.msra.mxu0 %v581
  %3301 = vmatprep.subr.bf16.mxu0 %v580
  %3302 = vmatpush2.bf16.msra.mxu0 %v579
  %3303 = vmatprep.mubr.bf16.mxu0 %v3207
  %3304 = vmatmul.mubr.bf16.gmra.mxu0 %v3185
  %v3305 = vpop.f32.mrf.mxu0
  %v3306 = vadd.f32 %v3253, %v3305
  %v3307 = vpop.f32.mrf.mxu0
  %v3308 = vadd.f32 %v3255, %v3307
  %v3309 = vpop.f32.mrf.mxu0
  %v3310 = vadd.f32 %v3257, %v3309
  %v3311 = vpop.f32.mrf.mxu0
  %v3312 = vadd.f32 %v3259, %v3311
  %3313 = vmatprep.mubr.bf16.mxu0 %v3206
  %3314 = vmatmul.mubr.bf16.gmra.mxu0 %v3184
  %v3315 = vpop.f32.mrf.mxu0
  %v3316 = vadd.f32 %v3263, %v3315
  %v3317 = vpop.f32.mrf.mxu0
  %v3318 = vadd.f32 %v3265, %v3317
  %v3319 = vpop.f32.mrf.mxu0
  %v3320 = vadd.f32 %v3267, %v3319
  %v3321 = vpop.f32.mrf.mxu0
  %v3322 = vadd.f32 %v3269, %v3321
  %3323 = vdwg.mxu0
  %3324 = vmatprep.subr.bf16.mxu0 %v610
  %3325 = vmatpush1.bf16.msra.mxu0 %v609
  %3326 = vmatprep.subr.bf16.mxu0 %v608
  %3327 = vmatpush1.bf16.msra.mxu0 %v607
  %3328 = vmatprep.subr.bf16.mxu0 %v606
  %3329 = vmatpush1.bf16.msra.mxu0 %v605
  %3330 = vmatprep.subr.bf16.mxu0 %v604
  %3331 = vmatpush1.bf16.msra.mxu0 %v603
  %3332 = vmatprep.subr.bf16.mxu0 %v602
  %3333 = vmatpush1.bf16.msra.mxu0 %v601
  %3334 = vmatprep.subr.bf16.mxu0 %v600
  %3335 = vmatpush1.bf16.msra.mxu0 %v599
  %3336 = vmatprep.subr.bf16.mxu0 %v598
  %3337 = vmatpush1.bf16.msra.mxu0 %v597
  %3338 = vmatprep.subr.bf16.mxu0 %v596
  %3339 = vmatpush1.bf16.msra.mxu0 %v595
  %3340 = vmatprep.subr.bf16.mxu0 0
  %3341 = vmatpush2.bf16.msra.mxu0 0
  %3342 = vmatprep.subr.bf16.mxu0 0
  %3343 = vmatpush2.bf16.msra.mxu0 0
  %3344 = vmatprep.subr.bf16.mxu0 0
  %3345 = vmatpush2.bf16.msra.mxu0 0
  %3346 = vmatprep.subr.bf16.mxu0 0
  %3347 = vmatpush2.bf16.msra.mxu0 0
  %3348 = vmatprep.subr.bf16.mxu0 0
  %3349 = vmatpush2.bf16.msra.mxu0 0
  %3350 = vmatprep.subr.bf16.mxu0 0
  %3351 = vmatpush2.bf16.msra.mxu0 0
  %3352 = vmatprep.subr.bf16.mxu0 0
  %3353 = vmatpush2.bf16.msra.mxu0 0
  %3354 = vmatprep.subr.bf16.mxu0 0
  %3355 = vmatpush2.bf16.msra.mxu0 0
  %3356 = vmatprep.mubr.bf16.mxu0 0
  %3357 = vmatmul.mubr.bf16.gmra.mxu0 %v3215
  %v3358 = vpop.f32.mrf.mxu0
  %v3359 = vadd.f32 %v3306, %v3358
  %v3360 = vpop.f32.mrf.mxu0
  %v3361 = vadd.f32 %v3308, %v3360
  %v3362 = vpop.f32.mrf.mxu0
  %v3363 = vadd.f32 %v3310, %v3362
  %v3364 = vpop.f32.mrf.mxu0
  %v3365 = vadd.f32 %v3312, %v3364
  %3366 = vmatprep.mubr.bf16.mxu0 0
  %3367 = vmatmul.mubr.bf16.gmra.mxu0 %v3214
  %v3368 = vpop.f32.mrf.mxu0
  %v3369 = vadd.f32 %v3316, %v3368
  %v3370 = vpop.f32.mrf.mxu0
  %v3371 = vadd.f32 %v3318, %v3370
  %v3372 = vpop.f32.mrf.mxu0
  %v3373 = vadd.f32 %v3320, %v3372
  %v3374 = vpop.f32.mrf.mxu0
  %v3375 = vadd.f32 %v3322, %v3374
  %3376 = vdwg.mxu0
  %v3377 = vmul.f32 %v3359, %v854
  %v3378 = vmul.f32 %v3361, %v858
  %v3379 = vmul.f32 %v3363, %v854
  %v3380 = vmul.f32 %v3365, %v858
  %v3381 = vmul.f32 %v3369, %v854
  %v3382 = vmul.f32 %v3371, %v858
  %v3383 = vmul.f32 %v3373, %v854
  %v3384 = vmul.f32 %v3375, %v858
  %v3385 = vadd.f32 %v3377, %v873
  %v3386 = vadd.f32 %v3378, %v877
  %v3387 = vadd.f32 %v3379, %v873
  %v3388 = vadd.f32 %v3380, %v877
  %v3389 = vadd.f32 %v3381, %v873
  %v3390 = vadd.f32 %v3382, %v877
  %v3391 = vadd.f32 %v3383, %v873
  %v3392 = vadd.f32 %v3384, %v877
  %v3393 = vmax.f32 %v3385, 0.0
  %v3394 = vmax.f32 %v3386, 0.0
  %v3395 = vmax.f32 %v3387, 0.0
  %v3396 = vmax.f32 %v3388, 0.0
  %v3397 = vmax.f32 %v3389, 0.0
  %v3398 = vmax.f32 %v3390, 0.0
  %v3399 = vmax.f32 %v3391, 0.0
  %v3400 = vmax.f32 %v3392, 0.0
  %v3401 = vmax.f32 %v3393, %v3394
  %v3402 = vmax.f32 %v3395, %v3396
  %v3403 = vmax.f32 %v3397, %v3398
  %v3404 = vmax.f32 %v3399, %v3400
  %v3406 = vrot.slane %v3401, 1
  %v3408 = vmax.f32 %v3401, %v3406
  %v3410 = vrot.slane %v3402, 1
  %v3412 = vmax.f32 %v3402, %v3410
  %v3414 = vrot.slane %v3403, 1
  %v3416 = vmax.f32 %v3403, %v3414
  %v3418 = vrot.slane %v3404, 1
  %v3420 = vmax.f32 %v3404, %v3418
  %v3422 = vrot.slane %v3408, 1
  %v3424 = vrot.slane %v3408, 2
  %v3426 = vrot.slane %v3408, 3
  %v3429 = vrot.slane %v3412, 4
  %v3431 = vrot.slane %v3412, 5
  %v3433 = vrot.slane %v3412, 6
  %v3435 = vrot.slane %v3412, 7
  %v3438 = vrot.slane %v3416, 1
  %v3440 = vrot.slane %v3416, 2
  %v3442 = vrot.slane %v3416, 3
  %v3445 = vrot.slane %v3420, 4
  %v3447 = vrot.slane %v3420, 5
  %v3449 = vsel %vm944, %v3408, %v3422
  %v3450 = vsel %vm946, %v3449, %v3424
  %v3451 = vsel %vm948, %v3450, %v3426
  %v3452 = vsel %vm950, %v3451, %v3429
  %v3453 = vsel %vm952, %v3452, %v3431
  %v3454 = vsel %vm954, %v3453, %v3433
  %v3455 = vsel %vm956, %v3454, %v3435
  %v3456 = vsel %vm944, %v3416, %v3438
  %v3457 = vsel %vm946, %v3456, %v3440
  %v3458 = vsel %vm948, %v3457, %v3442
  %v3459 = vsel %vm950, %v3458, %v3445
  %v3460 = vsel %vm952, %v3459, %v3447
  %v3463 = vrot.slane %v3455, 1
  %v3464 = vrot.slane %v3460, 1
  %v3465 = vsel %vm956, %v3463, %v3464
  %v3468 = vrot.slane %v3455, 2
  %v3469 = vrot.slane %v3460, 2
  %v3470 = vsel %vm954, %v3468, %v3469
  %v3473 = vrot.slane %v3455, 3
  %v3474 = vrot.slane %v3460, 3
  %v3475 = vsel %vm952, %v3473, %v3474
  %v3478 = vrot.slane %v3455, 4
  %v3479 = vrot.slane %v3460, 4
  %v3480 = vsel %vm950, %v3478, %v3479
  %v3483 = vpack.c.bf16 %v3460, %v3455
  %v3484 = vpack.c.bf16 %v3464, %v3465
  %v3485 = vpack.c.bf16 %v3469, %v3470
  %v3486 = vpack.c.bf16 %v3474, %v3475
  %v3487 = vpack.c.bf16 %v3479, %v3480
  %3488 = vmatprep.subr.bf16.mxu0 %v1245
  %3489 = vmatpush1.bf16.msra.mxu0 %v1244
  %3490 = vmatprep.subr.bf16.mxu0 %v1243
  %3491 = vmatpush1.bf16.msra.mxu0 %v1242
  %3492 = vmatprep.subr.bf16.mxu0 %v1241
  %3493 = vmatpush1.bf16.msra.mxu0 %v1240
  %3494 = vmatprep.subr.bf16.mxu0 %v1239
  %3495 = vmatpush1.bf16.msra.mxu0 %v1238
  %3496 = vmatprep.subr.bf16.mxu0 %v1237
  %3497 = vmatpush1.bf16.msra.mxu0 %v1236
  %3498 = vmatprep.subr.bf16.mxu0 %v1235
  %3499 = vmatpush1.bf16.msra.mxu0 %v1234
  %3500 = vmatprep.subr.bf16.mxu0 %v1233
  %3501 = vmatpush1.bf16.msra.mxu0 %v1232
  %3502 = vmatprep.subr.bf16.mxu0 %v1231
  %3503 = vmatpush1.bf16.msra.mxu0 %v1230
  %3504 = vmatprep.subr.bf16.mxu0 %v1261
  %3505 = vmatpush2.bf16.msra.mxu0 %v1260
  %3506 = vmatprep.subr.bf16.mxu0 %v1259
  %3507 = vmatpush2.bf16.msra.mxu0 %v1258
  %3508 = vmatprep.subr.bf16.mxu0 %v1257
  %3509 = vmatpush2.bf16.msra.mxu0 %v1256
  %3510 = vmatprep.subr.bf16.mxu0 %v1255
  %3511 = vmatpush2.bf16.msra.mxu0 %v1254
  %3512 = vmatprep.subr.bf16.mxu0 %v1253
  %3513 = vmatpush2.bf16.msra.mxu0 %v1252
  %3514 = vmatprep.subr.bf16.mxu0 %v1251
  %3515 = vmatpush2.bf16.msra.mxu0 %v1250
  %3516 = vmatprep.subr.bf16.mxu0 %v1249
  %3517 = vmatpush2.bf16.msra.mxu0 %v1248
  %3518 = vmatprep.subr.bf16.mxu0 %v1247
  %3519 = vmatpush2.bf16.msra.mxu0 %v1246
  %3520 = vmatprep.mubr.bf16.mxu0 %v3484
  %3521 = vmatmul.mubr.bf16.gmra.mxu0 %v3483
  %v3522 = vpop.f32.mrf.mxu0
  %v3523 = vadd.f32 0.0, %v3522
  %v3524 = vpop.f32.mrf.mxu0
  %v3525 = vadd.f32 0.0, %v3524
  %v3526 = vpop.f32.mrf.mxu0
  %v3527 = vadd.f32 0.0, %v3526
  %v3528 = vpop.f32.mrf.mxu0
  %v3529 = vadd.f32 0.0, %v3528
  %3530 = vdwg.mxu0
  %3531 = vmatprep.subr.bf16.mxu0 %v1277
  %3532 = vmatpush1.bf16.msra.mxu0 %v1276
  %3533 = vmatprep.subr.bf16.mxu0 %v1275
  %3534 = vmatpush1.bf16.msra.mxu0 %v1274
  %3535 = vmatprep.subr.bf16.mxu0 %v1273
  %3536 = vmatpush1.bf16.msra.mxu0 %v1272
  %3537 = vmatprep.subr.bf16.mxu0 %v1271
  %3538 = vmatpush1.bf16.msra.mxu0 %v1270
  %3539 = vmatprep.subr.bf16.mxu0 %v1269
  %3540 = vmatpush1.bf16.msra.mxu0 %v1268
  %3541 = vmatprep.subr.bf16.mxu0 %v1267
  %3542 = vmatpush1.bf16.msra.mxu0 %v1266
  %3543 = vmatprep.subr.bf16.mxu0 %v1265
  %3544 = vmatpush1.bf16.msra.mxu0 %v1264
  %3545 = vmatprep.subr.bf16.mxu0 %v1263
  %3546 = vmatpush1.bf16.msra.mxu0 %v1262
  %3547 = vmatprep.subr.bf16.mxu0 %v1293
  %3548 = vmatpush2.bf16.msra.mxu0 %v1292
  %3549 = vmatprep.subr.bf16.mxu0 %v1291
  %3550 = vmatpush2.bf16.msra.mxu0 %v1290
  %3551 = vmatprep.subr.bf16.mxu0 %v1289
  %3552 = vmatpush2.bf16.msra.mxu0 %v1288
  %3553 = vmatprep.subr.bf16.mxu0 %v1287
  %3554 = vmatpush2.bf16.msra.mxu0 %v1286
  %3555 = vmatprep.subr.bf16.mxu0 %v1285
  %3556 = vmatpush2.bf16.msra.mxu0 %v1284
  %3557 = vmatprep.subr.bf16.mxu0 %v1283
  %3558 = vmatpush2.bf16.msra.mxu0 %v1282
  %3559 = vmatprep.subr.bf16.mxu0 %v1281
  %3560 = vmatpush2.bf16.msra.mxu0 %v1280
  %3561 = vmatprep.subr.bf16.mxu0 %v1279
  %3562 = vmatpush2.bf16.msra.mxu0 %v1278
  %3563 = vmatprep.mubr.bf16.mxu0 %v3486
  %3564 = vmatmul.mubr.bf16.gmra.mxu0 %v3485
  %v3565 = vpop.f32.mrf.mxu0
  %v3566 = vadd.f32 %v3523, %v3565
  %v3567 = vpop.f32.mrf.mxu0
  %v3568 = vadd.f32 %v3525, %v3567
  %v3569 = vpop.f32.mrf.mxu0
  %v3570 = vadd.f32 %v3527, %v3569
  %v3571 = vpop.f32.mrf.mxu0
  %v3572 = vadd.f32 %v3529, %v3571
  %3573 = vdwg.mxu0
  %3574 = vmatprep.subr.bf16.mxu0 %v1309
  %3575 = vmatpush1.bf16.msra.mxu0 %v1308
  %3576 = vmatprep.subr.bf16.mxu0 %v1307
  %3577 = vmatpush1.bf16.msra.mxu0 %v1306
  %3578 = vmatprep.subr.bf16.mxu0 %v1305
  %3579 = vmatpush1.bf16.msra.mxu0 %v1304
  %3580 = vmatprep.subr.bf16.mxu0 %v1303
  %3581 = vmatpush1.bf16.msra.mxu0 %v1302
  %3582 = vmatprep.subr.bf16.mxu0 %v1301
  %3583 = vmatpush1.bf16.msra.mxu0 %v1300
  %3584 = vmatprep.subr.bf16.mxu0 %v1299
  %3585 = vmatpush1.bf16.msra.mxu0 %v1298
  %3586 = vmatprep.subr.bf16.mxu0 %v1297
  %3587 = vmatpush1.bf16.msra.mxu0 %v1296
  %3588 = vmatprep.subr.bf16.mxu0 %v1295
  %3589 = vmatpush1.bf16.msra.mxu0 %v1294
  %3590 = vmatprep.subr.bf16.mxu0 0
  %3591 = vmatpush2.bf16.msra.mxu0 0
  %3592 = vmatprep.subr.bf16.mxu0 0
  %3593 = vmatpush2.bf16.msra.mxu0 0
  %3594 = vmatprep.subr.bf16.mxu0 0
  %3595 = vmatpush2.bf16.msra.mxu0 0
  %3596 = vmatprep.subr.bf16.mxu0 0
  %3597 = vmatpush2.bf16.msra.mxu0 0
  %3598 = vmatprep.subr.bf16.mxu0 0
  %3599 = vmatpush2.bf16.msra.mxu0 0
  %3600 = vmatprep.subr.bf16.mxu0 0
  %3601 = vmatpush2.bf16.msra.mxu0 0
  %3602 = vmatprep.subr.bf16.mxu0 0
  %3603 = vmatpush2.bf16.msra.mxu0 0
  %3604 = vmatprep.subr.bf16.mxu0 0
  %3605 = vmatpush2.bf16.msra.mxu0 0
  %3606 = vmatprep.mubr.bf16.mxu0 0
  %3607 = vmatmul.mubr.bf16.gmra.mxu0 %v3487
  %v3608 = vpop.f32.mrf.mxu0
  %v3609 = vadd.f32 %v3566, %v3608
  %v3610 = vpop.f32.mrf.mxu0
  %v3611 = vadd.f32 %v3568, %v3610
  %v3612 = vpop.f32.mrf.mxu0
  %v3613 = vadd.f32 %v3570, %v3612
  %v3614 = vpop.f32.mrf.mxu0
  %v3615 = vadd.f32 %v3572, %v3614
  %3616 = vdwg.mxu0
  %v3617 = vmul.f32 %v3609, %v1523
  %v3618 = vmul.f32 %v3611, %v1527
  %v3619 = vmul.f32 %v3613, %v1523
  %v3620 = vmul.f32 %v3615, %v1527
  %v3621 = vadd.f32 %v3617, %v1538
  %v3622 = vadd.f32 %v3618, %v1542
  %v3623 = vadd.f32 %v3619, %v1538
  %v3624 = vadd.f32 %v3620, %v1542
  %v3625 = vmax.f32 %v3621, 0.0
  %v3626 = vmax.f32 %v3622, 0.0
  %v3627 = vmax.f32 %v3623, 0.0
  %v3628 = vmax.f32 %v3624, 0.0
  %v3629 = vmax.f32 %v3625, %v3626
  %v3630 = vmax.f32 %v3627, %v3628
  %v3632 = vrot.slane %v3629, 1
  %v3634 = vmax.f32 %v3629, %v3632
  %v3636 = vrot.slane %v3630, 1
  %v3638 = vmax.f32 %v3630, %v3636
  %v3640 = vrot.slane %v3634, 1
  %v3642 = vrot.slane %v3634, 2
  %v3644 = vrot.slane %v3634, 3
  %v3647 = vrot.slane %v3638, 4
  %v3649 = vsel %vm944, %v3634, %v3640
  %v3650 = vsel %vm946, %v3649, %v3642
  %v3651 = vsel %vm948, %v3650, %v3644
  %v3652 = vsel %vm950, %v3651, %v3647
  %v3654 = vrot.slane %v3652, 1
  %v3655 = vrot.slane %v3652, 2
  %v3656 = vrot.slane %v3652, 3
  %v3657 = vrot.slane %v3652, 4
  %v3658 = vld [vmem:[%s0 + $0x50] sm:$0xf]
  %v3659 = vld [vmem:[%s0 + $0x54] sm:$0xf]
  %v3660 = vld [vmem:[%s0 + $0x58] sm:$0xf]
  %v3661 = vld [vmem:[%s0 + $0x5c] sm:$0x3]
  %v3662 = vld [vmem:[%s0 + $0x5c] sm:$0x7]
  %v3663 = vld [vmem:[%s0 + $0x50] sm:$0xe]
  %v3664 = vld [vmem:[%s0 + $0x5c] sm:$0xf]
  %v3665 = vld [vmem:[%s0 + $0x50] sm:$0xc]
  %v3670 = vunpack.c.l.b16 %v3658
  %v3671 = vunpack.c.l.b16 %v3659
  %v3672 = vunpack.c.l.b16 %v3660
  %v3673 = vunpack.c.l.b16 %v3661
  %v3674 = vpack.c.b16 %v3671, %v3670
  %v3675 = vpack.c.b16 %v3673, %v3672
  %v3679 = vunpack.c.l.b16 %v3662
  %v3680 = vpack.c.b16 %v3679, %v3672
  %v3682 = vshrl.u32 %v3674, 16
  %v3684 = vshll.u32 %v3674, 16
  %v3686 = vrot.slane %v3684, 1
  %v3687 = vor.u32 %v3682, %v3686
  %v3689 = vshll.u32 %v3680, 16
  %v3691 = vrot.slane %v3689, 1
  %v3692 = vsel %vm232, %v3687, %v3691
  %v3693 = vshrl.u32 %v3680, 16
  %v3695 = vor.u32 %v3693, %v3691
  %v3699 = vunpack.c.l.b16 %v3663
  %v3700 = vpack.c.b16 %v3671, %v3699
  %v3701 = vrot.slane %v3700, 1
  %v3702 = vrot.slane %v3680, 1
  %v3703 = vsel %vm253, %v3701, %v3702
  %v3707 = vunpack.c.l.b16 %v3664
  %v3708 = vpack.c.b16 %v3707, %v3672
  %v3710 = vshrl.u32 %v3700, 16
  %v3712 = vrot.slane %v3710, 1
  %v3713 = vshll.u32 %v3700, 16
  %v3715 = vrot.slane %v3713, 2
  %v3716 = vor.u32 %v3712, %v3715
  %v3718 = vshrl.u32 %v3708, 16
  %v3720 = vrot.slane %v3718, 1
  %v3721 = vshll.u32 %v3708, 16
  %v3723 = vrot.slane %v3721, 2
  %v3724 = vor.u32 %v3720, %v3723
  %v3725 = vsel %vm262, %v3716, %v3724
  %v3729 = vunpack.c.l.b16 %v3665
  %v3730 = vpack.c.b16 %v3671, %v3729
  %v3731 = vrot.slane %v3730, 2
  %v3732 = vrot.slane %v3708, 2
  %v3733 = vsel %vm285, %v3731, %v3732
  %3736 = vmatprep.subr.bf16.mxu0 %v546
  %3737 = vmatpush1.bf16.msra.mxu0 %v545
  %3738 = vmatprep.subr.bf16.mxu0 %v544
  %3739 = vmatpush1.bf16.msra.mxu0 %v543
  %3740 = vmatprep.subr.bf16.mxu0 %v542
  %3741 = vmatpush1.bf16.msra.mxu0 %v541
  %3742 = vmatprep.subr.bf16.mxu0 %v540
  %3743 = vmatpush1.bf16.msra.mxu0 %v539
  %3744 = vmatprep.subr.bf16.mxu0 %v538
  %3745 = vmatpush1.bf16.msra.mxu0 %v537
  %3746 = vmatprep.subr.bf16.mxu0 %v536
  %3747 = vmatpush1.bf16.msra.mxu0 %v535
  %3748 = vmatprep.subr.bf16.mxu0 %v534
  %3749 = vmatpush1.bf16.msra.mxu0 %v533
  %3750 = vmatprep.subr.bf16.mxu0 %v532
  %3751 = vmatpush1.bf16.msra.mxu0 %v531
  %3752 = vmatprep.subr.bf16.mxu0 %v562
  %3753 = vmatpush2.bf16.msra.mxu0 %v561
  %3754 = vmatprep.subr.bf16.mxu0 %v560
  %3755 = vmatpush2.bf16.msra.mxu0 %v559
  %3756 = vmatprep.subr.bf16.mxu0 %v558
  %3757 = vmatpush2.bf16.msra.mxu0 %v557
  %3758 = vmatprep.subr.bf16.mxu0 %v556
  %3759 = vmatpush2.bf16.msra.mxu0 %v555
  %3760 = vmatprep.subr.bf16.mxu0 %v554
  %3761 = vmatpush2.bf16.msra.mxu0 %v553
  %3762 = vmatprep.subr.bf16.mxu0 %v552
  %3763 = vmatpush2.bf16.msra.mxu0 %v551
  %3764 = vmatprep.subr.bf16.mxu0 %v550
  %3765 = vmatpush2.bf16.msra.mxu0 %v549
  %3766 = vmatprep.subr.bf16.mxu0 %v548
  %3767 = vmatpush2.bf16.msra.mxu0 %v547
  %3768 = vmatprep.mubr.bf16.mxu0 %v3692
  %3769 = vmatmul.mubr.bf16.gmra.mxu0 %v3674
  %v3770 = vpop.f32.mrf.mxu0
  %v3771 = vadd.f32 0.0, %v3770
  %v3772 = vpop.f32.mrf.mxu0
  %v3773 = vadd.f32 0.0, %v3772
  %v3774 = vpop.f32.mrf.mxu0
  %v3775 = vadd.f32 0.0, %v3774
  %v3776 = vpop.f32.mrf.mxu0
  %v3777 = vadd.f32 0.0, %v3776
  %3778 = vmatprep.mubr.bf16.mxu0 %v3695
  %3779 = vmatmul.mubr.bf16.gmra.mxu0 %v3675
  %v3780 = vpop.f32.mrf.mxu0
  %v3781 = vadd.f32 0.0, %v3780
  %v3782 = vpop.f32.mrf.mxu0
  %v3783 = vadd.f32 0.0, %v3782
  %v3784 = vpop.f32.mrf.mxu0
  %v3785 = vadd.f32 0.0, %v3784
  %v3786 = vpop.f32.mrf.mxu0
  %v3787 = vadd.f32 0.0, %v3786
  %3788 = vdwg.mxu0
  %3789 = vmatprep.subr.bf16.mxu0 %v578
  %3790 = vmatpush1.bf16.msra.mxu0 %v577
  %3791 = vmatprep.subr.bf16.mxu0 %v576
  %3792 = vmatpush1.bf16.msra.mxu0 %v575
  %3793 = vmatprep.subr.bf16.mxu0 %v574
  %3794 = vmatpush1.bf16.msra.mxu0 %v573
  %3795 = vmatprep.subr.bf16.mxu0 %v572
  %3796 = vmatpush1.bf16.msra.mxu0 %v571
  %3797 = vmatprep.subr.bf16.mxu0 %v570
  %3798 = vmatpush1.bf16.msra.mxu0 %v569
  %3799 = vmatprep.subr.bf16.mxu0 %v568
  %3800 = vmatpush1.bf16.msra.mxu0 %v567
  %3801 = vmatprep.subr.bf16.mxu0 %v566
  %3802 = vmatpush1.bf16.msra.mxu0 %v565
  %3803 = vmatprep.subr.bf16.mxu0 %v564
  %3804 = vmatpush1.bf16.msra.mxu0 %v563
  %3805 = vmatprep.subr.bf16.mxu0 %v594
  %3806 = vmatpush2.bf16.msra.mxu0 %v593
  %3807 = vmatprep.subr.bf16.mxu0 %v592
  %3808 = vmatpush2.bf16.msra.mxu0 %v591
  %3809 = vmatprep.subr.bf16.mxu0 %v590
  %3810 = vmatpush2.bf16.msra.mxu0 %v589
  %3811 = vmatprep.subr.bf16.mxu0 %v588
  %3812 = vmatpush2.bf16.msra.mxu0 %v587
  %3813 = vmatprep.subr.bf16.mxu0 %v586
  %3814 = vmatpush2.bf16.msra.mxu0 %v585
  %3815 = vmatprep.subr.bf16.mxu0 %v584
  %3816 = vmatpush2.bf16.msra.mxu0 %v583
  %3817 = vmatprep.subr.bf16.mxu0 %v582
  %3818 = vmatpush2.bf16.msra.mxu0 %v581
  %3819 = vmatprep.subr.bf16.mxu0 %v580
  %3820 = vmatpush2.bf16.msra.mxu0 %v579
  %3821 = vmatprep.mubr.bf16.mxu0 %v3725
  %3822 = vmatmul.mubr.bf16.gmra.mxu0 %v3703
  %v3823 = vpop.f32.mrf.mxu0
  %v3824 = vadd.f32 %v3771, %v3823
  %v3825 = vpop.f32.mrf.mxu0
  %v3826 = vadd.f32 %v3773, %v3825
  %v3827 = vpop.f32.mrf.mxu0
  %v3828 = vadd.f32 %v3775, %v3827
  %v3829 = vpop.f32.mrf.mxu0
  %v3830 = vadd.f32 %v3777, %v3829
  %3831 = vmatprep.mubr.bf16.mxu0 %v3724
  %3832 = vmatmul.mubr.bf16.gmra.mxu0 %v3702
  %v3833 = vpop.f32.mrf.mxu0
  %v3834 = vadd.f32 %v3781, %v3833
  %v3835 = vpop.f32.mrf.mxu0
  %v3836 = vadd.f32 %v3783, %v3835
  %v3837 = vpop.f32.mrf.mxu0
  %v3838 = vadd.f32 %v3785, %v3837
  %v3839 = vpop.f32.mrf.mxu0
  %v3840 = vadd.f32 %v3787, %v3839
  %3841 = vdwg.mxu0
  %3842 = vmatprep.subr.bf16.mxu0 %v610
  %3843 = vmatpush1.bf16.msra.mxu0 %v609
  %3844 = vmatprep.subr.bf16.mxu0 %v608
  %3845 = vmatpush1.bf16.msra.mxu0 %v607
  %3846 = vmatprep.subr.bf16.mxu0 %v606
  %3847 = vmatpush1.bf16.msra.mxu0 %v605
  %3848 = vmatprep.subr.bf16.mxu0 %v604
  %3849 = vmatpush1.bf16.msra.mxu0 %v603
  %3850 = vmatprep.subr.bf16.mxu0 %v602
  %3851 = vmatpush1.bf16.msra.mxu0 %v601
  %3852 = vmatprep.subr.bf16.mxu0 %v600
  %3853 = vmatpush1.bf16.msra.mxu0 %v599
  %3854 = vmatprep.subr.bf16.mxu0 %v598
  %3855 = vmatpush1.bf16.msra.mxu0 %v597
  %3856 = vmatprep.subr.bf16.mxu0 %v596
  %3857 = vmatpush1.bf16.msra.mxu0 %v595
  %3858 = vmatprep.subr.bf16.mxu0 0
  %3859 = vmatpush2.bf16.msra.mxu0 0
  %3860 = vmatprep.subr.bf16.mxu0 0
  %3861 = vmatpush2.bf16.msra.mxu0 0
  %3862 = vmatprep.subr.bf16.mxu0 0
  %3863 = vmatpush2.bf16.msra.mxu0 0
  %3864 = vmatprep.subr.bf16.mxu0 0
  %3865 = vmatpush2.bf16.msra.mxu0 0
  %3866 = vmatprep.subr.bf16.mxu0 0
  %3867 = vmatpush2.bf16.msra.mxu0 0
  %3868 = vmatprep.subr.bf16.mxu0 0
  %3869 = vmatpush2.bf16.msra.mxu0 0
  %3870 = vmatprep.subr.bf16.mxu0 0
  %3871 = vmatpush2.bf16.msra.mxu0 0
  %3872 = vmatprep.subr.bf16.mxu0 0
  %3873 = vmatpush2.bf16.msra.mxu0 0
  %3874 = vmatprep.mubr.bf16.mxu0 0
  %3875 = vmatmul.mubr.bf16.gmra.mxu0 %v3733
  %v3876 = vpop.f32.mrf.mxu0
  %v3877 = vadd.f32 %v3824, %v3876
  %v3878 = vpop.f32.mrf.mxu0
  %v3879 = vadd.f32 %v3826, %v3878
  %v3880 = vpop.f32.mrf.mxu0
  %v3881 = vadd.f32 %v3828, %v3880
  %v3882 = vpop.f32.mrf.mxu0
  %v3883 = vadd.f32 %v3830, %v3882
  %3884 = vmatprep.mubr.bf16.mxu0 0
  %3885 = vmatmul.mubr.bf16.gmra.mxu0 %v3732
  %v3886 = vpop.f32.mrf.mxu0
  %v3887 = vadd.f32 %v3834, %v3886
  %v3888 = vpop.f32.mrf.mxu0
  %v3889 = vadd.f32 %v3836, %v3888
  %v3890 = vpop.f32.mrf.mxu0
  %v3891 = vadd.f32 %v3838, %v3890
  %v3892 = vpop.f32.mrf.mxu0
  %v3893 = vadd.f32 %v3840, %v3892
  %3894 = vdwg.mxu0
  %v3895 = vmul.f32 %v3877, %v854
  %v3896 = vmul.f32 %v3879, %v858
  %v3897 = vmul.f32 %v3881, %v854
  %v3898 = vmul.f32 %v3883, %v858
  %v3899 = vmul.f32 %v3887, %v854
  %v3900 = vmul.f32 %v3889, %v858
  %v3901 = vmul.f32 %v3891, %v854
  %v3902 = vmul.f32 %v3893, %v858
  %v3903 = vadd.f32 %v3895, %v873
  %v3904 = vadd.f32 %v3896, %v877
  %v3905 = vadd.f32 %v3897, %v873
  %v3906 = vadd.f32 %v3898, %v877
  %v3907 = vadd.f32 %v3899, %v873
  %v3908 = vadd.f32 %v3900, %v877
  %v3909 = vadd.f32 %v3901, %v873
  %v3910 = vadd.f32 %v3902, %v877
  %v3911 = vmax.f32 %v3903, 0.0
  %v3912 = vmax.f32 %v3904, 0.0
  %v3913 = vmax.f32 %v3905, 0.0
  %v3914 = vmax.f32 %v3906, 0.0
  %v3915 = vmax.f32 %v3907, 0.0
  %v3916 = vmax.f32 %v3908, 0.0
  %v3917 = vmax.f32 %v3909, 0.0
  %v3918 = vmax.f32 %v3910, 0.0
  %v3919 = vmax.f32 %v3911, %v3912
  %v3920 = vmax.f32 %v3913, %v3914
  %v3921 = vmax.f32 %v3915, %v3916
  %v3922 = vmax.f32 %v3917, %v3918
  %v3924 = vrot.slane %v3919, 1
  %v3926 = vmax.f32 %v3919, %v3924
  %v3928 = vrot.slane %v3920, 1
  %v3930 = vmax.f32 %v3920, %v3928
  %v3932 = vrot.slane %v3921, 1
  %v3934 = vmax.f32 %v3921, %v3932
  %v3936 = vrot.slane %v3922, 1
  %v3938 = vmax.f32 %v3922, %v3936
  %v3940 = vrot.slane %v3926, 1
  %v3942 = vrot.slane %v3926, 2
  %v3944 = vrot.slane %v3926, 3
  %v3947 = vrot.slane %v3930, 4
  %v3949 = vrot.slane %v3930, 5
  %v3951 = vrot.slane %v3930, 6
  %v3953 = vrot.slane %v3930, 7
  %v3956 = vrot.slane %v3934, 1
  %v3958 = vrot.slane %v3934, 2
  %v3960 = vrot.slane %v3934, 3
  %v3963 = vrot.slane %v3938, 4
  %v3965 = vrot.slane %v3938, 5
  %v3967 = vsel %vm944, %v3926, %v3940
  %v3968 = vsel %vm946, %v3967, %v3942
  %v3969 = vsel %vm948, %v3968, %v3944
  %v3970 = vsel %vm950, %v3969, %v3947
  %v3971 = vsel %vm952, %v3970, %v3949
  %v3972 = vsel %vm954, %v3971, %v3951
  %v3973 = vsel %vm956, %v3972, %v3953
  %v3974 = vsel %vm944, %v3934, %v3956
  %v3975 = vsel %vm946, %v3974, %v3958
  %v3976 = vsel %vm948, %v3975, %v3960
  %v3977 = vsel %vm950, %v3976, %v3963
  %v3978 = vsel %vm952, %v3977, %v3965
  %v3981 = vrot.slane %v3973, 1
  %v3982 = vrot.slane %v3978, 1
  %v3983 = vsel %vm956, %v3981, %v3982
  %v3986 = vrot.slane %v3973, 2
  %v3987 = vrot.slane %v3978, 2
  %v3988 = vsel %vm954, %v3986, %v3987
  %v3991 = vrot.slane %v3973, 3
  %v3992 = vrot.slane %v3978, 3
  %v3993 = vsel %vm952, %v3991, %v3992
  %v3996 = vrot.slane %v3973, 4
  %v3997 = vrot.slane %v3978, 4
  %v3998 = vsel %vm950, %v3996, %v3997
  %v4001 = vpack.c.bf16 %v3978, %v3973
  %v4002 = vpack.c.bf16 %v3982, %v3983
  %v4003 = vpack.c.bf16 %v3987, %v3988
  %v4004 = vpack.c.bf16 %v3992, %v3993
  %v4005 = vpack.c.bf16 %v3997, %v3998
  %4006 = vmatprep.subr.bf16.mxu0 %v1245
  %4007 = vmatpush1.bf16.msra.mxu0 %v1244
  %4008 = vmatprep.subr.bf16.mxu0 %v1243
  %4009 = vmatpush1.bf16.msra.mxu0 %v1242
  %4010 = vmatprep.subr.bf16.mxu0 %v1241
  %4011 = vmatpush1.bf16.msra.mxu0 %v1240
  %4012 = vmatprep.subr.bf16.mxu0 %v1239
  %4013 = vmatpush1.bf16.msra.mxu0 %v1238
  %4014 = vmatprep.subr.bf16.mxu0 %v1237
  %4015 = vmatpush1.bf16.msra.mxu0 %v1236
  %4016 = vmatprep.subr.bf16.mxu0 %v1235
  %4017 = vmatpush1.bf16.msra.mxu0 %v1234
  %4018 = vmatprep.subr.bf16.mxu0 %v1233
  %4019 = vmatpush1.bf16.msra.mxu0 %v1232
  %4020 = vmatprep.subr.bf16.mxu0 %v1231
  %4021 = vmatpush1.bf16.msra.mxu0 %v1230
  %4022 = vmatprep.subr.bf16.mxu0 %v1261
  %4023 = vmatpush2.bf16.msra.mxu0 %v1260
  %4024 = vmatprep.subr.bf16.mxu0 %v1259
  %4025 = vmatpush2.bf16.msra.mxu0 %v1258
  %4026 = vmatprep.subr.bf16.mxu0 %v1257
  %4027 = vmatpush2.bf16.msra.mxu0 %v1256
  %4028 = vmatprep.subr.bf16.mxu0 %v1255
  %4029 = vmatpush2.bf16.msra.mxu0 %v1254
  %4030 = vmatprep.subr.bf16.mxu0 %v1253
  %4031 = vmatpush2.bf16.msra.mxu0 %v1252
  %4032 = vmatprep.subr.bf16.mxu0 %v1251
  %4033 = vmatpush2.bf16.msra.mxu0 %v1250
  %4034 = vmatprep.subr.bf16.mxu0 %v1249
  %4035 = vmatpush2.bf16.msra.mxu0 %v1248
  %4036 = vmatprep.subr.bf16.mxu0 %v1247
  %4037 = vmatpush2.bf16.msra.mxu0 %v1246
  %4038 = vmatprep.mubr.bf16.mxu0 %v4002
  %4039 = vmatmul.mubr.bf16.gmra.mxu0 %v4001
  %v4040 = vpop.f32.mrf.mxu0
  %v4041 = vadd.f32 0.0, %v4040
  %v4042 = vpop.f32.mrf.mxu0
  %v4043 = vadd.f32 0.0, %v4042
  %v4044 = vpop.f32.mrf.mxu0
  %v4045 = vadd.f32 0.0, %v4044
  %v4046 = vpop.f32.mrf.mxu0
  %v4047 = vadd.f32 0.0, %v4046
  %4048 = vdwg.mxu0
  %4049 = vmatprep.subr.bf16.mxu0 %v1277
  %4050 = vmatpush1.bf16.msra.mxu0 %v1276
  %4051 = vmatprep.subr.bf16.mxu0 %v1275
  %4052 = vmatpush1.bf16.msra.mxu0 %v1274
  %4053 = vmatprep.subr.bf16.mxu0 %v1273
  %4054 = vmatpush1.bf16.msra.mxu0 %v1272
  %4055 = vmatprep.subr.bf16.mxu0 %v1271
  %4056 = vmatpush1.bf16.msra.mxu0 %v1270
  %4057 = vmatprep.subr.bf16.mxu0 %v1269
  %4058 = vmatpush1.bf16.msra.mxu0 %v1268
  %4059 = vmatprep.subr.bf16.mxu0 %v1267
  %4060 = vmatpush1.bf16.msra.mxu0 %v1266
  %4061 = vmatprep.subr.bf16.mxu0 %v1265
  %4062 = vmatpush1.bf16.msra.mxu0 %v1264
  %4063 = vmatprep.subr.bf16.mxu0 %v1263
  %4064 = vmatpush1.bf16.msra.mxu0 %v1262
  %4065 = vmatprep.subr.bf16.mxu0 %v1293
  %4066 = vmatpush2.bf16.msra.mxu0 %v1292
  %4067 = vmatprep.subr.bf16.mxu0 %v1291
  %4068 = vmatpush2.bf16.msra.mxu0 %v1290
  %4069 = vmatprep.subr.bf16.mxu0 %v1289
  %4070 = vmatpush2.bf16.msra.mxu0 %v1288
  %4071 = vmatprep.subr.bf16.mxu0 %v1287
  %4072 = vmatpush2.bf16.msra.mxu0 %v1286
  %4073 = vmatprep.subr.bf16.mxu0 %v1285
  %4074 = vmatpush2.bf16.msra.mxu0 %v1284
  %4075 = vmatprep.subr.bf16.mxu0 %v1283
  %4076 = vmatpush2.bf16.msra.mxu0 %v1282
  %4077 = vmatprep.subr.bf16.mxu0 %v1281
  %4078 = vmatpush2.bf16.msra.mxu0 %v1280
  %4079 = vmatprep.subr.bf16.mxu0 %v1279
  %4080 = vmatpush2.bf16.msra.mxu0 %v1278
  %4081 = vmatprep.mubr.bf16.mxu0 %v4004
  %4082 = vmatmul.mubr.bf16.gmra.mxu0 %v4003
  %v4083 = vpop.f32.mrf.mxu0
  %v4084 = vadd.f32 %v4041, %v4083
  %v4085 = vpop.f32.mrf.mxu0
  %v4086 = vadd.f32 %v4043, %v4085
  %v4087 = vpop.f32.mrf.mxu0
  %v4088 = vadd.f32 %v4045, %v4087
  %v4089 = vpop.f32.mrf.mxu0
  %v4090 = vadd.f32 %v4047, %v4089
  %4091 = vdwg.mxu0
  %4092 = vmatprep.subr.bf16.mxu0 %v1309
  %4093 = vmatpush1.bf16.msra.mxu0 %v1308
  %4094 = vmatprep.subr.bf16.mxu0 %v1307
  %4095 = vmatpush1.bf16.msra.mxu0 %v1306
  %4096 = vmatprep.subr.bf16.mxu0 %v1305
  %4097 = vmatpush1.bf16.msra.mxu0 %v1304
  %4098 = vmatprep.subr.bf16.mxu0 %v1303
  %4099 = vmatpush1.bf16.msra.mxu0 %v1302
  %4100 = vmatprep.subr.bf16.mxu0 %v1301
  %4101 = vmatpush1.bf16.msra.mxu0 %v1300
  %4102 = vmatprep.subr.bf16.mxu0 %v1299
  %4103 = vmatpush1.bf16.msra.mxu0 %v1298
  %4104 = vmatprep.subr.bf16.mxu0 %v1297
  %4105 = vmatpush1.bf16.msra.mxu0 %v1296
  %4106 = vmatprep.subr.bf16.mxu0 %v1295
  %4107 = vmatpush1.bf16.msra.mxu0 %v1294
  %4108 = vmatprep.subr.bf16.mxu0 0
  %4109 = vmatpush2.bf16.msra.mxu0 0
  %4110 = vmatprep.subr.bf16.mxu0 0
  %4111 = vmatpush2.bf16.msra.mxu0 0
  %4112 = vmatprep.subr.bf16.mxu0 0
  %4113 = vmatpush2.bf16.msra.mxu0 0
  %4114 = vmatprep.subr.bf16.mxu0 0
  %4115 = vmatpush2.bf16.msra.mxu0 0
  %4116 = vmatprep.subr.bf16.mxu0 0
  %4117 = vmatpush2.bf16.msra.mxu0 0
  %4118 = vmatprep.subr.bf16.mxu0 0
  %4119 = vmatpush2.bf16.msra.mxu0 0
  %4120 = vmatprep.subr.bf16.mxu0 0
  %4121 = vmatpush2.bf16.msra.mxu0 0
  %4122 = vmatprep.subr.bf16.mxu0 0
  %4123 = vmatpush2.bf16.msra.mxu0 0
  %4124 = vmatprep.mubr.bf16.mxu0 0
  %4125 = vmatmul.mubr.bf16.gmra.mxu0 %v4005
  %v4126 = vpop.f32.mrf.mxu0
  %v4127 = vadd.f32 %v4084, %v4126
  %v4128 = vpop.f32.mrf.mxu0
  %v4129 = vadd.f32 %v4086, %v4128
  %v4130 = vpop.f32.mrf.mxu0
  %v4131 = vadd.f32 %v4088, %v4130
  %v4132 = vpop.f32.mrf.mxu0
  %v4133 = vadd.f32 %v4090, %v4132
  %4134 = vdwg.mxu0
  %v4135 = vmul.f32 %v4127, %v1523
  %v4136 = vmul.f32 %v4129, %v1527
  %v4137 = vmul.f32 %v4131, %v1523
  %v4138 = vmul.f32 %v4133, %v1527
  %v4139 = vadd.f32 %v4135, %v1538
  %v4140 = vadd.f32 %v4136, %v1542
  %v4141 = vadd.f32 %v4137, %v1538
  %v4142 = vadd.f32 %v4138, %v1542
  %v4143 = vmax.f32 %v4139, 0.0
  %v4144 = vmax.f32 %v4140, 0.0
  %v4145 = vmax.f32 %v4141, 0.0
  %v4146 = vmax.f32 %v4142, 0.0
  %v4147 = vmax.f32 %v4143, %v4144
  %v4148 = vmax.f32 %v4145, %v4146
  %v4150 = vrot.slane %v4147, 1
  %v4152 = vmax.f32 %v4147, %v4150
  %v4154 = vrot.slane %v4148, 1
  %v4156 = vmax.f32 %v4148, %v4154
  %v4158 = vrot.slane %v4152, 1
  %v4160 = vrot.slane %v4152, 2
  %v4162 = vrot.slane %v4152, 3
  %v4165 = vrot.slane %v4156, 4
  %v4167 = vsel %vm944, %v4152, %v4158
  %v4168 = vsel %vm946, %v4167, %v4160
  %v4169 = vsel %vm948, %v4168, %v4162
  %v4170 = vsel %vm950, %v4169, %v4165
  %v4172 = vrot.slane %v4170, 1
  %v4173 = vrot.slane %v4170, 2
  %v4174 = vrot.slane %v4170, 3
  %v4175 = vrot.slane %v4170, 4
  %v4176 = vld [vmem:[%s0 + $0x60] sm:$0xf]
  %v4177 = vld [vmem:[%s0 + $0x64] sm:$0xf]
  %v4178 = vld [vmem:[%s0 + $0x68] sm:$0xf]
  %v4179 = vld [vmem:[%s0 + $0x6c] sm:$0x3]
  %v4180 = vld [vmem:[%s0 + $0x6c] sm:$0x7]
  %v4181 = vld [vmem:[%s0 + $0x60] sm:$0xe]
  %v4182 = vld [vmem:[%s0 + $0x6c] sm:$0xf]
  %v4183 = vld [vmem:[%s0 + $0x60] sm:$0xc]
  %v4188 = vunpack.c.l.b16 %v4176
  %v4189 = vunpack.c.l.b16 %v4177
  %v4190 = vunpack.c.l.b16 %v4178
  %v4191 = vunpack.c.l.b16 %v4179
  %v4192 = vpack.c.b16 %v4189, %v4188
  %v4193 = vpack.c.b16 %v4191, %v4190
  %v4197 = vunpack.c.l.b16 %v4180
  %v4198 = vpack.c.b16 %v4197, %v4190
  %v4200 = vshrl.u32 %v4192, 16
  %v4202 = vshll.u32 %v4192, 16
  %v4204 = vrot.slane %v4202, 1
  %v4205 = vor.u32 %v4200, %v4204
  %v4207 = vshll.u32 %v4198, 16
  %v4209 = vrot.slane %v4207, 1
  %v4210 = vsel %vm232, %v4205, %v4209
  %v4211 = vshrl.u32 %v4198, 16
  %v4213 = vor.u32 %v4211, %v4209
  %v4217 = vunpack.c.l.b16 %v4181
  %v4218 = vpack.c.b16 %v4189, %v4217
  %v4219 = vrot.slane %v4218, 1
  %v4220 = vrot.slane %v4198, 1
  %v4221 = vsel %vm253, %v4219, %v4220
  %v4225 = vunpack.c.l.b16 %v4182
  %v4226 = vpack.c.b16 %v4225, %v4190
  %v4228 = vshrl.u32 %v4218, 16
  %v4230 = vrot.slane %v4228, 1
  %v4231 = vshll.u32 %v4218, 16
  %v4233 = vrot.slane %v4231, 2
  %v4234 = vor.u32 %v4230, %v4233
  %v4236 = vshrl.u32 %v4226, 16
  %v4238 = vrot.slane %v4236, 1
  %v4239 = vshll.u32 %v4226, 16
  %v4241 = vrot.slane %v4239, 2
  %v4242 = vor.u32 %v4238, %v4241
  %v4243 = vsel %vm262, %v4234, %v4242
  %v4247 = vunpack.c.l.b16 %v4183
  %v4248 = vpack.c.b16 %v4189, %v4247
  %v4249 = vrot.slane %v4248, 2
  %v4250 = vrot.slane %v4226, 2
  %v4251 = vsel %vm285, %v4249, %v4250
  %4254 = vmatprep.subr.bf16.mxu0 %v546
  %4255 = vmatpush1.bf16.msra.mxu0 %v545
  %4256 = vmatprep.subr.bf16.mxu0 %v544
  %4257 = vmatpush1.bf16.msra.mxu0 %v543
  %4258 = vmatprep.subr.bf16.mxu0 %v542
  %4259 = vmatpush1.bf16.msra.mxu0 %v541
  %4260 = vmatprep.subr.bf16.mxu0 %v540
  %4261 = vmatpush1.bf16.msra.mxu0 %v539
  %4262 = vmatprep.subr.bf16.mxu0 %v538
  %4263 = vmatpush1.bf16.msra.mxu0 %v537
  %4264 = vmatprep.subr.bf16.mxu0 %v536
  %4265 = vmatpush1.bf16.msra.mxu0 %v535
  %4266 = vmatprep.subr.bf16.mxu0 %v534
  %4267 = vmatpush1.bf16.msra.mxu0 %v533
  %4268 = vmatprep.subr.bf16.mxu0 %v532
  %4269 = vmatpush1.bf16.msra.mxu0 %v531
  %4270 = vmatprep.subr.bf16.mxu0 %v562
  %4271 = vmatpush2.bf16.msra.mxu0 %v561
  %4272 = vmatprep.subr.bf16.mxu0 %v560
  %4273 = vmatpush2.bf16.msra.mxu0 %v559
  %4274 = vmatprep.subr.bf16.mxu0 %v558
  %4275 = vmatpush2.bf16.msra.mxu0 %v557
  %4276 = vmatprep.subr.bf16.mxu0 %v556
  %4277 = vmatpush2.bf16.msra.mxu0 %v555
  %4278 = vmatprep.subr.bf16.mxu0 %v554
  %4279 = vmatpush2.bf16.msra.mxu0 %v553
  %4280 = vmatprep.subr.bf16.mxu0 %v552
  %4281 = vmatpush2.bf16.msra.mxu0 %v551
  %4282 = vmatprep.subr.bf16.mxu0 %v550
  %4283 = vmatpush2.bf16.msra.mxu0 %v549
  %4284 = vmatprep.subr.bf16.mxu0 %v548
  %4285 = vmatpush2.bf16.msra.mxu0 %v547
  %4286 = vmatprep.mubr.bf16.mxu0 %v4210
  %4287 = vmatmul.mubr.bf16.gmra.mxu0 %v4192
  %v4288 = vpop.f32.mrf.mxu0
  %v4289 = vadd.f32 0.0, %v4288
  %v4290 = vpop.f32.mrf.mxu0
  %v4291 = vadd.f32 0.0, %v4290
  %v4292 = vpop.f32.mrf.mxu0
  %v4293 = vadd.f32 0.0, %v4292
  %v4294 = vpop.f32.mrf.mxu0
  %v4295 = vadd.f32 0.0, %v4294
  %4296 = vmatprep.mubr.bf16.mxu0 %v4213
  %4297 = vmatmul.mubr.bf16.gmra.mxu0 %v4193
  %v4298 = vpop.f32.mrf.mxu0
  %v4299 = vadd.f32 0.0, %v4298
  %v4300 = vpop.f32.mrf.mxu0
  %v4301 = vadd.f32 0.0, %v4300
  %v4302 = vpop.f32.mrf.mxu0
  %v4303 = vadd.f32 0.0, %v4302
  %v4304 = vpop.f32.mrf.mxu0
  %v4305 = vadd.f32 0.0, %v4304
  %4306 = vdwg.mxu0
  %4307 = vmatprep.subr.bf16.mxu0 %v578
  %4308 = vmatpush1.bf16.msra.mxu0 %v577
  %4309 = vmatprep.subr.bf16.mxu0 %v576
  %4310 = vmatpush1.bf16.msra.mxu0 %v575
  %4311 = vmatprep.subr.bf16.mxu0 %v574
  %4312 = vmatpush1.bf16.msra.mxu0 %v573
  %4313 = vmatprep.subr.bf16.mxu0 %v572
  %4314 = vmatpush1.bf16.msra.mxu0 %v571
  %4315 = vmatprep.subr.bf16.mxu0 %v570
  %4316 = vmatpush1.bf16.msra.mxu0 %v569
  %4317 = vmatprep.subr.bf16.mxu0 %v568
  %4318 = vmatpush1.bf16.msra.mxu0 %v567
  %4319 = vmatprep.subr.bf16.mxu0 %v566
  %4320 = vmatpush1.bf16.msra.mxu0 %v565
  %4321 = vmatprep.subr.bf16.mxu0 %v564
  %4322 = vmatpush1.bf16.msra.mxu0 %v563
  %4323 = vmatprep.subr.bf16.mxu0 %v594
  %4324 = vmatpush2.bf16.msra.mxu0 %v593
  %4325 = vmatprep.subr.bf16.mxu0 %v592
  %4326 = vmatpush2.bf16.msra.mxu0 %v591
  %4327 = vmatprep.subr.bf16.mxu0 %v590
  %4328 = vmatpush2.bf16.msra.mxu0 %v589
  %4329 = vmatprep.subr.bf16.mxu0 %v588
  %4330 = vmatpush2.bf16.msra.mxu0 %v587
  %4331 = vmatprep.subr.bf16.mxu0 %v586
  %4332 = vmatpush2.bf16.msra.mxu0 %v585
  %4333 = vmatprep.subr.bf16.mxu0 %v584
  %4334 = vmatpush2.bf16.msra.mxu0 %v583
  %4335 = vmatprep.subr.bf16.mxu0 %v582
  %4336 = vmatpush2.bf16.msra.mxu0 %v581
  %4337 = vmatprep.subr.bf16.mxu0 %v580
  %4338 = vmatpush2.bf16.msra.mxu0 %v579
  %4339 = vmatprep.mubr.bf16.mxu0 %v4243
  %4340 = vmatmul.mubr.bf16.gmra.mxu0 %v4221
  %v4341 = vpop.f32.mrf.mxu0
  %v4342 = vadd.f32 %v4289, %v4341
  %v4343 = vpop.f32.mrf.mxu0
  %v4344 = vadd.f32 %v4291, %v4343
  %v4345 = vpop.f32.mrf.mxu0
  %v4346 = vadd.f32 %v4293, %v4345
  %v4347 = vpop.f32.mrf.mxu0
  %v4348 = vadd.f32 %v4295, %v4347
  %4349 = vmatprep.mubr.bf16.mxu0 %v4242
  %4350 = vmatmul.mubr.bf16.gmra.mxu0 %v4220
  %v4351 = vpop.f32.mrf.mxu0
  %v4352 = vadd.f32 %v4299, %v4351
  %v4353 = vpop.f32.mrf.mxu0
  %v4354 = vadd.f32 %v4301, %v4353
  %v4355 = vpop.f32.mrf.mxu0
  %v4356 = vadd.f32 %v4303, %v4355
  %v4357 = vpop.f32.mrf.mxu0
  %v4358 = vadd.f32 %v4305, %v4357
  %4359 = vdwg.mxu0
  %4360 = vmatprep.subr.bf16.mxu0 %v610
  %4361 = vmatpush1.bf16.msra.mxu0 %v609
  %4362 = vmatprep.subr.bf16.mxu0 %v608
  %4363 = vmatpush1.bf16.msra.mxu0 %v607
  %4364 = vmatprep.subr.bf16.mxu0 %v606
  %4365 = vmatpush1.bf16.msra.mxu0 %v605
  %4366 = vmatprep.subr.bf16.mxu0 %v604
  %4367 = vmatpush1.bf16.msra.mxu0 %v603
  %4368 = vmatprep.subr.bf16.mxu0 %v602
  %4369 = vmatpush1.bf16.msra.mxu0 %v601
  %4370 = vmatprep.subr.bf16.mxu0 %v600
  %4371 = vmatpush1.bf16.msra.mxu0 %v599
  %4372 = vmatprep.subr.bf16.mxu0 %v598
  %4373 = vmatpush1.bf16.msra.mxu0 %v597
  %4374 = vmatprep.subr.bf16.mxu0 %v596
  %4375 = vmatpush1.bf16.msra.mxu0 %v595
  %4376 = vmatprep.subr.bf16.mxu0 0
  %4377 = vmatpush2.bf16.msra.mxu0 0
  %4378 = vmatprep.subr.bf16.mxu0 0
  %4379 = vmatpush2.bf16.msra.mxu0 0
  %4380 = vmatprep.subr.bf16.mxu0 0
  %4381 = vmatpush2.bf16.msra.mxu0 0
  %4382 = vmatprep.subr.bf16.mxu0 0
  %4383 = vmatpush2.bf16.msra.mxu0 0
  %4384 = vmatprep.subr.bf16.mxu0 0
  %4385 = vmatpush2.bf16.msra.mxu0 0
  %4386 = vmatprep.subr.bf16.mxu0 0
  %4387 = vmatpush2.bf16.msra.mxu0 0
  %4388 = vmatprep.subr.bf16.mxu0 0
  %4389 = vmatpush2.bf16.msra.mxu0 0
  %4390 = vmatprep.subr.bf16.mxu0 0
  %4391 = vmatpush2.bf16.msra.mxu0 0
  %4392 = vmatprep.mubr.bf16.mxu0 0
  %4393 = vmatmul.mubr.bf16.gmra.mxu0 %v4251
  %v4394 = vpop.f32.mrf.mxu0
  %v4395 = vadd.f32 %v4342, %v4394
  %v4396 = vpop.f32.mrf.mxu0
  %v4397 = vadd.f32 %v4344, %v4396
  %v4398 = vpop.f32.mrf.mxu0
  %v4399 = vadd.f32 %v4346, %v4398
  %v4400 = vpop.f32.mrf.mxu0
  %v4401 = vadd.f32 %v4348, %v4400
  %4402 = vmatprep.mubr.bf16.mxu0 0
  %4403 = vmatmul.mubr.bf16.gmra.mxu0 %v4250
  %v4404 = vpop.f32.mrf.mxu0
  %v4405 = vadd.f32 %v4352, %v4404
  %v4406 = vpop.f32.mrf.mxu0
  %v4407 = vadd.f32 %v4354, %v4406
  %v4408 = vpop.f32.mrf.mxu0
  %v4409 = vadd.f32 %v4356, %v4408
  %v4410 = vpop.f32.mrf.mxu0
  %v4411 = vadd.f32 %v4358, %v4410
  %4412 = vdwg.mxu0
  %v4413 = vmul.f32 %v4395, %v854
  %v4414 = vmul.f32 %v4397, %v858
  %v4415 = vmul.f32 %v4399, %v854
  %v4416 = vmul.f32 %v4401, %v858
  %v4417 = vmul.f32 %v4405, %v854
  %v4418 = vmul.f32 %v4407, %v858
  %v4419 = vmul.f32 %v4409, %v854
  %v4420 = vmul.f32 %v4411, %v858
  %v4421 = vadd.f32 %v4413, %v873
  %v4422 = vadd.f32 %v4414, %v877
  %v4423 = vadd.f32 %v4415, %v873
  %v4424 = vadd.f32 %v4416, %v877
  %v4425 = vadd.f32 %v4417, %v873
  %v4426 = vadd.f32 %v4418, %v877
  %v4427 = vadd.f32 %v4419, %v873
  %v4428 = vadd.f32 %v4420, %v877
  %v4429 = vmax.f32 %v4421, 0.0
  %v4430 = vmax.f32 %v4422, 0.0
  %v4431 = vmax.f32 %v4423, 0.0
  %v4432 = vmax.f32 %v4424, 0.0
  %v4433 = vmax.f32 %v4425, 0.0
  %v4434 = vmax.f32 %v4426, 0.0
  %v4435 = vmax.f32 %v4427, 0.0
  %v4436 = vmax.f32 %v4428, 0.0
  %v4437 = vmax.f32 %v4429, %v4430
  %v4438 = vmax.f32 %v4431, %v4432
  %v4439 = vmax.f32 %v4433, %v4434
  %v4440 = vmax.f32 %v4435, %v4436
  %v4442 = vrot.slane %v4437, 1
  %v4444 = vmax.f32 %v4437, %v4442
  %v4446 = vrot.slane %v4438, 1
  %v4448 = vmax.f32 %v4438, %v4446
  %v4450 = vrot.slane %v4439, 1
  %v4452 = vmax.f32 %v4439, %v4450
  %v4454 = vrot.slane %v4440, 1
  %v4456 = vmax.f32 %v4440, %v4454
  %v4458 = vrot.slane %v4444, 1
  %v4460 = vrot.slane %v4444, 2
  %v4462 = vrot.slane %v4444, 3
  %v4465 = vrot.slane %v4448, 4
  %v4467 = vrot.slane %v4448, 5
  %v4469 = vrot.slane %v4448, 6
  %v4471 = vrot.slane %v4448, 7
  %v4474 = vrot.slane %v4452, 1
  %v4476 = vrot.slane %v4452, 2
  %v4478 = vrot.slane %v4452, 3
  %v4481 = vrot.slane %v4456, 4
  %v4483 = vrot.slane %v4456, 5
  %v4485 = vsel %vm944, %v4444, %v4458
  %v4486 = vsel %vm946, %v4485, %v4460
  %v4487 = vsel %vm948, %v4486, %v4462
  %v4488 = vsel %vm950, %v4487, %v4465
  %v4489 = vsel %vm952, %v4488, %v4467
  %v4490 = vsel %vm954, %v4489, %v4469
  %v4491 = vsel %vm956, %v4490, %v4471
  %v4492 = vsel %vm944, %v4452, %v4474
  %v4493 = vsel %vm946, %v4492, %v4476
  %v4494 = vsel %vm948, %v4493, %v4478
  %v4495 = vsel %vm950, %v4494, %v4481
  %v4496 = vsel %vm952, %v4495, %v4483
  %v4499 = vrot.slane %v4491, 1
  %v4500 = vrot.slane %v4496, 1
  %v4501 = vsel %vm956, %v4499, %v4500
  %v4504 = vrot.slane %v4491, 2
  %v4505 = vrot.slane %v4496, 2
  %v4506 = vsel %vm954, %v4504, %v4505
  %v4509 = vrot.slane %v4491, 3
  %v4510 = vrot.slane %v4496, 3
  %v4511 = vsel %vm952, %v4509, %v4510
  %v4514 = vrot.slane %v4491, 4
  %v4515 = vrot.slane %v4496, 4
  %v4516 = vsel %vm950, %v4514, %v4515
  %v4519 = vpack.c.bf16 %v4496, %v4491
  %v4520 = vpack.c.bf16 %v4500, %v4501
  %v4521 = vpack.c.bf16 %v4505, %v4506
  %v4522 = vpack.c.bf16 %v4510, %v4511
  %v4523 = vpack.c.bf16 %v4515, %v4516
  %4524 = vmatprep.subr.bf16.mxu0 %v1245
  %4525 = vmatpush1.bf16.msra.mxu0 %v1244
  %4526 = vmatprep.subr.bf16.mxu0 %v1243
  %4527 = vmatpush1.bf16.msra.mxu0 %v1242
  %4528 = vmatprep.subr.bf16.mxu0 %v1241
  %4529 = vmatpush1.bf16.msra.mxu0 %v1240
  %4530 = vmatprep.subr.bf16.mxu0 %v1239
  %4531 = vmatpush1.bf16.msra.mxu0 %v1238
  %4532 = vmatprep.subr.bf16.mxu0 %v1237
  %4533 = vmatpush1.bf16.msra.mxu0 %v1236
  %4534 = vmatprep.subr.bf16.mxu0 %v1235
  %4535 = vmatpush1.bf16.msra.mxu0 %v1234
  %4536 = vmatprep.subr.bf16.mxu0 %v1233
  %4537 = vmatpush1.bf16.msra.mxu0 %v1232
  %4538 = vmatprep.subr.bf16.mxu0 %v1231
  %4539 = vmatpush1.bf16.msra.mxu0 %v1230
  %4540 = vmatprep.subr.bf16.mxu0 %v1261
  %4541 = vmatpush2.bf16.msra.mxu0 %v1260
  %4542 = vmatprep.subr.bf16.mxu0 %v1259
  %4543 = vmatpush2.bf16.msra.mxu0 %v1258
  %4544 = vmatprep.subr.bf16.mxu0 %v1257
  %4545 = vmatpush2.bf16.msra.mxu0 %v1256
  %4546 = vmatprep.subr.bf16.mxu0 %v1255
  %4547 = vmatpush2.bf16.msra.mxu0 %v1254
  %4548 = vmatprep.subr.bf16.mxu0 %v1253
  %4549 = vmatpush2.bf16.msra.mxu0 %v1252
  %4550 = vmatprep.subr.bf16.mxu0 %v1251
  %4551 = vmatpush2.bf16.msra.mxu0 %v1250
  %4552 = vmatprep.subr.bf16.mxu0 %v1249
  %4553 = vmatpush2.bf16.msra.mxu0 %v1248
  %4554 = vmatprep.subr.bf16.mxu0 %v1247
  %4555 = vmatpush2.bf16.msra.mxu0 %v1246
  %4556 = vmatprep.mubr.bf16.mxu0 %v4520
  %4557 = vmatmul.mubr.bf16.gmra.mxu0 %v4519
  %v4558 = vpop.f32.mrf.mxu0
  %v4559 = vadd.f32 0.0, %v4558
  %v4560 = vpop.f32.mrf.mxu0
  %v4561 = vadd.f32 0.0, %v4560
  %v4562 = vpop.f32.mrf.mxu0
  %v4563 = vadd.f32 0.0, %v4562
  %v4564 = vpop.f32.mrf.mxu0
  %v4565 = vadd.f32 0.0, %v4564
  %4566 = vdwg.mxu0
  %4567 = vmatprep.subr.bf16.mxu0 %v1277
  %4568 = vmatpush1.bf16.msra.mxu0 %v1276
  %4569 = vmatprep.subr.bf16.mxu0 %v1275
  %4570 = vmatpush1.bf16.msra.mxu0 %v1274
  %4571 = vmatprep.subr.bf16.mxu0 %v1273
  %4572 = vmatpush1.bf16.msra.mxu0 %v1272
  %4573 = vmatprep.subr.bf16.mxu0 %v1271
  %4574 = vmatpush1.bf16.msra.mxu0 %v1270
  %4575 = vmatprep.subr.bf16.mxu0 %v1269
  %4576 = vmatpush1.bf16.msra.mxu0 %v1268
  %4577 = vmatprep.subr.bf16.mxu0 %v1267
  %4578 = vmatpush1.bf16.msra.mxu0 %v1266
  %4579 = vmatprep.subr.bf16.mxu0 %v1265
  %4580 = vmatpush1.bf16.msra.mxu0 %v1264
  %4581 = vmatprep.subr.bf16.mxu0 %v1263
  %4582 = vmatpush1.bf16.msra.mxu0 %v1262
  %4583 = vmatprep.subr.bf16.mxu0 %v1293
  %4584 = vmatpush2.bf16.msra.mxu0 %v1292
  %4585 = vmatprep.subr.bf16.mxu0 %v1291
  %4586 = vmatpush2.bf16.msra.mxu0 %v1290
  %4587 = vmatprep.subr.bf16.mxu0 %v1289
  %4588 = vmatpush2.bf16.msra.mxu0 %v1288
  %4589 = vmatprep.subr.bf16.mxu0 %v1287
  %4590 = vmatpush2.bf16.msra.mxu0 %v1286
  %4591 = vmatprep.subr.bf16.mxu0 %v1285
  %4592 = vmatpush2.bf16.msra.mxu0 %v1284
  %4593 = vmatprep.subr.bf16.mxu0 %v1283
  %4594 = vmatpush2.bf16.msra.mxu0 %v1282
  %4595 = vmatprep.subr.bf16.mxu0 %v1281
  %4596 = vmatpush2.bf16.msra.mxu0 %v1280
  %4597 = vmatprep.subr.bf16.mxu0 %v1279
  %4598 = vmatpush2.bf16.msra.mxu0 %v1278
  %4599 = vmatprep.mubr.bf16.mxu0 %v4522
  %4600 = vmatmul.mubr.bf16.gmra.mxu0 %v4521
  %v4601 = vpop.f32.mrf.mxu0
  %v4602 = vadd.f32 %v4559, %v4601
  %v4603 = vpop.f32.mrf.mxu0
  %v4604 = vadd.f32 %v4561, %v4603
  %v4605 = vpop.f32.mrf.mxu0
  %v4606 = vadd.f32 %v4563, %v4605
  %v4607 = vpop.f32.mrf.mxu0
  %v4608 = vadd.f32 %v4565, %v4607
  %4609 = vdwg.mxu0
  %4610 = vmatprep.subr.bf16.mxu0 %v1309
  %4611 = vmatpush1.bf16.msra.mxu0 %v1308
  %4612 = vmatprep.subr.bf16.mxu0 %v1307
  %4613 = vmatpush1.bf16.msra.mxu0 %v1306
  %4614 = vmatprep.subr.bf16.mxu0 %v1305
  %4615 = vmatpush1.bf16.msra.mxu0 %v1304
  %4616 = vmatprep.subr.bf16.mxu0 %v1303
  %4617 = vmatpush1.bf16.msra.mxu0 %v1302
  %4618 = vmatprep.subr.bf16.mxu0 %v1301
  %4619 = vmatpush1.bf16.msra.mxu0 %v1300
  %4620 = vmatprep.subr.bf16.mxu0 %v1299
  %4621 = vmatpush1.bf16.msra.mxu0 %v1298
  %4622 = vmatprep.subr.bf16.mxu0 %v1297
  %4623 = vmatpush1.bf16.msra.mxu0 %v1296
  %4624 = vmatprep.subr.bf16.mxu0 %v1295
  %4625 = vmatpush1.bf16.msra.mxu0 %v1294
  %4626 = vmatprep.subr.bf16.mxu0 0
  %4627 = vmatpush2.bf16.msra.mxu0 0
  %4628 = vmatprep.subr.bf16.mxu0 0
  %4629 = vmatpush2.bf16.msra.mxu0 0
  %4630 = vmatprep.subr.bf16.mxu0 0
  %4631 = vmatpush2.bf16.msra.mxu0 0
  %4632 = vmatprep.subr.bf16.mxu0 0
  %4633 = vmatpush2.bf16.msra.mxu0 0
  %4634 = vmatprep.subr.bf16.mxu0 0
  %4635 = vmatpush2.bf16.msra.mxu0 0
  %4636 = vmatprep.subr.bf16.mxu0 0
  %4637 = vmatpush2.bf16.msra.mxu0 0
  %4638 = vmatprep.subr.bf16.mxu0 0
  %4639 = vmatpush2.bf16.msra.mxu0 0
  %4640 = vmatprep.subr.bf16.mxu0 0
  %4641 = vmatpush2.bf16.msra.mxu0 0
  %4642 = vmatprep.mubr.bf16.mxu0 0
  %4643 = vmatmul.mubr.bf16.gmra.mxu0 %v4523
  %v4644 = vpop.f32.mrf.mxu0
  %v4645 = vadd.f32 %v4602, %v4644
  %v4646 = vpop.f32.mrf.mxu0
  %v4647 = vadd.f32 %v4604, %v4646
  %v4648 = vpop.f32.mrf.mxu0
  %v4649 = vadd.f32 %v4606, %v4648
  %v4650 = vpop.f32.mrf.mxu0
  %v4651 = vadd.f32 %v4608, %v4650
  %4652 = vdwg.mxu0
  %v4653 = vmul.f32 %v4645, %v1523
  %v4654 = vmul.f32 %v4647, %v1527
  %v4655 = vmul.f32 %v4649, %v1523
  %v4656 = vmul.f32 %v4651, %v1527
  %v4657 = vadd.f32 %v4653, %v1538
  %v4658 = vadd.f32 %v4654, %v1542
  %v4659 = vadd.f32 %v4655, %v1538
  %v4660 = vadd.f32 %v4656, %v1542
  %v4661 = vmax.f32 %v4657, 0.0
  %v4662 = vmax.f32 %v4658, 0.0
  %v4663 = vmax.f32 %v4659, 0.0
  %v4664 = vmax.f32 %v4660, 0.0
  %v4665 = vmax.f32 %v4661, %v4662
  %v4666 = vmax.f32 %v4663, %v4664
  %v4668 = vrot.slane %v4665, 1
  %v4670 = vmax.f32 %v4665, %v4668
  %v4672 = vrot.slane %v4666, 1
  %v4674 = vmax.f32 %v4666, %v4672
  %v4676 = vrot.slane %v4670, 1
  %v4678 = vrot.slane %v4670, 2
  %v4680 = vrot.slane %v4670, 3
  %v4683 = vrot.slane %v4674, 4
  %v4685 = vsel %vm944, %v4670, %v4676
  %v4686 = vsel %vm946, %v4685, %v4678
  %v4687 = vsel %vm948, %v4686, %v4680
  %v4688 = vsel %vm950, %v4687, %v4683
  %v4690 = vrot.slane %v4688, 1
  %v4691 = vrot.slane %v4688, 2
  %v4692 = vrot.slane %v4688, 3
  %v4693 = vrot.slane %v4688, 4
  %v4694 = vld [vmem:[%s0 + $0x70] sm:$0xf]
  %v4695 = vld [vmem:[%s0 + $0x74] sm:$0xf]
  %v4696 = vld [vmem:[%s0 + $0x78] sm:$0xf]
  %v4697 = vld [vmem:[%s0 + $0x7c] sm:$0x3]
  %v4698 = vld [vmem:[%s0 + $0x7c] sm:$0x7]
  %v4699 = vld [vmem:[%s0 + $0x70] sm:$0xe]
  %v4700 = vld [vmem:[%s0 + $0x7c] sm:$0xf]
  %v4701 = vld [vmem:[%s0 + $0x70] sm:$0xc]
  %v4706 = vunpack.c.l.b16 %v4694
  %v4707 = vunpack.c.l.b16 %v4695
  %v4708 = vunpack.c.l.b16 %v4696
  %v4709 = vunpack.c.l.b16 %v4697
  %v4710 = vpack.c.b16 %v4707, %v4706
  %v4711 = vpack.c.b16 %v4709, %v4708
  %v4715 = vunpack.c.l.b16 %v4698
  %v4716 = vpack.c.b16 %v4715, %v4708
  %v4718 = vshrl.u32 %v4710, 16
  %v4720 = vshll.u32 %v4710, 16
  %v4722 = vrot.slane %v4720, 1
  %v4723 = vor.u32 %v4718, %v4722
  %v4725 = vshll.u32 %v4716, 16
  %v4727 = vrot.slane %v4725, 1
  %v4728 = vsel %vm232, %v4723, %v4727
  %v4729 = vshrl.u32 %v4716, 16
  %v4731 = vor.u32 %v4729, %v4727
  %v4735 = vunpack.c.l.b16 %v4699
  %v4736 = vpack.c.b16 %v4707, %v4735
  %v4737 = vrot.slane %v4736, 1
  %v4738 = vrot.slane %v4716, 1
  %v4739 = vsel %vm253, %v4737, %v4738
  %v4743 = vunpack.c.l.b16 %v4700
  %v4744 = vpack.c.b16 %v4743, %v4708
  %v4746 = vshrl.u32 %v4736, 16
  %v4748 = vrot.slane %v4746, 1
  %v4749 = vshll.u32 %v4736, 16
  %v4751 = vrot.slane %v4749, 2
  %v4752 = vor.u32 %v4748, %v4751
  %v4754 = vshrl.u32 %v4744, 16
  %v4756 = vrot.slane %v4754, 1
  %v4757 = vshll.u32 %v4744, 16
  %v4759 = vrot.slane %v4757, 2
  %v4760 = vor.u32 %v4756, %v4759
  %v4761 = vsel %vm262, %v4752, %v4760
  %v4765 = vunpack.c.l.b16 %v4701
  %v4766 = vpack.c.b16 %v4707, %v4765
  %v4767 = vrot.slane %v4766, 2
  %v4768 = vrot.slane %v4744, 2
  %v4769 = vsel %vm285, %v4767, %v4768
  %4772 = vmatprep.subr.bf16.mxu0 %v546
  %4773 = vmatpush1.bf16.msra.mxu0 %v545
  %4774 = vmatprep.subr.bf16.mxu0 %v544
  %4775 = vmatpush1.bf16.msra.mxu0 %v543
  %4776 = vmatprep.subr.bf16.mxu0 %v542
  %4777 = vmatpush1.bf16.msra.mxu0 %v541
  %4778 = vmatprep.subr.bf16.mxu0 %v540
  %4779 = vmatpush1.bf16.msra.mxu0 %v539
  %4780 = vmatprep.subr.bf16.mxu0 %v538
  %4781 = vmatpush1.bf16.msra.mxu0 %v537
  %4782 = vmatprep.subr.bf16.mxu0 %v536
  %4783 = vmatpush1.bf16.msra.mxu0 %v535
  %4784 = vmatprep.subr.bf16.mxu0 %v534
  %4785 = vmatpush1.bf16.msra.mxu0 %v533
  %4786 = vmatprep.subr.bf16.mxu0 %v532
  %4787 = vmatpush1.bf16.msra.mxu0 %v531
  %4788 = vmatprep.subr.bf16.mxu0 %v562
  %4789 = vmatpush2.bf16.msra.mxu0 %v561
  %4790 = vmatprep.subr.bf16.mxu0 %v560
  %4791 = vmatpush2.bf16.msra.mxu0 %v559
  %4792 = vmatprep.subr.bf16.mxu0 %v558
  %4793 = vmatpush2.bf16.msra.mxu0 %v557
  %4794 = vmatprep.subr.bf16.mxu0 %v556
  %4795 = vmatpush2.bf16.msra.mxu0 %v555
  %4796 = vmatprep.subr.bf16.mxu0 %v554
  %4797 = vmatpush2.bf16.msra.mxu0 %v553
  %4798 = vmatprep.subr.bf16.mxu0 %v552
  %4799 = vmatpush2.bf16.msra.mxu0 %v551
  %4800 = vmatprep.subr.bf16.mxu0 %v550
  %4801 = vmatpush2.bf16.msra.mxu0 %v549
  %4802 = vmatprep.subr.bf16.mxu0 %v548
  %4803 = vmatpush2.bf16.msra.mxu0 %v547
  %4804 = vmatprep.mubr.bf16.mxu0 %v4728
  %4805 = vmatmul.mubr.bf16.gmra.mxu0 %v4710
  %v4806 = vpop.f32.mrf.mxu0
  %v4807 = vadd.f32 0.0, %v4806
  %v4808 = vpop.f32.mrf.mxu0
  %v4809 = vadd.f32 0.0, %v4808
  %v4810 = vpop.f32.mrf.mxu0
  %v4811 = vadd.f32 0.0, %v4810
  %v4812 = vpop.f32.mrf.mxu0
  %v4813 = vadd.f32 0.0, %v4812
  %4814 = vmatprep.mubr.bf16.mxu0 %v4731
  %4815 = vmatmul.mubr.bf16.gmra.mxu0 %v4711
  %v4816 = vpop.f32.mrf.mxu0
  %v4817 = vadd.f32 0.0, %v4816
  %v4818 = vpop.f32.mrf.mxu0
  %v4819 = vadd.f32 0.0, %v4818
  %v4820 = vpop.f32.mrf.mxu0
  %v4821 = vadd.f32 0.0, %v4820
  %v4822 = vpop.f32.mrf.mxu0
  %v4823 = vadd.f32 0.0, %v4822
  %4824 = vdwg.mxu0
  %4825 = vmatprep.subr.bf16.mxu0 %v578
  %4826 = vmatpush1.bf16.msra.mxu0 %v577
  %4827 = vmatprep.subr.bf16.mxu0 %v576
  %4828 = vmatpush1.bf16.msra.mxu0 %v575
  %4829 = vmatprep.subr.bf16.mxu0 %v574
  %4830 = vmatpush1.bf16.msra.mxu0 %v573
  %4831 = vmatprep.subr.bf16.mxu0 %v572
  %4832 = vmatpush1.bf16.msra.mxu0 %v571
  %4833 = vmatprep.subr.bf16.mxu0 %v570
  %4834 = vmatpush1.bf16.msra.mxu0 %v569
  %4835 = vmatprep.subr.bf16.mxu0 %v568
  %4836 = vmatpush1.bf16.msra.mxu0 %v567
  %4837 = vmatprep.subr.bf16.mxu0 %v566
  %4838 = vmatpush1.bf16.msra.mxu0 %v565
  %4839 = vmatprep.subr.bf16.mxu0 %v564
  %4840 = vmatpush1.bf16.msra.mxu0 %v563
  %4841 = vmatprep.subr.bf16.mxu0 %v594
  %4842 = vmatpush2.bf16.msra.mxu0 %v593
  %4843 = vmatprep.subr.bf16.mxu0 %v592
  %4844 = vmatpush2.bf16.msra.mxu0 %v591
  %4845 = vmatprep.subr.bf16.mxu0 %v590
  %4846 = vmatpush2.bf16.msra.mxu0 %v589
  %4847 = vmatprep.subr.bf16.mxu0 %v588
  %4848 = vmatpush2.bf16.msra.mxu0 %v587
  %4849 = vmatprep.subr.bf16.mxu0 %v586
  %4850 = vmatpush2.bf16.msra.mxu0 %v585
  %4851 = vmatprep.subr.bf16.mxu0 %v584
  %4852 = vmatpush2.bf16.msra.mxu0 %v583
  %4853 = vmatprep.subr.bf16.mxu0 %v582
  %4854 = vmatpush2.bf16.msra.mxu0 %v581
  %4855 = vmatprep.subr.bf16.mxu0 %v580
  %4856 = vmatpush2.bf16.msra.mxu0 %v579
  %4857 = vmatprep.mubr.bf16.mxu0 %v4761
  %4858 = vmatmul.mubr.bf16.gmra.mxu0 %v4739
  %v4859 = vpop.f32.mrf.mxu0
  %v4860 = vadd.f32 %v4807, %v4859
  %v4861 = vpop.f32.mrf.mxu0
  %v4862 = vadd.f32 %v4809, %v4861
  %v4863 = vpop.f32.mrf.mxu0
  %v4864 = vadd.f32 %v4811, %v4863
  %v4865 = vpop.f32.mrf.mxu0
  %v4866 = vadd.f32 %v4813, %v4865
  %4867 = vmatprep.mubr.bf16.mxu0 %v4760
  %4868 = vmatmul.mubr.bf16.gmra.mxu0 %v4738
  %v4869 = vpop.f32.mrf.mxu0
  %v4870 = vadd.f32 %v4817, %v4869
  %v4871 = vpop.f32.mrf.mxu0
  %v4872 = vadd.f32 %v4819, %v4871
  %v4873 = vpop.f32.mrf.mxu0
  %v4874 = vadd.f32 %v4821, %v4873
  %v4875 = vpop.f32.mrf.mxu0
  %v4876 = vadd.f32 %v4823, %v4875
  %4877 = vdwg.mxu0
  %4878 = vmatprep.subr.bf16.mxu0 %v610
  %4879 = vmatpush1.bf16.msra.mxu0 %v609
  %4880 = vmatprep.subr.bf16.mxu0 %v608
  %4881 = vmatpush1.bf16.msra.mxu0 %v607
  %4882 = vmatprep.subr.bf16.mxu0 %v606
  %4883 = vmatpush1.bf16.msra.mxu0 %v605
  %4884 = vmatprep.subr.bf16.mxu0 %v604
  %4885 = vmatpush1.bf16.msra.mxu0 %v603
  %4886 = vmatprep.subr.bf16.mxu0 %v602
  %4887 = vmatpush1.bf16.msra.mxu0 %v601
  %4888 = vmatprep.subr.bf16.mxu0 %v600
  %4889 = vmatpush1.bf16.msra.mxu0 %v599
  %4890 = vmatprep.subr.bf16.mxu0 %v598
  %4891 = vmatpush1.bf16.msra.mxu0 %v597
  %4892 = vmatprep.subr.bf16.mxu0 %v596
  %4893 = vmatpush1.bf16.msra.mxu0 %v595
  %4894 = vmatprep.subr.bf16.mxu0 0
  %4895 = vmatpush2.bf16.msra.mxu0 0
  %4896 = vmatprep.subr.bf16.mxu0 0
  %4897 = vmatpush2.bf16.msra.mxu0 0
  %4898 = vmatprep.subr.bf16.mxu0 0
  %4899 = vmatpush2.bf16.msra.mxu0 0
  %4900 = vmatprep.subr.bf16.mxu0 0
  %4901 = vmatpush2.bf16.msra.mxu0 0
  %4902 = vmatprep.subr.bf16.mxu0 0
  %4903 = vmatpush2.bf16.msra.mxu0 0
  %4904 = vmatprep.subr.bf16.mxu0 0
  %4905 = vmatpush2.bf16.msra.mxu0 0
  %4906 = vmatprep.subr.bf16.mxu0 0
  %4907 = vmatpush2.bf16.msra.mxu0 0
  %4908 = vmatprep.subr.bf16.mxu0 0
  %4909 = vmatpush2.bf16.msra.mxu0 0
  %4910 = vmatprep.mubr.bf16.mxu0 0
  %4911 = vmatmul.mubr.bf16.gmra.mxu0 %v4769
  %v4912 = vpop.f32.mrf.mxu0
  %v4913 = vadd.f32 %v4860, %v4912
  %v4914 = vpop.f32.mrf.mxu0
  %v4915 = vadd.f32 %v4862, %v4914
  %v4916 = vpop.f32.mrf.mxu0
  %v4917 = vadd.f32 %v4864, %v4916
  %v4918 = vpop.f32.mrf.mxu0
  %v4919 = vadd.f32 %v4866, %v4918
  %4920 = vmatprep.mubr.bf16.mxu0 0
  %4921 = vmatmul.mubr.bf16.gmra.mxu0 %v4768
  %v4922 = vpop.f32.mrf.mxu0
  %v4923 = vadd.f32 %v4870, %v4922
  %v4924 = vpop.f32.mrf.mxu0
  %v4925 = vadd.f32 %v4872, %v4924
  %v4926 = vpop.f32.mrf.mxu0
  %v4927 = vadd.f32 %v4874, %v4926
  %v4928 = vpop.f32.mrf.mxu0
  %v4929 = vadd.f32 %v4876, %v4928
  %4930 = vdwg.mxu0
  %v4931 = vmul.f32 %v4913, %v854
  %v4932 = vmul.f32 %v4915, %v858
  %v4933 = vmul.f32 %v4917, %v854
  %v4934 = vmul.f32 %v4919, %v858
  %v4935 = vmul.f32 %v4923, %v854
  %v4936 = vmul.f32 %v4925, %v858
  %v4937 = vmul.f32 %v4927, %v854
  %v4938 = vmul.f32 %v4929, %v858
  %v4939 = vadd.f32 %v4931, %v873
  %v4940 = vadd.f32 %v4932, %v877
  %v4941 = vadd.f32 %v4933, %v873
  %v4942 = vadd.f32 %v4934, %v877
  %v4943 = vadd.f32 %v4935, %v873
  %v4944 = vadd.f32 %v4936, %v877
  %v4945 = vadd.f32 %v4937, %v873
  %v4946 = vadd.f32 %v4938, %v877
  %v4947 = vmax.f32 %v4939, 0.0
  %v4948 = vmax.f32 %v4940, 0.0
  %v4949 = vmax.f32 %v4941, 0.0
  %v4950 = vmax.f32 %v4942, 0.0
  %v4951 = vmax.f32 %v4943, 0.0
  %v4952 = vmax.f32 %v4944, 0.0
  %v4953 = vmax.f32 %v4945, 0.0
  %v4954 = vmax.f32 %v4946, 0.0
  %v4955 = vmax.f32 %v4947, %v4948
  %v4956 = vmax.f32 %v4949, %v4950
  %v4957 = vmax.f32 %v4951, %v4952
  %v4958 = vmax.f32 %v4953, %v4954
  %v4960 = vrot.slane %v4955, 1
  %v4962 = vmax.f32 %v4955, %v4960
  %v4964 = vrot.slane %v4956, 1
  %v4966 = vmax.f32 %v4956, %v4964
  %v4968 = vrot.slane %v4957, 1
  %v4970 = vmax.f32 %v4957, %v4968
  %v4972 = vrot.slane %v4958, 1
  %v4974 = vmax.f32 %v4958, %v4972
  %v4976 = vrot.slane %v4962, 1
  %v4978 = vrot.slane %v4962, 2
  %v4980 = vrot.slane %v4962, 3
  %v4983 = vrot.slane %v4966, 4
  %v4985 = vrot.slane %v4966, 5
  %v4987 = vrot.slane %v4966, 6
  %v4989 = vrot.slane %v4966, 7
  %v4992 = vrot.slane %v4970, 1
  %v4994 = vrot.slane %v4970, 2
  %v4996 = vrot.slane %v4970, 3
  %v4999 = vrot.slane %v4974, 4
  %v5001 = vrot.slane %v4974, 5
  %v5003 = vsel %vm944, %v4962, %v4976
  %v5004 = vsel %vm946, %v5003, %v4978
  %v5005 = vsel %vm948, %v5004, %v4980
  %v5006 = vsel %vm950, %v5005, %v4983
  %v5007 = vsel %vm952, %v5006, %v4985
  %v5008 = vsel %vm954, %v5007, %v4987
  %v5009 = vsel %vm956, %v5008, %v4989
  %v5010 = vsel %vm944, %v4970, %v4992
  %v5011 = vsel %vm946, %v5010, %v4994
  %v5012 = vsel %vm948, %v5011, %v4996
  %v5013 = vsel %vm950, %v5012, %v4999
  %v5014 = vsel %vm952, %v5013, %v5001
  %v5017 = vrot.slane %v5009, 1
  %v5018 = vrot.slane %v5014, 1
  %v5019 = vsel %vm956, %v5017, %v5018
  %v5022 = vrot.slane %v5009, 2
  %v5023 = vrot.slane %v5014, 2
  %v5024 = vsel %vm954, %v5022, %v5023
  %v5027 = vrot.slane %v5009, 3
  %v5028 = vrot.slane %v5014, 3
  %v5029 = vsel %vm952, %v5027, %v5028
  %v5032 = vrot.slane %v5009, 4
  %v5033 = vrot.slane %v5014, 4
  %v5034 = vsel %vm950, %v5032, %v5033
  %v5037 = vpack.c.bf16 %v5014, %v5009
  %v5038 = vpack.c.bf16 %v5018, %v5019
  %v5039 = vpack.c.bf16 %v5023, %v5024
  %v5040 = vpack.c.bf16 %v5028, %v5029
  %v5041 = vpack.c.bf16 %v5033, %v5034
  %5042 = vmatprep.subr.bf16.mxu0 %v1245
  %5043 = vmatpush1.bf16.msra.mxu0 %v1244
  %5044 = vmatprep.subr.bf16.mxu0 %v1243
  %5045 = vmatpush1.bf16.msra.mxu0 %v1242
  %5046 = vmatprep.subr.bf16.mxu0 %v1241
  %5047 = vmatpush1.bf16.msra.mxu0 %v1240
  %5048 = vmatprep.subr.bf16.mxu0 %v1239
  %5049 = vmatpush1.bf16.msra.mxu0 %v1238
  %5050 = vmatprep.subr.bf16.mxu0 %v1237
  %5051 = vmatpush1.bf16.msra.mxu0 %v1236
  %5052 = vmatprep.subr.bf16.mxu0 %v1235
  %5053 = vmatpush1.bf16.msra.mxu0 %v1234
  %5054 = vmatprep.subr.bf16.mxu0 %v1233
  %5055 = vmatpush1.bf16.msra.mxu0 %v1232
  %5056 = vmatprep.subr.bf16.mxu0 %v1231
  %5057 = vmatpush1.bf16.msra.mxu0 %v1230
  %5058 = vmatprep.subr.bf16.mxu0 %v1261
  %5059 = vmatpush2.bf16.msra.mxu0 %v1260
  %5060 = vmatprep.subr.bf16.mxu0 %v1259
  %5061 = vmatpush2.bf16.msra.mxu0 %v1258
  %5062 = vmatprep.subr.bf16.mxu0 %v1257
  %5063 = vmatpush2.bf16.msra.mxu0 %v1256
  %5064 = vmatprep.subr.bf16.mxu0 %v1255
  %5065 = vmatpush2.bf16.msra.mxu0 %v1254
  %5066 = vmatprep.subr.bf16.mxu0 %v1253
  %5067 = vmatpush2.bf16.msra.mxu0 %v1252
  %5068 = vmatprep.subr.bf16.mxu0 %v1251
  %5069 = vmatpush2.bf16.msra.mxu0 %v1250
  %5070 = vmatprep.subr.bf16.mxu0 %v1249
  %5071 = vmatpush2.bf16.msra.mxu0 %v1248
  %5072 = vmatprep.subr.bf16.mxu0 %v1247
  %5073 = vmatpush2.bf16.msra.mxu0 %v1246
  %5074 = vmatprep.mubr.bf16.mxu0 %v5038
  %5075 = vmatmul.mubr.bf16.gmra.mxu0 %v5037
  %v5076 = vpop.f32.mrf.mxu0
  %v5077 = vadd.f32 0.0, %v5076
  %v5078 = vpop.f32.mrf.mxu0
  %v5079 = vadd.f32 0.0, %v5078
  %v5080 = vpop.f32.mrf.mxu0
  %v5081 = vadd.f32 0.0, %v5080
  %v5082 = vpop.f32.mrf.mxu0
  %v5083 = vadd.f32 0.0, %v5082
  %5084 = vdwg.mxu0
  %5085 = vmatprep.subr.bf16.mxu0 %v1277
  %5086 = vmatpush1.bf16.msra.mxu0 %v1276
  %5087 = vmatprep.subr.bf16.mxu0 %v1275
  %5088 = vmatpush1.bf16.msra.mxu0 %v1274
  %5089 = vmatprep.subr.bf16.mxu0 %v1273
  %5090 = vmatpush1.bf16.msra.mxu0 %v1272
  %5091 = vmatprep.subr.bf16.mxu0 %v1271
  %5092 = vmatpush1.bf16.msra.mxu0 %v1270
  %5093 = vmatprep.subr.bf16.mxu0 %v1269
  %5094 = vmatpush1.bf16.msra.mxu0 %v1268
  %5095 = vmatprep.subr.bf16.mxu0 %v1267
  %5096 = vmatpush1.bf16.msra.mxu0 %v1266
  %5097 = vmatprep.subr.bf16.mxu0 %v1265
  %5098 = vmatpush1.bf16.msra.mxu0 %v1264
  %5099 = vmatprep.subr.bf16.mxu0 %v1263
  %5100 = vmatpush1.bf16.msra.mxu0 %v1262
  %5101 = vmatprep.subr.bf16.mxu0 %v1293
  %5102 = vmatpush2.bf16.msra.mxu0 %v1292
  %5103 = vmatprep.subr.bf16.mxu0 %v1291
  %5104 = vmatpush2.bf16.msra.mxu0 %v1290
  %5105 = vmatprep.subr.bf16.mxu0 %v1289
  %5106 = vmatpush2.bf16.msra.mxu0 %v1288
  %5107 = vmatprep.subr.bf16.mxu0 %v1287
  %5108 = vmatpush2.bf16.msra.mxu0 %v1286
  %5109 = vmatprep.subr.bf16.mxu0 %v1285
  %5110 = vmatpush2.bf16.msra.mxu0 %v1284
  %5111 = vmatprep.subr.bf16.mxu0 %v1283
  %5112 = vmatpush2.bf16.msra.mxu0 %v1282
  %5113 = vmatprep.subr.bf16.mxu0 %v1281
  %5114 = vmatpush2.bf16.msra.mxu0 %v1280
  %5115 = vmatprep.subr.bf16.mxu0 %v1279
  %5116 = vmatpush2.bf16.msra.mxu0 %v1278
  %5117 = vmatprep.mubr.bf16.mxu0 %v5040
  %5118 = vmatmul.mubr.bf16.gmra.mxu0 %v5039
  %v5119 = vpop.f32.mrf.mxu0
  %v5120 = vadd.f32 %v5077, %v5119
  %v5121 = vpop.f32.mrf.mxu0
  %v5122 = vadd.f32 %v5079, %v5121
  %v5123 = vpop.f32.mrf.mxu0
  %v5124 = vadd.f32 %v5081, %v5123
  %v5125 = vpop.f32.mrf.mxu0
  %v5126 = vadd.f32 %v5083, %v5125
  %5127 = vdwg.mxu0
  %5128 = vmatprep.subr.bf16.mxu0 %v1309
  %5129 = vmatpush1.bf16.msra.mxu0 %v1308
  %5130 = vmatprep.subr.bf16.mxu0 %v1307
  %5131 = vmatpush1.bf16.msra.mxu0 %v1306
  %5132 = vmatprep.subr.bf16.mxu0 %v1305
  %5133 = vmatpush1.bf16.msra.mxu0 %v1304
  %5134 = vmatprep.subr.bf16.mxu0 %v1303
  %5135 = vmatpush1.bf16.msra.mxu0 %v1302
  %5136 = vmatprep.subr.bf16.mxu0 %v1301
  %5137 = vmatpush1.bf16.msra.mxu0 %v1300
  %5138 = vmatprep.subr.bf16.mxu0 %v1299
  %5139 = vmatpush1.bf16.msra.mxu0 %v1298
  %5140 = vmatprep.subr.bf16.mxu0 %v1297
  %5141 = vmatpush1.bf16.msra.mxu0 %v1296
  %5142 = vmatprep.subr.bf16.mxu0 %v1295
  %5143 = vmatpush1.bf16.msra.mxu0 %v1294
  %5144 = vmatprep.subr.bf16.mxu0 0
  %5145 = vmatpush2.bf16.msra.mxu0 0
  %5146 = vmatprep.subr.bf16.mxu0 0
  %5147 = vmatpush2.bf16.msra.mxu0 0
  %5148 = vmatprep.subr.bf16.mxu0 0
  %5149 = vmatpush2.bf16.msra.mxu0 0
  %5150 = vmatprep.subr.bf16.mxu0 0
  %5151 = vmatpush2.bf16.msra.mxu0 0
  %5152 = vmatprep.subr.bf16.mxu0 0
  %5153 = vmatpush2.bf16.msra.mxu0 0
  %5154 = vmatprep.subr.bf16.mxu0 0
  %5155 = vmatpush2.bf16.msra.mxu0 0
  %5156 = vmatprep.subr.bf16.mxu0 0
  %5157 = vmatpush2.bf16.msra.mxu0 0
  %5158 = vmatprep.subr.bf16.mxu0 0
  %5159 = vmatpush2.bf16.msra.mxu0 0
  %5160 = vmatprep.mubr.bf16.mxu0 0
  %5161 = vmatmul.mubr.bf16.gmra.mxu0 %v5041
  %v5162 = vpop.f32.mrf.mxu0
  %v5163 = vadd.f32 %v5120, %v5162
  %v5164 = vpop.f32.mrf.mxu0
  %v5165 = vadd.f32 %v5122, %v5164
  %v5166 = vpop.f32.mrf.mxu0
  %v5167 = vadd.f32 %v5124, %v5166
  %v5168 = vpop.f32.mrf.mxu0
  %v5169 = vadd.f32 %v5126, %v5168
  %5170 = vdwg.mxu0
  %v5171 = vmul.f32 %v5163, %v1523
  %v5172 = vmul.f32 %v5165, %v1527
  %v5173 = vmul.f32 %v5167, %v1523
  %v5174 = vmul.f32 %v5169, %v1527
  %v5175 = vadd.f32 %v5171, %v1538
  %v5176 = vadd.f32 %v5172, %v1542
  %v5177 = vadd.f32 %v5173, %v1538
  %v5178 = vadd.f32 %v5174, %v1542
  %v5179 = vmax.f32 %v5175, 0.0
  %v5180 = vmax.f32 %v5176, 0.0
  %v5181 = vmax.f32 %v5177, 0.0
  %v5182 = vmax.f32 %v5178, 0.0
  %v5183 = vmax.f32 %v5179, %v5180
  %v5184 = vmax.f32 %v5181, %v5182
  %v5186 = vrot.slane %v5183, 1
  %v5188 = vmax.f32 %v5183, %v5186
  %v5190 = vrot.slane %v5184, 1
  %v5192 = vmax.f32 %v5184, %v5190
  %v5194 = vrot.slane %v5188, 1
  %v5196 = vrot.slane %v5188, 2
  %v5198 = vrot.slane %v5188, 3
  %v5201 = vrot.slane %v5192, 4
  %v5203 = vsel %vm944, %v5188, %v5194
  %v5204 = vsel %vm946, %v5203, %v5196
  %v5205 = vsel %vm948, %v5204, %v5198
  %v5206 = vsel %vm950, %v5205, %v5201
  %v5208 = vrot.slane %v5206, 1
  %v5209 = vrot.slane %v5206, 2
  %v5210 = vrot.slane %v5206, 3
  %v5211 = vrot.slane %v5206, 4
  %v5212 = vrot.slane %v2098, 7
  %v5213 = vrot.slane %v2100, 7
  %v5214 = vrot.slane %v2101, 7
  %v5215 = vrot.slane %v2102, 7
  %v5216 = vrot.slane %v2103, 7
  %v5222 = vrot.slane %v2616, 6
  %v5223 = vrot.slane %v2618, 6
  %v5224 = vrot.slane %v2619, 6
  %v5225 = vrot.slane %v2620, 6
  %v5226 = vrot.slane %v2621, 6
  %v5232 = vrot.slane %v3134, 5
  %v5233 = vrot.slane %v3136, 5
  %v5234 = vrot.slane %v3137, 5
  %v5235 = vrot.slane %v3138, 5
  %v5236 = vrot.slane %v3139, 5
  %v5242 = vrot.slane %v3654, 4
  %v5243 = vrot.slane %v3655, 4
  %v5244 = vrot.slane %v3656, 4
  %v5245 = vrot.slane %v3657, 4
  %v5251 = vrot.slane %v4172, 3
  %v5252 = vrot.slane %v4173, 3
  %v5253 = vrot.slane %v4174, 3
  %v5254 = vrot.slane %v4175, 3
  %v5260 = vrot.slane %v4690, 2
  %v5261 = vrot.slane %v4691, 2
  %v5262 = vrot.slane %v4692, 2
  %v5263 = vrot.slane %v4693, 2
  %v5269 = vrot.slane %v5208, 1
  %v5270 = vrot.slane %v5209, 1
  %v5271 = vrot.slane %v5210, 1
  %v5272 = vrot.slane %v5211, 1
  %v5278 = vsel %vm944, %v1576, %v5212
  %v5279 = vsel %vm944, %v1578, %v5213
  %v5280 = vsel %vm944, %v1580, %v5214
  %v5281 = vsel %vm944, %v1582, %v5215
  %v5282 = vsel %vm944, %v1584, %v5216
  %v5283 = vsel %vm946, %v5278, %v5222
  %v5284 = vsel %vm946, %v5279, %v5223
  %v5285 = vsel %vm946, %v5280, %v5224
  %v5286 = vsel %vm946, %v5281, %v5225
  %v5287 = vsel %vm946, %v5282, %v5226
  %v5288 = vsel %vm948, %v5283, %v5232
  %v5289 = vsel %vm948, %v5284, %v5233
  %v5290 = vsel %vm948, %v5285, %v5234
  %v5291 = vsel %vm948, %v5286, %v5235
  %v5292 = vsel %vm948, %v5287, %v5236
  %v5293 = vsel %vm950, %v5288, %v3657
  %v5294 = vsel %vm950, %v5289, %v5242
  %v5295 = vsel %vm950, %v5290, %v5243
  %v5296 = vsel %vm950, %v5291, %v5244
  %v5297 = vsel %vm950, %v5292, %v5245
  %v5298 = vsel %vm952, %v5293, %v4174
  %v5299 = vsel %vm952, %v5294, %v5251
  %v5300 = vsel %vm952, %v5295, %v5252
  %v5301 = vsel %vm952, %v5296, %v5253
  %v5302 = vsel %vm952, %v5297, %v5254
  %v5303 = vsel %vm954, %v5298, %v4691
  %v5304 = vsel %vm954, %v5299, %v5260
  %v5305 = vsel %vm954, %v5300, %v5261
  %v5306 = vsel %vm954, %v5301, %v5262
  %v5307 = vsel %vm954, %v5302, %v5263
  %v5308 = vsel %vm956, %v5303, %v5208
  %v5309 = vsel %vm956, %v5304, %v5269
  %v5310 = vsel %vm956, %v5305, %v5270
  %v5311 = vsel %vm956, %v5306, %v5271
  %v5312 = vsel %vm956, %v5307, %v5272
  %v5313 = vpack.c.bf16 %v5308, %v5308
  %v5314 = vpack.c.bf16 %v5309, %v5309
  %v5315 = vpack.c.bf16 %v5310, %v5310
  %v5316 = vpack.c.bf16 %v5311, %v5311
  %v5317 = vpack.c.bf16 %v5312, %v5312
  %v5318 = vld [vmem:[%s7] sm:$0xf]
  %v5319 = vld [vmem:[%s7 + $0x4] sm:$0xf]
  %v5320 = vld [vmem:[%s7 + $0x8] sm:$0xf]
  %v5321 = vld [vmem:[%s7 + $0xc] sm:$0xf]
  %v5322 = vld [vmem:[%s7 + $0x10] sm:$0xf]
  %v5323 = vld [vmem:[%s7 + $0x14] sm:$0xf]
  %v5324 = vld [vmem:[%s7 + $0x18] sm:$0xf]
  %v5325 = vld [vmem:[%s7 + $0x1c] sm:$0xf]
  %v5326 = vld [vmem:[%s7 + $0x20] sm:$0xf]
  %v5327 = vld [vmem:[%s7 + $0x24] sm:$0xf]
  %v5328 = vld [vmem:[%s7 + $0x28] sm:$0xf]
  %v5329 = vld [vmem:[%s7 + $0x2c] sm:$0xf]
  %v5330 = vld [vmem:[%s7 + $0x30] sm:$0xf]
  %v5331 = vld [vmem:[%s7 + $0x34] sm:$0xf]
  %v5332 = vld [vmem:[%s7 + $0x38] sm:$0xf]
  %v5333 = vld [vmem:[%s7 + $0x3c] sm:$0xf]
  %v5334 = vld [vmem:[%s7 + $0x40] sm:$0xf]
  %v5335 = vld [vmem:[%s7 + $0x44] sm:$0xf]
  %v5336 = vld [vmem:[%s7 + $0x48] sm:$0xf]
  %v5337 = vld [vmem:[%s7 + $0x4c] sm:$0xf]
  %v5338 = vld [vmem:[%s7 + $0x50] sm:$0xf]
  %v5339 = vld [vmem:[%s7 + $0x54] sm:$0xf]
  %v5340 = vld [vmem:[%s7 + $0x58] sm:$0xf]
  %v5341 = vld [vmem:[%s7 + $0x5c] sm:$0xf]
  %v5342 = vld [vmem:[%s7 + $0x60] sm:$0xf]
  %v5343 = vld [vmem:[%s7 + $0x64] sm:$0xf]
  %v5344 = vld [vmem:[%s7 + $0x68] sm:$0xf]
  %v5345 = vld [vmem:[%s7 + $0x6c] sm:$0xf]
  %v5346 = vld [vmem:[%s7 + $0x70] sm:$0xf]
  %v5347 = vld [vmem:[%s7 + $0x74] sm:$0xf]
  %v5348 = vld [vmem:[%s7 + $0x78] sm:$0xf]
  %v5349 = vld [vmem:[%s7 + $0x7c] sm:$0xf]
  %v5350 = vld [vmem:[%s7 + $0x80] sm:$0xf]
  %v5351 = vld [vmem:[%s7 + $0x84] sm:$0xf]
  %v5352 = vld [vmem:[%s7 + $0x88] sm:$0xf]
  %v5353 = vld [vmem:[%s7 + $0x8c] sm:$0xf]
  %v5354 = vld [vmem:[%s7 + $0x90] sm:$0xf]
  %v5355 = vld [vmem:[%s7 + $0x94] sm:$0xf]
  %v5356 = vld [vmem:[%s7 + $0x98] sm:$0xf]
  %v5357 = vld [vmem:[%s7 + $0x9c] sm:$0xf]
  %v5358 = vld [vmem:[%s7 + $0xa0] sm:$0xf]
  %v5359 = vld [vmem:[%s7 + $0xa4] sm:$0xf]
  %v5360 = vld [vmem:[%s7 + $0xa8] sm:$0xf]
  %v5361 = vld [vmem:[%s7 + $0xac] sm:$0xf]
  %v5362 = vld [vmem:[%s7 + $0xb0] sm:$0xf]
  %v5363 = vld [vmem:[%s7 + $0xb4] sm:$0xf]
  %v5364 = vld [vmem:[%s7 + $0xb8] sm:$0xf]
  %v5365 = vld [vmem:[%s7 + $0xbc] sm:$0xf]
  %v5366 = vld [vmem:[%s7 + $0xc0] sm:$0xf]
  %v5367 = vld [vmem:[%s7 + $0xc4] sm:$0xf]
  %v5368 = vld [vmem:[%s7 + $0xc8] sm:$0xf]
  %v5369 = vld [vmem:[%s7 + $0xcc] sm:$0xf]
  %v5370 = vld [vmem:[%s7 + $0xd0] sm:$0xf]
  %v5371 = vld [vmem:[%s7 + $0xd4] sm:$0xf]
  %v5372 = vld [vmem:[%s7 + $0xd8] sm:$0xf]
  %v5373 = vld [vmem:[%s7 + $0xdc] sm:$0xf]
  %v5374 = vld [vmem:[%s7 + $0xe0] sm:$0xf]
  %v5375 = vld [vmem:[%s7 + $0xe4] sm:$0xf]
  %v5376 = vld [vmem:[%s7 + $0xe8] sm:$0xf]
  %v5377 = vld [vmem:[%s7 + $0xec] sm:$0xf]
  %v5378 = vld [vmem:[%s7 + $0xf0] sm:$0xf]
  %v5379 = vld [vmem:[%s7 + $0xf4] sm:$0xf]
  %v5380 = vld [vmem:[%s7 + $0xf8] sm:$0xf]
  %v5381 = vld [vmem:[%s7 + $0xfc] sm:$0xf]
  %v5382 = vld [vmem:[%s7 + $0x100] sm:$0xf]
  %v5383 = vld [vmem:[%s7 + $0x104] sm:$0xf]
  %v5384 = vld [vmem:[%s7 + $0x108] sm:$0xf]
  %v5385 = vld [vmem:[%s7 + $0x10c] sm:$0xf]
  %v5386 = vld [vmem:[%s7 + $0x110] sm:$0xf]
  %v5387 = vld [vmem:[%s7 + $0x114] sm:$0xf]
  %v5388 = vld [vmem:[%s7 + $0x118] sm:$0xf]
  %v5389 = vld [vmem:[%s7 + $0x11c] sm:$0xf]
  %v5390 = vld [vmem:[%s7 + $0x120] sm:$0xf]
  %v5391 = vld [vmem:[%s7 + $0x124] sm:$0xf]
  %v5392 = vld [vmem:[%s7 + $0x128] sm:$0xf]
  %v5393 = vld [vmem:[%s7 + $0x12c] sm:$0xf]
  %v5394 = vld [vmem:[%s7 + $0x130] sm:$0xf]
  %v5395 = vld [vmem:[%s7 + $0x134] sm:$0xf]
  %v5396 = vld [vmem:[%s7 + $0x138] sm:$0xf]
  %v5397 = vld [vmem:[%s7 + $0x13c] sm:$0xf]
  %v5398 = vld [vmem:[%s8] sm:$0x1]
  %v5400 = vlaneseq
  %v5401 = vshrl.u32 %v5400, 7
  %v5402 = vsub.s32 0, %v5401
  %v5403 = vrot.slane %v5398, %v5402
  %v5485 = vunpack.c.l.b16 %v5318
  %v5486 = vunpack.c.l.b16 %v5319
  %v5487 = vunpack.c.l.b16 %v5320
  %v5488 = vunpack.c.l.b16 %v5321
  %v5489 = vunpack.c.l.b16 %v5322
  %v5490 = vunpack.c.l.b16 %v5323
  %v5491 = vunpack.c.l.b16 %v5324
  %v5492 = vunpack.c.l.b16 %v5325
  %v5493 = vunpack.c.l.b16 %v5326
  %v5494 = vunpack.c.l.b16 %v5327
  %v5495 = vunpack.c.l.b16 %v5328
  %v5496 = vunpack.c.l.b16 %v5329
  %v5497 = vunpack.c.l.b16 %v5330
  %v5498 = vunpack.c.l.b16 %v5331
  %v5499 = vunpack.c.l.b16 %v5332
  %v5500 = vunpack.c.l.b16 %v5333
  %v5501 = vunpack.c.l.b16 %v5334
  %v5502 = vunpack.c.l.b16 %v5335
  %v5503 = vunpack.c.l.b16 %v5336
  %v5504 = vunpack.c.l.b16 %v5337
  %v5505 = vunpack.c.l.b16 %v5338
  %v5506 = vunpack.c.l.b16 %v5339
  %v5507 = vunpack.c.l.b16 %v5340
  %v5508 = vunpack.c.l.b16 %v5341
  %v5509 = vunpack.c.l.b16 %v5342
  %v5510 = vunpack.c.l.b16 %v5343
  %v5511 = vunpack.c.l.b16 %v5344
  %v5512 = vunpack.c.l.b16 %v5345
  %v5513 = vunpack.c.l.b16 %v5346
  %v5514 = vunpack.c.l.b16 %v5347
  %v5515 = vunpack.c.l.b16 %v5348
  %v5516 = vunpack.c.l.b16 %v5349
  %v5517 = vunpack.c.l.b16 %v5350
  %v5518 = vunpack.c.l.b16 %v5351
  %v5519 = vunpack.c.l.b16 %v5352
  %v5520 = vunpack.c.l.b16 %v5353
  %v5521 = vunpack.c.l.b16 %v5354
  %v5522 = vunpack.c.l.b16 %v5355
  %v5523 = vunpack.c.l.b16 %v5356
  %v5524 = vunpack.c.l.b16 %v5357
  %v5525 = vunpack.c.l.b16 %v5358
  %v5526 = vunpack.c.l.b16 %v5359
  %v5527 = vunpack.c.l.b16 %v5360
  %v5528 = vunpack.c.l.b16 %v5361
  %v5529 = vunpack.c.l.b16 %v5362
  %v5530 = vunpack.c.l.b16 %v5363
  %v5531 = vunpack.c.l.b16 %v5364
  %v5532 = vunpack.c.l.b16 %v5365
  %v5533 = vunpack.c.l.b16 %v5366
  %v5534 = vunpack.c.l.b16 %v5367
  %v5535 = vunpack.c.l.b16 %v5368
  %v5536 = vunpack.c.l.b16 %v5369
  %v5537 = vunpack.c.l.b16 %v5370
  %v5538 = vunpack.c.l.b16 %v5371
  %v5539 = vunpack.c.l.b16 %v5372
  %v5540 = vunpack.c.l.b16 %v5373
  %v5541 = vunpack.c.l.b16 %v5374
  %v5542 = vunpack.c.l.b16 %v5375
  %v5543 = vunpack.c.l.b16 %v5376
  %v5544 = vunpack.c.l.b16 %v5377
  %v5545 = vunpack.c.l.b16 %v5378
  %v5546 = vunpack.c.l.b16 %v5379
  %v5547 = vunpack.c.l.b16 %v5380
  %v5548 = vunpack.c.l.b16 %v5381
  %v5549 = vunpack.c.l.b16 %v5382
  %v5550 = vunpack.c.l.b16 %v5383
  %v5551 = vunpack.c.l.b16 %v5384
  %v5552 = vunpack.c.l.b16 %v5385
  %v5553 = vunpack.c.l.b16 %v5386
  %v5554 = vunpack.c.l.b16 %v5387
  %v5555 = vunpack.c.l.b16 %v5388
  %v5556 = vunpack.c.l.b16 %v5389
  %v5557 = vunpack.c.l.b16 %v5390
  %v5558 = vunpack.c.l.b16 %v5391
  %v5559 = vunpack.c.l.b16 %v5392
  %v5560 = vunpack.c.l.b16 %v5393
  %v5561 = vunpack.c.l.b16 %v5394
  %v5562 = vunpack.c.l.b16 %v5395
  %v5563 = vunpack.c.l.b16 %v5396
  %v5564 = vunpack.c.l.b16 %v5397
  %v5565 = vpack.c.b16 %v5486, %v5485
  %v5566 = vpack.c.b16 %v5488, %v5487
  %v5567 = vpack.c.b16 %v5490, %v5489
  %v5568 = vpack.c.b16 %v5492, %v5491
  %v5569 = vpack.c.b16 %v5494, %v5493
  %v5570 = vpack.c.b16 %v5496, %v5495
  %v5571 = vpack.c.b16 %v5498, %v5497
  %v5572 = vpack.c.b16 %v5500, %v5499
  %v5573 = vpack.c.b16 %v5502, %v5501
  %v5574 = vpack.c.b16 %v5504, %v5503
  %v5575 = vpack.c.b16 %v5506, %v5505
  %v5576 = vpack.c.b16 %v5508, %v5507
  %v5577 = vpack.c.b16 %v5510, %v5509
  %v5578 = vpack.c.b16 %v5512, %v5511
  %v5579 = vpack.c.b16 %v5514, %v5513
  %v5580 = vpack.c.b16 %v5516, %v5515
  %v5581 = vpack.c.b16 %v5518, %v5517
  %v5582 = vpack.c.b16 %v5520, %v5519
  %v5583 = vpack.c.b16 %v5522, %v5521
  %v5584 = vpack.c.b16 %v5524, %v5523
  %v5585 = vpack.c.b16 %v5526, %v5525
  %v5586 = vpack.c.b16 %v5528, %v5527
  %v5587 = vpack.c.b16 %v5530, %v5529
  %v5588 = vpack.c.b16 %v5532, %v5531
  %v5589 = vpack.c.b16 %v5534, %v5533
  %v5590 = vpack.c.b16 %v5536, %v5535
  %v5591 = vpack.c.b16 %v5538, %v5537
  %v5592 = vpack.c.b16 %v5540, %v5539
  %v5593 = vpack.c.b16 %v5542, %v5541
  %v5594 = vpack.c.b16 %v5544, %v5543
  %v5595 = vpack.c.b16 %v5546, %v5545
  %v5596 = vpack.c.b16 %v5548, %v5547
  %v5597 = vpack.c.b16 %v5550, %v5549
  %v5598 = vpack.c.b16 %v5552, %v5551
  %v5599 = vpack.c.b16 %v5554, %v5553
  %v5600 = vpack.c.b16 %v5556, %v5555
  %v5601 = vpack.c.b16 %v5558, %v5557
  %v5602 = vpack.c.b16 %v5560, %v5559
  %v5603 = vpack.c.b16 %v5562, %v5561
  %v5604 = vpack.c.b16 %v5564, %v5563
  %5645 = vmatprep.subr.bf16.mxu0 0
  %5646 = vmatpush1.bf16.msra.mxu0 %v5572
  %5647 = vmatprep.subr.bf16.mxu0 0
  %5648 = vmatpush1.bf16.msra.mxu0 %v5571
  %5649 = vmatprep.subr.bf16.mxu0 0
  %5650 = vmatpush1.bf16.msra.mxu0 %v5570
  %5651 = vmatprep.subr.bf16.mxu0 0
  %5652 = vmatpush1.bf16.msra.mxu0 %v5569
  %5653 = vmatprep.subr.bf16.mxu0 0
  %5654 = vmatpush1.bf16.msra.mxu0 %v5568
  %5655 = vmatprep.subr.bf16.mxu0 0
  %5656 = vmatpush1.bf16.msra.mxu0 %v5567
  %5657 = vmatprep.subr.bf16.mxu0 0
  %5658 = vmatpush1.bf16.msra.mxu0 %v5566
  %5659 = vmatprep.subr.bf16.mxu0 0
  %5660 = vmatpush1.bf16.msra.mxu0 %v5565
  %5661 = vmatprep.subr.bf16.mxu0 0
  %5662 = vmatpush2.bf16.msra.mxu0 %v5580
  %5663 = vmatprep.subr.bf16.mxu0 0
  %5664 = vmatpush2.bf16.msra.mxu0 %v5579
  %5665 = vmatprep.subr.bf16.mxu0 0
  %5666 = vmatpush2.bf16.msra.mxu0 %v5578
  %5667 = vmatprep.subr.bf16.mxu0 0
  %5668 = vmatpush2.bf16.msra.mxu0 %v5577
  %5669 = vmatprep.subr.bf16.mxu0 0
  %5670 = vmatpush2.bf16.msra.mxu0 %v5576
  %5671 = vmatprep.subr.bf16.mxu0 0
  %5672 = vmatpush2.bf16.msra.mxu0 %v5575
  %5673 = vmatprep.subr.bf16.mxu0 0
  %5674 = vmatpush2.bf16.msra.mxu0 %v5574
  %5675 = vmatprep.subr.bf16.mxu0 0
  %5676 = vmatpush2.bf16.msra.mxu0 %v5573
  %5677 = vmatprep.mubr.bf16.mxu0 %v5314
  %5678 = vmatmul.mubr.bf16.gmra.mxu0 %v5313
  %v5679 = vpop.f32.mrf.mxu0
  %v5680 = vadd.f32 %v5403, %v5679
  %v5681 = vpop.f32.mrf.mxu0
  %v5682 = vpop.f32.mrf.mxu0
  %v5683 = vpop.f32.mrf.mxu0
  %5684 = vdwg.mxu0
  %5685 = vmatprep.subr.bf16.mxu0 0
  %5686 = vmatpush1.bf16.msra.mxu0 %v5588
  %5687 = vmatprep.subr.bf16.mxu0 0
  %5688 = vmatpush1.bf16.msra.mxu0 %v5587
  %5689 = vmatprep.subr.bf16.mxu0 0
  %5690 = vmatpush1.bf16.msra.mxu0 %v5586
  %5691 = vmatprep.subr.bf16.mxu0 0
  %5692 = vmatpush1.bf16.msra.mxu0 %v5585
  %5693 = vmatprep.subr.bf16.mxu0 0
  %5694 = vmatpush1.bf16.msra.mxu0 %v5584
  %5695 = vmatprep.subr.bf16.mxu0 0
  %5696 = vmatpush1.bf16.msra.mxu0 %v5583
  %5697 = vmatprep.subr.bf16.mxu0 0
  %5698 = vmatpush1.bf16.msra.mxu0 %v5582
  %5699 = vmatprep.subr.bf16.mxu0 0
  %5700 = vmatpush1.bf16.msra.mxu0 %v5581
  %5701 = vmatprep.subr.bf16.mxu0 0
  %5702 = vmatpush2.bf16.msra.mxu0 %v5596
  %5703 = vmatprep.subr.bf16.mxu0 0
  %5704 = vmatpush2.bf16.msra.mxu0 %v5595
  %5705 = vmatprep.subr.bf16.mxu0 0
  %5706 = vmatpush2.bf16.msra.mxu0 %v5594
  %5707 = vmatprep.subr.bf16.mxu0 0
  %5708 = vmatpush2.bf16.msra.mxu0 %v5593
  %5709 = vmatprep.subr.bf16.mxu0 0
  %5710 = vmatpush2.bf16.msra.mxu0 %v5592
  %5711 = vmatprep.subr.bf16.mxu0 0
  %5712 = vmatpush2.bf16.msra.mxu0 %v5591
  %5713 = vmatprep.subr.bf16.mxu0 0
  %5714 = vmatpush2.bf16.msra.mxu0 %v5590
  %5715 = vmatprep.subr.bf16.mxu0 0
  %5716 = vmatpush2.bf16.msra.mxu0 %v5589
  %5717 = vmatprep.mubr.bf16.mxu0 %v5316
  %5718 = vmatmul.mubr.bf16.gmra.mxu0 %v5315
  %v5719 = vpop.f32.mrf.mxu0
  %v5720 = vadd.f32 %v5680, %v5719
  %v5721 = vpop.f32.mrf.mxu0
  %v5722 = vpop.f32.mrf.mxu0
  %v5723 = vpop.f32.mrf.mxu0
  %5724 = vdwg.mxu0
  %5725 = vmatprep.subr.bf16.mxu0 0
  %5726 = vmatpush1.bf16.msra.mxu0 %v5604
  %5727 = vmatprep.subr.bf16.mxu0 0
  %5728 = vmatpush1.bf16.msra.mxu0 %v5603
  %5729 = vmatprep.subr.bf16.mxu0 0
  %5730 = vmatpush1.bf16.msra.mxu0 %v5602
  %5731 = vmatprep.subr.bf16.mxu0 0
  %5732 = vmatpush1.bf16.msra.mxu0 %v5601
  %5733 = vmatprep.subr.bf16.mxu0 0
  %5734 = vmatpush1.bf16.msra.mxu0 %v5600
  %5735 = vmatprep.subr.bf16.mxu0 0
  %5736 = vmatpush1.bf16.msra.mxu0 %v5599
  %5737 = vmatprep.subr.bf16.mxu0 0
  %5738 = vmatpush1.bf16.msra.mxu0 %v5598
  %5739 = vmatprep.subr.bf16.mxu0 0
  %5740 = vmatpush1.bf16.msra.mxu0 %v5597
  %5741 = vmatprep.subr.bf16.mxu0 0
  %5742 = vmatpush2.bf16.msra.mxu0 0
  %5743 = vmatprep.subr.bf16.mxu0 0
  %5744 = vmatpush2.bf16.msra.mxu0 0
  %5745 = vmatprep.subr.bf16.mxu0 0
  %5746 = vmatpush2.bf16.msra.mxu0 0
  %5747 = vmatprep.subr.bf16.mxu0 0
  %5748 = vmatpush2.bf16.msra.mxu0 0
  %5749 = vmatprep.subr.bf16.mxu0 0
  %5750 = vmatpush2.bf16.msra.mxu0 0
  %5751 = vmatprep.subr.bf16.mxu0 0
  %5752 = vmatpush2.bf16.msra.mxu0 0
  %5753 = vmatprep.subr.bf16.mxu0 0
  %5754 = vmatpush2.bf16.msra.mxu0 0
  %5755 = vmatprep.subr.bf16.mxu0 0
  %5756 = vmatpush2.bf16.msra.mxu0 0
  %5757 = vmatprep.mubr.bf16.mxu0 0
  %5758 = vmatmul.mubr.bf16.gmra.mxu0 %v5317
  %v5759 = vpop.f32.mrf.mxu0
  %v5760 = vadd.f32 %v5720, %v5759
  %v5761 = vpop.f32.mrf.mxu0
  %v5762 = vpop.f32.mrf.mxu0
  %v5763 = vpop.f32.mrf.mxu0
  %5764 = vdwg.mxu0
  %v5765 = vmax.f32 %v5760, 0.0
  %v5766 = vpack.c.bf16 %v5765, %v5765
  %v5767 = vld [vmem:[%s9] sm:$0xf]
  %v5768 = vld [vmem:[%s9 + $0x4] sm:$0xf]
  %v5769 = vld [vmem:[%s9 + $0x8] sm:$0xf]
  %v5770 = vld [vmem:[%s9 + $0xc] sm:$0xf]
  %v5771 = vld [vmem:[%s9 + $0x10] sm:$0xf]
  %v5772 = vld [vmem:[%s9 + $0x14] sm:$0xf]
  %v5773 = vld [vmem:[%s9 + $0x18] sm:$0xf]
  %v5774 = vld [vmem:[%s9 + $0x1c] sm:$0xf]
  %v5775 = vld [vmem:[%s9 + $0x20] sm:$0xf]
  %v5776 = vld [vmem:[%s9 + $0x24] sm:$0xf]
  %v5777 = vld [vmem:[%s9 + $0x28] sm:$0xf]
  %v5778 = vld [vmem:[%s9 + $0x2c] sm:$0xf]
  %v5779 = vld [vmem:[%s9 + $0x30] sm:$0xf]
  %v5780 = vld [vmem:[%s9 + $0x34] sm:$0xf]
  %v5781 = vld [vmem:[%s9 + $0x38] sm:$0xf]
  %v5782 = vld [vmem:[%s9 + $0x3c] sm:$0xf]
  %v5783 = vld [vmem:[%s10] sm:$0x1]
  %v5785 = vlaneseq
  %v5786 = vshrl.u32 %v5785, 7
  %v5787 = vsub.s32 0, %v5786
  %v5788 = vrot.slane %v5783, %v5787
  %v5806 = vunpack.c.l.b16 %v5767
  %v5807 = vunpack.c.l.b16 %v5768
  %v5808 = vunpack.c.l.b16 %v5769
  %v5809 = vunpack.c.l.b16 %v5770
  %v5810 = vunpack.c.l.b16 %v5771
  %v5811 = vunpack.c.l.b16 %v5772
  %v5812 = vunpack.c.l.b16 %v5773
  %v5813 = vunpack.c.l.b16 %v5774
  %v5814 = vunpack.c.l.b16 %v5775
  %v5815 = vunpack.c.l.b16 %v5776
  %v5816 = vunpack.c.l.b16 %v5777
  %v5817 = vunpack.c.l.b16 %v5778
  %v5818 = vunpack.c.l.b16 %v5779
  %v5819 = vunpack.c.l.b16 %v5780
  %v5820 = vunpack.c.l.b16 %v5781
  %v5821 = vunpack.c.l.b16 %v5782
  %v5822 = vpack.c.b16 %v5807, %v5806
  %v5823 = vpack.c.b16 %v5809, %v5808
  %v5824 = vpack.c.b16 %v5811, %v5810
  %v5825 = vpack.c.b16 %v5813, %v5812
  %v5826 = vpack.c.b16 %v5815, %v5814
  %v5827 = vpack.c.b16 %v5817, %v5816
  %v5828 = vpack.c.b16 %v5819, %v5818
  %v5829 = vpack.c.b16 %v5821, %v5820
  %5838 = vmatprep.subr.bf16.mxu0 0
  %5839 = vmatpush1.bf16.msra.mxu0 %v5829
  %5840 = vmatprep.subr.bf16.mxu0 0
  %5841 = vmatpush1.bf16.msra.mxu0 %v5828
  %5842 = vmatprep.subr.bf16.mxu0 0
  %5843 = vmatpush1.bf16.msra.mxu0 %v5827
  %5844 = vmatprep.subr.bf16.mxu0 0
  %5845 = vmatpush1.bf16.msra.mxu0 %v5826
  %5846 = vmatprep.subr.bf16.mxu0 0
  %5847 = vmatpush1.bf16.msra.mxu0 %v5825
  %5848 = vmatprep.subr.bf16.mxu0 0
  %5849 = vmatpush1.bf16.msra.mxu0 %v5824
  %5850 = vmatprep.subr.bf16.mxu0 0
  %5851 = vmatpush1.bf16.msra.mxu0 %v5823
  %5852 = vmatprep.subr.bf16.mxu0 0
  %5853 = vmatpush1.bf16.msra.mxu0 %v5822
  %5854 = vmatprep.subr.bf16.mxu0 0
  %5855 = vmatpush2.bf16.msra.mxu0 0
  %5856 = vmatprep.subr.bf16.mxu0 0
  %5857 = vmatpush2.bf16.msra.mxu0 0
  %5858 = vmatprep.subr.bf16.mxu0 0
  %5859 = vmatpush2.bf16.msra.mxu0 0
  %5860 = vmatprep.subr.bf16.mxu0 0
  %5861 = vmatpush2.bf16.msra.mxu0 0
  %5862 = vmatprep.subr.bf16.mxu0 0
  %5863 = vmatpush2.bf16.msra.mxu0 0
  %5864 = vmatprep.subr.bf16.mxu0 0
  %5865 = vmatpush2.bf16.msra.mxu0 0
  %5866 = vmatprep.subr.bf16.mxu0 0
  %5867 = vmatpush2.bf16.msra.mxu0 0
  %5868 = vmatprep.subr.bf16.mxu0 0
  %5869 = vmatpush2.bf16.msra.mxu0 0
  %5870 = vmatprep.mubr.bf16.mxu0 0
  %5871 = vmatmul.mubr.bf16.gmra.mxu0 %v5766
  %v5872 = vpop.f32.mrf.mxu0
  %v5873 = vadd.f32 %v5788, %v5872
  %v5874 = vpop.f32.mrf.mxu0
  %v5875 = vpop.f32.mrf.mxu0
  %v5876 = vpop.f32.mrf.mxu0
  %5877 = vdwg.mxu0
  %v5878 = vmax.f32 %v5873, 0.0
  %v5879 = vpack.c.bf16 %v5878, %v5878
  %v5880 = vld [vmem:[%s11] sm:$0xf]
  %v5881 = vld [vmem:[%s11 + $0x4] sm:$0xf]
  %v5882 = vld [vmem:[%s11 + $0x8] sm:$0xf]
  %v5883 = vld [vmem:[%s11 + $0xc] sm:$0xf]
  %v5884 = vld [vmem:[%s11 + $0x10] sm:$0xf]
  %v5885 = vld [vmem:[%s11 + $0x14] sm:$0xf]
  %v5886 = vld [vmem:[%s11 + $0x18] sm:$0xf]
  %v5887 = vld [vmem:[%s11 + $0x1c] sm:$0xf]
  %v5888 = vld [vmem:[%s11 + $0x20] sm:$0xf]
  %v5889 = vld [vmem:[%s11 + $0x24] sm:$0xf]
  %v5890 = vld [vmem:[%s11 + $0x28] sm:$0xf]
  %v5891 = vld [vmem:[%s11 + $0x2c] sm:$0xf]
  %v5892 = vld [vmem:[%s11 + $0x30] sm:$0xf]
  %v5893 = vld [vmem:[%s11 + $0x34] sm:$0xf]
  %v5894 = vld [vmem:[%s11 + $0x38] sm:$0xf]
  %v5895 = vld [vmem:[%s11 + $0x3c] sm:$0xf]
  %v5896 = vld [vmem:[%s12] sm:$0x1]
  %v5898 = vlaneseq
  %v5899 = vshrl.u32 %v5898, 7
  %v5900 = vsub.s32 0, %v5899
  %v5901 = vrot.slane %v5896, %v5900
  %v5919 = vunpack.c.l.b16 %v5880
  %v5920 = vunpack.c.l.b16 %v5881
  %v5921 = vunpack.c.l.b16 %v5882
  %v5922 = vunpack.c.l.b16 %v5883
  %v5923 = vunpack.c.l.b16 %v5884
  %v5924 = vunpack.c.l.b16 %v5885
  %v5925 = vunpack.c.l.b16 %v5886
  %v5926 = vunpack.c.l.b16 %v5887
  %v5927 = vunpack.c.l.b16 %v5888
  %v5928 = vunpack.c.l.b16 %v5889
  %v5929 = vunpack.c.l.b16 %v5890
  %v5930 = vunpack.c.l.b16 %v5891
  %v5931 = vunpack.c.l.b16 %v5892
  %v5932 = vunpack.c.l.b16 %v5893
  %v5933 = vunpack.c.l.b16 %v5894
  %v5934 = vunpack.c.l.b16 %v5895
  %v5935 = vpack.c.b16 %v5920, %v5919
  %v5936 = vpack.c.b16 %v5922, %v5921
  %v5937 = vpack.c.b16 %v5924, %v5923
  %v5938 = vpack.c.b16 %v5926, %v5925
  %v5939 = vpack.c.b16 %v5928, %v5927
  %v5940 = vpack.c.b16 %v5930, %v5929
  %v5941 = vpack.c.b16 %v5932, %v5931
  %v5942 = vpack.c.b16 %v5934, %v5933
  %5951 = vmatprep.subr.bf16.mxu0 0
  %5952 = vmatpush1.bf16.msra.mxu0 %v5942
  %5953 = vmatprep.subr.bf16.mxu0 0
  %5954 = vmatpush1.bf16.msra.mxu0 %v5941
  %5955 = vmatprep.subr.bf16.mxu0 0
  %5956 = vmatpush1.bf16.msra.mxu0 %v5940
  %5957 = vmatprep.subr.bf16.mxu0 0
  %5958 = vmatpush1.bf16.msra.mxu0 %v5939
  %5959 = vmatprep.subr.bf16.mxu0 0
  %5960 = vmatpush1.bf16.msra.mxu0 %v5938
  %5961 = vmatprep.subr.bf16.mxu0 0
  %5962 = vmatpush1.bf16.msra.mxu0 %v5937
  %5963 = vmatprep.subr.bf16.mxu0 0
  %5964 = vmatpush1.bf16.msra.mxu0 %v5936
  %5965 = vmatprep.subr.bf16.mxu0 0
  %5966 = vmatpush1.bf16.msra.mxu0 %v5935
  %5967 = vmatprep.subr.bf16.mxu0 0
  %5968 = vmatpush2.bf16.msra.mxu0 0
  %5969 = vmatprep.subr.bf16.mxu0 0
  %5970 = vmatpush2.bf16.msra.mxu0 0
  %5971 = vmatprep.subr.bf16.mxu0 0
  %5972 = vmatpush2.bf16.msra.mxu0 0
  %5973 = vmatprep.subr.bf16.mxu0 0
  %5974 = vmatpush2.bf16.msra.mxu0 0
  %5975 = vmatprep.subr.bf16.mxu0 0
  %5976 = vmatpush2.bf16.msra.mxu0 0
  %5977 = vmatprep.subr.bf16.mxu0 0
  %5978 = vmatpush2.bf16.msra.mxu0 0
  %5979 = vmatprep.subr.bf16.mxu0 0
  %5980 = vmatpush2.bf16.msra.mxu0 0
  %5981 = vmatprep.subr.bf16.mxu0 0
  %5982 = vmatpush2.bf16.msra.mxu0 0
  %5983 = vmatprep.mubr.bf16.mxu0 0
  %5984 = vmatmul.mubr.bf16.gmra.mxu0 %v5879
  %v5985 = vpop.f32.mrf.mxu0
  %v5986 = vadd.f32 %v5901, %v5985
  %v5987 = vpop.f32.mrf.mxu0
  %v5988 = vpop.f32.mrf.mxu0
  %v5989 = vpop.f32.mrf.mxu0
  %5990 = vdwg.mxu0
  %5991 = vst [vmem:[%s13] sm:$0xff] %v5986
  // Predicated region
  $region54: #{lenet5_forward.1} parent=0 // pred_check
    _
  $region55: #{lenet5_forward.1} parent=0 // pred_check_branch
    %5993 = sbr.rel (0) target = $region57
  $region56: #{lenet5_forward.1} parent=0 // pred_region
    _
  $region57: #{lenet5_forward.1} parent=0 // pred_fallthru
    _
  // Predicated region
  $region58: #{lenet5_forward.1} parent=0 // pred_check
    _
  $region59: #{lenet5_forward.1} parent=0 // pred_check_branch
    %5995 = sbr.rel (0) target = $region61
  $region60: #{lenet5_forward.1} parent=0 // pred_region
    _
  $region61: #{lenet5_forward.1} parent=0 // pred_fallthru
    _

</llo_original>
